<compile_context>
chip_gen: v5e
topology: v5e:2x2
jax: 0.10.0
libtpu: 0.0.40
codegen_flags: <defaults>
</compile_context>

<pallas_src>
import functools

import jax
import jax.numpy as jnp
from jax import lax
from jax.experimental import pallas as pl
from jax.experimental.pallas import tpu as pltpu


def _newsnet_lstm_kernel(
    emb_f_ref,   # (1, TC*Bp, Dp) bf16  fwd-direction chunk i (time-major, flat batch)
    emb_b_ref,   # (1, TC*Bp, Dp) bf16  bwd-direction chunk nc-1-i
    wih_f_ref,   # (Dp, 4Hp) bf16  forward  W_ih^T (gate blocks lane-padded)
    whh_f_ref,   # (Hp, 4Hp) bf16  forward  W_hh^T
    b_f_ref,     # (1, 4Hp)  f32   forward  b_ih + b_hh
    wih_b_ref,   # (Dp, 4Hp) bf16  backward W_ih^T
    whh_b_ref,   # (Hp, 4Hp) bf16  backward W_hh^T
    b_b_ref,     # (1, 4Hp)  f32   backward b_ih + b_hh
    wlin_f_ref,  # (Hp, Cp)  f32   linear weight, forward-hidden half
    wlin_b_ref,  # (Hp, Cp)  f32   linear weight, backward-hidden half
    blin_ref,    # (1, Cp)   f32   linear bias
    out_ref,     # (Bp, Cp)  f32   logits (written back after the last chunk)
    xgf_s,       # VMEM (TC, Bp, 4Hp) bf16  fwd gate pre-activations for this chunk
    xgb_s,       # VMEM (TC, Bp, 4Hp) bf16  bwd gate pre-activations for this chunk
    hf_s, cf_s, hb_s, cb_s,  # VMEM (Bp, Hp) f32  recurrent state, carried across chunks
    *, seq_len, pad_len,
):
    TC, Bp, fourHp = xgf_s.shape
    Hp = fourHp // 4
    i = pl.program_id(0)
    nc = pl.num_programs(0)
    needs_mask = seq_len != pad_len            # static: padded time steps exist?

    @pl.when(i == 0)
    def _init():
        hf_s[...] = jnp.zeros_like(hf_s)
        cf_s[...] = jnp.zeros_like(cf_s)
        hb_s[...] = jnp.zeros_like(hb_s)
        cb_s[...] = jnp.zeros_like(cb_s)

    # Hoisted per-chunk input projections: one wide bf16 MXU matmul per
    # direction (once per chunk, not per step).  f32 accumulation + bias, then
    # cast to bf16 for the scratch store (halves the largest scratch buffer and
    # the per-step load bytes).  Bp is a multiple of 16, so the reshape / bf16
    # store is (16,128)-tile aligned (no relayout).
    xgf_s[...] = (
        jnp.dot(emb_f_ref[0], wih_f_ref[...], preferred_element_type=jnp.float32)
        + b_f_ref[...]
    ).astype(jnp.bfloat16).reshape(TC, Bp, fourHp)
    xgb_s[...] = (
        jnp.dot(emb_b_ref[0], wih_b_ref[...], preferred_element_type=jnp.float32)
        + b_b_ref[...]
    ).astype(jnp.bfloat16).reshape(TC, Bp, fourHp)

    def sigmoid(x):
        # One EUP op (tanh) instead of exp + reciprocal: EUP has a single VLIW
        # slot and these sit on the serial recurrence critical path.
        return 0.5 * jnp.tanh(0.5 * x) + 0.5

    def lstm_cell(gates, c):
        # Hp is a multiple of 128 -> every gate slice is whole 128-lane vregs.
        i_g = sigmoid(gates[:, 0 * Hp:1 * Hp])
        f_g = sigmoid(gates[:, 1 * Hp:2 * Hp])
        g_g = jnp.tanh(gates[:, 2 * Hp:3 * Hp])
        o_g = sigmoid(gates[:, 3 * Hp:4 * Hp])
        c_new = f_g * c + i_g * g_g
        h_new = o_g * jnp.tanh(c_new)
        return h_new, c_new

    chunk_base = i * TC   # global (padded) step index of local step 0

    def step(s, carry):
        h_f, c_f, h_b, c_b = carry
        # Interleave the two directions: two back-to-back MXU pushes per
        # iteration so the recurrent matmuls pipeline.  W_hh is read from its
        # ref INSIDE the loop (not hoisted into live SSA values: at Hp=128 the
        # two bf16 (128,512) weights are ~64 vregs -> register-file-sized).
        g_f = (xgf_s[s].astype(jnp.float32)
               + jnp.dot(h_f.astype(jnp.bfloat16), whh_f_ref[...],
                         preferred_element_type=jnp.float32))
        g_b = (xgb_s[TC - 1 - s].astype(jnp.float32)
               + jnp.dot(h_b.astype(jnp.bfloat16), whh_b_ref[...],
                         preferred_element_type=jnp.float32))
        h_f_n, c_f_n = lstm_cell(g_f, c_f)
        h_b_n, c_b_n = lstm_cell(g_b, c_b)
        if needs_mask:
            # Padded steps keep the state unchanged.  Forward padding sits at
            # the END of the padded sequence (k >= seq_len); backward padding
            # is consumed FIRST (k < pad_len - seq_len) because the bwd stream
            # walks the padded sequence in reverse.
            k = chunk_base + s
            mf = (k < seq_len).astype(jnp.float32)
            mb = (k >= pad_len - seq_len).astype(jnp.float32)
            h_f_n = mf * h_f_n + (1.0 - mf) * h_f
            c_f_n = mf * c_f_n + (1.0 - mf) * c_f
            h_b_n = mb * h_b_n + (1.0 - mb) * h_b
            c_b_n = mb * c_b_n + (1.0 - mb) * c_b
        return h_f_n, c_f_n, h_b_n, c_b_n

    carry = (hf_s[...], cf_s[...], hb_s[...], cb_s[...])
    h_f, c_f, h_b, c_b = lax.fori_loop(0, TC, step, carry, unroll=4)
    hf_s[...] = h_f
    cf_s[...] = c_f
    hb_s[...] = h_b
    cb_s[...] = c_b

    # Final-hidden concat + linear head, only after the last chunk.  Two
    # matmuls (fwd/bwd halves of the weight) avoid a lane concat.
    @pl.when(i == nc - 1)
    def _final():
        out_ref[...] = (
            jnp.dot(h_f, wlin_f_ref[...], preferred_element_type=jnp.float32)
            + jnp.dot(h_b, wlin_b_ref[...], preferred_element_type=jnp.float32)
            + blin_ref[...]
        )


def _round_up(x, m):
    return (x + m - 1) // m * m


def _physical_vmem_bytes():
    """Per-core VMEM capacity; conservative (v7x-sized) fallback if unknown."""
    try:
        info = pltpu.get_tpu_info()
        for attr in ("vmem_capacity_bytes", "vmem_bytes", "vmem_size_bytes"):
            v = getattr(info, attr, None)
            if v:
                return int(v)
    except Exception:
        pass
    return 64 << 20


def _vmem_estimate(chunk_t, Bp, Dp, Hp, Cp, single_buffer_weights):
    """VMEM bytes including pipeline-buffering factors for every operand."""
    TCB = chunk_t * Bp
    wbuf = 1 if single_buffer_weights else 2
    emb = 2 * 2 * TCB * Dp * 2                       # 2 dirs x double-buffered x bf16
    lstm_w = wbuf * 2 * (Dp + Hp) * 4 * Hp * 2       # bf16 W_ih^T + W_hh^T, both dirs
    lstm_b = wbuf * 2 * 4 * Hp * 4                   # f32 fused biases
    lin = wbuf * (2 * Hp * Cp + Cp) * 4              # f32 linear head
    xg = 2 * TCB * 4 * Hp * 2                        # bf16 gate pre-activation scratch
    state = 4 * Bp * Hp * 4                          # f32 h/c, both dirs
    out = 2 * Bp * Cp * 4                            # f32 logits (double-buffered)
    return emb + lstm_w + lstm_b + lin + xg + state + out


def _pick_chunk_t(T, Bp, Dp, Hp, Cp, vmem_cap):
    """Largest power-of-two time chunk that fits the generation-aware budget."""
    budget = int(vmem_cap * 0.85)                # leave compiler-scratch headroom
    hi = min(256, max(8, _round_up(T, 8)))
    for cand in (256, 128, 64, 32, 16, 8):
        if cand <= hi and _vmem_estimate(cand, Bp, Dp, Hp, Cp, True) <= budget:
            return cand
    return 8


def newsnet_lstm_forward(x_idx, params, *, chunk_t=None):
    """x_idx: (B, T) int token ids. Returns (B, num_classes) float32 logits."""
    emb_w = params["emb_w"]
    B, T = x_idx.shape
    D = emb_w.shape[1]
    H = params["whh_f"].shape[1]          # (4H, H) -> H
    C = params["w_lin"].shape[0]

    # Padded sizes.  B is padded to 16 (bf16 sublane tile) so the bf16 gate
    # scratch slabs / projection reshape are exactly (16,128)-tile aligned;
    # H/D/C are lane multiples -> aligned gate slices, matmuls and a
    # lane-dense output store.
    Bp = _round_up(B, 16)
    Dp = _round_up(D, 128)
    Hp = _round_up(H, 128)
    Cp = _round_up(C, 128)

    # Generation-aware VMEM budget (v7x: 64 MiB -> ~48 MiB cap; v5e/v6e:
    # 128 MiB -> ~96 MiB cap), used for both chunk_t selection and vmem_limit.
    vmem_cap = (_physical_vmem_bytes() * 3) // 4

    if chunk_t is None:
        chunk_t = _pick_chunk_t(T, Bp, Dp, Hp, Cp, vmem_cap)
    # T does not need to divide chunk_t: the time axis is padded up to a chunk
    # multiple and padded steps are masked inside the kernel.
    nc = -(-T // chunk_t)
    Tp = nc * chunk_t
    TCB = chunk_t * Bp

    # ---- wrapper glue: embedding gather (time-major directly, no transpose of
    # the embedded tensor), pad, flatten, bf16 ----
    ids = jnp.zeros((Bp, Tp), jnp.int32).at[:B, :T].set(x_idx.astype(jnp.int32))
    emb = jnp.take(emb_w, ids.T, axis=0)                      # (Tp, Bp, D)
    emb = jnp.pad(emb, ((0, 0), (0, 0), (0, Dp - D)))
    emb = emb.astype(jnp.bfloat16).reshape(nc, TCB, Dp)
    # TODO(synk): move this gather into the kernel (scalar-prefetched token ids
    # + Element-indexed BlockSpec / manual DMA) so (Tp,Bp,Dp) never hits HBM.

    def pack_ih(w):       # (4H, D) -> (Dp, 4Hp), transposed, per-gate lane padding
        out = jnp.zeros((Dp, 4 * Hp), jnp.float32)
        for g in range(4):
            out = out.at[:D, g * Hp:g * Hp + H].set(w[g * H:(g + 1) * H, :].T)
        return out.astype(jnp.bfloat16)

    def pack_hh(w):       # (4H, H) -> (Hp, 4Hp)
        out = jnp.zeros((Hp, 4 * Hp), jnp.float32)
        for g in range(4):
            out = out.at[:H, g * Hp:g * Hp + H].set(w[g * H:(g + 1) * H, :].T)
        return out.astype(jnp.bfloat16)

    def pack_bias(bih, bhh):    # (4H,) -> (1, 4Hp), fused b_ih + b_hh, f32
        b = bih + bhh
        out = jnp.zeros((1, 4 * Hp), jnp.float32)
        for g in range(4):
            out = out.at[0, g * Hp:g * Hp + H].set(b[g * H:(g + 1) * H])
        return out

    wih_f = pack_ih(params["wih_f"])
    whh_f = pack_hh(params["whh_f"])
    b_f = pack_bias(params["bih_f"], params["bhh_f"])
    wih_b = pack_ih(params["wih_b"])
    whh_b = pack_hh(params["whh_b"])
    b_b = pack_bias(params["bih_b"], params["bhh_b"])

    # Linear head split into fwd/bwd halves (no in-kernel concat); kept f32.
    w_lin = params["w_lin"]                                   # (C, 2H)
    wlin_f = jnp.zeros((Hp, Cp), jnp.float32).at[:H, :C].set(w_lin[:, :H].T)
    wlin_b = jnp.zeros((Hp, Cp), jnp.float32).at[:H, :C].set(w_lin[:, H:].T)
    b_lin = jnp.zeros((1, Cp), jnp.float32).at[0, :C].set(params["b_lin"])

    kernel = functools.partial(_newsnet_lstm_kernel, seq_len=T, pad_len=Tp)

    def build_and_call(single_buffer_weights):
        def inv_spec(a):
            # Grid-invariant operands: their block index never changes, so a
            # single pipeline buffer suffices (halves weight VMEM).
            kwargs = {}
            if single_buffer_weights:
                kwargs["pipeline_mode"] = pl.Buffered(1)
            nd = a.ndim
            return pl.BlockSpec(a.shape, lambda i, _nd=nd: (0,) * _nd, **kwargs)

        in_specs = [
            pl.BlockSpec((1, TCB, Dp), lambda i: (i, 0, 0)),           # fwd chunk i
            pl.BlockSpec((1, TCB, Dp), lambda i: (nc - 1 - i, 0, 0)),  # bwd chunk
            inv_spec(wih_f), inv_spec(whh_f), inv_spec(b_f),
            inv_spec(wih_b), inv_spec(whh_b), inv_spec(b_b),
            inv_spec(wlin_f), inv_spec(wlin_b), inv_spec(b_lin),
        ]
        out_specs = pl.BlockSpec((Bp, Cp), lambda i: (0, 0))
        scratch_shapes = [
            pltpu.VMEM((chunk_t, Bp, 4 * Hp), jnp.bfloat16),  # fwd gate preacts
            pltpu.VMEM((chunk_t, Bp, 4 * Hp), jnp.bfloat16),  # bwd gate preacts
            pltpu.VMEM((Bp, Hp), jnp.float32),                # h_fwd
            pltpu.VMEM((Bp, Hp), jnp.float32),                # c_fwd
            pltpu.VMEM((Bp, Hp), jnp.float32),                # h_bwd
            pltpu.VMEM((Bp, Hp), jnp.float32),                # c_bwd
        ]
        est = _vmem_estimate(chunk_t, Bp, Dp, Hp, Cp, single_buffer_weights)
        vmem_limit = int(min(vmem_cap, max(16 << 20, int(est * 1.25) + (4 << 20))))

        return pl.pallas_call(
            kernel,
            out_shape=jax.ShapeDtypeStruct((Bp, Cp), jnp.float32),
            grid_spec=pltpu.PrefetchScalarGridSpec(
                num_scalar_prefetch=0,
                grid=(nc,),
                in_specs=in_specs,
                out_specs=out_specs,
                scratch_shapes=scratch_shapes,
            ),
            compiler_params=pltpu.CompilerParams(
                # Recurrent state is carried across chunks -> sequential grid.
                # TODO(synk): v7x could split the two directions across its
                # 2 TensorCores (core-parallel direction axis, ~2x).
                dimension_semantics=("arbitrary",),
                vmem_limit_bytes=vmem_limit,
            ),
            # TODO(synk): emb is streamed twice (fwd + bwd chunk views); pass it
            # once as a VMEM-resident Buffered(1) block when it fits to halve
            # the dominant HBM input traffic on v5e/v6e.
        )(emb, emb, wih_f, whh_f, b_f, wih_b, whh_b, b_b, wlin_f, wlin_b, b_lin)

    try:
        out = build_and_call(True)
    except Exception:
        # pl.Buffered(1) unsupported on this jax version -> fall back to the
        # default double-buffered invariant operands (same kernel).
        out = build_and_call(False)
    return out[:B, :C]


def newsnet_lstm_reference(x_idx, params):
    """Pure-JAX f32 reference mirroring the PyTorch forward semantics."""
    emb = jnp.take(params["emb_w"], x_idx, axis=0)    # (B, T, D)
    H = params["whh_f"].shape[1]

    def run(wih, whh, bih, bhh, reverse):
        seq = emb[:, ::-1, :] if reverse else emb
        seq_tm = jnp.swapaxes(seq, 0, 1)              # (T, B, D)
        b = bih + bhh

        def step(carry, x_t):
            h, c = carry
            gates = x_t @ wih.T + h @ whh.T + b
            i_g = jax.nn.sigmoid(gates[:, 0 * H:1 * H])
            f_g = jax.nn.sigmoid(gates[:, 1 * H:2 * H])
            g_g = jnp.tanh(gates[:, 2 * H:3 * H])
            o_g = jax.nn.sigmoid(gates[:, 3 * H:4 * H])
            c_new = f_g * c + i_g * g_g
            h_new = o_g * jnp.tanh(c_new)
            return (h_new, c_new), None

        B = emb.shape[0]
        (h_fin, _), _ = lax.scan(step, (jnp.zeros((B, H)), jnp.zeros((B, H))), seq_tm)
        return h_fin

    h_fwd = run(params["wih_f"], params["whh_f"], params["bih_f"], params["bhh_f"], False)
    h_bwd = run(params["wih_b"], params["whh_b"], params["bih_b"], params["bhh_b"], True)
    hidden = jnp.concatenate([h_fwd, h_bwd], axis=1)
    return hidden @ params["w_lin"].T + params["b_lin"]


def init_params(key, n_embed, d_embed, hidden_size, num_classes):
    ks = jax.random.split(key, 12)
    H, D, C = hidden_size, d_embed, num_classes
    s = 0.1
    return {
        "emb_w": jax.random.normal(ks[0], (n_embed, D), jnp.float32) * s,
        "wih_f": jax.random.normal(ks[1], (4 * H, D), jnp.float32) * s,
        "whh_f": jax.random.normal(ks[2], (4 * H, H), jnp.float32) * s,
        "bih_f": jax.random.normal(ks[3], (4 * H,), jnp.float32) * s,
        "bhh_f": jax.random.normal(ks[4], (4 * H,), jnp.float32) * s,
        "wih_b": jax.random.normal(ks[5], (4 * H, D), jnp.float32) * s,
        "whh_b": jax.random.normal(ks[6], (4 * H, H), jnp.float32) * s,
        "bih_b": jax.random.normal(ks[7], (4 * H,), jnp.float32) * s,
        "bhh_b": jax.random.normal(ks[8], (4 * H,), jnp.float32) * s,
        "w_lin": jax.random.normal(ks[9], (C, 2 * H), jnp.float32) * s,
        "b_lin": jax.random.normal(ks[10], (C,), jnp.float32) * s,
    }


if __name__ == "__main__":
    # Small shapes consistent with the module's forward: x is (batch, seq) ids.
    # T=9 is deliberately NOT a multiple of chunk_t -> exercises the time
    # padding + masking path as well as multi-chunk streaming with carried state.
    B, T = 2, 9
    n_embed, d_embed = 50, 32
    hidden_size, num_classes = 32, 7

    key = jax.random.PRNGKey(0)
    k_par, k_idx = jax.random.split(key)
    params = init_params(k_par, n_embed, d_embed, hidden_size, num_classes)
    x_idx = jax.random.randint(k_idx, (B, T), 0, n_embed, dtype=jnp.int32)

    ref = jax.block_until_ready(newsnet_lstm_reference(x_idx, params))

    # Explicit chunk_t=4 -> 3 time chunks (Tp=12, 3 masked tail steps).
    out = jax.block_until_ready(newsnet_lstm_forward(x_idx, params, chunk_t=4))
    assert out.shape == (B, num_classes)
    # bf16 matmul inputs + bf16 gate-preactivation scratch (f32 accumulation /
    # gates / cell state) -> slightly looser tolerance than a pure-f32 path;
    # real bugs are orders of magnitude larger.
    assert jnp.allclose(out, ref, atol=1e-2, rtol=1e-2), (out, ref)

    # Auto chunk_t (generation-aware VMEM budget) -> single padded chunk here.
    out_auto = jax.block_until_ready(newsnet_lstm_forward(x_idx, params))
    assert jnp.allclose(out_auto, ref, atol=1e-2, rtol=1e-2), (out_auto, ref)

    print("KERNEL_OK")
</pallas_src>

<mosaic_0001>
module attributes {stable_mosaic.version = 11 : i64} {
  func.func @_newsnet_lstm_kernel(%arg0: i32, %arg1: memref<1x64x128xbf16, #tpu.memory_space<vmem>>, %arg2: memref<1x64x128xbf16, #tpu.memory_space<vmem>>, %arg3: memref<128x512xbf16, #tpu.memory_space<vmem>>, %arg4: memref<128x512xbf16, #tpu.memory_space<vmem>>, %arg5: memref<1x512xf32, #tpu.memory_space<vmem>>, %arg6: memref<128x512xbf16, #tpu.memory_space<vmem>>, %arg7: memref<128x512xbf16, #tpu.memory_space<vmem>>, %arg8: memref<1x512xf32, #tpu.memory_space<vmem>>, %arg9: memref<128x128xf32, #tpu.memory_space<vmem>>, %arg10: memref<128x128xf32, #tpu.memory_space<vmem>>, %arg11: memref<1x128xf32, #tpu.memory_space<vmem>>, %arg12: memref<16x128xf32, #tpu.memory_space<vmem>>, %arg13: memref<4x16x512xbf16, #tpu.memory_space<vmem>>, %arg14: memref<4x16x512xbf16, #tpu.memory_space<vmem>>, %arg15: memref<16x128xf32, #tpu.memory_space<vmem>>, %arg16: memref<16x128xf32, #tpu.memory_space<vmem>>, %arg17: memref<16x128xf32, #tpu.memory_space<vmem>>, %arg18: memref<16x128xf32, #tpu.memory_space<vmem>>) attributes {dimension_semantics = [#tpu.dimension_semantics<arbitrary>], iteration_bounds = array<i64: 3>, scalar_prefetch = 0 : i64, scratch_operands = 6 : i64, tpu.core_type = #tpu.core_type<tc>, window_params = [{transform_indices = @transform_0, window_bounds = array<i64: 1, 64, 128>}, {transform_indices = @transform_1, window_bounds = array<i64: 1, 64, 128>}, {pipeline_mode = #tpu.pipeline_mode<synchronous>, transform_indices = @transform_2, window_bounds = array<i64: 128, 512>}, {pipeline_mode = #tpu.pipeline_mode<synchronous>, transform_indices = @transform_3, window_bounds = array<i64: 128, 512>}, {pipeline_mode = #tpu.pipeline_mode<synchronous>, transform_indices = @transform_4, window_bounds = array<i64: 1, 512>}, {pipeline_mode = #tpu.pipeline_mode<synchronous>, transform_indices = @transform_5, window_bounds = array<i64: 128, 512>}, {pipeline_mode = #tpu.pipeline_mode<synchronous>, transform_indices = @transform_6, window_bounds = array<i64: 128, 512>}, {pipeline_mode = #tpu.pipeline_mode<synchronous>, transform_indices = @transform_7, window_bounds = array<i64: 1, 512>}, {pipeline_mode = #tpu.pipeline_mode<synchronous>, transform_indices = @transform_8, window_bounds = array<i64: 128, 128>}, {pipeline_mode = #tpu.pipeline_mode<synchronous>, transform_indices = @transform_9, window_bounds = array<i64: 128, 128>}, {pipeline_mode = #tpu.pipeline_mode<synchronous>, transform_indices = @transform_10, window_bounds = array<i64: 1, 128>}, {pipeline_mode = #tpu.pipeline_mode<synchronous>, transform_indices = @transform_11, window_bounds = array<i64: 16, 128>}]} {
    %c0_i32 = arith.constant 0 : i32
    %0 = arith.cmpi eq, %arg0, %c0_i32 : i32
    %1 = arith.extui %0 : i1 to i32
    %c0_i32_0 = arith.constant 0 : i32
    %2 = arith.cmpi ne, %1, %c0_i32_0 : i32
    scf.if %2 {
      %cst_180 = arith.constant 0.000000e+00 : f32
      %475 = vector.broadcast %cst_180 : f32 to vector<16x128xf32>
      %c0_181 = arith.constant 0 : index
      %c0_182 = arith.constant 0 : index
      %476 = vector.load %arg15[%c0_181, %c0_182] : memref<16x128xf32, #tpu.memory_space<vmem>>, vector<16x128xf32>
      tpu.vector_store %arg15[%c0_181, %c0_182], %475 {strides = array<i32>} : memref<16x128xf32, #tpu.memory_space<vmem>>, vector<16x128xf32>,
      %cst_183 = arith.constant 0.000000e+00 : f32
      %477 = vector.broadcast %cst_183 : f32 to vector<16x128xf32>
      %c0_184 = arith.constant 0 : index
      %c0_185 = arith.constant 0 : index
      %478 = vector.load %arg16[%c0_184, %c0_185] : memref<16x128xf32, #tpu.memory_space<vmem>>, vector<16x128xf32>
      tpu.vector_store %arg16[%c0_184, %c0_185], %477 {strides = array<i32>} : memref<16x128xf32, #tpu.memory_space<vmem>>, vector<16x128xf32>,
      %cst_186 = arith.constant 0.000000e+00 : f32
      %479 = vector.broadcast %cst_186 : f32 to vector<16x128xf32>
      %c0_187 = arith.constant 0 : index
      %c0_188 = arith.constant 0 : index
      %480 = vector.load %arg17[%c0_187, %c0_188] : memref<16x128xf32, #tpu.memory_space<vmem>>, vector<16x128xf32>
      tpu.vector_store %arg17[%c0_187, %c0_188], %479 {strides = array<i32>} : memref<16x128xf32, #tpu.memory_space<vmem>>, vector<16x128xf32>,
      %cst_189 = arith.constant 0.000000e+00 : f32
      %481 = vector.broadcast %cst_189 : f32 to vector<16x128xf32>
      %c0_190 = arith.constant 0 : index
      %c0_191 = arith.constant 0 : index
      %482 = vector.load %arg18[%c0_190, %c0_191] : memref<16x128xf32, #tpu.memory_space<vmem>>, vector<16x128xf32>
      tpu.vector_store %arg18[%c0_190, %c0_191], %481 {strides = array<i32>} : memref<16x128xf32, #tpu.memory_space<vmem>>, vector<16x128xf32>,
    } else {
    }
    %c0 = arith.constant 0 : index
    %c0_1 = arith.constant 0 : index
    %c0_2 = arith.constant 0 : index
    %3 = vector.load %arg1[%c0, %c0_1, %c0_2] : memref<1x64x128xbf16, #tpu.memory_space<vmem>>, vector<1x64x128xbf16>
    %4 = vector.shape_cast %3 : vector<1x64x128xbf16> to vector<64x128xbf16>
    %c0_3 = arith.constant 0 : index
    %c0_4 = arith.constant 0 : index
    %5 = vector.load %arg3[%c0_3, %c0_4] : memref<128x512xbf16, #tpu.memory_space<vmem>>, vector<128x512xbf16>
    %cst = arith.constant dense<0.000000e+00> : vector<64x512xf32>
    %6 = tpu.matmul %4, %5, %cst {dimension_numbers = #tpu.dot_dimension_numbers<[1], [0], [0], [1], [0, 0, 1, 1], [], []>} : vector<64x128xbf16>, vector<128x512xbf16>, vector<64x512xf32> -> vector<64x512xf32>
    %c0_5 = arith.constant 0 : index
    %c0_6 = arith.constant 0 : index
    %7 = vector.load %arg5[%c0_5, %c0_6] : memref<1x512xf32, #tpu.memory_space<vmem>>, vector<1x512xf32>
    %8 = vector.broadcast %7 : vector<1x512xf32> to vector<64x512xf32>
    %9 = arith.addf %6, %8 : vector<64x512xf32>
    %10 = arith.truncf %9 : vector<64x512xf32> to vector<64x512xbf16>
    %11 = vector.shape_cast %10 : vector<64x512xbf16> to vector<4x16x512xbf16>
    %c0_7 = arith.constant 0 : index
    %c0_8 = arith.constant 0 : index
    %c0_9 = arith.constant 0 : index
    %12 = vector.load %arg13[%c0_7, %c0_8, %c0_9] : memref<4x16x512xbf16, #tpu.memory_space<vmem>>, vector<4x16x512xbf16>
    tpu.vector_store %arg13[%c0_7, %c0_8, %c0_9], %11 {strides = array<i32>} : memref<4x16x512xbf16, #tpu.memory_space<vmem>>, vector<4x16x512xbf16>,
    %c0_10 = arith.constant 0 : index
    %c0_11 = arith.constant 0 : index
    %c0_12 = arith.constant 0 : index
    %13 = vector.load %arg2[%c0_10, %c0_11, %c0_12] : memref<1x64x128xbf16, #tpu.memory_space<vmem>>, vector<1x64x128xbf16>
    %14 = vector.shape_cast %13 : vector<1x64x128xbf16> to vector<64x128xbf16>
    %c0_13 = arith.constant 0 : index
    %c0_14 = arith.constant 0 : index
    %15 = vector.load %arg6[%c0_13, %c0_14] : memref<128x512xbf16, #tpu.memory_space<vmem>>, vector<128x512xbf16>
    %cst_15 = arith.constant dense<0.000000e+00> : vector<64x512xf32>
    %16 = tpu.matmul %14, %15, %cst_15 {dimension_numbers = #tpu.dot_dimension_numbers<[1], [0], [0], [1], [0, 0, 1, 1], [], []>} : vector<64x128xbf16>, vector<128x512xbf16>, vector<64x512xf32> -> vector<64x512xf32>
    %c0_16 = arith.constant 0 : index
    %c0_17 = arith.constant 0 : index
    %17 = vector.load %arg8[%c0_16, %c0_17] : memref<1x512xf32, #tpu.memory_space<vmem>>, vector<1x512xf32>
    %18 = vector.broadcast %17 : vector<1x512xf32> to vector<64x512xf32>
    %19 = arith.addf %16, %18 : vector<64x512xf32>
    %20 = arith.truncf %19 : vector<64x512xf32> to vector<64x512xbf16>
    %21 = vector.shape_cast %20 : vector<64x512xbf16> to vector<4x16x512xbf16>
    %c0_18 = arith.constant 0 : index
    %c0_19 = arith.constant 0 : index
    %c0_20 = arith.constant 0 : index
    %22 = vector.load %arg14[%c0_18, %c0_19, %c0_20] : memref<4x16x512xbf16, #tpu.memory_space<vmem>>, vector<4x16x512xbf16>
    tpu.vector_store %arg14[%c0_18, %c0_19, %c0_20], %21 {strides = array<i32>} : memref<4x16x512xbf16, #tpu.memory_space<vmem>>, vector<4x16x512xbf16>,
    %c4_i32 = arith.constant 4 : i32
    %23 = arith.muli %arg0, %c4_i32 : i32
    %c0_21 = arith.constant 0 : index
    %c0_22 = arith.constant 0 : index
    %24 = vector.load %arg15[%c0_21, %c0_22] : memref<16x128xf32, #tpu.memory_space<vmem>>, vector<16x128xf32>
    %c0_23 = arith.constant 0 : index
    %c0_24 = arith.constant 0 : index
    %25 = vector.load %arg16[%c0_23, %c0_24] : memref<16x128xf32, #tpu.memory_space<vmem>>, vector<16x128xf32>
    %c0_25 = arith.constant 0 : index
    %c0_26 = arith.constant 0 : index
    %26 = vector.load %arg17[%c0_25, %c0_26] : memref<16x128xf32, #tpu.memory_space<vmem>>, vector<16x128xf32>
    %c0_27 = arith.constant 0 : index
    %c0_28 = arith.constant 0 : index
    %27 = vector.load %arg18[%c0_27, %c0_28] : memref<16x128xf32, #tpu.memory_space<vmem>>, vector<16x128xf32>
    %c0_i32_29 = arith.constant 0 : i32
    %28 = arith.index_cast %c0_i32_29 : i32 to index
    %c0_30 = arith.constant 0 : index
    %c0_31 = arith.constant 0 : index
    %29 = vector.load %arg13[%28, %c0_30, %c0_31] : memref<4x16x512xbf16, #tpu.memory_space<vmem>>, vector<1x16x512xbf16>
    %30 = vector.shape_cast %29 : vector<1x16x512xbf16> to vector<16x512xbf16>
    %31 = arith.extf %30 : vector<16x512xbf16> to vector<16x512xf32>
    %32 = arith.truncf %24 : vector<16x128xf32> to vector<16x128xbf16>
    %c0_32 = arith.constant 0 : index
    %c0_33 = arith.constant 0 : index
    %33 = vector.load %arg4[%c0_32, %c0_33] : memref<128x512xbf16, #tpu.memory_space<vmem>>, vector<128x512xbf16>
    %cst_34 = arith.constant dense<0.000000e+00> : vector<16x512xf32>
    %34 = tpu.matmul %32, %33, %cst_34 {dimension_numbers = #tpu.dot_dimension_numbers<[1], [0], [0], [1], [0, 0, 1, 1], [], []>} : vector<16x128xbf16>, vector<128x512xbf16>, vector<16x512xf32> -> vector<16x512xf32>
    %35 = arith.addf %31, %34 : vector<16x512xf32>
    %c3_i32 = arith.constant 3 : i32
    %36 = arith.subi %c3_i32, %c0_i32_29 : i32
    %37 = arith.index_cast %36 : i32 to index
    %c0_35 = arith.constant 0 : index
    %c0_36 = arith.constant 0 : index
    %38 = vector.load %arg14[%37, %c0_35, %c0_36] : memref<4x16x512xbf16, #tpu.memory_space<vmem>>, vector<1x16x512xbf16>
    %39 = vector.shape_cast %38 : vector<1x16x512xbf16> to vector<16x512xbf16>
    %40 = arith.extf %39 : vector<16x512xbf16> to vector<16x512xf32>
    %41 = arith.truncf %26 : vector<16x128xf32> to vector<16x128xbf16>
    %c0_37 = arith.constant 0 : index
    %c0_38 = arith.constant 0 : index
    %42 = vector.load %arg7[%c0_37, %c0_38] : memref<128x512xbf16, #tpu.memory_space<vmem>>, vector<128x512xbf16>
    %cst_39 = arith.constant dense<0.000000e+00> : vector<16x512xf32>
    %43 = tpu.matmul %41, %42, %cst_39 {dimension_numbers = #tpu.dot_dimension_numbers<[1], [0], [0], [1], [0, 0, 1, 1], [], []>} : vector<16x128xbf16>, vector<128x512xbf16>, vector<16x512xf32> -> vector<16x512xf32>
    %44 = arith.addf %40, %43 : vector<16x512xf32>
    %45 = vector.extract_strided_slice %35 {offsets = [0, 0], sizes = [16, 128], strides = [1, 1]} : vector<16x512xf32> to vector<16x128xf32>
    %cst_40 = arith.constant 5.000000e-01 : f32
    %46 = vector.broadcast %cst_40 : f32 to vector<16x128xf32>
    %47 = arith.mulf %46, %45 : vector<16x128xf32>
    %48 = math.tanh %47 : vector<16x128xf32>
    %cst_41 = arith.constant 5.000000e-01 : f32
    %49 = vector.broadcast %cst_41 : f32 to vector<16x128xf32>
    %50 = arith.mulf %49, %48 : vector<16x128xf32>
    %cst_42 = arith.constant 5.000000e-01 : f32
    %51 = vector.broadcast %cst_42 : f32 to vector<16x128xf32>
    %52 = arith.addf %50, %51 : vector<16x128xf32>
    %53 = vector.extract_strided_slice %35 {offsets = [0, 128], sizes = [16, 128], strides = [1, 1]} : vector<16x512xf32> to vector<16x128xf32>
    %cst_43 = arith.constant 5.000000e-01 : f32
    %54 = vector.broadcast %cst_43 : f32 to vector<16x128xf32>
    %55 = arith.mulf %54, %53 : vector<16x128xf32>
    %56 = math.tanh %55 : vector<16x128xf32>
    %cst_44 = arith.constant 5.000000e-01 : f32
    %57 = vector.broadcast %cst_44 : f32 to vector<16x128xf32>
    %58 = arith.mulf %57, %56 : vector<16x128xf32>
    %cst_45 = arith.constant 5.000000e-01 : f32
    %59 = vector.broadcast %cst_45 : f32 to vector<16x128xf32>
    %60 = arith.addf %58, %59 : vector<16x128xf32>
    %61 = vector.extract_strided_slice %35 {offsets = [0, 256], sizes = [16, 128], strides = [1, 1]} : vector<16x512xf32> to vector<16x128xf32>
    %62 = math.tanh %61 : vector<16x128xf32>
    %63 = vector.extract_strided_slice %35 {offsets = [0, 384], sizes = [16, 128], strides = [1, 1]} : vector<16x512xf32> to vector<16x128xf32>
    %cst_46 = arith.constant 5.000000e-01 : f32
    %64 = vector.broadcast %cst_46 : f32 to vector<16x128xf32>
    %65 = arith.mulf %64, %63 : vector<16x128xf32>
    %66 = math.tanh %65 : vector<16x128xf32>
    %cst_47 = arith.constant 5.000000e-01 : f32
    %67 = vector.broadcast %cst_47 : f32 to vector<16x128xf32>
    %68 = arith.mulf %67, %66 : vector<16x128xf32>
    %cst_48 = arith.constant 5.000000e-01 : f32
    %69 = vector.broadcast %cst_48 : f32 to vector<16x128xf32>
    %70 = arith.addf %68, %69 : vector<16x128xf32>
    %71 = arith.mulf %60, %25 : vector<16x128xf32>
    %72 = arith.mulf %52, %62 : vector<16x128xf32>
    %73 = arith.addf %71, %72 : vector<16x128xf32>
    %74 = math.tanh %73 : vector<16x128xf32>
    %75 = arith.mulf %70, %74 : vector<16x128xf32>
    %76 = vector.extract_strided_slice %44 {offsets = [0, 0], sizes = [16, 128], strides = [1, 1]} : vector<16x512xf32> to vector<16x128xf32>
    %cst_49 = arith.constant 5.000000e-01 : f32
    %77 = vector.broadcast %cst_49 : f32 to vector<16x128xf32>
    %78 = arith.mulf %77, %76 : vector<16x128xf32>
    %79 = math.tanh %78 : vector<16x128xf32>
    %cst_50 = arith.constant 5.000000e-01 : f32
    %80 = vector.broadcast %cst_50 : f32 to vector<16x128xf32>
    %81 = arith.mulf %80, %79 : vector<16x128xf32>
    %cst_51 = arith.constant 5.000000e-01 : f32
    %82 = vector.broadcast %cst_51 : f32 to vector<16x128xf32>
    %83 = arith.addf %81, %82 : vector<16x128xf32>
    %84 = vector.extract_strided_slice %44 {offsets = [0, 128], sizes = [16, 128], strides = [1, 1]} : vector<16x512xf32> to vector<16x128xf32>
    %cst_52 = arith.constant 5.000000e-01 : f32
    %85 = vector.broadcast %cst_52 : f32 to vector<16x128xf32>
    %86 = arith.mulf %85, %84 : vector<16x128xf32>
    %87 = math.tanh %86 : vector<16x128xf32>
    %cst_53 = arith.constant 5.000000e-01 : f32
    %88 = vector.broadcast %cst_53 : f32 to vector<16x128xf32>
    %89 = arith.mulf %88, %87 : vector<16x128xf32>
    %cst_54 = arith.constant 5.000000e-01 : f32
    %90 = vector.broadcast %cst_54 : f32 to vector<16x128xf32>
    %91 = arith.addf %89, %90 : vector<16x128xf32>
    %92 = vector.extract_strided_slice %44 {offsets = [0, 256], sizes = [16, 128], strides = [1, 1]} : vector<16x512xf32> to vector<16x128xf32>
    %93 = math.tanh %92 : vector<16x128xf32>
    %94 = vector.extract_strided_slice %44 {offsets = [0, 384], sizes = [16, 128], strides = [1, 1]} : vector<16x512xf32> to vector<16x128xf32>
    %cst_55 = arith.constant 5.000000e-01 : f32
    %95 = vector.broadcast %cst_55 : f32 to vector<16x128xf32>
    %96 = arith.mulf %95, %94 : vector<16x128xf32>
    %97 = math.tanh %96 : vector<16x128xf32>
    %cst_56 = arith.constant 5.000000e-01 : f32
    %98 = vector.broadcast %cst_56 : f32 to vector<16x128xf32>
    %99 = arith.mulf %98, %97 : vector<16x128xf32>
    %cst_57 = arith.constant 5.000000e-01 : f32
    %100 = vector.broadcast %cst_57 : f32 to vector<16x128xf32>
    %101 = arith.addf %99, %100 : vector<16x128xf32>
    %102 = arith.mulf %91, %27 : vector<16x128xf32>
    %103 = arith.mulf %83, %93 : vector<16x128xf32>
    %104 = arith.addf %102, %103 : vector<16x128xf32>
    %105 = math.tanh %104 : vector<16x128xf32>
    %106 = arith.mulf %101, %105 : vector<16x128xf32>
    %107 = arith.addi %23, %c0_i32_29 : i32
    %c9_i32 = arith.constant 9 : i32
    %108 = arith.cmpi slt, %107, %c9_i32 : i32
    %109 = arith.extui %108 : i1 to i32
    %110 = arith.sitofp %109 : i32 to f32
    %c3_i32_58 = arith.constant 3 : i32
    %111 = arith.cmpi sge, %107, %c3_i32_58 : i32
    %112 = arith.extui %111 : i1 to i32
    %113 = arith.sitofp %112 : i32 to f32
    %114 = vector.broadcast %110 : f32 to vector<16x128xf32>
    %115 = arith.mulf %114, %75 : vector<16x128xf32>
    %cst_59 = arith.constant 1.000000e+00 : f32
    %116 = arith.subf %cst_59, %110 : f32
    %117 = vector.broadcast %116 : f32 to vector<16x128xf32>
    %118 = arith.mulf %117, %24 : vector<16x128xf32>
    %119 = arith.addf %115, %118 : vector<16x128xf32>
    %120 = vector.broadcast %110 : f32 to vector<16x128xf32>
    %121 = arith.mulf %120, %73 : vector<16x128xf32>
    %cst_60 = arith.constant 1.000000e+00 : f32
    %122 = arith.subf %cst_60, %110 : f32
    %123 = vector.broadcast %122 : f32 to vector<16x128xf32>
    %124 = arith.mulf %123, %25 : vector<16x128xf32>
    %125 = arith.addf %121, %124 : vector<16x128xf32>
    %126 = vector.broadcast %113 : f32 to vector<16x128xf32>
    %127 = arith.mulf %126, %106 : vector<16x128xf32>
    %cst_61 = arith.constant 1.000000e+00 : f32
    %128 = arith.subf %cst_61, %113 : f32
    %129 = vector.broadcast %128 : f32 to vector<16x128xf32>
    %130 = arith.mulf %129, %26 : vector<16x128xf32>
    %131 = arith.addf %127, %130 : vector<16x128xf32>
    %132 = vector.broadcast %113 : f32 to vector<16x128xf32>
    %133 = arith.mulf %132, %104 : vector<16x128xf32>
    %cst_62 = arith.constant 1.000000e+00 : f32
    %134 = arith.subf %cst_62, %113 : f32
    %135 = vector.broadcast %134 : f32 to vector<16x128xf32>
    %136 = arith.mulf %135, %27 : vector<16x128xf32>
    %137 = arith.addf %133, %136 : vector<16x128xf32>
    %c1_i32 = arith.constant 1 : i32
    %138 = arith.index_cast %c1_i32 : i32 to index
    %c0_63 = arith.constant 0 : index
    %c0_64 = arith.constant 0 : index
    %139 = vector.load %arg13[%138, %c0_63, %c0_64] : memref<4x16x512xbf16, #tpu.memory_space<vmem>>, vector<1x16x512xbf16>
    %140 = vector.shape_cast %139 : vector<1x16x512xbf16> to vector<16x512xbf16>
    %141 = arith.extf %140 : vector<16x512xbf16> to vector<16x512xf32>
    %142 = arith.truncf %119 : vector<16x128xf32> to vector<16x128xbf16>
    %c0_65 = arith.constant 0 : index
    %c0_66 = arith.constant 0 : index
    %143 = vector.load %arg4[%c0_65, %c0_66] : memref<128x512xbf16, #tpu.memory_space<vmem>>, vector<128x512xbf16>
    %cst_67 = arith.constant dense<0.000000e+00> : vector<16x512xf32>
    %144 = tpu.matmul %142, %143, %cst_67 {dimension_numbers = #tpu.dot_dimension_numbers<[1], [0], [0], [1], [0, 0, 1, 1], [], []>} : vector<16x128xbf16>, vector<128x512xbf16>, vector<16x512xf32> -> vector<16x512xf32>
    %145 = arith.addf %141, %144 : vector<16x512xf32>
    %c3_i32_68 = arith.constant 3 : i32
    %146 = arith.subi %c3_i32_68, %c1_i32 : i32
    %147 = arith.index_cast %146 : i32 to index
    %c0_69 = arith.constant 0 : index
    %c0_70 = arith.constant 0 : index
    %148 = vector.load %arg14[%147, %c0_69, %c0_70] : memref<4x16x512xbf16, #tpu.memory_space<vmem>>, vector<1x16x512xbf16>
    %149 = vector.shape_cast %148 : vector<1x16x512xbf16> to vector<16x512xbf16>
    %150 = arith.extf %149 : vector<16x512xbf16> to vector<16x512xf32>
    %151 = arith.truncf %131 : vector<16x128xf32> to vector<16x128xbf16>
    %c0_71 = arith.constant 0 : index
    %c0_72 = arith.constant 0 : index
    %152 = vector.load %arg7[%c0_71, %c0_72] : memref<128x512xbf16, #tpu.memory_space<vmem>>, vector<128x512xbf16>
    %cst_73 = arith.constant dense<0.000000e+00> : vector<16x512xf32>
    %153 = tpu.matmul %151, %152, %cst_73 {dimension_numbers = #tpu.dot_dimension_numbers<[1], [0], [0], [1], [0, 0, 1, 1], [], []>} : vector<16x128xbf16>, vector<128x512xbf16>, vector<16x512xf32> -> vector<16x512xf32>
    %154 = arith.addf %150, %153 : vector<16x512xf32>
    %155 = vector.extract_strided_slice %145 {offsets = [0, 0], sizes = [16, 128], strides = [1, 1]} : vector<16x512xf32> to vector<16x128xf32>
    %cst_74 = arith.constant 5.000000e-01 : f32
    %156 = vector.broadcast %cst_74 : f32 to vector<16x128xf32>
    %157 = arith.mulf %156, %155 : vector<16x128xf32>
    %158 = math.tanh %157 : vector<16x128xf32>
    %cst_75 = arith.constant 5.000000e-01 : f32
    %159 = vector.broadcast %cst_75 : f32 to vector<16x128xf32>
    %160 = arith.mulf %159, %158 : vector<16x128xf32>
    %cst_76 = arith.constant 5.000000e-01 : f32
    %161 = vector.broadcast %cst_76 : f32 to vector<16x128xf32>
    %162 = arith.addf %160, %161 : vector<16x128xf32>
    %163 = vector.extract_strided_slice %145 {offsets = [0, 128], sizes = [16, 128], strides = [1, 1]} : vector<16x512xf32> to vector<16x128xf32>
    %cst_77 = arith.constant 5.000000e-01 : f32
    %164 = vector.broadcast %cst_77 : f32 to vector<16x128xf32>
    %165 = arith.mulf %164, %163 : vector<16x128xf32>
    %166 = math.tanh %165 : vector<16x128xf32>
    %cst_78 = arith.constant 5.000000e-01 : f32
    %167 = vector.broadcast %cst_78 : f32 to vector<16x128xf32>
    %168 = arith.mulf %167, %166 : vector<16x128xf32>
    %cst_79 = arith.constant 5.000000e-01 : f32
    %169 = vector.broadcast %cst_79 : f32 to vector<16x128xf32>
    %170 = arith.addf %168, %169 : vector<16x128xf32>
    %171 = vector.extract_strided_slice %145 {offsets = [0, 256], sizes = [16, 128], strides = [1, 1]} : vector<16x512xf32> to vector<16x128xf32>
    %172 = math.tanh %171 : vector<16x128xf32>
    %173 = vector.extract_strided_slice %145 {offsets = [0, 384], sizes = [16, 128], strides = [1, 1]} : vector<16x512xf32> to vector<16x128xf32>
    %cst_80 = arith.constant 5.000000e-01 : f32
    %174 = vector.broadcast %cst_80 : f32 to vector<16x128xf32>
    %175 = arith.mulf %174, %173 : vector<16x128xf32>
    %176 = math.tanh %175 : vector<16x128xf32>
    %cst_81 = arith.constant 5.000000e-01 : f32
    %177 = vector.broadcast %cst_81 : f32 to vector<16x128xf32>
    %178 = arith.mulf %177, %176 : vector<16x128xf32>
    %cst_82 = arith.constant 5.000000e-01 : f32
    %179 = vector.broadcast %cst_82 : f32 to vector<16x128xf32>
    %180 = arith.addf %178, %179 : vector<16x128xf32>
    %181 = arith.mulf %170, %125 : vector<16x128xf32>
    %182 = arith.mulf %162, %172 : vector<16x128xf32>
    %183 = arith.addf %181, %182 : vector<16x128xf32>
    %184 = math.tanh %183 : vector<16x128xf32>
    %185 = arith.mulf %180, %184 : vector<16x128xf32>
    %186 = vector.extract_strided_slice %154 {offsets = [0, 0], sizes = [16, 128], strides = [1, 1]} : vector<16x512xf32> to vector<16x128xf32>
    %cst_83 = arith.constant 5.000000e-01 : f32
    %187 = vector.broadcast %cst_83 : f32 to vector<16x128xf32>
    %188 = arith.mulf %187, %186 : vector<16x128xf32>
    %189 = math.tanh %188 : vector<16x128xf32>
    %cst_84 = arith.constant 5.000000e-01 : f32
    %190 = vector.broadcast %cst_84 : f32 to vector<16x128xf32>
    %191 = arith.mulf %190, %189 : vector<16x128xf32>
    %cst_85 = arith.constant 5.000000e-01 : f32
    %192 = vector.broadcast %cst_85 : f32 to vector<16x128xf32>
    %193 = arith.addf %191, %192 : vector<16x128xf32>
    %194 = vector.extract_strided_slice %154 {offsets = [0, 128], sizes = [16, 128], strides = [1, 1]} : vector<16x512xf32> to vector<16x128xf32>
    %cst_86 = arith.constant 5.000000e-01 : f32
    %195 = vector.broadcast %cst_86 : f32 to vector<16x128xf32>
    %196 = arith.mulf %195, %194 : vector<16x128xf32>
    %197 = math.tanh %196 : vector<16x128xf32>
    %cst_87 = arith.constant 5.000000e-01 : f32
    %198 = vector.broadcast %cst_87 : f32 to vector<16x128xf32>
    %199 = arith.mulf %198, %197 : vector<16x128xf32>
    %cst_88 = arith.constant 5.000000e-01 : f32
    %200 = vector.broadcast %cst_88 : f32 to vector<16x128xf32>
    %201 = arith.addf %199, %200 : vector<16x128xf32>
    %202 = vector.extract_strided_slice %154 {offsets = [0, 256], sizes = [16, 128], strides = [1, 1]} : vector<16x512xf32> to vector<16x128xf32>
    %203 = math.tanh %202 : vector<16x128xf32>
    %204 = vector.extract_strided_slice %154 {offsets = [0, 384], sizes = [16, 128], strides = [1, 1]} : vector<16x512xf32> to vector<16x128xf32>
    %cst_89 = arith.constant 5.000000e-01 : f32
    %205 = vector.broadcast %cst_89 : f32 to vector<16x128xf32>
    %206 = arith.mulf %205, %204 : vector<16x128xf32>
    %207 = math.tanh %206 : vector<16x128xf32>
    %cst_90 = arith.constant 5.000000e-01 : f32
    %208 = vector.broadcast %cst_90 : f32 to vector<16x128xf32>
    %209 = arith.mulf %208, %207 : vector<16x128xf32>
    %cst_91 = arith.constant 5.000000e-01 : f32
    %210 = vector.broadcast %cst_91 : f32 to vector<16x128xf32>
    %211 = arith.addf %209, %210 : vector<16x128xf32>
    %212 = arith.mulf %201, %137 : vector<16x128xf32>
    %213 = arith.mulf %193, %203 : vector<16x128xf32>
    %214 = arith.addf %212, %213 : vector<16x128xf32>
    %215 = math.tanh %214 : vector<16x128xf32>
    %216 = arith.mulf %211, %215 : vector<16x128xf32>
    %217 = arith.addi %23, %c1_i32 : i32
    %c9_i32_92 = arith.constant 9 : i32
    %218 = arith.cmpi slt, %217, %c9_i32_92 : i32
    %219 = arith.extui %218 : i1 to i32
    %220 = arith.sitofp %219 : i32 to f32
    %c3_i32_93 = arith.constant 3 : i32
    %221 = arith.cmpi sge, %217, %c3_i32_93 : i32
    %222 = arith.extui %221 : i1 to i32
    %223 = arith.sitofp %222 : i32 to f32
    %224 = vector.broadcast %220 : f32 to vector<16x128xf32>
    %225 = arith.mulf %224, %185 : vector<16x128xf32>
    %cst_94 = arith.constant 1.000000e+00 : f32
    %226 = arith.subf %cst_94, %220 : f32
    %227 = vector.broadcast %226 : f32 to vector<16x128xf32>
    %228 = arith.mulf %227, %119 : vector<16x128xf32>
    %229 = arith.addf %225, %228 : vector<16x128xf32>
    %230 = vector.broadcast %220 : f32 to vector<16x128xf32>
    %231 = arith.mulf %230, %183 : vector<16x128xf32>
    %cst_95 = arith.constant 1.000000e+00 : f32
    %232 = arith.subf %cst_95, %220 : f32
    %233 = vector.broadcast %232 : f32 to vector<16x128xf32>
    %234 = arith.mulf %233, %125 : vector<16x128xf32>
    %235 = arith.addf %231, %234 : vector<16x128xf32>
    %236 = vector.broadcast %223 : f32 to vector<16x128xf32>
    %237 = arith.mulf %236, %216 : vector<16x128xf32>
    %cst_96 = arith.constant 1.000000e+00 : f32
    %238 = arith.subf %cst_96, %223 : f32
    %239 = vector.broadcast %238 : f32 to vector<16x128xf32>
    %240 = arith.mulf %239, %131 : vector<16x128xf32>
    %241 = arith.addf %237, %240 : vector<16x128xf32>
    %242 = vector.broadcast %223 : f32 to vector<16x128xf32>
    %243 = arith.mulf %242, %214 : vector<16x128xf32>
    %cst_97 = arith.constant 1.000000e+00 : f32
    %244 = arith.subf %cst_97, %223 : f32
    %245 = vector.broadcast %244 : f32 to vector<16x128xf32>
    %246 = arith.mulf %245, %137 : vector<16x128xf32>
    %247 = arith.addf %243, %246 : vector<16x128xf32>
    %c2_i32 = arith.constant 2 : i32
    %248 = arith.index_cast %c2_i32 : i32 to index
    %c0_98 = arith.constant 0 : index
    %c0_99 = arith.constant 0 : index
    %249 = vector.load %arg13[%248, %c0_98, %c0_99] : memref<4x16x512xbf16, #tpu.memory_space<vmem>>, vector<1x16x512xbf16>
    %250 = vector.shape_cast %249 : vector<1x16x512xbf16> to vector<16x512xbf16>
    %251 = arith.extf %250 : vector<16x512xbf16> to vector<16x512xf32>
    %252 = arith.truncf %229 : vector<16x128xf32> to vector<16x128xbf16>
    %c0_100 = arith.constant 0 : index
    %c0_101 = arith.constant 0 : index
    %253 = vector.load %arg4[%c0_100, %c0_101] : memref<128x512xbf16, #tpu.memory_space<vmem>>, vector<128x512xbf16>
    %cst_102 = arith.constant dense<0.000000e+00> : vector<16x512xf32>
    %254 = tpu.matmul %252, %253, %cst_102 {dimension_numbers = #tpu.dot_dimension_numbers<[1], [0], [0], [1], [0, 0, 1, 1], [], []>} : vector<16x128xbf16>, vector<128x512xbf16>, vector<16x512xf32> -> vector<16x512xf32>
    %255 = arith.addf %251, %254 : vector<16x512xf32>
    %c3_i32_103 = arith.constant 3 : i32
    %256 = arith.subi %c3_i32_103, %c2_i32 : i32
    %257 = arith.index_cast %256 : i32 to index
    %c0_104 = arith.constant 0 : index
    %c0_105 = arith.constant 0 : index
    %258 = vector.load %arg14[%257, %c0_104, %c0_105] : memref<4x16x512xbf16, #tpu.memory_space<vmem>>, vector<1x16x512xbf16>
    %259 = vector.shape_cast %258 : vector<1x16x512xbf16> to vector<16x512xbf16>
    %260 = arith.extf %259 : vector<16x512xbf16> to vector<16x512xf32>
    %261 = arith.truncf %241 : vector<16x128xf32> to vector<16x128xbf16>
    %c0_106 = arith.constant 0 : index
    %c0_107 = arith.constant 0 : index
    %262 = vector.load %arg7[%c0_106, %c0_107] : memref<128x512xbf16, #tpu.memory_space<vmem>>, vector<128x512xbf16>
    %cst_108 = arith.constant dense<0.000000e+00> : vector<16x512xf32>
    %263 = tpu.matmul %261, %262, %cst_108 {dimension_numbers = #tpu.dot_dimension_numbers<[1], [0], [0], [1], [0, 0, 1, 1], [], []>} : vector<16x128xbf16>, vector<128x512xbf16>, vector<16x512xf32> -> vector<16x512xf32>
    %264 = arith.addf %260, %263 : vector<16x512xf32>
    %265 = vector.extract_strided_slice %255 {offsets = [0, 0], sizes = [16, 128], strides = [1, 1]} : vector<16x512xf32> to vector<16x128xf32>
    %cst_109 = arith.constant 5.000000e-01 : f32
    %266 = vector.broadcast %cst_109 : f32 to vector<16x128xf32>
    %267 = arith.mulf %266, %265 : vector<16x128xf32>
    %268 = math.tanh %267 : vector<16x128xf32>
    %cst_110 = arith.constant 5.000000e-01 : f32
    %269 = vector.broadcast %cst_110 : f32 to vector<16x128xf32>
    %270 = arith.mulf %269, %268 : vector<16x128xf32>
    %cst_111 = arith.constant 5.000000e-01 : f32
    %271 = vector.broadcast %cst_111 : f32 to vector<16x128xf32>
    %272 = arith.addf %270, %271 : vector<16x128xf32>
    %273 = vector.extract_strided_slice %255 {offsets = [0, 128], sizes = [16, 128], strides = [1, 1]} : vector<16x512xf32> to vector<16x128xf32>
    %cst_112 = arith.constant 5.000000e-01 : f32
    %274 = vector.broadcast %cst_112 : f32 to vector<16x128xf32>
    %275 = arith.mulf %274, %273 : vector<16x128xf32>
    %276 = math.tanh %275 : vector<16x128xf32>
    %cst_113 = arith.constant 5.000000e-01 : f32
    %277 = vector.broadcast %cst_113 : f32 to vector<16x128xf32>
    %278 = arith.mulf %277, %276 : vector<16x128xf32>
    %cst_114 = arith.constant 5.000000e-01 : f32
    %279 = vector.broadcast %cst_114 : f32 to vector<16x128xf32>
    %280 = arith.addf %278, %279 : vector<16x128xf32>
    %281 = vector.extract_strided_slice %255 {offsets = [0, 256], sizes = [16, 128], strides = [1, 1]} : vector<16x512xf32> to vector<16x128xf32>
    %282 = math.tanh %281 : vector<16x128xf32>
    %283 = vector.extract_strided_slice %255 {offsets = [0, 384], sizes = [16, 128], strides = [1, 1]} : vector<16x512xf32> to vector<16x128xf32>
    %cst_115 = arith.constant 5.000000e-01 : f32
    %284 = vector.broadcast %cst_115 : f32 to vector<16x128xf32>
    %285 = arith.mulf %284, %283 : vector<16x128xf32>
    %286 = math.tanh %285 : vector<16x128xf32>
    %cst_116 = arith.constant 5.000000e-01 : f32
    %287 = vector.broadcast %cst_116 : f32 to vector<16x128xf32>
    %288 = arith.mulf %287, %286 : vector<16x128xf32>
    %cst_117 = arith.constant 5.000000e-01 : f32
    %289 = vector.broadcast %cst_117 : f32 to vector<16x128xf32>
    %290 = arith.addf %288, %289 : vector<16x128xf32>
    %291 = arith.mulf %280, %235 : vector<16x128xf32>
    %292 = arith.mulf %272, %282 : vector<16x128xf32>
    %293 = arith.addf %291, %292 : vector<16x128xf32>
    %294 = math.tanh %293 : vector<16x128xf32>
    %295 = arith.mulf %290, %294 : vector<16x128xf32>
    %296 = vector.extract_strided_slice %264 {offsets = [0, 0], sizes = [16, 128], strides = [1, 1]} : vector<16x512xf32> to vector<16x128xf32>
    %cst_118 = arith.constant 5.000000e-01 : f32
    %297 = vector.broadcast %cst_118 : f32 to vector<16x128xf32>
    %298 = arith.mulf %297, %296 : vector<16x128xf32>
    %299 = math.tanh %298 : vector<16x128xf32>
    %cst_119 = arith.constant 5.000000e-01 : f32
    %300 = vector.broadcast %cst_119 : f32 to vector<16x128xf32>
    %301 = arith.mulf %300, %299 : vector<16x128xf32>
    %cst_120 = arith.constant 5.000000e-01 : f32
    %302 = vector.broadcast %cst_120 : f32 to vector<16x128xf32>
    %303 = arith.addf %301, %302 : vector<16x128xf32>
    %304 = vector.extract_strided_slice %264 {offsets = [0, 128], sizes = [16, 128], strides = [1, 1]} : vector<16x512xf32> to vector<16x128xf32>
    %cst_121 = arith.constant 5.000000e-01 : f32
    %305 = vector.broadcast %cst_121 : f32 to vector<16x128xf32>
    %306 = arith.mulf %305, %304 : vector<16x128xf32>
    %307 = math.tanh %306 : vector<16x128xf32>
    %cst_122 = arith.constant 5.000000e-01 : f32
    %308 = vector.broadcast %cst_122 : f32 to vector<16x128xf32>
    %309 = arith.mulf %308, %307 : vector<16x128xf32>
    %cst_123 = arith.constant 5.000000e-01 : f32
    %310 = vector.broadcast %cst_123 : f32 to vector<16x128xf32>
    %311 = arith.addf %309, %310 : vector<16x128xf32>
    %312 = vector.extract_strided_slice %264 {offsets = [0, 256], sizes = [16, 128], strides = [1, 1]} : vector<16x512xf32> to vector<16x128xf32>
    %313 = math.tanh %312 : vector<16x128xf32>
    %314 = vector.extract_strided_slice %264 {offsets = [0, 384], sizes = [16, 128], strides = [1, 1]} : vector<16x512xf32> to vector<16x128xf32>
    %cst_124 = arith.constant 5.000000e-01 : f32
    %315 = vector.broadcast %cst_124 : f32 to vector<16x128xf32>
    %316 = arith.mulf %315, %314 : vector<16x128xf32>
    %317 = math.tanh %316 : vector<16x128xf32>
    %cst_125 = arith.constant 5.000000e-01 : f32
    %318 = vector.broadcast %cst_125 : f32 to vector<16x128xf32>
    %319 = arith.mulf %318, %317 : vector<16x128xf32>
    %cst_126 = arith.constant 5.000000e-01 : f32
    %320 = vector.broadcast %cst_126 : f32 to vector<16x128xf32>
    %321 = arith.addf %319, %320 : vector<16x128xf32>
    %322 = arith.mulf %311, %247 : vector<16x128xf32>
    %323 = arith.mulf %303, %313 : vector<16x128xf32>
    %324 = arith.addf %322, %323 : vector<16x128xf32>
    %325 = math.tanh %324 : vector<16x128xf32>
    %326 = arith.mulf %321, %325 : vector<16x128xf32>
    %327 = arith.addi %23, %c2_i32 : i32
    %c9_i32_127 = arith.constant 9 : i32
    %328 = arith.cmpi slt, %327, %c9_i32_127 : i32
    %329 = arith.extui %328 : i1 to i32
    %330 = arith.sitofp %329 : i32 to f32
    %c3_i32_128 = arith.constant 3 : i32
    %331 = arith.cmpi sge, %327, %c3_i32_128 : i32
    %332 = arith.extui %331 : i1 to i32
    %333 = arith.sitofp %332 : i32 to f32
    %334 = vector.broadcast %330 : f32 to vector<16x128xf32>
    %335 = arith.mulf %334, %295 : vector<16x128xf32>
    %cst_129 = arith.constant 1.000000e+00 : f32
    %336 = arith.subf %cst_129, %330 : f32
    %337 = vector.broadcast %336 : f32 to vector<16x128xf32>
    %338 = arith.mulf %337, %229 : vector<16x128xf32>
    %339 = arith.addf %335, %338 : vector<16x128xf32>
    %340 = vector.broadcast %330 : f32 to vector<16x128xf32>
    %341 = arith.mulf %340, %293 : vector<16x128xf32>
    %cst_130 = arith.constant 1.000000e+00 : f32
    %342 = arith.subf %cst_130, %330 : f32
    %343 = vector.broadcast %342 : f32 to vector<16x128xf32>
    %344 = arith.mulf %343, %235 : vector<16x128xf32>
    %345 = arith.addf %341, %344 : vector<16x128xf32>
    %346 = vector.broadcast %333 : f32 to vector<16x128xf32>
    %347 = arith.mulf %346, %326 : vector<16x128xf32>
    %cst_131 = arith.constant 1.000000e+00 : f32
    %348 = arith.subf %cst_131, %333 : f32
    %349 = vector.broadcast %348 : f32 to vector<16x128xf32>
    %350 = arith.mulf %349, %241 : vector<16x128xf32>
    %351 = arith.addf %347, %350 : vector<16x128xf32>
    %352 = vector.broadcast %333 : f32 to vector<16x128xf32>
    %353 = arith.mulf %352, %324 : vector<16x128xf32>
    %cst_132 = arith.constant 1.000000e+00 : f32
    %354 = arith.subf %cst_132, %333 : f32
    %355 = vector.broadcast %354 : f32 to vector<16x128xf32>
    %356 = arith.mulf %355, %247 : vector<16x128xf32>
    %357 = arith.addf %353, %356 : vector<16x128xf32>
    %c3_i32_133 = arith.constant 3 : i32
    %358 = arith.index_cast %c3_i32_133 : i32 to index
    %c0_134 = arith.constant 0 : index
    %c0_135 = arith.constant 0 : index
    %359 = vector.load %arg13[%358, %c0_134, %c0_135] : memref<4x16x512xbf16, #tpu.memory_space<vmem>>, vector<1x16x512xbf16>
    %360 = vector.shape_cast %359 : vector<1x16x512xbf16> to vector<16x512xbf16>
    %361 = arith.extf %360 : vector<16x512xbf16> to vector<16x512xf32>
    %362 = arith.truncf %339 : vector<16x128xf32> to vector<16x128xbf16>
    %c0_136 = arith.constant 0 : index
    %c0_137 = arith.constant 0 : index
    %363 = vector.load %arg4[%c0_136, %c0_137] : memref<128x512xbf16, #tpu.memory_space<vmem>>, vector<128x512xbf16>
    %cst_138 = arith.constant dense<0.000000e+00> : vector<16x512xf32>
    %364 = tpu.matmul %362, %363, %cst_138 {dimension_numbers = #tpu.dot_dimension_numbers<[1], [0], [0], [1], [0, 0, 1, 1], [], []>} : vector<16x128xbf16>, vector<128x512xbf16>, vector<16x512xf32> -> vector<16x512xf32>
    %365 = arith.addf %361, %364 : vector<16x512xf32>
    %c3_i32_139 = arith.constant 3 : i32
    %366 = arith.subi %c3_i32_139, %c3_i32_133 : i32
    %367 = arith.index_cast %366 : i32 to index
    %c0_140 = arith.constant 0 : index
    %c0_141 = arith.constant 0 : index
    %368 = vector.load %arg14[%367, %c0_140, %c0_141] : memref<4x16x512xbf16, #tpu.memory_space<vmem>>, vector<1x16x512xbf16>
    %369 = vector.shape_cast %368 : vector<1x16x512xbf16> to vector<16x512xbf16>
    %370 = arith.extf %369 : vector<16x512xbf16> to vector<16x512xf32>
    %371 = arith.truncf %351 : vector<16x128xf32> to vector<16x128xbf16>
    %c0_142 = arith.constant 0 : index
    %c0_143 = arith.constant 0 : index
    %372 = vector.load %arg7[%c0_142, %c0_143] : memref<128x512xbf16, #tpu.memory_space<vmem>>, vector<128x512xbf16>
    %cst_144 = arith.constant dense<0.000000e+00> : vector<16x512xf32>
    %373 = tpu.matmul %371, %372, %cst_144 {dimension_numbers = #tpu.dot_dimension_numbers<[1], [0], [0], [1], [0, 0, 1, 1], [], []>} : vector<16x128xbf16>, vector<128x512xbf16>, vector<16x512xf32> -> vector<16x512xf32>
    %374 = arith.addf %370, %373 : vector<16x512xf32>
    %375 = vector.extract_strided_slice %365 {offsets = [0, 0], sizes = [16, 128], strides = [1, 1]} : vector<16x512xf32> to vector<16x128xf32>
    %cst_145 = arith.constant 5.000000e-01 : f32
    %376 = vector.broadcast %cst_145 : f32 to vector<16x128xf32>
    %377 = arith.mulf %376, %375 : vector<16x128xf32>
    %378 = math.tanh %377 : vector<16x128xf32>
    %cst_146 = arith.constant 5.000000e-01 : f32
    %379 = vector.broadcast %cst_146 : f32 to vector<16x128xf32>
    %380 = arith.mulf %379, %378 : vector<16x128xf32>
    %cst_147 = arith.constant 5.000000e-01 : f32
    %381 = vector.broadcast %cst_147 : f32 to vector<16x128xf32>
    %382 = arith.addf %380, %381 : vector<16x128xf32>
    %383 = vector.extract_strided_slice %365 {offsets = [0, 128], sizes = [16, 128], strides = [1, 1]} : vector<16x512xf32> to vector<16x128xf32>
    %cst_148 = arith.constant 5.000000e-01 : f32
    %384 = vector.broadcast %cst_148 : f32 to vector<16x128xf32>
    %385 = arith.mulf %384, %383 : vector<16x128xf32>
    %386 = math.tanh %385 : vector<16x128xf32>
    %cst_149 = arith.constant 5.000000e-01 : f32
    %387 = vector.broadcast %cst_149 : f32 to vector<16x128xf32>
    %388 = arith.mulf %387, %386 : vector<16x128xf32>
    %cst_150 = arith.constant 5.000000e-01 : f32
    %389 = vector.broadcast %cst_150 : f32 to vector<16x128xf32>
    %390 = arith.addf %388, %389 : vector<16x128xf32>
    %391 = vector.extract_strided_slice %365 {offsets = [0, 256], sizes = [16, 128], strides = [1, 1]} : vector<16x512xf32> to vector<16x128xf32>
    %392 = math.tanh %391 : vector<16x128xf32>
    %393 = vector.extract_strided_slice %365 {offsets = [0, 384], sizes = [16, 128], strides = [1, 1]} : vector<16x512xf32> to vector<16x128xf32>
    %cst_151 = arith.constant 5.000000e-01 : f32
    %394 = vector.broadcast %cst_151 : f32 to vector<16x128xf32>
    %395 = arith.mulf %394, %393 : vector<16x128xf32>
    %396 = math.tanh %395 : vector<16x128xf32>
    %cst_152 = arith.constant 5.000000e-01 : f32
    %397 = vector.broadcast %cst_152 : f32 to vector<16x128xf32>
    %398 = arith.mulf %397, %396 : vector<16x128xf32>
    %cst_153 = arith.constant 5.000000e-01 : f32
    %399 = vector.broadcast %cst_153 : f32 to vector<16x128xf32>
    %400 = arith.addf %398, %399 : vector<16x128xf32>
    %401 = arith.mulf %390, %345 : vector<16x128xf32>
    %402 = arith.mulf %382, %392 : vector<16x128xf32>
    %403 = arith.addf %401, %402 : vector<16x128xf32>
    %404 = math.tanh %403 : vector<16x128xf32>
    %405 = arith.mulf %400, %404 : vector<16x128xf32>
    %406 = vector.extract_strided_slice %374 {offsets = [0, 0], sizes = [16, 128], strides = [1, 1]} : vector<16x512xf32> to vector<16x128xf32>
    %cst_154 = arith.constant 5.000000e-01 : f32
    %407 = vector.broadcast %cst_154 : f32 to vector<16x128xf32>
    %408 = arith.mulf %407, %406 : vector<16x128xf32>
    %409 = math.tanh %408 : vector<16x128xf32>
    %cst_155 = arith.constant 5.000000e-01 : f32
    %410 = vector.broadcast %cst_155 : f32 to vector<16x128xf32>
    %411 = arith.mulf %410, %409 : vector<16x128xf32>
    %cst_156 = arith.constant 5.000000e-01 : f32
    %412 = vector.broadcast %cst_156 : f32 to vector<16x128xf32>
    %413 = arith.addf %411, %412 : vector<16x128xf32>
    %414 = vector.extract_strided_slice %374 {offsets = [0, 128], sizes = [16, 128], strides = [1, 1]} : vector<16x512xf32> to vector<16x128xf32>
    %cst_157 = arith.constant 5.000000e-01 : f32
    %415 = vector.broadcast %cst_157 : f32 to vector<16x128xf32>
    %416 = arith.mulf %415, %414 : vector<16x128xf32>
    %417 = math.tanh %416 : vector<16x128xf32>
    %cst_158 = arith.constant 5.000000e-01 : f32
    %418 = vector.broadcast %cst_158 : f32 to vector<16x128xf32>
    %419 = arith.mulf %418, %417 : vector<16x128xf32>
    %cst_159 = arith.constant 5.000000e-01 : f32
    %420 = vector.broadcast %cst_159 : f32 to vector<16x128xf32>
    %421 = arith.addf %419, %420 : vector<16x128xf32>
    %422 = vector.extract_strided_slice %374 {offsets = [0, 256], sizes = [16, 128], strides = [1, 1]} : vector<16x512xf32> to vector<16x128xf32>
    %423 = math.tanh %422 : vector<16x128xf32>
    %424 = vector.extract_strided_slice %374 {offsets = [0, 384], sizes = [16, 128], strides = [1, 1]} : vector<16x512xf32> to vector<16x128xf32>
    %cst_160 = arith.constant 5.000000e-01 : f32
    %425 = vector.broadcast %cst_160 : f32 to vector<16x128xf32>
    %426 = arith.mulf %425, %424 : vector<16x128xf32>
    %427 = math.tanh %426 : vector<16x128xf32>
    %cst_161 = arith.constant 5.000000e-01 : f32
    %428 = vector.broadcast %cst_161 : f32 to vector<16x128xf32>
    %429 = arith.mulf %428, %427 : vector<16x128xf32>
    %cst_162 = arith.constant 5.000000e-01 : f32
    %430 = vector.broadcast %cst_162 : f32 to vector<16x128xf32>
    %431 = arith.addf %429, %430 : vector<16x128xf32>
    %432 = arith.mulf %421, %357 : vector<16x128xf32>
    %433 = arith.mulf %413, %423 : vector<16x128xf32>
    %434 = arith.addf %432, %433 : vector<16x128xf32>
    %435 = math.tanh %434 : vector<16x128xf32>
    %436 = arith.mulf %431, %435 : vector<16x128xf32>
    %437 = arith.addi %23, %c3_i32_133 : i32
    %c9_i32_163 = arith.constant 9 : i32
    %438 = arith.cmpi slt, %437, %c9_i32_163 : i32
    %439 = arith.extui %438 : i1 to i32
    %440 = arith.sitofp %439 : i32 to f32
    %c3_i32_164 = arith.constant 3 : i32
    %441 = arith.cmpi sge, %437, %c3_i32_164 : i32
    %442 = arith.extui %441 : i1 to i32
    %443 = arith.sitofp %442 : i32 to f32
    %444 = vector.broadcast %440 : f32 to vector<16x128xf32>
    %445 = arith.mulf %444, %405 : vector<16x128xf32>
    %cst_165 = arith.constant 1.000000e+00 : f32
    %446 = arith.subf %cst_165, %440 : f32
    %447 = vector.broadcast %446 : f32 to vector<16x128xf32>
    %448 = arith.mulf %447, %339 : vector<16x128xf32>
    %449 = arith.addf %445, %448 : vector<16x128xf32>
    %450 = vector.broadcast %440 : f32 to vector<16x128xf32>
    %451 = arith.mulf %450, %403 : vector<16x128xf32>
    %cst_166 = arith.constant 1.000000e+00 : f32
    %452 = arith.subf %cst_166, %440 : f32
    %453 = vector.broadcast %452 : f32 to vector<16x128xf32>
    %454 = arith.mulf %453, %345 : vector<16x128xf32>
    %455 = arith.addf %451, %454 : vector<16x128xf32>
    %456 = vector.broadcast %443 : f32 to vector<16x128xf32>
    %457 = arith.mulf %456, %436 : vector<16x128xf32>
    %cst_167 = arith.constant 1.000000e+00 : f32
    %458 = arith.subf %cst_167, %443 : f32
    %459 = vector.broadcast %458 : f32 to vector<16x128xf32>
    %460 = arith.mulf %459, %351 : vector<16x128xf32>
    %461 = arith.addf %457, %460 : vector<16x128xf32>
    %462 = vector.broadcast %443 : f32 to vector<16x128xf32>
    %463 = arith.mulf %462, %434 : vector<16x128xf32>
    %cst_168 = arith.constant 1.000000e+00 : f32
    %464 = arith.subf %cst_168, %443 : f32
    %465 = vector.broadcast %464 : f32 to vector<16x128xf32>
    %466 = arith.mulf %465, %357 : vector<16x128xf32>
    %467 = arith.addf %463, %466 : vector<16x128xf32>
    %c4_i32_169 = arith.constant 4 : i32
    %c0_170 = arith.constant 0 : index
    %c0_171 = arith.constant 0 : index
    %468 = vector.load %arg15[%c0_170, %c0_171] : memref<16x128xf32, #tpu.memory_space<vmem>>, vector<16x128xf32>
    tpu.vector_store %arg15[%c0_170, %c0_171], %449 {strides = array<i32>} : memref<16x128xf32, #tpu.memory_space<vmem>>, vector<16x128xf32>,
    %c0_172 = arith.constant 0 : index
    %c0_173 = arith.constant 0 : index
    %469 = vector.load %arg16[%c0_172, %c0_173] : memref<16x128xf32, #tpu.memory_space<vmem>>, vector<16x128xf32>
    tpu.vector_store %arg16[%c0_172, %c0_173], %455 {strides = array<i32>} : memref<16x128xf32, #tpu.memory_space<vmem>>, vector<16x128xf32>,
    %c0_174 = arith.constant 0 : index
    %c0_175 = arith.constant 0 : index
    %470 = vector.load %arg17[%c0_174, %c0_175] : memref<16x128xf32, #tpu.memory_space<vmem>>, vector<16x128xf32>
    tpu.vector_store %arg17[%c0_174, %c0_175], %461 {strides = array<i32>} : memref<16x128xf32, #tpu.memory_space<vmem>>, vector<16x128xf32>,
    %c0_176 = arith.constant 0 : index
    %c0_177 = arith.constant 0 : index
    %471 = vector.load %arg18[%c0_176, %c0_177] : memref<16x128xf32, #tpu.memory_space<vmem>>, vector<16x128xf32>
    tpu.vector_store %arg18[%c0_176, %c0_177], %467 {strides = array<i32>} : memref<16x128xf32, #tpu.memory_space<vmem>>, vector<16x128xf32>,
    %c2_i32_178 = arith.constant 2 : i32
    %472 = arith.cmpi eq, %arg0, %c2_i32_178 : i32
    %473 = arith.extui %472 : i1 to i32
    %c0_i32_179 = arith.constant 0 : i32
    %474 = arith.cmpi ne, %473, %c0_i32_179 : i32
    scf.if %474 {
      %c0_180 = arith.constant 0 : index
      %c0_181 = arith.constant 0 : index
      %475 = vector.load %arg9[%c0_180, %c0_181] : memref<128x128xf32, #tpu.memory_space<vmem>>, vector<128x128xf32>
      %cst_182 = arith.constant dense<0.000000e+00> : vector<16x128xf32>
      %476 = tpu.matmul %449, %475, %cst_182 {dimension_numbers = #tpu.dot_dimension_numbers<[1], [0], [0], [1], [0, 0, 1, 1], [], []>} : vector<16x128xf32>, vector<128x128xf32>, vector<16x128xf32> -> vector<16x128xf32>
      %c0_183 = arith.constant 0 : index
      %c0_184 = arith.constant 0 : index
      %477 = vector.load %arg10[%c0_183, %c0_184] : memref<128x128xf32, #tpu.memory_space<vmem>>, vector<128x128xf32>
      %cst_185 = arith.constant dense<0.000000e+00> : vector<16x128xf32>
      %478 = tpu.matmul %461, %477, %cst_185 {dimension_numbers = #tpu.dot_dimension_numbers<[1], [0], [0], [1], [0, 0, 1, 1], [], []>} : vector<16x128xf32>, vector<128x128xf32>, vector<16x128xf32> -> vector<16x128xf32>
      %479 = arith.addf %476, %478 : vector<16x128xf32>
      %c0_186 = arith.constant 0 : index
      %c0_187 = arith.constant 0 : index
      %480 = vector.load %arg11[%c0_186, %c0_187] : memref<1x128xf32, #tpu.memory_space<vmem>>, vector<1x128xf32>
      %481 = vector.broadcast %480 : vector<1x128xf32> to vector<16x128xf32>
      %482 = arith.addf %479, %481 : vector<16x128xf32>
      %c0_188 = arith.constant 0 : index
      %c0_189 = arith.constant 0 : index
      %483 = vector.load %arg12[%c0_188, %c0_189] : memref<16x128xf32, #tpu.memory_space<vmem>>, vector<16x128xf32>
      tpu.vector_store %arg12[%c0_188, %c0_189], %482 {strides = array<i32>} : memref<16x128xf32, #tpu.memory_space<vmem>>, vector<16x128xf32>,
    } else {
    }
    return
  }
  func.func @transform_0(%arg0: i32) -> (i32, i32, i32) {
    %c0_i32 = arith.constant 0 : i32
    %c0_i32_0 = arith.constant 0 : i32
    %c0_i32_1 = arith.constant 0 : i32
    return %arg0, %c0_i32, %c0_i32_0 : i32, i32, i32
  }
  func.func @transform_1(%arg0: i32) -> (i32, i32, i32) {
    %c2_i32 = arith.constant 2 : i32
    %0 = arith.subi %c2_i32, %arg0 : i32
    %c0_i32 = arith.constant 0 : i32
    %c0_i32_0 = arith.constant 0 : i32
    %c0_i32_1 = arith.constant 0 : i32
    return %0, %c0_i32, %c0_i32_0 : i32, i32, i32
  }
  func.func @transform_2(%arg0: i32) -> (i32, i32) {
    %c0_i32 = arith.constant 0 : i32
    %c0_i32_0 = arith.constant 0 : i32
    %c0_i32_1 = arith.constant 0 : i32
    return %c0_i32, %c0_i32_0 : i32, i32
  }
  func.func @transform_3(%arg0: i32) -> (i32, i32) {
    %c0_i32 = arith.constant 0 : i32
    %c0_i32_0 = arith.constant 0 : i32
    %c0_i32_1 = arith.constant 0 : i32
    return %c0_i32, %c0_i32_0 : i32, i32
  }
  func.func @transform_4(%arg0: i32) -> (i32, i32) {
    %c0_i32 = arith.constant 0 : i32
    %c0_i32_0 = arith.constant 0 : i32
    %c0_i32_1 = arith.constant 0 : i32
    return %c0_i32, %c0_i32_0 : i32, i32
  }
  func.func @transform_5(%arg0: i32) -> (i32, i32) {
    %c0_i32 = arith.constant 0 : i32
    %c0_i32_0 = arith.constant 0 : i32
    %c0_i32_1 = arith.constant 0 : i32
    return %c0_i32, %c0_i32_0 : i32, i32
  }
  func.func @transform_6(%arg0: i32) -> (i32, i32) {
    %c0_i32 = arith.constant 0 : i32
    %c0_i32_0 = arith.constant 0 : i32
    %c0_i32_1 = arith.constant 0 : i32
    return %c0_i32, %c0_i32_0 : i32, i32
  }
  func.func @transform_7(%arg0: i32) -> (i32, i32) {
    %c0_i32 = arith.constant 0 : i32
    %c0_i32_0 = arith.constant 0 : i32
    %c0_i32_1 = arith.constant 0 : i32
    return %c0_i32, %c0_i32_0 : i32, i32
  }
  func.func @transform_8(%arg0: i32) -> (i32, i32) {
    %c0_i32 = arith.constant 0 : i32
    %c0_i32_0 = arith.constant 0 : i32
    %c0_i32_1 = arith.constant 0 : i32
    return %c0_i32, %c0_i32_0 : i32, i32
  }
  func.func @transform_9(%arg0: i32) -> (i32, i32) {
    %c0_i32 = arith.constant 0 : i32
    %c0_i32_0 = arith.constant 0 : i32
    %c0_i32_1 = arith.constant 0 : i32
    return %c0_i32, %c0_i32_0 : i32, i32
  }
  func.func @transform_10(%arg0: i32) -> (i32, i32) {
    %c0_i32 = arith.constant 0 : i32
    %c0_i32_0 = arith.constant 0 : i32
    %c0_i32_1 = arith.constant 0 : i32
    return %c0_i32, %c0_i32_0 : i32, i32
  }
  func.func @transform_11(%arg0: i32) -> (i32, i32) {
    %c0_i32 = arith.constant 0 : i32
    %c0_i32_0 = arith.constant 0 : i32
    %c0_i32_1 = arith.constant 0 : i32
    return %c0_i32, %c0_i32_0 : i32, i32
  }
}

module attributes {stable_mosaic.version = 11 : i64} {
  func.func @_newsnet_lstm_kernel(%arg0: i32, %arg1: memref<1x64x128xbf16, #tpu.memory_space<vmem>>, %arg2: memref<1x64x128xbf16, #tpu.memory_space<vmem>>, %arg3: memref<128x512xbf16, #tpu.memory_space<vmem>>, %arg4: memref<128x512xbf16, #tpu.memory_space<vmem>>, %arg5: memref<1x512xf32, #tpu.memory_space<vmem>>, %arg6: memref<128x512xbf16, #tpu.memory_space<vmem>>, %arg7: memref<128x512xbf16, #tpu.memory_space<vmem>>, %arg8: memref<1x512xf32, #tpu.memory_space<vmem>>, %arg9: memref<128x128xf32, #tpu.memory_space<vmem>>, %arg10: memref<128x128xf32, #tpu.memory_space<vmem>>, %arg11: memref<1x128xf32, #tpu.memory_space<vmem>>, %arg12: memref<16x128xf32, #tpu.memory_space<vmem>>, %arg13: memref<4x16x512xbf16, #tpu.memory_space<vmem>>, %arg14: memref<4x16x512xbf16, #tpu.memory_space<vmem>>, %arg15: memref<16x128xf32, #tpu.memory_space<vmem>>, %arg16: memref<16x128xf32, #tpu.memory_space<vmem>>, %arg17: memref<16x128xf32, #tpu.memory_space<vmem>>, %arg18: memref<16x128xf32, #tpu.memory_space<vmem>>) attributes {dimension_semantics = [#tpu.dimension_semantics<arbitrary>], iteration_bounds = array<i64: 3>, scalar_prefetch = 0 : i64, scratch_operands = 6 : i64, tpu.core_type = #tpu.core_type<tc>, window_params = [{transform_indices = @transform_0, window_bounds = array<i64: 1, 64, 128>}, {transform_indices = @transform_1, window_bounds = array<i64: 1, 64, 128>}, {pipeline_mode = #tpu.pipeline_mode<synchronous>, transform_indices = @transform_2, window_bounds = array<i64: 128, 512>}, {pipeline_mode = #tpu.pipeline_mode<synchronous>, transform_indices = @transform_3, window_bounds = array<i64: 128, 512>}, {pipeline_mode = #tpu.pipeline_mode<synchronous>, transform_indices = @transform_4, window_bounds = array<i64: 1, 512>}, {pipeline_mode = #tpu.pipeline_mode<synchronous>, transform_indices = @transform_5, window_bounds = array<i64: 128, 512>}, {pipeline_mode = #tpu.pipeline_mode<synchronous>, transform_indices = @transform_6, window_bounds = array<i64: 128, 512>}, {pipeline_mode = #tpu.pipeline_mode<synchronous>, transform_indices = @transform_7, window_bounds = array<i64: 1, 512>}, {pipeline_mode = #tpu.pipeline_mode<synchronous>, transform_indices = @transform_8, window_bounds = array<i64: 128, 128>}, {pipeline_mode = #tpu.pipeline_mode<synchronous>, transform_indices = @transform_9, window_bounds = array<i64: 128, 128>}, {pipeline_mode = #tpu.pipeline_mode<synchronous>, transform_indices = @transform_10, window_bounds = array<i64: 1, 128>}, {pipeline_mode = #tpu.pipeline_mode<synchronous>, transform_indices = @transform_11, window_bounds = array<i64: 16, 128>}]} {
    %c0_i32 = arith.constant 0 : i32
    %0 = arith.cmpi eq, %arg0, %c0_i32 : i32
    %1 = arith.extui %0 : i1 to i32
    %c0_i32_0 = arith.constant 0 : i32
    %2 = arith.cmpi ne, %1, %c0_i32_0 : i32
    scf.if %2 {
      %cst_180 = arith.constant 0.000000e+00 : f32
      %475 = vector.broadcast %cst_180 : f32 to vector<16x128xf32>
      %c0_181 = arith.constant 0 : index
      %c0_182 = arith.constant 0 : index
      %476 = vector.load %arg15[%c0_181, %c0_182] : memref<16x128xf32, #tpu.memory_space<vmem>>, vector<16x128xf32>
      tpu.vector_store %arg15[%c0_181, %c0_182], %475 {strides = array<i32>} : memref<16x128xf32, #tpu.memory_space<vmem>>, vector<16x128xf32>,
      %cst_183 = arith.constant 0.000000e+00 : f32
      %477 = vector.broadcast %cst_183 : f32 to vector<16x128xf32>
      %c0_184 = arith.constant 0 : index
      %c0_185 = arith.constant 0 : index
      %478 = vector.load %arg16[%c0_184, %c0_185] : memref<16x128xf32, #tpu.memory_space<vmem>>, vector<16x128xf32>
      tpu.vector_store %arg16[%c0_184, %c0_185], %477 {strides = array<i32>} : memref<16x128xf32, #tpu.memory_space<vmem>>, vector<16x128xf32>,
      %cst_186 = arith.constant 0.000000e+00 : f32
      %479 = vector.broadcast %cst_186 : f32 to vector<16x128xf32>
      %c0_187 = arith.constant 0 : index
      %c0_188 = arith.constant 0 : index
      %480 = vector.load %arg17[%c0_187, %c0_188] : memref<16x128xf32, #tpu.memory_space<vmem>>, vector<16x128xf32>
      tpu.vector_store %arg17[%c0_187, %c0_188], %479 {strides = array<i32>} : memref<16x128xf32, #tpu.memory_space<vmem>>, vector<16x128xf32>,
      %cst_189 = arith.constant 0.000000e+00 : f32
      %481 = vector.broadcast %cst_189 : f32 to vector<16x128xf32>
      %c0_190 = arith.constant 0 : index
      %c0_191 = arith.constant 0 : index
      %482 = vector.load %arg18[%c0_190, %c0_191] : memref<16x128xf32, #tpu.memory_space<vmem>>, vector<16x128xf32>
      tpu.vector_store %arg18[%c0_190, %c0_191], %481 {strides = array<i32>} : memref<16x128xf32, #tpu.memory_space<vmem>>, vector<16x128xf32>,
    } else {
    }
    %c0 = arith.constant 0 : index
    %c0_1 = arith.constant 0 : index
    %c0_2 = arith.constant 0 : index
    %3 = vector.load %arg1[%c0, %c0_1, %c0_2] : memref<1x64x128xbf16, #tpu.memory_space<vmem>>, vector<1x64x128xbf16>
    %4 = vector.shape_cast %3 : vector<1x64x128xbf16> to vector<64x128xbf16>
    %c0_3 = arith.constant 0 : index
    %c0_4 = arith.constant 0 : index
    %5 = vector.load %arg3[%c0_3, %c0_4] : memref<128x512xbf16, #tpu.memory_space<vmem>>, vector<128x512xbf16>
    %cst = arith.constant dense<0.000000e+00> : vector<64x512xf32>
    %6 = tpu.matmul %4, %5, %cst {dimension_numbers = #tpu.dot_dimension_numbers<[1], [0], [0], [1], [0, 0, 1, 1], [], []>} : vector<64x128xbf16>, vector<128x512xbf16>, vector<64x512xf32> -> vector<64x512xf32>
    %c0_5 = arith.constant 0 : index
    %c0_6 = arith.constant 0 : index
    %7 = vector.load %arg5[%c0_5, %c0_6] : memref<1x512xf32, #tpu.memory_space<vmem>>, vector<1x512xf32>
    %8 = vector.broadcast %7 : vector<1x512xf32> to vector<64x512xf32>
    %9 = arith.addf %6, %8 : vector<64x512xf32>
    %10 = arith.truncf %9 : vector<64x512xf32> to vector<64x512xbf16>
    %11 = vector.shape_cast %10 : vector<64x512xbf16> to vector<4x16x512xbf16>
    %c0_7 = arith.constant 0 : index
    %c0_8 = arith.constant 0 : index
    %c0_9 = arith.constant 0 : index
    %12 = vector.load %arg13[%c0_7, %c0_8, %c0_9] : memref<4x16x512xbf16, #tpu.memory_space<vmem>>, vector<4x16x512xbf16>
    tpu.vector_store %arg13[%c0_7, %c0_8, %c0_9], %11 {strides = array<i32>} : memref<4x16x512xbf16, #tpu.memory_space<vmem>>, vector<4x16x512xbf16>,
    %c0_10 = arith.constant 0 : index
    %c0_11 = arith.constant 0 : index
    %c0_12 = arith.constant 0 : index
    %13 = vector.load %arg2[%c0_10, %c0_11, %c0_12] : memref<1x64x128xbf16, #tpu.memory_space<vmem>>, vector<1x64x128xbf16>
    %14 = vector.shape_cast %13 : vector<1x64x128xbf16> to vector<64x128xbf16>
    %c0_13 = arith.constant 0 : index
    %c0_14 = arith.constant 0 : index
    %15 = vector.load %arg6[%c0_13, %c0_14] : memref<128x512xbf16, #tpu.memory_space<vmem>>, vector<128x512xbf16>
    %cst_15 = arith.constant dense<0.000000e+00> : vector<64x512xf32>
    %16 = tpu.matmul %14, %15, %cst_15 {dimension_numbers = #tpu.dot_dimension_numbers<[1], [0], [0], [1], [0, 0, 1, 1], [], []>} : vector<64x128xbf16>, vector<128x512xbf16>, vector<64x512xf32> -> vector<64x512xf32>
    %c0_16 = arith.constant 0 : index
    %c0_17 = arith.constant 0 : index
    %17 = vector.load %arg8[%c0_16, %c0_17] : memref<1x512xf32, #tpu.memory_space<vmem>>, vector<1x512xf32>
    %18 = vector.broadcast %17 : vector<1x512xf32> to vector<64x512xf32>
    %19 = arith.addf %16, %18 : vector<64x512xf32>
    %20 = arith.truncf %19 : vector<64x512xf32> to vector<64x512xbf16>
    %21 = vector.shape_cast %20 : vector<64x512xbf16> to vector<4x16x512xbf16>
    %c0_18 = arith.constant 0 : index
    %c0_19 = arith.constant 0 : index
    %c0_20 = arith.constant 0 : index
    %22 = vector.load %arg14[%c0_18, %c0_19, %c0_20] : memref<4x16x512xbf16, #tpu.memory_space<vmem>>, vector<4x16x512xbf16>
    tpu.vector_store %arg14[%c0_18, %c0_19, %c0_20], %21 {strides = array<i32>} : memref<4x16x512xbf16, #tpu.memory_space<vmem>>, vector<4x16x512xbf16>,
    %c4_i32 = arith.constant 4 : i32
    %23 = arith.muli %arg0, %c4_i32 : i32
    %c0_21 = arith.constant 0 : index
    %c0_22 = arith.constant 0 : index
    %24 = vector.load %arg15[%c0_21, %c0_22] : memref<16x128xf32, #tpu.memory_space<vmem>>, vector<16x128xf32>
    %c0_23 = arith.constant 0 : index
    %c0_24 = arith.constant 0 : index
    %25 = vector.load %arg16[%c0_23, %c0_24] : memref<16x128xf32, #tpu.memory_space<vmem>>, vector<16x128xf32>
    %c0_25 = arith.constant 0 : index
    %c0_26 = arith.constant 0 : index
    %26 = vector.load %arg17[%c0_25, %c0_26] : memref<16x128xf32, #tpu.memory_space<vmem>>, vector<16x128xf32>
    %c0_27 = arith.constant 0 : index
    %c0_28 = arith.constant 0 : index
    %27 = vector.load %arg18[%c0_27, %c0_28] : memref<16x128xf32, #tpu.memory_space<vmem>>, vector<16x128xf32>
    %c0_i32_29 = arith.constant 0 : i32
    %28 = arith.index_cast %c0_i32_29 : i32 to index
    %c0_30 = arith.constant 0 : index
    %c0_31 = arith.constant 0 : index
    %29 = vector.load %arg13[%28, %c0_30, %c0_31] : memref<4x16x512xbf16, #tpu.memory_space<vmem>>, vector<1x16x512xbf16>
    %30 = vector.shape_cast %29 : vector<1x16x512xbf16> to vector<16x512xbf16>
    %31 = arith.extf %30 : vector<16x512xbf16> to vector<16x512xf32>
    %32 = arith.truncf %24 : vector<16x128xf32> to vector<16x128xbf16>
    %c0_32 = arith.constant 0 : index
    %c0_33 = arith.constant 0 : index
    %33 = vector.load %arg4[%c0_32, %c0_33] : memref<128x512xbf16, #tpu.memory_space<vmem>>, vector<128x512xbf16>
    %cst_34 = arith.constant dense<0.000000e+00> : vector<16x512xf32>
    %34 = tpu.matmul %32, %33, %cst_34 {dimension_numbers = #tpu.dot_dimension_numbers<[1], [0], [0], [1], [0, 0, 1, 1], [], []>} : vector<16x128xbf16>, vector<128x512xbf16>, vector<16x512xf32> -> vector<16x512xf32>
    %35 = arith.addf %31, %34 : vector<16x512xf32>
    %c3_i32 = arith.constant 3 : i32
    %36 = arith.subi %c3_i32, %c0_i32_29 : i32
    %37 = arith.index_cast %36 : i32 to index
    %c0_35 = arith.constant 0 : index
    %c0_36 = arith.constant 0 : index
    %38 = vector.load %arg14[%37, %c0_35, %c0_36] : memref<4x16x512xbf16, #tpu.memory_space<vmem>>, vector<1x16x512xbf16>
    %39 = vector.shape_cast %38 : vector<1x16x512xbf16> to vector<16x512xbf16>
    %40 = arith.extf %39 : vector<16x512xbf16> to vector<16x512xf32>
    %41 = arith.truncf %26 : vector<16x128xf32> to vector<16x128xbf16>
    %c0_37 = arith.constant 0 : index
    %c0_38 = arith.constant 0 : index
    %42 = vector.load %arg7[%c0_37, %c0_38] : memref<128x512xbf16, #tpu.memory_space<vmem>>, vector<128x512xbf16>
    %cst_39 = arith.constant dense<0.000000e+00> : vector<16x512xf32>
    %43 = tpu.matmul %41, %42, %cst_39 {dimension_numbers = #tpu.dot_dimension_numbers<[1], [0], [0], [1], [0, 0, 1, 1], [], []>} : vector<16x128xbf16>, vector<128x512xbf16>, vector<16x512xf32> -> vector<16x512xf32>
    %44 = arith.addf %40, %43 : vector<16x512xf32>
    %45 = vector.extract_strided_slice %35 {offsets = [0, 0], sizes = [16, 128], strides = [1, 1]} : vector<16x512xf32> to vector<16x128xf32>
    %cst_40 = arith.constant 5.000000e-01 : f32
    %46 = vector.broadcast %cst_40 : f32 to vector<16x128xf32>
    %47 = arith.mulf %46, %45 : vector<16x128xf32>
    %48 = math.tanh %47 : vector<16x128xf32>
    %cst_41 = arith.constant 5.000000e-01 : f32
    %49 = vector.broadcast %cst_41 : f32 to vector<16x128xf32>
    %50 = arith.mulf %49, %48 : vector<16x128xf32>
    %cst_42 = arith.constant 5.000000e-01 : f32
    %51 = vector.broadcast %cst_42 : f32 to vector<16x128xf32>
    %52 = arith.addf %50, %51 : vector<16x128xf32>
    %53 = vector.extract_strided_slice %35 {offsets = [0, 128], sizes = [16, 128], strides = [1, 1]} : vector<16x512xf32> to vector<16x128xf32>
    %cst_43 = arith.constant 5.000000e-01 : f32
    %54 = vector.broadcast %cst_43 : f32 to vector<16x128xf32>
    %55 = arith.mulf %54, %53 : vector<16x128xf32>
    %56 = math.tanh %55 : vector<16x128xf32>
    %cst_44 = arith.constant 5.000000e-01 : f32
    %57 = vector.broadcast %cst_44 : f32 to vector<16x128xf32>
    %58 = arith.mulf %57, %56 : vector<16x128xf32>
    %cst_45 = arith.constant 5.000000e-01 : f32
    %59 = vector.broadcast %cst_45 : f32 to vector<16x128xf32>
    %60 = arith.addf %58, %59 : vector<16x128xf32>
    %61 = vector.extract_strided_slice %35 {offsets = [0, 256], sizes = [16, 128], strides = [1, 1]} : vector<16x512xf32> to vector<16x128xf32>
    %62 = math.tanh %61 : vector<16x128xf32>
    %63 = vector.extract_strided_slice %35 {offsets = [0, 384], sizes = [16, 128], strides = [1, 1]} : vector<16x512xf32> to vector<16x128xf32>
    %cst_46 = arith.constant 5.000000e-01 : f32
    %64 = vector.broadcast %cst_46 : f32 to vector<16x128xf32>
    %65 = arith.mulf %64, %63 : vector<16x128xf32>
    %66 = math.tanh %65 : vector<16x128xf32>
    %cst_47 = arith.constant 5.000000e-01 : f32
    %67 = vector.broadcast %cst_47 : f32 to vector<16x128xf32>
    %68 = arith.mulf %67, %66 : vector<16x128xf32>
    %cst_48 = arith.constant 5.000000e-01 : f32
    %69 = vector.broadcast %cst_48 : f32 to vector<16x128xf32>
    %70 = arith.addf %68, %69 : vector<16x128xf32>
    %71 = arith.mulf %60, %25 : vector<16x128xf32>
    %72 = arith.mulf %52, %62 : vector<16x128xf32>
    %73 = arith.addf %71, %72 : vector<16x128xf32>
    %74 = math.tanh %73 : vector<16x128xf32>
    %75 = arith.mulf %70, %74 : vector<16x128xf32>
    %76 = vector.extract_strided_slice %44 {offsets = [0, 0], sizes = [16, 128], strides = [1, 1]} : vector<16x512xf32> to vector<16x128xf32>
    %cst_49 = arith.constant 5.000000e-01 : f32
    %77 = vector.broadcast %cst_49 : f32 to vector<16x128xf32>
    %78 = arith.mulf %77, %76 : vector<16x128xf32>
    %79 = math.tanh %78 : vector<16x128xf32>
    %cst_50 = arith.constant 5.000000e-01 : f32
    %80 = vector.broadcast %cst_50 : f32 to vector<16x128xf32>
    %81 = arith.mulf %80, %79 : vector<16x128xf32>
    %cst_51 = arith.constant 5.000000e-01 : f32
    %82 = vector.broadcast %cst_51 : f32 to vector<16x128xf32>
    %83 = arith.addf %81, %82 : vector<16x128xf32>
    %84 = vector.extract_strided_slice %44 {offsets = [0, 128], sizes = [16, 128], strides = [1, 1]} : vector<16x512xf32> to vector<16x128xf32>
    %cst_52 = arith.constant 5.000000e-01 : f32
    %85 = vector.broadcast %cst_52 : f32 to vector<16x128xf32>
    %86 = arith.mulf %85, %84 : vector<16x128xf32>
    %87 = math.tanh %86 : vector<16x128xf32>
    %cst_53 = arith.constant 5.000000e-01 : f32
    %88 = vector.broadcast %cst_53 : f32 to vector<16x128xf32>
    %89 = arith.mulf %88, %87 : vector<16x128xf32>
    %cst_54 = arith.constant 5.000000e-01 : f32
    %90 = vector.broadcast %cst_54 : f32 to vector<16x128xf32>
    %91 = arith.addf %89, %90 : vector<16x128xf32>
    %92 = vector.extract_strided_slice %44 {offsets = [0, 256], sizes = [16, 128], strides = [1, 1]} : vector<16x512xf32> to vector<16x128xf32>
    %93 = math.tanh %92 : vector<16x128xf32>
    %94 = vector.extract_strided_slice %44 {offsets = [0, 384], sizes = [16, 128], strides = [1, 1]} : vector<16x512xf32> to vector<16x128xf32>
    %cst_55 = arith.constant 5.000000e-01 : f32
    %95 = vector.broadcast %cst_55 : f32 to vector<16x128xf32>
    %96 = arith.mulf %95, %94 : vector<16x128xf32>
    %97 = math.tanh %96 : vector<16x128xf32>
    %cst_56 = arith.constant 5.000000e-01 : f32
    %98 = vector.broadcast %cst_56 : f32 to vector<16x128xf32>
    %99 = arith.mulf %98, %97 : vector<16x128xf32>
    %cst_57 = arith.constant 5.000000e-01 : f32
    %100 = vector.broadcast %cst_57 : f32 to vector<16x128xf32>
    %101 = arith.addf %99, %100 : vector<16x128xf32>
    %102 = arith.mulf %91, %27 : vector<16x128xf32>
    %103 = arith.mulf %83, %93 : vector<16x128xf32>
    %104 = arith.addf %102, %103 : vector<16x128xf32>
    %105 = math.tanh %104 : vector<16x128xf32>
    %106 = arith.mulf %101, %105 : vector<16x128xf32>
    %107 = arith.addi %23, %c0_i32_29 : i32
    %c9_i32 = arith.constant 9 : i32
    %108 = arith.cmpi slt, %107, %c9_i32 : i32
    %109 = arith.extui %108 : i1 to i32
    %110 = arith.sitofp %109 : i32 to f32
    %c3_i32_58 = arith.constant 3 : i32
    %111 = arith.cmpi sge, %107, %c3_i32_58 : i32
    %112 = arith.extui %111 : i1 to i32
    %113 = arith.sitofp %112 : i32 to f32
    %114 = vector.broadcast %110 : f32 to vector<16x128xf32>
    %115 = arith.mulf %114, %75 : vector<16x128xf32>
    %cst_59 = arith.constant 1.000000e+00 : f32
    %116 = arith.subf %cst_59, %110 : f32
    %117 = vector.broadcast %116 : f32 to vector<16x128xf32>
    %118 = arith.mulf %117, %24 : vector<16x128xf32>
    %119 = arith.addf %115, %118 : vector<16x128xf32>
    %120 = vector.broadcast %110 : f32 to vector<16x128xf32>
    %121 = arith.mulf %120, %73 : vector<16x128xf32>
    %cst_60 = arith.constant 1.000000e+00 : f32
    %122 = arith.subf %cst_60, %110 : f32
    %123 = vector.broadcast %122 : f32 to vector<16x128xf32>
    %124 = arith.mulf %123, %25 : vector<16x128xf32>
    %125 = arith.addf %121, %124 : vector<16x128xf32>
    %126 = vector.broadcast %113 : f32 to vector<16x128xf32>
    %127 = arith.mulf %126, %106 : vector<16x128xf32>
    %cst_61 = arith.constant 1.000000e+00 : f32
    %128 = arith.subf %cst_61, %113 : f32
    %129 = vector.broadcast %128 : f32 to vector<16x128xf32>
    %130 = arith.mulf %129, %26 : vector<16x128xf32>
    %131 = arith.addf %127, %130 : vector<16x128xf32>
    %132 = vector.broadcast %113 : f32 to vector<16x128xf32>
    %133 = arith.mulf %132, %104 : vector<16x128xf32>
    %cst_62 = arith.constant 1.000000e+00 : f32
    %134 = arith.subf %cst_62, %113 : f32
    %135 = vector.broadcast %134 : f32 to vector<16x128xf32>
    %136 = arith.mulf %135, %27 : vector<16x128xf32>
    %137 = arith.addf %133, %136 : vector<16x128xf32>
    %c1_i32 = arith.constant 1 : i32
    %138 = arith.index_cast %c1_i32 : i32 to index
    %c0_63 = arith.constant 0 : index
    %c0_64 = arith.constant 0 : index
    %139 = vector.load %arg13[%138, %c0_63, %c0_64] : memref<4x16x512xbf16, #tpu.memory_space<vmem>>, vector<1x16x512xbf16>
    %140 = vector.shape_cast %139 : vector<1x16x512xbf16> to vector<16x512xbf16>
    %141 = arith.extf %140 : vector<16x512xbf16> to vector<16x512xf32>
    %142 = arith.truncf %119 : vector<16x128xf32> to vector<16x128xbf16>
    %c0_65 = arith.constant 0 : index
    %c0_66 = arith.constant 0 : index
    %143 = vector.load %arg4[%c0_65, %c0_66] : memref<128x512xbf16, #tpu.memory_space<vmem>>, vector<128x512xbf16>
    %cst_67 = arith.constant dense<0.000000e+00> : vector<16x512xf32>
    %144 = tpu.matmul %142, %143, %cst_67 {dimension_numbers = #tpu.dot_dimension_numbers<[1], [0], [0], [1], [0, 0, 1, 1], [], []>} : vector<16x128xbf16>, vector<128x512xbf16>, vector<16x512xf32> -> vector<16x512xf32>
    %145 = arith.addf %141, %144 : vector<16x512xf32>
    %c3_i32_68 = arith.constant 3 : i32
    %146 = arith.subi %c3_i32_68, %c1_i32 : i32
    %147 = arith.index_cast %146 : i32 to index
    %c0_69 = arith.constant 0 : index
    %c0_70 = arith.constant 0 : index
    %148 = vector.load %arg14[%147, %c0_69, %c0_70] : memref<4x16x512xbf16, #tpu.memory_space<vmem>>, vector<1x16x512xbf16>
    %149 = vector.shape_cast %148 : vector<1x16x512xbf16> to vector<16x512xbf16>
    %150 = arith.extf %149 : vector<16x512xbf16> to vector<16x512xf32>
    %151 = arith.truncf %131 : vector<16x128xf32> to vector<16x128xbf16>
    %c0_71 = arith.constant 0 : index
    %c0_72 = arith.constant 0 : index
    %152 = vector.load %arg7[%c0_71, %c0_72] : memref<128x512xbf16, #tpu.memory_space<vmem>>, vector<128x512xbf16>
    %cst_73 = arith.constant dense<0.000000e+00> : vector<16x512xf32>
    %153 = tpu.matmul %151, %152, %cst_73 {dimension_numbers = #tpu.dot_dimension_numbers<[1], [0], [0], [1], [0, 0, 1, 1], [], []>} : vector<16x128xbf16>, vector<128x512xbf16>, vector<16x512xf32> -> vector<16x512xf32>
    %154 = arith.addf %150, %153 : vector<16x512xf32>
    %155 = vector.extract_strided_slice %145 {offsets = [0, 0], sizes = [16, 128], strides = [1, 1]} : vector<16x512xf32> to vector<16x128xf32>
    %cst_74 = arith.constant 5.000000e-01 : f32
    %156 = vector.broadcast %cst_74 : f32 to vector<16x128xf32>
    %157 = arith.mulf %156, %155 : vector<16x128xf32>
    %158 = math.tanh %157 : vector<16x128xf32>
    %cst_75 = arith.constant 5.000000e-01 : f32
    %159 = vector.broadcast %cst_75 : f32 to vector<16x128xf32>
    %160 = arith.mulf %159, %158 : vector<16x128xf32>
    %cst_76 = arith.constant 5.000000e-01 : f32
    %161 = vector.broadcast %cst_76 : f32 to vector<16x128xf32>
    %162 = arith.addf %160, %161 : vector<16x128xf32>
    %163 = vector.extract_strided_slice %145 {offsets = [0, 128], sizes = [16, 128], strides = [1, 1]} : vector<16x512xf32> to vector<16x128xf32>
    %cst_77 = arith.constant 5.000000e-01 : f32
    %164 = vector.broadcast %cst_77 : f32 to vector<16x128xf32>
    %165 = arith.mulf %164, %163 : vector<16x128xf32>
    %166 = math.tanh %165 : vector<16x128xf32>
    %cst_78 = arith.constant 5.000000e-01 : f32
    %167 = vector.broadcast %cst_78 : f32 to vector<16x128xf32>
    %168 = arith.mulf %167, %166 : vector<16x128xf32>
    %cst_79 = arith.constant 5.000000e-01 : f32
    %169 = vector.broadcast %cst_79 : f32 to vector<16x128xf32>
    %170 = arith.addf %168, %169 : vector<16x128xf32>
    %171 = vector.extract_strided_slice %145 {offsets = [0, 256], sizes = [16, 128], strides = [1, 1]} : vector<16x512xf32> to vector<16x128xf32>
    %172 = math.tanh %171 : vector<16x128xf32>
    %173 = vector.extract_strided_slice %145 {offsets = [0, 384], sizes = [16, 128], strides = [1, 1]} : vector<16x512xf32> to vector<16x128xf32>
    %cst_80 = arith.constant 5.000000e-01 : f32
    %174 = vector.broadcast %cst_80 : f32 to vector<16x128xf32>
    %175 = arith.mulf %174, %173 : vector<16x128xf32>
    %176 = math.tanh %175 : vector<16x128xf32>
    %cst_81 = arith.constant 5.000000e-01 : f32
    %177 = vector.broadcast %cst_81 : f32 to vector<16x128xf32>
    %178 = arith.mulf %177, %176 : vector<16x128xf32>
    %cst_82 = arith.constant 5.000000e-01 : f32
    %179 = vector.broadcast %cst_82 : f32 to vector<16x128xf32>
    %180 = arith.addf %178, %179 : vector<16x128xf32>
    %181 = arith.mulf %170, %125 : vector<16x128xf32>
    %182 = arith.mulf %162, %172 : vector<16x128xf32>
    %183 = arith.addf %181, %182 : vector<16x128xf32>
    %184 = math.tanh %183 : vector<16x128xf32>
    %185 = arith.mulf %180, %184 : vector<16x128xf32>
    %186 = vector.extract_strided_slice %154 {offsets = [0, 0], sizes = [16, 128], strides = [1, 1]} : vector<16x512xf32> to vector<16x128xf32>
    %cst_83 = arith.constant 5.000000e-01 : f32
    %187 = vector.broadcast %cst_83 : f32 to vector<16x128xf32>
    %188 = arith.mulf %187, %186 : vector<16x128xf32>
    %189 = math.tanh %188 : vector<16x128xf32>
    %cst_84 = arith.constant 5.000000e-01 : f32
    %190 = vector.broadcast %cst_84 : f32 to vector<16x128xf32>
    %191 = arith.mulf %190, %189 : vector<16x128xf32>
    %cst_85 = arith.constant 5.000000e-01 : f32
    %192 = vector.broadcast %cst_85 : f32 to vector<16x128xf32>
    %193 = arith.addf %191, %192 : vector<16x128xf32>
    %194 = vector.extract_strided_slice %154 {offsets = [0, 128], sizes = [16, 128], strides = [1, 1]} : vector<16x512xf32> to vector<16x128xf32>
    %cst_86 = arith.constant 5.000000e-01 : f32
    %195 = vector.broadcast %cst_86 : f32 to vector<16x128xf32>
    %196 = arith.mulf %195, %194 : vector<16x128xf32>
    %197 = math.tanh %196 : vector<16x128xf32>
    %cst_87 = arith.constant 5.000000e-01 : f32
    %198 = vector.broadcast %cst_87 : f32 to vector<16x128xf32>
    %199 = arith.mulf %198, %197 : vector<16x128xf32>
    %cst_88 = arith.constant 5.000000e-01 : f32
    %200 = vector.broadcast %cst_88 : f32 to vector<16x128xf32>
    %201 = arith.addf %199, %200 : vector<16x128xf32>
    %202 = vector.extract_strided_slice %154 {offsets = [0, 256], sizes = [16, 128], strides = [1, 1]} : vector<16x512xf32> to vector<16x128xf32>
    %203 = math.tanh %202 : vector<16x128xf32>
    %204 = vector.extract_strided_slice %154 {offsets = [0, 384], sizes = [16, 128], strides = [1, 1]} : vector<16x512xf32> to vector<16x128xf32>
    %cst_89 = arith.constant 5.000000e-01 : f32
    %205 = vector.broadcast %cst_89 : f32 to vector<16x128xf32>
    %206 = arith.mulf %205, %204 : vector<16x128xf32>
    %207 = math.tanh %206 : vector<16x128xf32>
    %cst_90 = arith.constant 5.000000e-01 : f32
    %208 = vector.broadcast %cst_90 : f32 to vector<16x128xf32>
    %209 = arith.mulf %208, %207 : vector<16x128xf32>
    %cst_91 = arith.constant 5.000000e-01 : f32
    %210 = vector.broadcast %cst_91 : f32 to vector<16x128xf32>
    %211 = arith.addf %209, %210 : vector<16x128xf32>
    %212 = arith.mulf %201, %137 : vector<16x128xf32>
    %213 = arith.mulf %193, %203 : vector<16x128xf32>
    %214 = arith.addf %212, %213 : vector<16x128xf32>
    %215 = math.tanh %214 : vector<16x128xf32>
    %216 = arith.mulf %211, %215 : vector<16x128xf32>
    %217 = arith.addi %23, %c1_i32 : i32
    %c9_i32_92 = arith.constant 9 : i32
    %218 = arith.cmpi slt, %217, %c9_i32_92 : i32
    %219 = arith.extui %218 : i1 to i32
    %220 = arith.sitofp %219 : i32 to f32
    %c3_i32_93 = arith.constant 3 : i32
    %221 = arith.cmpi sge, %217, %c3_i32_93 : i32
    %222 = arith.extui %221 : i1 to i32
    %223 = arith.sitofp %222 : i32 to f32
    %224 = vector.broadcast %220 : f32 to vector<16x128xf32>
    %225 = arith.mulf %224, %185 : vector<16x128xf32>
    %cst_94 = arith.constant 1.000000e+00 : f32
    %226 = arith.subf %cst_94, %220 : f32
    %227 = vector.broadcast %226 : f32 to vector<16x128xf32>
    %228 = arith.mulf %227, %119 : vector<16x128xf32>
    %229 = arith.addf %225, %228 : vector<16x128xf32>
    %230 = vector.broadcast %220 : f32 to vector<16x128xf32>
    %231 = arith.mulf %230, %183 : vector<16x128xf32>
    %cst_95 = arith.constant 1.000000e+00 : f32
    %232 = arith.subf %cst_95, %220 : f32
    %233 = vector.broadcast %232 : f32 to vector<16x128xf32>
    %234 = arith.mulf %233, %125 : vector<16x128xf32>
    %235 = arith.addf %231, %234 : vector<16x128xf32>
    %236 = vector.broadcast %223 : f32 to vector<16x128xf32>
    %237 = arith.mulf %236, %216 : vector<16x128xf32>
    %cst_96 = arith.constant 1.000000e+00 : f32
    %238 = arith.subf %cst_96, %223 : f32
    %239 = vector.broadcast %238 : f32 to vector<16x128xf32>
    %240 = arith.mulf %239, %131 : vector<16x128xf32>
    %241 = arith.addf %237, %240 : vector<16x128xf32>
    %242 = vector.broadcast %223 : f32 to vector<16x128xf32>
    %243 = arith.mulf %242, %214 : vector<16x128xf32>
    %cst_97 = arith.constant 1.000000e+00 : f32
    %244 = arith.subf %cst_97, %223 : f32
    %245 = vector.broadcast %244 : f32 to vector<16x128xf32>
    %246 = arith.mulf %245, %137 : vector<16x128xf32>
    %247 = arith.addf %243, %246 : vector<16x128xf32>
    %c2_i32 = arith.constant 2 : i32
    %248 = arith.index_cast %c2_i32 : i32 to index
    %c0_98 = arith.constant 0 : index
    %c0_99 = arith.constant 0 : index
    %249 = vector.load %arg13[%248, %c0_98, %c0_99] : memref<4x16x512xbf16, #tpu.memory_space<vmem>>, vector<1x16x512xbf16>
    %250 = vector.shape_cast %249 : vector<1x16x512xbf16> to vector<16x512xbf16>
    %251 = arith.extf %250 : vector<16x512xbf16> to vector<16x512xf32>
    %252 = arith.truncf %229 : vector<16x128xf32> to vector<16x128xbf16>
    %c0_100 = arith.constant 0 : index
    %c0_101 = arith.constant 0 : index
    %253 = vector.load %arg4[%c0_100, %c0_101] : memref<128x512xbf16, #tpu.memory_space<vmem>>, vector<128x512xbf16>
    %cst_102 = arith.constant dense<0.000000e+00> : vector<16x512xf32>
    %254 = tpu.matmul %252, %253, %cst_102 {dimension_numbers = #tpu.dot_dimension_numbers<[1], [0], [0], [1], [0, 0, 1, 1], [], []>} : vector<16x128xbf16>, vector<128x512xbf16>, vector<16x512xf32> -> vector<16x512xf32>
    %255 = arith.addf %251, %254 : vector<16x512xf32>
    %c3_i32_103 = arith.constant 3 : i32
    %256 = arith.subi %c3_i32_103, %c2_i32 : i32
    %257 = arith.index_cast %256 : i32 to index
    %c0_104 = arith.constant 0 : index
    %c0_105 = arith.constant 0 : index
    %258 = vector.load %arg14[%257, %c0_104, %c0_105] : memref<4x16x512xbf16, #tpu.memory_space<vmem>>, vector<1x16x512xbf16>
    %259 = vector.shape_cast %258 : vector<1x16x512xbf16> to vector<16x512xbf16>
    %260 = arith.extf %259 : vector<16x512xbf16> to vector<16x512xf32>
    %261 = arith.truncf %241 : vector<16x128xf32> to vector<16x128xbf16>
    %c0_106 = arith.constant 0 : index
    %c0_107 = arith.constant 0 : index
    %262 = vector.load %arg7[%c0_106, %c0_107] : memref<128x512xbf16, #tpu.memory_space<vmem>>, vector<128x512xbf16>
    %cst_108 = arith.constant dense<0.000000e+00> : vector<16x512xf32>
    %263 = tpu.matmul %261, %262, %cst_108 {dimension_numbers = #tpu.dot_dimension_numbers<[1], [0], [0], [1], [0, 0, 1, 1], [], []>} : vector<16x128xbf16>, vector<128x512xbf16>, vector<16x512xf32> -> vector<16x512xf32>
    %264 = arith.addf %260, %263 : vector<16x512xf32>
    %265 = vector.extract_strided_slice %255 {offsets = [0, 0], sizes = [16, 128], strides = [1, 1]} : vector<16x512xf32> to vector<16x128xf32>
    %cst_109 = arith.constant 5.000000e-01 : f32
    %266 = vector.broadcast %cst_109 : f32 to vector<16x128xf32>
    %267 = arith.mulf %266, %265 : vector<16x128xf32>
    %268 = math.tanh %267 : vector<16x128xf32>
    %cst_110 = arith.constant 5.000000e-01 : f32
    %269 = vector.broadcast %cst_110 : f32 to vector<16x128xf32>
    %270 = arith.mulf %269, %268 : vector<16x128xf32>
    %cst_111 = arith.constant 5.000000e-01 : f32
    %271 = vector.broadcast %cst_111 : f32 to vector<16x128xf32>
    %272 = arith.addf %270, %271 : vector<16x128xf32>
    %273 = vector.extract_strided_slice %255 {offsets = [0, 128], sizes = [16, 128], strides = [1, 1]} : vector<16x512xf32> to vector<16x128xf32>
    %cst_112 = arith.constant 5.000000e-01 : f32
    %274 = vector.broadcast %cst_112 : f32 to vector<16x128xf32>
    %275 = arith.mulf %274, %273 : vector<16x128xf32>
    %276 = math.tanh %275 : vector<16x128xf32>
    %cst_113 = arith.constant 5.000000e-01 : f32
    %277 = vector.broadcast %cst_113 : f32 to vector<16x128xf32>
    %278 = arith.mulf %277, %276 : vector<16x128xf32>
    %cst_114 = arith.constant 5.000000e-01 : f32
    %279 = vector.broadcast %cst_114 : f32 to vector<16x128xf32>
    %280 = arith.addf %278, %279 : vector<16x128xf32>
    %281 = vector.extract_strided_slice %255 {offsets = [0, 256], sizes = [16, 128], strides = [1, 1]} : vector<16x512xf32> to vector<16x128xf32>
    %282 = math.tanh %281 : vector<16x128xf32>
    %283 = vector.extract_strided_slice %255 {offsets = [0, 384], sizes = [16, 128], strides = [1, 1]} : vector<16x512xf32> to vector<16x128xf32>
    %cst_115 = arith.constant 5.000000e-01 : f32
    %284 = vector.broadcast %cst_115 : f32 to vector<16x128xf32>
    %285 = arith.mulf %284, %283 : vector<16x128xf32>
    %286 = math.tanh %285 : vector<16x128xf32>
    %cst_116 = arith.constant 5.000000e-01 : f32
    %287 = vector.broadcast %cst_116 : f32 to vector<16x128xf32>
    %288 = arith.mulf %287, %286 : vector<16x128xf32>
    %cst_117 = arith.constant 5.000000e-01 : f32
    %289 = vector.broadcast %cst_117 : f32 to vector<16x128xf32>
    %290 = arith.addf %288, %289 : vector<16x128xf32>
    %291 = arith.mulf %280, %235 : vector<16x128xf32>
    %292 = arith.mulf %272, %282 : vector<16x128xf32>
    %293 = arith.addf %291, %292 : vector<16x128xf32>
    %294 = math.tanh %293 : vector<16x128xf32>
    %295 = arith.mulf %290, %294 : vector<16x128xf32>
    %296 = vector.extract_strided_slice %264 {offsets = [0, 0], sizes = [16, 128], strides = [1, 1]} : vector<16x512xf32> to vector<16x128xf32>
    %cst_118 = arith.constant 5.000000e-01 : f32
    %297 = vector.broadcast %cst_118 : f32 to vector<16x128xf32>
    %298 = arith.mulf %297, %296 : vector<16x128xf32>
    %299 = math.tanh %298 : vector<16x128xf32>
    %cst_119 = arith.constant 5.000000e-01 : f32
    %300 = vector.broadcast %cst_119 : f32 to vector<16x128xf32>
    %301 = arith.mulf %300, %299 : vector<16x128xf32>
    %cst_120 = arith.constant 5.000000e-01 : f32
    %302 = vector.broadcast %cst_120 : f32 to vector<16x128xf32>
    %303 = arith.addf %301, %302 : vector<16x128xf32>
    %304 = vector.extract_strided_slice %264 {offsets = [0, 128], sizes = [16, 128], strides = [1, 1]} : vector<16x512xf32> to vector<16x128xf32>
    %cst_121 = arith.constant 5.000000e-01 : f32
    %305 = vector.broadcast %cst_121 : f32 to vector<16x128xf32>
    %306 = arith.mulf %305, %304 : vector<16x128xf32>
    %307 = math.tanh %306 : vector<16x128xf32>
    %cst_122 = arith.constant 5.000000e-01 : f32
    %308 = vector.broadcast %cst_122 : f32 to vector<16x128xf32>
    %309 = arith.mulf %308, %307 : vector<16x128xf32>
    %cst_123 = arith.constant 5.000000e-01 : f32
    %310 = vector.broadcast %cst_123 : f32 to vector<16x128xf32>
    %311 = arith.addf %309, %310 : vector<16x128xf32>
    %312 = vector.extract_strided_slice %264 {offsets = [0, 256], sizes = [16, 128], strides = [1, 1]} : vector<16x512xf32> to vector<16x128xf32>
    %313 = math.tanh %312 : vector<16x128xf32>
    %314 = vector.extract_strided_slice %264 {offsets = [0, 384], sizes = [16, 128], strides = [1, 1]} : vector<16x512xf32> to vector<16x128xf32>
    %cst_124 = arith.constant 5.000000e-01 : f32
    %315 = vector.broadcast %cst_124 : f32 to vector<16x128xf32>
    %316 = arith.mulf %315, %314 : vector<16x128xf32>
    %317 = math.tanh %316 : vector<16x128xf32>
    %cst_125 = arith.constant 5.000000e-01 : f32
    %318 = vector.broadcast %cst_125 : f32 to vector<16x128xf32>
    %319 = arith.mulf %318, %317 : vector<16x128xf32>
    %cst_126 = arith.constant 5.000000e-01 : f32
    %320 = vector.broadcast %cst_126 : f32 to vector<16x128xf32>
    %321 = arith.addf %319, %320 : vector<16x128xf32>
    %322 = arith.mulf %311, %247 : vector<16x128xf32>
    %323 = arith.mulf %303, %313 : vector<16x128xf32>
    %324 = arith.addf %322, %323 : vector<16x128xf32>
    %325 = math.tanh %324 : vector<16x128xf32>
    %326 = arith.mulf %321, %325 : vector<16x128xf32>
    %327 = arith.addi %23, %c2_i32 : i32
    %c9_i32_127 = arith.constant 9 : i32
    %328 = arith.cmpi slt, %327, %c9_i32_127 : i32
    %329 = arith.extui %328 : i1 to i32
    %330 = arith.sitofp %329 : i32 to f32
    %c3_i32_128 = arith.constant 3 : i32
    %331 = arith.cmpi sge, %327, %c3_i32_128 : i32
    %332 = arith.extui %331 : i1 to i32
    %333 = arith.sitofp %332 : i32 to f32
    %334 = vector.broadcast %330 : f32 to vector<16x128xf32>
    %335 = arith.mulf %334, %295 : vector<16x128xf32>
    %cst_129 = arith.constant 1.000000e+00 : f32
    %336 = arith.subf %cst_129, %330 : f32
    %337 = vector.broadcast %336 : f32 to vector<16x128xf32>
    %338 = arith.mulf %337, %229 : vector<16x128xf32>
    %339 = arith.addf %335, %338 : vector<16x128xf32>
    %340 = vector.broadcast %330 : f32 to vector<16x128xf32>
    %341 = arith.mulf %340, %293 : vector<16x128xf32>
    %cst_130 = arith.constant 1.000000e+00 : f32
    %342 = arith.subf %cst_130, %330 : f32
    %343 = vector.broadcast %342 : f32 to vector<16x128xf32>
    %344 = arith.mulf %343, %235 : vector<16x128xf32>
    %345 = arith.addf %341, %344 : vector<16x128xf32>
    %346 = vector.broadcast %333 : f32 to vector<16x128xf32>
    %347 = arith.mulf %346, %326 : vector<16x128xf32>
    %cst_131 = arith.constant 1.000000e+00 : f32
    %348 = arith.subf %cst_131, %333 : f32
    %349 = vector.broadcast %348 : f32 to vector<16x128xf32>
    %350 = arith.mulf %349, %241 : vector<16x128xf32>
    %351 = arith.addf %347, %350 : vector<16x128xf32>
    %352 = vector.broadcast %333 : f32 to vector<16x128xf32>
    %353 = arith.mulf %352, %324 : vector<16x128xf32>
    %cst_132 = arith.constant 1.000000e+00 : f32
    %354 = arith.subf %cst_132, %333 : f32
    %355 = vector.broadcast %354 : f32 to vector<16x128xf32>
    %356 = arith.mulf %355, %247 : vector<16x128xf32>
    %357 = arith.addf %353, %356 : vector<16x128xf32>
    %c3_i32_133 = arith.constant 3 : i32
    %358 = arith.index_cast %c3_i32_133 : i32 to index
    %c0_134 = arith.constant 0 : index
    %c0_135 = arith.constant 0 : index
    %359 = vector.load %arg13[%358, %c0_134, %c0_135] : memref<4x16x512xbf16, #tpu.memory_space<vmem>>, vector<1x16x512xbf16>
    %360 = vector.shape_cast %359 : vector<1x16x512xbf16> to vector<16x512xbf16>
    %361 = arith.extf %360 : vector<16x512xbf16> to vector<16x512xf32>
    %362 = arith.truncf %339 : vector<16x128xf32> to vector<16x128xbf16>
    %c0_136 = arith.constant 0 : index
    %c0_137 = arith.constant 0 : index
    %363 = vector.load %arg4[%c0_136, %c0_137] : memref<128x512xbf16, #tpu.memory_space<vmem>>, vector<128x512xbf16>
    %cst_138 = arith.constant dense<0.000000e+00> : vector<16x512xf32>
    %364 = tpu.matmul %362, %363, %cst_138 {dimension_numbers = #tpu.dot_dimension_numbers<[1], [0], [0], [1], [0, 0, 1, 1], [], []>} : vector<16x128xbf16>, vector<128x512xbf16>, vector<16x512xf32> -> vector<16x512xf32>
    %365 = arith.addf %361, %364 : vector<16x512xf32>
    %c3_i32_139 = arith.constant 3 : i32
    %366 = arith.subi %c3_i32_139, %c3_i32_133 : i32
    %367 = arith.index_cast %366 : i32 to index
    %c0_140 = arith.constant 0 : index
    %c0_141 = arith.constant 0 : index
    %368 = vector.load %arg14[%367, %c0_140, %c0_141] : memref<4x16x512xbf16, #tpu.memory_space<vmem>>, vector<1x16x512xbf16>
    %369 = vector.shape_cast %368 : vector<1x16x512xbf16> to vector<16x512xbf16>
    %370 = arith.extf %369 : vector<16x512xbf16> to vector<16x512xf32>
    %371 = arith.truncf %351 : vector<16x128xf32> to vector<16x128xbf16>
    %c0_142 = arith.constant 0 : index
    %c0_143 = arith.constant 0 : index
    %372 = vector.load %arg7[%c0_142, %c0_143] : memref<128x512xbf16, #tpu.memory_space<vmem>>, vector<128x512xbf16>
    %cst_144 = arith.constant dense<0.000000e+00> : vector<16x512xf32>
    %373 = tpu.matmul %371, %372, %cst_144 {dimension_numbers = #tpu.dot_dimension_numbers<[1], [0], [0], [1], [0, 0, 1, 1], [], []>} : vector<16x128xbf16>, vector<128x512xbf16>, vector<16x512xf32> -> vector<16x512xf32>
    %374 = arith.addf %370, %373 : vector<16x512xf32>
    %375 = vector.extract_strided_slice %365 {offsets = [0, 0], sizes = [16, 128], strides = [1, 1]} : vector<16x512xf32> to vector<16x128xf32>
    %cst_145 = arith.constant 5.000000e-01 : f32
    %376 = vector.broadcast %cst_145 : f32 to vector<16x128xf32>
    %377 = arith.mulf %376, %375 : vector<16x128xf32>
    %378 = math.tanh %377 : vector<16x128xf32>
    %cst_146 = arith.constant 5.000000e-01 : f32
    %379 = vector.broadcast %cst_146 : f32 to vector<16x128xf32>
    %380 = arith.mulf %379, %378 : vector<16x128xf32>
    %cst_147 = arith.constant 5.000000e-01 : f32
    %381 = vector.broadcast %cst_147 : f32 to vector<16x128xf32>
    %382 = arith.addf %380, %381 : vector<16x128xf32>
    %383 = vector.extract_strided_slice %365 {offsets = [0, 128], sizes = [16, 128], strides = [1, 1]} : vector<16x512xf32> to vector<16x128xf32>
    %cst_148 = arith.constant 5.000000e-01 : f32
    %384 = vector.broadcast %cst_148 : f32 to vector<16x128xf32>
    %385 = arith.mulf %384, %383 : vector<16x128xf32>
    %386 = math.tanh %385 : vector<16x128xf32>
    %cst_149 = arith.constant 5.000000e-01 : f32
    %387 = vector.broadcast %cst_149 : f32 to vector<16x128xf32>
    %388 = arith.mulf %387, %386 : vector<16x128xf32>
    %cst_150 = arith.constant 5.000000e-01 : f32
    %389 = vector.broadcast %cst_150 : f32 to vector<16x128xf32>
    %390 = arith.addf %388, %389 : vector<16x128xf32>
    %391 = vector.extract_strided_slice %365 {offsets = [0, 256], sizes = [16, 128], strides = [1, 1]} : vector<16x512xf32> to vector<16x128xf32>
    %392 = math.tanh %391 : vector<16x128xf32>
    %393 = vector.extract_strided_slice %365 {offsets = [0, 384], sizes = [16, 128], strides = [1, 1]} : vector<16x512xf32> to vector<16x128xf32>
    %cst_151 = arith.constant 5.000000e-01 : f32
    %394 = vector.broadcast %cst_151 : f32 to vector<16x128xf32>
    %395 = arith.mulf %394, %393 : vector<16x128xf32>
    %396 = math.tanh %395 : vector<16x128xf32>
    %cst_152 = arith.constant 5.000000e-01 : f32
    %397 = vector.broadcast %cst_152 : f32 to vector<16x128xf32>
    %398 = arith.mulf %397, %396 : vector<16x128xf32>
    %cst_153 = arith.constant 5.000000e-01 : f32
    %399 = vector.broadcast %cst_153 : f32 to vector<16x128xf32>
    %400 = arith.addf %398, %399 : vector<16x128xf32>
    %401 = arith.mulf %390, %345 : vector<16x128xf32>
    %402 = arith.mulf %382, %392 : vector<16x128xf32>
    %403 = arith.addf %401, %402 : vector<16x128xf32>
    %404 = math.tanh %403 : vector<16x128xf32>
    %405 = arith.mulf %400, %404 : vector<16x128xf32>
    %406 = vector.extract_strided_slice %374 {offsets = [0, 0], sizes = [16, 128], strides = [1, 1]} : vector<16x512xf32> to vector<16x128xf32>
    %cst_154 = arith.constant 5.000000e-01 : f32
    %407 = vector.broadcast %cst_154 : f32 to vector<16x128xf32>
    %408 = arith.mulf %407, %406 : vector<16x128xf32>
    %409 = math.tanh %408 : vector<16x128xf32>
    %cst_155 = arith.constant 5.000000e-01 : f32
    %410 = vector.broadcast %cst_155 : f32 to vector<16x128xf32>
    %411 = arith.mulf %410, %409 : vector<16x128xf32>
    %cst_156 = arith.constant 5.000000e-01 : f32
    %412 = vector.broadcast %cst_156 : f32 to vector<16x128xf32>
    %413 = arith.addf %411, %412 : vector<16x128xf32>
    %414 = vector.extract_strided_slice %374 {offsets = [0, 128], sizes = [16, 128], strides = [1, 1]} : vector<16x512xf32> to vector<16x128xf32>
    %cst_157 = arith.constant 5.000000e-01 : f32
    %415 = vector.broadcast %cst_157 : f32 to vector<16x128xf32>
    %416 = arith.mulf %415, %414 : vector<16x128xf32>
    %417 = math.tanh %416 : vector<16x128xf32>
    %cst_158 = arith.constant 5.000000e-01 : f32
    %418 = vector.broadcast %cst_158 : f32 to vector<16x128xf32>
    %419 = arith.mulf %418, %417 : vector<16x128xf32>
    %cst_159 = arith.constant 5.000000e-01 : f32
    %420 = vector.broadcast %cst_159 : f32 to vector<16x128xf32>
    %421 = arith.addf %419, %420 : vector<16x128xf32>
    %422 = vector.extract_strided_slice %374 {offsets = [0, 256], sizes = [16, 128], strides = [1, 1]} : vector<16x512xf32> to vector<16x128xf32>
    %423 = math.tanh %422 : vector<16x128xf32>
    %424 = vector.extract_strided_slice %374 {offsets = [0, 384], sizes = [16, 128], strides = [1, 1]} : vector<16x512xf32> to vector<16x128xf32>
    %cst_160 = arith.constant 5.000000e-01 : f32
    %425 = vector.broadcast %cst_160 : f32 to vector<16x128xf32>
    %426 = arith.mulf %425, %424 : vector<16x128xf32>
    %427 = math.tanh %426 : vector<16x128xf32>
    %cst_161 = arith.constant 5.000000e-01 : f32
    %428 = vector.broadcast %cst_161 : f32 to vector<16x128xf32>
    %429 = arith.mulf %428, %427 : vector<16x128xf32>
    %cst_162 = arith.constant 5.000000e-01 : f32
    %430 = vector.broadcast %cst_162 : f32 to vector<16x128xf32>
    %431 = arith.addf %429, %430 : vector<16x128xf32>
    %432 = arith.mulf %421, %357 : vector<16x128xf32>
    %433 = arith.mulf %413, %423 : vector<16x128xf32>
    %434 = arith.addf %432, %433 : vector<16x128xf32>
    %435 = math.tanh %434 : vector<16x128xf32>
    %436 = arith.mulf %431, %435 : vector<16x128xf32>
    %437 = arith.addi %23, %c3_i32_133 : i32
    %c9_i32_163 = arith.constant 9 : i32
    %438 = arith.cmpi slt, %437, %c9_i32_163 : i32
    %439 = arith.extui %438 : i1 to i32
    %440 = arith.sitofp %439 : i32 to f32
    %c3_i32_164 = arith.constant 3 : i32
    %441 = arith.cmpi sge, %437, %c3_i32_164 : i32
    %442 = arith.extui %441 : i1 to i32
    %443 = arith.sitofp %442 : i32 to f32
    %444 = vector.broadcast %440 : f32 to vector<16x128xf32>
    %445 = arith.mulf %444, %405 : vector<16x128xf32>
    %cst_165 = arith.constant 1.000000e+00 : f32
    %446 = arith.subf %cst_165, %440 : f32
    %447 = vector.broadcast %446 : f32 to vector<16x128xf32>
    %448 = arith.mulf %447, %339 : vector<16x128xf32>
    %449 = arith.addf %445, %448 : vector<16x128xf32>
    %450 = vector.broadcast %440 : f32 to vector<16x128xf32>
    %451 = arith.mulf %450, %403 : vector<16x128xf32>
    %cst_166 = arith.constant 1.000000e+00 : f32
    %452 = arith.subf %cst_166, %440 : f32
    %453 = vector.broadcast %452 : f32 to vector<16x128xf32>
    %454 = arith.mulf %453, %345 : vector<16x128xf32>
    %455 = arith.addf %451, %454 : vector<16x128xf32>
    %456 = vector.broadcast %443 : f32 to vector<16x128xf32>
    %457 = arith.mulf %456, %436 : vector<16x128xf32>
    %cst_167 = arith.constant 1.000000e+00 : f32
    %458 = arith.subf %cst_167, %443 : f32
    %459 = vector.broadcast %458 : f32 to vector<16x128xf32>
    %460 = arith.mulf %459, %351 : vector<16x128xf32>
    %461 = arith.addf %457, %460 : vector<16x128xf32>
    %462 = vector.broadcast %443 : f32 to vector<16x128xf32>
    %463 = arith.mulf %462, %434 : vector<16x128xf32>
    %cst_168 = arith.constant 1.000000e+00 : f32
    %464 = arith.subf %cst_168, %443 : f32
    %465 = vector.broadcast %464 : f32 to vector<16x128xf32>
    %466 = arith.mulf %465, %357 : vector<16x128xf32>
    %467 = arith.addf %463, %466 : vector<16x128xf32>
    %c4_i32_169 = arith.constant 4 : i32
    %c0_170 = arith.constant 0 : index
    %c0_171 = arith.constant 0 : index
    %468 = vector.load %arg15[%c0_170, %c0_171] : memref<16x128xf32, #tpu.memory_space<vmem>>, vector<16x128xf32>
    tpu.vector_store %arg15[%c0_170, %c0_171], %449 {strides = array<i32>} : memref<16x128xf32, #tpu.memory_space<vmem>>, vector<16x128xf32>,
    %c0_172 = arith.constant 0 : index
    %c0_173 = arith.constant 0 : index
    %469 = vector.load %arg16[%c0_172, %c0_173] : memref<16x128xf32, #tpu.memory_space<vmem>>, vector<16x128xf32>
    tpu.vector_store %arg16[%c0_172, %c0_173], %455 {strides = array<i32>} : memref<16x128xf32, #tpu.memory_space<vmem>>, vector<16x128xf32>,
    %c0_174 = arith.constant 0 : index
    %c0_175 = arith.constant 0 : index
    %470 = vector.load %arg17[%c0_174, %c0_175] : memref<16x128xf32, #tpu.memory_space<vmem>>, vector<16x128xf32>
    tpu.vector_store %arg17[%c0_174, %c0_175], %461 {strides = array<i32>} : memref<16x128xf32, #tpu.memory_space<vmem>>, vector<16x128xf32>,
    %c0_176 = arith.constant 0 : index
    %c0_177 = arith.constant 0 : index
    %471 = vector.load %arg18[%c0_176, %c0_177] : memref<16x128xf32, #tpu.memory_space<vmem>>, vector<16x128xf32>
    tpu.vector_store %arg18[%c0_176, %c0_177], %467 {strides = array<i32>} : memref<16x128xf32, #tpu.memory_space<vmem>>, vector<16x128xf32>,
    %c2_i32_178 = arith.constant 2 : i32
    %472 = arith.cmpi eq, %arg0, %c2_i32_178 : i32
    %473 = arith.extui %472 : i1 to i32
    %c0_i32_179 = arith.constant 0 : i32
    %474 = arith.cmpi ne, %473, %c0_i32_179 : i32
    scf.if %474 {
      %c0_180 = arith.constant 0 : index
      %c0_181 = arith.constant 0 : index
      %475 = vector.load %arg9[%c0_180, %c0_181] : memref<128x128xf32, #tpu.memory_space<vmem>>, vector<128x128xf32>
      %cst_182 = arith.constant dense<0.000000e+00> : vector<16x128xf32>
      %476 = tpu.matmul %449, %475, %cst_182 {dimension_numbers = #tpu.dot_dimension_numbers<[1], [0], [0], [1], [0, 0, 1, 1], [], []>} : vector<16x128xf32>, vector<128x128xf32>, vector<16x128xf32> -> vector<16x128xf32>
      %c0_183 = arith.constant 0 : index
      %c0_184 = arith.constant 0 : index
      %477 = vector.load %arg10[%c0_183, %c0_184] : memref<128x128xf32, #tpu.memory_space<vmem>>, vector<128x128xf32>
      %cst_185 = arith.constant dense<0.000000e+00> : vector<16x128xf32>
      %478 = tpu.matmul %461, %477, %cst_185 {dimension_numbers = #tpu.dot_dimension_numbers<[1], [0], [0], [1], [0, 0, 1, 1], [], []>} : vector<16x128xf32>, vector<128x128xf32>, vector<16x128xf32> -> vector<16x128xf32>
      %479 = arith.addf %476, %478 : vector<16x128xf32>
      %c0_186 = arith.constant 0 : index
      %c0_187 = arith.constant 0 : index
      %480 = vector.load %arg11[%c0_186, %c0_187] : memref<1x128xf32, #tpu.memory_space<vmem>>, vector<1x128xf32>
      %481 = vector.broadcast %480 : vector<1x128xf32> to vector<16x128xf32>
      %482 = arith.addf %479, %481 : vector<16x128xf32>
      %c0_188 = arith.constant 0 : index
      %c0_189 = arith.constant 0 : index
      %483 = vector.load %arg12[%c0_188, %c0_189] : memref<16x128xf32, #tpu.memory_space<vmem>>, vector<16x128xf32>
      tpu.vector_store %arg12[%c0_188, %c0_189], %482 {strides = array<i32>} : memref<16x128xf32, #tpu.memory_space<vmem>>, vector<16x128xf32>,
    } else {
    }
    return
  }
  func.func @transform_0(%arg0: i32) -> (i32, i32, i32) {
    %c0_i32 = arith.constant 0 : i32
    %c0_i32_0 = arith.constant 0 : i32
    %c0_i32_1 = arith.constant 0 : i32
    return %arg0, %c0_i32, %c0_i32_0 : i32, i32, i32
  }
  func.func @transform_1(%arg0: i32) -> (i32, i32, i32) {
    %c2_i32 = arith.constant 2 : i32
    %0 = arith.subi %c2_i32, %arg0 : i32
    %c0_i32 = arith.constant 0 : i32
    %c0_i32_0 = arith.constant 0 : i32
    %c0_i32_1 = arith.constant 0 : i32
    return %0, %c0_i32, %c0_i32_0 : i32, i32, i32
  }
  func.func @transform_2(%arg0: i32) -> (i32, i32) {
    %c0_i32 = arith.constant 0 : i32
    %c0_i32_0 = arith.constant 0 : i32
    %c0_i32_1 = arith.constant 0 : i32
    return %c0_i32, %c0_i32_0 : i32, i32
  }
  func.func @transform_3(%arg0: i32) -> (i32, i32) {
    %c0_i32 = arith.constant 0 : i32
    %c0_i32_0 = arith.constant 0 : i32
    %c0_i32_1 = arith.constant 0 : i32
    return %c0_i32, %c0_i32_0 : i32, i32
  }
  func.func @transform_4(%arg0: i32) -> (i32, i32) {
    %c0_i32 = arith.constant 0 : i32
    %c0_i32_0 = arith.constant 0 : i32
    %c0_i32_1 = arith.constant 0 : i32
    return %c0_i32, %c0_i32_0 : i32, i32
  }
  func.func @transform_5(%arg0: i32) -> (i32, i32) {
    %c0_i32 = arith.constant 0 : i32
    %c0_i32_0 = arith.constant 0 : i32
    %c0_i32_1 = arith.constant 0 : i32
    return %c0_i32, %c0_i32_0 : i32, i32
  }
  func.func @transform_6(%arg0: i32) -> (i32, i32) {
    %c0_i32 = arith.constant 0 : i32
    %c0_i32_0 = arith.constant 0 : i32
    %c0_i32_1 = arith.constant 0 : i32
    return %c0_i32, %c0_i32_0 : i32, i32
  }
  func.func @transform_7(%arg0: i32) -> (i32, i32) {
    %c0_i32 = arith.constant 0 : i32
    %c0_i32_0 = arith.constant 0 : i32
    %c0_i32_1 = arith.constant 0 : i32
    return %c0_i32, %c0_i32_0 : i32, i32
  }
  func.func @transform_8(%arg0: i32) -> (i32, i32) {
    %c0_i32 = arith.constant 0 : i32
    %c0_i32_0 = arith.constant 0 : i32
    %c0_i32_1 = arith.constant 0 : i32
    return %c0_i32, %c0_i32_0 : i32, i32
  }
  func.func @transform_9(%arg0: i32) -> (i32, i32) {
    %c0_i32 = arith.constant 0 : i32
    %c0_i32_0 = arith.constant 0 : i32
    %c0_i32_1 = arith.constant 0 : i32
    return %c0_i32, %c0_i32_0 : i32, i32
  }
  func.func @transform_10(%arg0: i32) -> (i32, i32) {
    %c0_i32 = arith.constant 0 : i32
    %c0_i32_0 = arith.constant 0 : i32
    %c0_i32_1 = arith.constant 0 : i32
    return %c0_i32, %c0_i32_0 : i32, i32
  }
  func.func @transform_11(%arg0: i32) -> (i32, i32) {
    %c0_i32 = arith.constant 0 : i32
    %c0_i32_0 = arith.constant 0 : i32
    %c0_i32_1 = arith.constant 0 : i32
    return %c0_i32, %c0_i32_0 : i32, i32
  }
}

</mosaic_0001>

<llo_original>
// kernel: tpu_custom_call.1
$region0: #{tpu_custom_call.1}
  #allocation0 [shape = 'u32[]', space=smem, size = 0x4, offset = 0x4, fixed_abs, tag = 'smem constant byte address 0x4 - core index']
  #allocation1 [shape = 'u32[72,128]{1,0:T(1,128)}', space=vmem, size = 0x9000, scoped, tag = 'internal scratch']
  #allocation2 [shape = 'bf16[4,16,512]{2,1,0:T(8,128)(2,1)}', space=vmem, size = 0x10000, scoped, tag = 'scratch operand']
  #allocation3 [shape = 'bf16[4,16,512]{2,1,0:T(8,128)(2,1)}', space=vmem, size = 0x10000, scoped, tag = 'scratch operand']
  #allocation4 [shape = 'f32[16,128]{1,0:T(8,128)}', space=vmem, size = 0x2000, scoped, tag = 'scratch operand']
  #allocation5 [shape = 'f32[16,128]{1,0:T(8,128)}', space=vmem, size = 0x2000, scoped, tag = 'scratch operand']
  #allocation6 [shape = 'f32[16,128]{1,0:T(8,128)}', space=vmem, size = 0x2000, scoped, tag = 'scratch operand']
  #allocation7 [shape = 'f32[16,128]{1,0:T(8,128)}', space=vmem, size = 0x2000, scoped, tag = 'scratch operand']
  %s0 = inlined_call_operand.hbm [shape: bf16[3,64,128], index: 0, kind: input, shape index: {}]
  %s1 = inlined_call_operand.hbm [shape: bf16[3,64,128], index: 1, kind: input, shape index: {}]
  %s2 = inlined_call_operand.hbm [shape: bf16[128,512], index: 2, kind: input, shape index: {}]
  %s3 = inlined_call_operand.hbm [shape: bf16[128,512], index: 3, kind: input, shape index: {}]
  %s4 = inlined_call_operand.hbm [shape: f32[1,512], index: 4, kind: input, shape index: {}]
  %s5 = inlined_call_operand.hbm [shape: bf16[128,512], index: 5, kind: input, shape index: {}]
  %s6 = inlined_call_operand.hbm [shape: bf16[128,512], index: 6, kind: input, shape index: {}]
  %s7 = inlined_call_operand.vmem [shape: f32[1,512], index: 7, kind: input, shape index: {}]
  %s8 = inlined_call_operand.hbm [shape: f32[128,128], index: 8, kind: input, shape index: {}]
  %s9 = inlined_call_operand.hbm [shape: f32[128,128], index: 9, kind: input, shape index: {}]
  %s10 = inlined_call_operand.vmem [shape: f32[1,128], index: 10, kind: input, shape index: {}]
  %s11 = inlined_call_operand.hbm [shape: f32[16,128], index: 11, kind: output, shape index: {}]
  %s12 = sld [smem:[#allocation0]]
  $region121: #{tpu_custom_call.1} parent=0
    _
  %s14 = ssub.s32 1, %s12
  %s15 = scalar_select 0, %s14, %s12
  $region1: #{tpu_custom_call.1} parent=0
    #allocation8 [shape = 'u8[32768]{0}', space=vmem, size = 0x8000, scoped, tag = 'input window, operand 0']
    #allocation9 [shape = 's32[2]{0}', space=sflag, size = 0x8, scoped, tag = 'scoped memory for tpu_custom_call.1']
    #allocation10 [shape = 's32[2]{0}', space=sflag, size = 0x8, scoped, tag = 'scoped memory for tpu_custom_call.1']
    #allocation11 [shape = 'u8[32768]{0}', space=vmem, size = 0x8000, scoped, tag = 'input window, operand 1']
    #allocation12 [shape = 's32[2]{0}', space=sflag, size = 0x8, scoped, tag = 'scoped memory for tpu_custom_call.1']
    #allocation13 [shape = 'u8[131072]{0}', space=vmem, size = 0x20000, scoped, tag = 'input window, operand 2, single buffered']
    #allocation14 [shape = 'u8[131072]{0}', space=vmem, size = 0x20000, scoped, tag = 'input window, operand 3, single buffered']
    #allocation15 [shape = 's32[1]{0}', space=sflag, size = 0x4, scoped, tag = 'scoped memory for tpu_custom_call.1']
    #allocation16 [shape = 'u8[2048]{0}', space=vmem, size = 0x800, scoped, tag = 'input window, operand 4, single buffered']
    #allocation17 [shape = 'u8[131072]{0}', space=vmem, size = 0x20000, scoped, tag = 'input window, operand 5, single buffered']
    #allocation18 [shape = 's32[1]{0}', space=sflag, size = 0x4, scoped, tag = 'scoped memory for tpu_custom_call.1']
    #allocation19 [shape = 'u8[131072]{0}', space=vmem, size = 0x20000, scoped, tag = 'input window, operand 6, single buffered']
    #allocation20 [shape = 'u8[65536]{0}', space=vmem, size = 0x10000, scoped, tag = 'input window, operand 8, single buffered']
    #allocation21 [shape = 's32[1]{0}', space=sflag, size = 0x4, scoped, tag = 'scoped memory for tpu_custom_call.1']
    #allocation22 [shape = 'u8[65536]{0}', space=vmem, size = 0x10000, scoped, tag = 'input window, operand 9, single buffered']
    #allocation23 [shape = 'u8[8192]{0}', space=vmem, size = 0x2000, scoped, tag = 'output window, operand 0, single buffered']
    %16 = vsyncpa [#allocation9], 0
    %s17 = scalar_lea.sflag [#allocation9], 1
    %18 = vsyncpa %s17, 0
    %19 = vsyncpa [#allocation12], 0
    %s20 = scalar_lea.sflag [#allocation12], 1
    %21 = vsyncpa %s20, 0
    %22 = vsyncpa [#allocation15], 0
    %23 = vsyncpa [#allocation18], 0
    %24 = vsyncpa [#allocation21], 0
    %25 = vsyncpa [#allocation10], 0
    loop: start=0, step=1, limit=5
    $region2: #{tpu_custom_call.1} parent=1 // loop_pre_header
      _
    $region3: #{tpu_custom_call.1} parent=1 // loop_header
      %s27 = sphi 0, %s31
      %p28 = scmp.ge.s32.totalorder %s27, 5
      %s37 = sphi 0, %s39
      %s40 = sphi 0, %s37
      %s41 = sphi 0, %s40
      %s57 = sphi 0, %s41
      %s65 = sphi 0, %s67
      %s68 = sphi 0, %s65
      %s69 = sphi 0, %s68
      %s85 = sphi 0, %s69
      %s89 = sphi 0, %s89
      %s91 = sphi 0, %s89
      %s92 = sphi 0, %s91
      %s106 = sphi 0, %s92
      %s110 = sphi 0, %s110
      %s112 = sphi 0, %s110
      %s113 = sphi 0, %s112
      %s127 = sphi 0, %s113
      %s131 = sphi 0, %s131
      %s133 = sphi 0, %s131
      %s134 = sphi 0, %s133
      %s148 = sphi 0, %s134
      %s152 = sphi 0, %s152
      %s154 = sphi 0, %s152
      %s155 = sphi 0, %s154
      %s169 = sphi 0, %s155
      %s173 = sphi 0, %s173
      %s175 = sphi 0, %s173
      %s176 = sphi 0, %s175
      %s190 = sphi 0, %s176
      %s194 = sphi 0, %s194
      %s196 = sphi 0, %s194
      %s197 = sphi 0, %s196
      %s211 = sphi 0, %s197
      %s215 = sphi 0, %s215
      %s217 = sphi 0, %s215
      %s218 = sphi 0, %s217
      %s232 = sphi 0, %s218
      %s236 = sphi 0, %s236
      %s238 = sphi 0, %s236
      %s239 = sphi 0, %s238
      %s253 = sphi 0, %s239
      %s257 = sphi 0, %s257
      %s259 = sphi 0, %s257
      %s260 = sphi 0, %s259
      %s274 = sphi 0, %s260
      %s278 = sphi 0, %s278
      %s280 = sphi 0, %s278
      %s281 = sphi 0, %s280
      %s295 = sphi 0, %s281
    $region4: #{tpu_custom_call.1} parent=1 // loop_header_branch
      %30 = sbr.rel (%p28) target = $region8
    $region5: #{tpu_custom_call.1} parent=1 // loop_body
      %s32 = ssub.s32 %s27, 1
      %s33 = ssub.s32 %s27, 2
      %s34 = sadd.s32 %s27, 1
      %s35 = ssub.s32 %s27, %s34
      %p36 = scmp.eq.s32.totalorder %s35, 0
      %s38 = sadd.s32 %s37, 1
      %s39 = scalar_select %p36, %s37, %s38
      %p42 = pneg %p36
      %p43 = scmp.eq.s32.totalorder %s27, 2
      %p44 = por %p42, %p43
      %p45 = scmp.ne.s32.totalorder %s37, %s40
      %p46 = scmp.eq.s32.totalorder %s27, 0
      %p47 = por %p45, %p46
      %p48 = scmp.ne.s32.totalorder %s37, %s40
      %p49 = scmp.eq.s32.totalorder %s32, 2
      %p50 = por %p48, %p49
      %p51 = scmp.ne.s32.totalorder %s40, %s41
      %p52 = scmp.eq.s32.totalorder %s32, 0
      %p53 = por %p51, %p52
      %p54 = scmp.ne.s32.totalorder %s40, %s41
      %p55 = scmp.eq.s32.totalorder %s33, 2
      %p56 = por %p54, %p55
      %p58 = scmp.ne.s32.totalorder %s41, %s57
      %p59 = scmp.eq.s32.totalorder %s33, 0
      %p60 = por %p58, %p59
      %s61 = ssub.s32 2, %s27
      %s62 = ssub.s32 2, %s34
      %s63 = ssub.s32 %s61, %s62
      %p64 = scmp.eq.s32.totalorder %s63, 0
      %s66 = sadd.s32 %s65, 1
      %s67 = scalar_select %p64, %s65, %s66
      %p70 = pneg %p64
      %p71 = scmp.eq.s32.totalorder %s27, 2
      %p72 = por %p70, %p71
      %p73 = scmp.ne.s32.totalorder %s65, %s68
      %p74 = scmp.eq.s32.totalorder %s27, 0
      %p75 = por %p73, %p74
      %p76 = scmp.ne.s32.totalorder %s65, %s68
      %p77 = scmp.eq.s32.totalorder %s32, 2
      %p78 = por %p76, %p77
      %p79 = scmp.ne.s32.totalorder %s68, %s69
      %p80 = scmp.eq.s32.totalorder %s32, 0
      %p81 = por %p79, %p80
      %p82 = scmp.ne.s32.totalorder %s68, %s69
      %p83 = scmp.eq.s32.totalorder %s33, 2
      %p84 = por %p82, %p83
      %p86 = scmp.ne.s32.totalorder %s69, %s85
      %p87 = scmp.eq.s32.totalorder %s33, 0
      %p88 = por %p86, %p87
      %s90 = sadd.s32 %s89, 1
      %p93 = scmp.eq.s32.totalorder %s27, 2
      %p94 = scmp.ne.s32.totalorder %s89, %s91
      %p95 = scmp.eq.s32.totalorder %s27, 0
      %p96 = por %p94, %p95
      %p97 = scmp.ne.s32.totalorder %s89, %s91
      %p98 = scmp.eq.s32.totalorder %s32, 2
      %p99 = por %p97, %p98
      %p100 = scmp.ne.s32.totalorder %s91, %s92
      %p101 = scmp.eq.s32.totalorder %s32, 0
      %p102 = por %p100, %p101
      %p103 = scmp.ne.s32.totalorder %s91, %s92
      %p104 = scmp.eq.s32.totalorder %s33, 2
      %p105 = por %p103, %p104
      %p107 = scmp.ne.s32.totalorder %s92, %s106
      %p108 = scmp.eq.s32.totalorder %s33, 0
      %p109 = por %p107, %p108
      %s111 = sadd.s32 %s110, 1
      %p114 = scmp.eq.s32.totalorder %s27, 2
      %p115 = scmp.ne.s32.totalorder %s110, %s112
      %p116 = scmp.eq.s32.totalorder %s27, 0
      %p117 = por %p115, %p116
      %p118 = scmp.ne.s32.totalorder %s110, %s112
      %p119 = scmp.eq.s32.totalorder %s32, 2
      %p120 = por %p118, %p119
      %p121 = scmp.ne.s32.totalorder %s112, %s113
      %p122 = scmp.eq.s32.totalorder %s32, 0
      %p123 = por %p121, %p122
      %p124 = scmp.ne.s32.totalorder %s112, %s113
      %p125 = scmp.eq.s32.totalorder %s33, 2
      %p126 = por %p124, %p125
      %p128 = scmp.ne.s32.totalorder %s113, %s127
      %p129 = scmp.eq.s32.totalorder %s33, 0
      %p130 = por %p128, %p129
      %s132 = sadd.s32 %s131, 1
      %p135 = scmp.eq.s32.totalorder %s27, 2
      %p136 = scmp.ne.s32.totalorder %s131, %s133
      %p137 = scmp.eq.s32.totalorder %s27, 0
      %p138 = por %p136, %p137
      %p139 = scmp.ne.s32.totalorder %s131, %s133
      %p140 = scmp.eq.s32.totalorder %s32, 2
      %p141 = por %p139, %p140
      %p142 = scmp.ne.s32.totalorder %s133, %s134
      %p143 = scmp.eq.s32.totalorder %s32, 0
      %p144 = por %p142, %p143
      %p145 = scmp.ne.s32.totalorder %s133, %s134
      %p146 = scmp.eq.s32.totalorder %s33, 2
      %p147 = por %p145, %p146
      %p149 = scmp.ne.s32.totalorder %s134, %s148
      %p150 = scmp.eq.s32.totalorder %s33, 0
      %p151 = por %p149, %p150
      %s153 = sadd.s32 %s152, 1
      %p156 = scmp.eq.s32.totalorder %s27, 2
      %p157 = scmp.ne.s32.totalorder %s152, %s154
      %p158 = scmp.eq.s32.totalorder %s27, 0
      %p159 = por %p157, %p158
      %p160 = scmp.ne.s32.totalorder %s152, %s154
      %p161 = scmp.eq.s32.totalorder %s32, 2
      %p162 = por %p160, %p161
      %p163 = scmp.ne.s32.totalorder %s154, %s155
      %p164 = scmp.eq.s32.totalorder %s32, 0
      %p165 = por %p163, %p164
      %p166 = scmp.ne.s32.totalorder %s154, %s155
      %p167 = scmp.eq.s32.totalorder %s33, 2
      %p168 = por %p166, %p167
      %p170 = scmp.ne.s32.totalorder %s155, %s169
      %p171 = scmp.eq.s32.totalorder %s33, 0
      %p172 = por %p170, %p171
      %s174 = sadd.s32 %s173, 1
      %p177 = scmp.eq.s32.totalorder %s27, 2
      %p178 = scmp.ne.s32.totalorder %s173, %s175
      %p179 = scmp.eq.s32.totalorder %s27, 0
      %p180 = por %p178, %p179
      %p181 = scmp.ne.s32.totalorder %s173, %s175
      %p182 = scmp.eq.s32.totalorder %s32, 2
      %p183 = por %p181, %p182
      %p184 = scmp.ne.s32.totalorder %s175, %s176
      %p185 = scmp.eq.s32.totalorder %s32, 0
      %p186 = por %p184, %p185
      %p187 = scmp.ne.s32.totalorder %s175, %s176
      %p188 = scmp.eq.s32.totalorder %s33, 2
      %p189 = por %p187, %p188
      %p191 = scmp.ne.s32.totalorder %s176, %s190
      %p192 = scmp.eq.s32.totalorder %s33, 0
      %p193 = por %p191, %p192
      %s195 = sadd.s32 %s194, 1
      %p198 = scmp.eq.s32.totalorder %s27, 2
      %p199 = scmp.ne.s32.totalorder %s194, %s196
      %p200 = scmp.eq.s32.totalorder %s27, 0
      %p201 = por %p199, %p200
      %p202 = scmp.ne.s32.totalorder %s194, %s196
      %p203 = scmp.eq.s32.totalorder %s32, 2
      %p204 = por %p202, %p203
      %p205 = scmp.ne.s32.totalorder %s196, %s197
      %p206 = scmp.eq.s32.totalorder %s32, 0
      %p207 = por %p205, %p206
      %p208 = scmp.ne.s32.totalorder %s196, %s197
      %p209 = scmp.eq.s32.totalorder %s33, 2
      %p210 = por %p208, %p209
      %p212 = scmp.ne.s32.totalorder %s197, %s211
      %p213 = scmp.eq.s32.totalorder %s33, 0
      %p214 = por %p212, %p213
      %s216 = sadd.s32 %s215, 1
      %p219 = scmp.eq.s32.totalorder %s27, 2
      %p220 = scmp.ne.s32.totalorder %s215, %s217
      %p221 = scmp.eq.s32.totalorder %s27, 0
      %p222 = por %p220, %p221
      %p223 = scmp.ne.s32.totalorder %s215, %s217
      %p224 = scmp.eq.s32.totalorder %s32, 2
      %p225 = por %p223, %p224
      %p226 = scmp.ne.s32.totalorder %s217, %s218
      %p227 = scmp.eq.s32.totalorder %s32, 0
      %p228 = por %p226, %p227
      %p229 = scmp.ne.s32.totalorder %s217, %s218
      %p230 = scmp.eq.s32.totalorder %s33, 2
      %p231 = por %p229, %p230
      %p233 = scmp.ne.s32.totalorder %s218, %s232
      %p234 = scmp.eq.s32.totalorder %s33, 0
      %p235 = por %p233, %p234
      %s237 = sadd.s32 %s236, 1
      %p240 = scmp.eq.s32.totalorder %s27, 2
      %p241 = scmp.ne.s32.totalorder %s236, %s238
      %p242 = scmp.eq.s32.totalorder %s27, 0
      %p243 = por %p241, %p242
      %p244 = scmp.ne.s32.totalorder %s236, %s238
      %p245 = scmp.eq.s32.totalorder %s32, 2
      %p246 = por %p244, %p245
      %p247 = scmp.ne.s32.totalorder %s238, %s239
      %p248 = scmp.eq.s32.totalorder %s32, 0
      %p249 = por %p247, %p248
      %p250 = scmp.ne.s32.totalorder %s238, %s239
      %p251 = scmp.eq.s32.totalorder %s33, 2
      %p252 = por %p250, %p251
      %p254 = scmp.ne.s32.totalorder %s239, %s253
      %p255 = scmp.eq.s32.totalorder %s33, 0
      %p256 = por %p254, %p255
      %s258 = sadd.s32 %s257, 1
      %p261 = scmp.eq.s32.totalorder %s27, 2
      %p262 = scmp.ne.s32.totalorder %s257, %s259
      %p263 = scmp.eq.s32.totalorder %s27, 0
      %p264 = por %p262, %p263
      %p265 = scmp.ne.s32.totalorder %s257, %s259
      %p266 = scmp.eq.s32.totalorder %s32, 2
      %p267 = por %p265, %p266
      %p268 = scmp.ne.s32.totalorder %s259, %s260
      %p269 = scmp.eq.s32.totalorder %s32, 0
      %p270 = por %p268, %p269
      %p271 = scmp.ne.s32.totalorder %s259, %s260
      %p272 = scmp.eq.s32.totalorder %s33, 2
      %p273 = por %p271, %p272
      %p275 = scmp.ne.s32.totalorder %s260, %s274
      %p276 = scmp.eq.s32.totalorder %s33, 0
      %p277 = por %p275, %p276
      %s279 = sadd.s32 %s278, 1
      %p282 = scmp.eq.s32.totalorder %s27, 2
      %p283 = scmp.ne.s32.totalorder %s278, %s280
      %p284 = scmp.eq.s32.totalorder %s27, 0
      %p285 = por %p283, %p284
      %p286 = scmp.ne.s32.totalorder %s278, %s280
      %p287 = scmp.eq.s32.totalorder %s32, 2
      %p288 = por %p286, %p287
      %p289 = scmp.ne.s32.totalorder %s280, %s281
      %p290 = scmp.eq.s32.totalorder %s32, 0
      %p291 = por %p289, %p290
      %p292 = scmp.ne.s32.totalorder %s280, %s281
      %p293 = scmp.eq.s32.totalorder %s33, 2
      %p294 = por %p292, %p293
      %p296 = scmp.ne.s32.totalorder %s281, %s295
      %p297 = scmp.eq.s32.totalorder %s33, 0
      %p298 = por %p296, %p297
      %p299 = scmp.le.s32.totalorder 1, %s27
      %p300 = scmp.lt.s32.totalorder %s27, 4
      %p301 = pnand %p299, %p300
      %p302 = pneg %p301
      // Predicated region
      $region9: #{tpu_custom_call.1} parent=5 // pred_check
        _
      $region10: #{tpu_custom_call.1} parent=5 // pred_check_branch
        %304 = sbr.rel (%p301) target = $region12
      $region11: #{tpu_custom_call.1} parent=5 // pred_region
        %s305 = ssub.s32 %s27, 1
        // Predicated region
        $region13: #{tpu_custom_call.1} parent=11 // pred_check
          %p306 = pneg %p102
        $region14: #{tpu_custom_call.1} parent=11 // pred_check_branch
          %308 = sbr.rel (%p306) target = $region16
        $region15: #{tpu_custom_call.1} parent=11 // pred_region
          %310 = vsyncadd [#allocation12], 0
          %s311 = sshll.u32 %s2, 4
          %s312 = int_to_ptr.hbm [resolvable:$true] %s311
          %s313 = sshll.u32 [#allocation13], 4
          %s314 = int_to_ptr.vmem [resolvable:$true] %s313
          %319 = dma.hbm_to_vmem [thread:$0]  %s312, 4096, %s314, [#allocation12], 256, 256, 16
        $region16: #{tpu_custom_call.1} parent=11 // pred_fallthru
          _
        // Predicated region
        $region17: #{tpu_custom_call.1} parent=11 // pred_check
          %p320 = pneg %p123
        $region18: #{tpu_custom_call.1} parent=11 // pred_check_branch
          %322 = sbr.rel (%p320) target = $region20
        $region19: #{tpu_custom_call.1} parent=11 // pred_region
          %324 = vsyncadd [#allocation15], 0
          %s325 = sshll.u32 %s3, 4
          %s326 = int_to_ptr.hbm [resolvable:$true] %s325
          %s327 = sshll.u32 [#allocation14], 4
          %s328 = int_to_ptr.vmem [resolvable:$true] %s327
          %333 = dma.hbm_to_vmem [thread:$0]  %s326, 4096, %s328, [#allocation15], 256, 256, 16
        $region20: #{tpu_custom_call.1} parent=11 // pred_fallthru
          _
        // Predicated region
        $region21: #{tpu_custom_call.1} parent=11 // pred_check
          %p334 = pneg %p144
        $region22: #{tpu_custom_call.1} parent=11 // pred_check_branch
          %336 = sbr.rel (%p334) target = $region24
        $region23: #{tpu_custom_call.1} parent=11 // pred_region
          %338 = vsyncadd [#allocation15], 0
          %s340 = sshll.u32 %s4, 4
          %s341 = int_to_ptr.hbm [resolvable:$true] %s340
          %s342 = sshll.u32 [#allocation16], 4
          %s343 = int_to_ptr.vmem [resolvable:$true] %s342
          %345 = dma.hbm_to_vmem [thread:$0]  %s341, 64, %s343, [#allocation15]
        $region24: #{tpu_custom_call.1} parent=11 // pred_fallthru
          _
        // Predicated region
        $region25: #{tpu_custom_call.1} parent=11 // pred_check
          %p346 = pneg %p165
        $region26: #{tpu_custom_call.1} parent=11 // pred_check_branch
          %348 = sbr.rel (%p346) target = $region28
        $region27: #{tpu_custom_call.1} parent=11 // pred_region
          %350 = vsyncadd [#allocation18], 0
          %s351 = sshll.u32 %s5, 4
          %s352 = int_to_ptr.hbm [resolvable:$true] %s351
          %s353 = sshll.u32 [#allocation17], 4
          %s354 = int_to_ptr.vmem [resolvable:$true] %s353
          %359 = dma.hbm_to_vmem [thread:$0]  %s352, 4096, %s354, [#allocation18], 256, 256, 16
        $region28: #{tpu_custom_call.1} parent=11 // pred_fallthru
          _
        // Predicated region
        $region29: #{tpu_custom_call.1} parent=11 // pred_check
          %p360 = pneg %p186
        $region30: #{tpu_custom_call.1} parent=11 // pred_check_branch
          %362 = sbr.rel (%p360) target = $region32
        $region31: #{tpu_custom_call.1} parent=11 // pred_region
          %364 = vsyncadd [#allocation18], 0
          %s365 = sshll.u32 %s6, 4
          %s366 = int_to_ptr.hbm [resolvable:$true] %s365
          %s367 = sshll.u32 [#allocation19], 4
          %s368 = int_to_ptr.vmem [resolvable:$true] %s367
          %373 = dma.hbm_to_vmem [thread:$0]  %s366, 4096, %s368, [#allocation18], 256, 256, 16
        $region32: #{tpu_custom_call.1} parent=11 // pred_fallthru
          _
        // Predicated region
        $region33: #{tpu_custom_call.1} parent=11 // pred_check
          %p374 = pneg %p207
        $region34: #{tpu_custom_call.1} parent=11 // pred_check_branch
          %376 = sbr.rel (%p374) target = $region36
        $region35: #{tpu_custom_call.1} parent=11 // pred_region
          _
        $region36: #{tpu_custom_call.1} parent=11 // pred_fallthru
          _
        // Predicated region
        $region37: #{tpu_custom_call.1} parent=11 // pred_check
          %p377 = pneg %p228
        $region38: #{tpu_custom_call.1} parent=11 // pred_check_branch
          %379 = sbr.rel (%p377) target = $region40
        $region39: #{tpu_custom_call.1} parent=11 // pred_region
          %381 = vsyncadd [#allocation21], 0
          %s382 = sshll.u32 %s8, 4
          %s383 = int_to_ptr.hbm [resolvable:$true] %s382
          %s384 = sshll.u32 [#allocation20], 4
          %s385 = int_to_ptr.vmem [resolvable:$true] %s384
          %390 = dma.hbm_to_vmem [thread:$0]  %s383, 2048, %s385, [#allocation21], 128, 128, 8
        $region40: #{tpu_custom_call.1} parent=11 // pred_fallthru
          _
        // Predicated region
        $region41: #{tpu_custom_call.1} parent=11 // pred_check
          %p391 = pneg %p249
        $region42: #{tpu_custom_call.1} parent=11 // pred_check_branch
          %393 = sbr.rel (%p391) target = $region44
        $region43: #{tpu_custom_call.1} parent=11 // pred_region
          %395 = vsyncadd [#allocation21], 0
          %s396 = sshll.u32 %s9, 4
          %s397 = int_to_ptr.hbm [resolvable:$true] %s396
          %s398 = sshll.u32 [#allocation22], 4
          %s399 = int_to_ptr.vmem [resolvable:$true] %s398
          %404 = dma.hbm_to_vmem [thread:$0]  %s397, 2048, %s399, [#allocation21], 128, 128, 8
        $region44: #{tpu_custom_call.1} parent=11 // pred_fallthru
          _
        // Predicated region
        $region45: #{tpu_custom_call.1} parent=11 // pred_check
          %p405 = pneg %p270
        $region46: #{tpu_custom_call.1} parent=11 // pred_check_branch
          %407 = sbr.rel (%p405) target = $region48
        $region47: #{tpu_custom_call.1} parent=11 // pred_region
          _
        $region48: #{tpu_custom_call.1} parent=11 // pred_fallthru
          _
      $region12: #{tpu_custom_call.1} parent=5 // pred_fallthru
        _
      %p408 = scmp.lt.s32.totalorder %s27, 3
      // Predicated region
      $region49: #{tpu_custom_call.1} parent=5 // pred_check
        %p409 = pneg %p408
      $region50: #{tpu_custom_call.1} parent=5 // pred_check_branch
        %411 = sbr.rel (%p409) target = $region52
      $region51: #{tpu_custom_call.1} parent=5 // pred_region
        // Predicated region
        $region53: #{tpu_custom_call.1} parent=51 // pred_check
          %p412 = pneg %p47
        $region54: #{tpu_custom_call.1} parent=51 // pred_check_branch
          %414 = sbr.rel (%p412) target = $region56
        $region55: #{tpu_custom_call.1} parent=51 // pred_region
          %s415 = sand.u32 %s37, 1
          %s416 = scalar_lea.sflag [#allocation9], %s415
          %s417 = sand.u32 %s37, 1
          %s418 = smul.addr %s417, 32
          %s419 = scalar_lea.vmem [#allocation8], %s418
          %421 = vsyncadd %s416, 0
          %s422 = smul.addr %s27, 8
          %s423 = smul.addr %s422, 4
          %s424 = scalar_lea.hbm %s0, %s423
          %s425 = sshll.u32 %s424, 4
          %s426 = int_to_ptr.hbm [resolvable:$true] %s425
          %s427 = sshll.u32 %s419, 4
          %s428 = int_to_ptr.vmem [resolvable:$true] %s427
          %433 = dma.hbm_to_vmem [thread:$0]  %s426, 512, %s428, %s416, 64, 64, 4
        $region56: #{tpu_custom_call.1} parent=51 // pred_fallthru
          _
        // Predicated region
        $region57: #{tpu_custom_call.1} parent=51 // pred_check
          %p434 = pneg %p75
        $region58: #{tpu_custom_call.1} parent=51 // pred_check_branch
          %436 = sbr.rel (%p434) target = $region60
        $region59: #{tpu_custom_call.1} parent=51 // pred_region
          %s437 = sand.u32 %s27, 1
          %s438 = scalar_lea.sflag [#allocation12], %s437
          %s439 = sand.u32 %s65, 1
          %s440 = smul.addr %s439, 32
          %s441 = scalar_lea.vmem [#allocation11], %s440
          %s442 = ssub.s32 2, %s27
          %444 = vsyncadd %s438, 0
          %s445 = smul.addr %s442, 8
          %s446 = smul.addr %s445, 4
          %s447 = scalar_lea.hbm %s1, %s446
          %s448 = sshll.u32 %s447, 4
          %s449 = int_to_ptr.hbm [resolvable:$true] %s448
          %s450 = sshll.u32 %s441, 4
          %s451 = int_to_ptr.vmem [resolvable:$true] %s450
          %456 = dma.hbm_to_vmem [thread:$0]  %s449, 512, %s451, %s438, 64, 64, 4
        $region60: #{tpu_custom_call.1} parent=51 // pred_fallthru
          _
      $region52: #{tpu_custom_call.1} parent=5 // pred_fallthru
        _
      %p457 = scmp.le.s32.totalorder 1, %s27
      %p458 = scmp.lt.s32.totalorder %s27, 4
      %p459 = pnand %p457, %p458
      %p460 = pneg %p459
      // Predicated region
      $region61: #{tpu_custom_call.1} parent=5 // pred_check
        _
      $region62: #{tpu_custom_call.1} parent=5 // pred_check_branch
        %462 = sbr.rel (%p459) target = $region64
      $region63: #{tpu_custom_call.1} parent=5 // pred_region
        %s463 = ssub.s32 %s27, 1
        %s464 = sand.u32 %s40, 1
        %s465 = scalar_lea.sflag [#allocation9], %s464
        %s466 = sand.u32 %s40, 1
        %s467 = smul.addr %s466, 32
        %s468 = scalar_lea.vmem [#allocation8], %s467
        // Predicated region
        $region65: #{tpu_custom_call.1} parent=63 // pred_check
          %p469 = pneg %p53
        $region66: #{tpu_custom_call.1} parent=63 // pred_check_branch
          %471 = sbr.rel (%p469) target = $region68
        $region67: #{tpu_custom_call.1} parent=63 // pred_region
          %473 = dma.done %s465, 512
        $region68: #{tpu_custom_call.1} parent=63 // pred_fallthru
          _
        %s474 = sand.u32 %s32, 1
        %s475 = scalar_lea.sflag [#allocation12], %s474
        %s476 = sand.u32 %s68, 1
        %s477 = smul.addr %s476, 32
        %s478 = scalar_lea.vmem [#allocation11], %s477
        // Predicated region
        $region69: #{tpu_custom_call.1} parent=63 // pred_check
          %p479 = pneg %p81
        $region70: #{tpu_custom_call.1} parent=63 // pred_check_branch
          %481 = sbr.rel (%p479) target = $region72
        $region71: #{tpu_custom_call.1} parent=63 // pred_region
          %483 = dma.done %s475, 512
        $region72: #{tpu_custom_call.1} parent=63 // pred_fallthru
          _
        // Predicated region
        $region73: #{tpu_custom_call.1} parent=63 // pred_check
          %p484 = pneg %p102
        $region74: #{tpu_custom_call.1} parent=63 // pred_check_branch
          %486 = sbr.rel (%p484) target = $region76
        $region75: #{tpu_custom_call.1} parent=63 // pred_region
          %488 = dma.done [#allocation12], 4096
        $region76: #{tpu_custom_call.1} parent=63 // pred_fallthru
          _
        // Predicated region
        $region77: #{tpu_custom_call.1} parent=63 // pred_check
          %p489 = pneg %p123
        $region78: #{tpu_custom_call.1} parent=63 // pred_check_branch
          %491 = sbr.rel (%p489) target = $region80
        $region79: #{tpu_custom_call.1} parent=63 // pred_region
          %493 = dma.done [#allocation15], 4096
        $region80: #{tpu_custom_call.1} parent=63 // pred_fallthru
          _
        // Predicated region
        $region81: #{tpu_custom_call.1} parent=63 // pred_check
          %p494 = pneg %p144
        $region82: #{tpu_custom_call.1} parent=63 // pred_check_branch
          %496 = sbr.rel (%p494) target = $region84
        $region83: #{tpu_custom_call.1} parent=63 // pred_region
          %498 = dma.done [#allocation15], 64
        $region84: #{tpu_custom_call.1} parent=63 // pred_fallthru
          _
        // Predicated region
        $region85: #{tpu_custom_call.1} parent=63 // pred_check
          %p499 = pneg %p165
        $region86: #{tpu_custom_call.1} parent=63 // pred_check_branch
          %501 = sbr.rel (%p499) target = $region88
        $region87: #{tpu_custom_call.1} parent=63 // pred_region
          %503 = dma.done [#allocation18], 4096
        $region88: #{tpu_custom_call.1} parent=63 // pred_fallthru
          _
        // Predicated region
        $region89: #{tpu_custom_call.1} parent=63 // pred_check
          %p504 = pneg %p186
        $region90: #{tpu_custom_call.1} parent=63 // pred_check_branch
          %506 = sbr.rel (%p504) target = $region92
        $region91: #{tpu_custom_call.1} parent=63 // pred_region
          %508 = dma.done [#allocation18], 4096
        $region92: #{tpu_custom_call.1} parent=63 // pred_fallthru
          _
        // Predicated region
        $region93: #{tpu_custom_call.1} parent=63 // pred_check
          %p509 = pneg %p228
        $region94: #{tpu_custom_call.1} parent=63 // pred_check_branch
          %511 = sbr.rel (%p509) target = $region96
        $region95: #{tpu_custom_call.1} parent=63 // pred_region
          %513 = dma.done [#allocation21], 2048
        $region96: #{tpu_custom_call.1} parent=63 // pred_fallthru
          _
        // Predicated region
        $region97: #{tpu_custom_call.1} parent=63 // pred_check
          %p514 = pneg %p249
        $region98: #{tpu_custom_call.1} parent=63 // pred_check_branch
          %516 = sbr.rel (%p514) target = $region100
        $region99: #{tpu_custom_call.1} parent=63 // pred_region
          %518 = dma.done [#allocation21], 2048
        $region100: #{tpu_custom_call.1} parent=63 // pred_fallthru
          _
        %s519 = sand.u32 %s40, 1
        %s520 = scalar_lea.sflag [#allocation9], %s519
        %s521 = sand.u32 %s40, 1
        %s522 = smul.addr %s521, 32
        %s523 = scalar_lea.vmem [#allocation8], %s522
        %p524 = pneg %p53
        %p525 = pneg %p50
        %s526 = sand.u32 %s32, 1
        %s527 = scalar_lea.sflag [#allocation12], %s526
        %s528 = sand.u32 %s68, 1
        %s529 = smul.addr %s528, 32
        %s530 = scalar_lea.vmem [#allocation11], %s529
        %p531 = pneg %p81
        %p532 = pneg %p78
        %p533 = pneg %p102
        %p534 = pneg %p99
        %p535 = pneg %p123
        %p536 = pneg %p120
        %p537 = pneg %p144
        %p538 = pneg %p141
        %p539 = pneg %p165
        %p540 = pneg %p162
        %p541 = pneg %p186
        %p542 = pneg %p183
        %p543 = pneg %p207
        %p544 = pneg %p204
        %p545 = pneg %p228
        %p546 = pneg %p225
        %p547 = pneg %p249
        %p548 = pneg %p246
        %p549 = pneg %p270
        %p550 = pneg %p267
        %p551 = pneg %p291
        %p552 = pneg %p288
        %s553 = ssub.s32 2, %s32
        %p554 = scmp.eq.s32.totalorder %s32, 0
        // Predicated region
        $region101: #{tpu_custom_call.1} parent=63 // pred_check
          %p555 = pneg %p554
        $region102: #{tpu_custom_call.1} parent=63 // pred_check_branch
          %557 = sbr.rel (%p555) target = $region104
        $region103: #{tpu_custom_call.1} parent=63 // pred_region
          %558 = vst [vmem:[#allocation4] sm:$0xff] 0.0
          %559 = vst [vmem:[#allocation4 + $0x8] sm:$0xff] 0.0
          %560 = vst [vmem:[#allocation5] sm:$0xff] 0.0
          %561 = vst [vmem:[#allocation5 + $0x8] sm:$0xff] 0.0
          %562 = vst [vmem:[#allocation6] sm:$0xff] 0.0
          %563 = vst [vmem:[#allocation6 + $0x8] sm:$0xff] 0.0
          %564 = vst [vmem:[#allocation7] sm:$0xff] 0.0
          %565 = vst [vmem:[#allocation7 + $0x8] sm:$0xff] 0.0
        $region104: #{tpu_custom_call.1} parent=63 // pred_fallthru
          _
        %v566 = vld [vmem:[%s468] sm:$0xf]
        %v567 = vld [vmem:[%s468 + $0x4] sm:$0xf]
        %v568 = vld [vmem:[%s468 + $0x8] sm:$0xf]
        %v569 = vld [vmem:[%s468 + $0xc] sm:$0xf]
        %v570 = vld [vmem:[%s468 + $0x10] sm:$0xf]
        %v571 = vld [vmem:[%s468 + $0x14] sm:$0xf]
        %v572 = vld [vmem:[%s468 + $0x18] sm:$0xf]
        %v573 = vld [vmem:[%s468 + $0x1c] sm:$0xf]
        %v574 = vld [vmem:[#allocation13] sm:$0xff]
        %v575 = vld [vmem:[#allocation13 + $0x8] sm:$0xff]
        %v576 = vld [vmem:[#allocation13 + $0x10] sm:$0xff]
        %v577 = vld [vmem:[#allocation13 + $0x18] sm:$0xff]
        %v578 = vld [vmem:[#allocation13 + $0x20] sm:$0xff]
        %v579 = vld [vmem:[#allocation13 + $0x28] sm:$0xff]
        %v580 = vld [vmem:[#allocation13 + $0x30] sm:$0xff]
        %v581 = vld [vmem:[#allocation13 + $0x38] sm:$0xff]
        %v582 = vld [vmem:[#allocation13 + $0x40] sm:$0xff]
        %v583 = vld [vmem:[#allocation13 + $0x48] sm:$0xff]
        %v584 = vld [vmem:[#allocation13 + $0x50] sm:$0xff]
        %v585 = vld [vmem:[#allocation13 + $0x58] sm:$0xff]
        %v586 = vld [vmem:[#allocation13 + $0x60] sm:$0xff]
        %v587 = vld [vmem:[#allocation13 + $0x68] sm:$0xff]
        %v588 = vld [vmem:[#allocation13 + $0x70] sm:$0xff]
        %v589 = vld [vmem:[#allocation13 + $0x78] sm:$0xff]
        %v590 = vld [vmem:[#allocation13 + $0x80] sm:$0xff]
        %v591 = vld [vmem:[#allocation13 + $0x88] sm:$0xff]
        %v592 = vld [vmem:[#allocation13 + $0x90] sm:$0xff]
        %v593 = vld [vmem:[#allocation13 + $0x98] sm:$0xff]
        %v594 = vld [vmem:[#allocation13 + $0xa0] sm:$0xff]
        %v595 = vld [vmem:[#allocation13 + $0xa8] sm:$0xff]
        %v596 = vld [vmem:[#allocation13 + $0xb0] sm:$0xff]
        %v597 = vld [vmem:[#allocation13 + $0xb8] sm:$0xff]
        %v598 = vld [vmem:[#allocation13 + $0xc0] sm:$0xff]
        %v599 = vld [vmem:[#allocation13 + $0xc8] sm:$0xff]
        %v600 = vld [vmem:[#allocation13 + $0xd0] sm:$0xff]
        %v601 = vld [vmem:[#allocation13 + $0xd8] sm:$0xff]
        %v602 = vld [vmem:[#allocation13 + $0xe0] sm:$0xff]
        %v603 = vld [vmem:[#allocation13 + $0xe8] sm:$0xff]
        %v604 = vld [vmem:[#allocation13 + $0xf0] sm:$0xff]
        %v605 = vld [vmem:[#allocation13 + $0xf8] sm:$0xff]
        %v606 = vld [vmem:[#allocation16] sm:$0xf]
        %v608 = vperm.slane %v606, 0
        %v609 = vperm.slane %v606, 1
        %v610 = vperm.slane %v606, 2
        %v611 = vperm.slane %v606, 3
        %v624 = vunpack.c.l.b16 %v566
        %v625 = vunpack.c.l.b16 %v567
        %v626 = vunpack.c.l.b16 %v568
        %v627 = vunpack.c.l.b16 %v569
        %v628 = vunpack.c.l.b16 %v570
        %v629 = vunpack.c.l.b16 %v571
        %v630 = vunpack.c.l.b16 %v572
        %v631 = vunpack.c.l.b16 %v573
        %v632 = vpack.c.b16 %v625, %v624
        %v633 = vpack.c.b16 %v627, %v626
        %v634 = vpack.c.b16 %v629, %v628
        %v635 = vpack.c.b16 %v631, %v630
        %v672 = vunpack.c.l.b16 %v574
        %v673 = vunpack.c.h.b16 %v574
        %v674 = vunpack.c.l.b16 %v575
        %v675 = vunpack.c.h.b16 %v575
        %v676 = vunpack.c.l.b16 %v576
        %v677 = vunpack.c.h.b16 %v576
        %v678 = vunpack.c.l.b16 %v577
        %v679 = vunpack.c.h.b16 %v577
        %v680 = vunpack.c.l.b16 %v578
        %v681 = vunpack.c.h.b16 %v578
        %v682 = vunpack.c.l.b16 %v579
        %v683 = vunpack.c.h.b16 %v579
        %v684 = vunpack.c.l.b16 %v580
        %v685 = vunpack.c.h.b16 %v580
        %v686 = vunpack.c.l.b16 %v581
        %v687 = vunpack.c.h.b16 %v581
        %v688 = vunpack.c.l.b16 %v582
        %v689 = vunpack.c.h.b16 %v582
        %v690 = vunpack.c.l.b16 %v583
        %v691 = vunpack.c.h.b16 %v583
        %v692 = vunpack.c.l.b16 %v584
        %v693 = vunpack.c.h.b16 %v584
        %v694 = vunpack.c.l.b16 %v585
        %v695 = vunpack.c.h.b16 %v585
        %v696 = vunpack.c.l.b16 %v586
        %v697 = vunpack.c.h.b16 %v586
        %v698 = vunpack.c.l.b16 %v587
        %v699 = vunpack.c.h.b16 %v587
        %v700 = vunpack.c.l.b16 %v588
        %v701 = vunpack.c.h.b16 %v588
        %v702 = vunpack.c.l.b16 %v589
        %v703 = vunpack.c.h.b16 %v589
        %v704 = vunpack.c.l.b16 %v590
        %v705 = vunpack.c.h.b16 %v590
        %v706 = vunpack.c.l.b16 %v591
        %v707 = vunpack.c.h.b16 %v591
        %v708 = vunpack.c.l.b16 %v592
        %v709 = vunpack.c.h.b16 %v592
        %v710 = vunpack.c.l.b16 %v593
        %v711 = vunpack.c.h.b16 %v593
        %v712 = vunpack.c.l.b16 %v594
        %v713 = vunpack.c.h.b16 %v594
        %v714 = vunpack.c.l.b16 %v595
        %v715 = vunpack.c.h.b16 %v595
        %v716 = vunpack.c.l.b16 %v596
        %v717 = vunpack.c.h.b16 %v596
        %v718 = vunpack.c.l.b16 %v597
        %v719 = vunpack.c.h.b16 %v597
        %v720 = vunpack.c.l.b16 %v598
        %v721 = vunpack.c.h.b16 %v598
        %v722 = vunpack.c.l.b16 %v599
        %v723 = vunpack.c.h.b16 %v599
        %v724 = vunpack.c.l.b16 %v600
        %v725 = vunpack.c.h.b16 %v600
        %v726 = vunpack.c.l.b16 %v601
        %v727 = vunpack.c.h.b16 %v601
        %v728 = vunpack.c.l.b16 %v602
        %v729 = vunpack.c.h.b16 %v602
        %v730 = vunpack.c.l.b16 %v603
        %v731 = vunpack.c.h.b16 %v603
        %v732 = vunpack.c.l.b16 %v604
        %v733 = vunpack.c.h.b16 %v604
        %v734 = vunpack.c.l.b16 %v605
        %v735 = vunpack.c.h.b16 %v605
        %v736 = vpack.c.b16 %v676, %v672
        %v737 = vpack.c.b16 %v677, %v673
        %v738 = vpack.c.b16 %v678, %v674
        %v739 = vpack.c.b16 %v679, %v675
        %v740 = vpack.c.b16 %v684, %v680
        %v741 = vpack.c.b16 %v685, %v681
        %v742 = vpack.c.b16 %v686, %v682
        %v743 = vpack.c.b16 %v687, %v683
        %v744 = vpack.c.b16 %v692, %v688
        %v745 = vpack.c.b16 %v693, %v689
        %v746 = vpack.c.b16 %v694, %v690
        %v747 = vpack.c.b16 %v695, %v691
        %v748 = vpack.c.b16 %v700, %v696
        %v749 = vpack.c.b16 %v701, %v697
        %v750 = vpack.c.b16 %v702, %v698
        %v751 = vpack.c.b16 %v703, %v699
        %v752 = vpack.c.b16 %v708, %v704
        %v753 = vpack.c.b16 %v709, %v705
        %v754 = vpack.c.b16 %v710, %v706
        %v755 = vpack.c.b16 %v711, %v707
        %v756 = vpack.c.b16 %v716, %v712
        %v757 = vpack.c.b16 %v717, %v713
        %v758 = vpack.c.b16 %v718, %v714
        %v759 = vpack.c.b16 %v719, %v715
        %v760 = vpack.c.b16 %v724, %v720
        %v761 = vpack.c.b16 %v725, %v721
        %v762 = vpack.c.b16 %v726, %v722
        %v763 = vpack.c.b16 %v727, %v723
        %v764 = vpack.c.b16 %v732, %v728
        %v765 = vpack.c.b16 %v733, %v729
        %v766 = vpack.c.b16 %v734, %v730
        %v767 = vpack.c.b16 %v735, %v731
        %800 = vmatpush.bf16.msra.mxu0 %v764
        %801 = vmatpush.bf16.msra.mxu0 %v760
        %802 = vmatpush.bf16.msra.mxu0 %v756
        %803 = vmatpush.bf16.msra.mxu0 %v752
        %804 = vmatpush.bf16.msra.mxu0 %v748
        %805 = vmatpush.bf16.msra.mxu0 %v744
        %806 = vmatpush.bf16.msra.mxu0 %v740
        %807 = vmatpush.bf16.msra.mxu0 %v736
        %808 = vmatmul.bf16.gmra.mxu0 %v632
        %v809 = vpop.f32.mrf.mxu0
        %v810 = vadd.f32 %v608, %v809
        %v811 = vpop.f32.mrf.mxu0
        %v812 = vadd.f32 %v608, %v811
        %813 = vmatmul.bf16.gmra.mxu0 %v633
        %v814 = vpop.f32.mrf.mxu0
        %v815 = vadd.f32 %v608, %v814
        %v816 = vpop.f32.mrf.mxu0
        %v817 = vadd.f32 %v608, %v816
        %818 = vmatmul.bf16.gmra.mxu0 %v634
        %v819 = vpop.f32.mrf.mxu0
        %v820 = vadd.f32 %v608, %v819
        %v821 = vpop.f32.mrf.mxu0
        %v822 = vadd.f32 %v608, %v821
        %823 = vmatmul.bf16.gmra.mxu0 %v635
        %v824 = vpop.f32.mrf.mxu0
        %v825 = vadd.f32 %v608, %v824
        %v826 = vpop.f32.mrf.mxu0
        %v827 = vadd.f32 %v608, %v826
        %828 = vdwg.mxu0
        %829 = vmatpush.bf16.msra.mxu0 %v765
        %830 = vmatpush.bf16.msra.mxu0 %v761
        %831 = vmatpush.bf16.msra.mxu0 %v757
        %832 = vmatpush.bf16.msra.mxu0 %v753
        %833 = vmatpush.bf16.msra.mxu0 %v749
        %834 = vmatpush.bf16.msra.mxu0 %v745
        %835 = vmatpush.bf16.msra.mxu0 %v741
        %836 = vmatpush.bf16.msra.mxu0 %v737
        %837 = vmatmul.bf16.gmra.mxu0 %v632
        %v838 = vpop.f32.mrf.mxu0
        %v839 = vadd.f32 %v609, %v838
        %v840 = vpop.f32.mrf.mxu0
        %v841 = vadd.f32 %v609, %v840
        %842 = vmatmul.bf16.gmra.mxu0 %v633
        %v843 = vpop.f32.mrf.mxu0
        %v844 = vadd.f32 %v609, %v843
        %v845 = vpop.f32.mrf.mxu0
        %v846 = vadd.f32 %v609, %v845
        %847 = vmatmul.bf16.gmra.mxu0 %v634
        %v848 = vpop.f32.mrf.mxu0
        %v849 = vadd.f32 %v609, %v848
        %v850 = vpop.f32.mrf.mxu0
        %v851 = vadd.f32 %v609, %v850
        %852 = vmatmul.bf16.gmra.mxu0 %v635
        %v853 = vpop.f32.mrf.mxu0
        %v854 = vadd.f32 %v609, %v853
        %v855 = vpop.f32.mrf.mxu0
        %v856 = vadd.f32 %v609, %v855
        %857 = vdwg.mxu0
        %858 = vmatpush.bf16.msra.mxu0 %v766
        %859 = vmatpush.bf16.msra.mxu0 %v762
        %860 = vmatpush.bf16.msra.mxu0 %v758
        %861 = vmatpush.bf16.msra.mxu0 %v754
        %862 = vmatpush.bf16.msra.mxu0 %v750
        %863 = vmatpush.bf16.msra.mxu0 %v746
        %864 = vmatpush.bf16.msra.mxu0 %v742
        %865 = vmatpush.bf16.msra.mxu0 %v738
        %866 = vmatmul.bf16.gmra.mxu0 %v632
        %v867 = vpop.f32.mrf.mxu0
        %v868 = vadd.f32 %v610, %v867
        %v869 = vpop.f32.mrf.mxu0
        %v870 = vadd.f32 %v610, %v869
        %871 = vmatmul.bf16.gmra.mxu0 %v633
        %v872 = vpop.f32.mrf.mxu0
        %v873 = vadd.f32 %v610, %v872
        %v874 = vpop.f32.mrf.mxu0
        %v875 = vadd.f32 %v610, %v874
        %876 = vmatmul.bf16.gmra.mxu0 %v634
        %v877 = vpop.f32.mrf.mxu0
        %v878 = vadd.f32 %v610, %v877
        %v879 = vpop.f32.mrf.mxu0
        %v880 = vadd.f32 %v610, %v879
        %881 = vmatmul.bf16.gmra.mxu0 %v635
        %v882 = vpop.f32.mrf.mxu0
        %v883 = vadd.f32 %v610, %v882
        %v884 = vpop.f32.mrf.mxu0
        %v885 = vadd.f32 %v610, %v884
        %886 = vdwg.mxu0
        %887 = vmatpush.bf16.msra.mxu0 %v767
        %888 = vmatpush.bf16.msra.mxu0 %v763
        %889 = vmatpush.bf16.msra.mxu0 %v759
        %890 = vmatpush.bf16.msra.mxu0 %v755
        %891 = vmatpush.bf16.msra.mxu0 %v751
        %892 = vmatpush.bf16.msra.mxu0 %v747
        %893 = vmatpush.bf16.msra.mxu0 %v743
        %894 = vmatpush.bf16.msra.mxu0 %v739
        %895 = vmatmul.bf16.gmra.mxu0 %v632
        %v896 = vpop.f32.mrf.mxu0
        %v897 = vadd.f32 %v611, %v896
        %v898 = vpop.f32.mrf.mxu0
        %v899 = vadd.f32 %v611, %v898
        %900 = vmatmul.bf16.gmra.mxu0 %v633
        %v901 = vpop.f32.mrf.mxu0
        %v902 = vadd.f32 %v611, %v901
        %v903 = vpop.f32.mrf.mxu0
        %v904 = vadd.f32 %v611, %v903
        %905 = vmatmul.bf16.gmra.mxu0 %v634
        %v906 = vpop.f32.mrf.mxu0
        %v907 = vadd.f32 %v611, %v906
        %v908 = vpop.f32.mrf.mxu0
        %v909 = vadd.f32 %v611, %v908
        %910 = vmatmul.bf16.gmra.mxu0 %v635
        %v911 = vpop.f32.mrf.mxu0
        %v912 = vadd.f32 %v611, %v911
        %v913 = vpop.f32.mrf.mxu0
        %v914 = vadd.f32 %v611, %v913
        %915 = vdwg.mxu0
        %v916 = vpack.c.bf16 %v839, %v810
        %v917 = vpack.c.bf16 %v897, %v868
        %v918 = vpack.c.bf16 %v841, %v812
        %v919 = vpack.c.bf16 %v899, %v870
        %v920 = vpack.c.bf16 %v844, %v815
        %v921 = vpack.c.bf16 %v902, %v873
        %v922 = vpack.c.bf16 %v846, %v817
        %v923 = vpack.c.bf16 %v904, %v875
        %v924 = vpack.c.bf16 %v849, %v820
        %v925 = vpack.c.bf16 %v907, %v878
        %v926 = vpack.c.bf16 %v851, %v822
        %v927 = vpack.c.bf16 %v909, %v880
        %v928 = vpack.c.bf16 %v854, %v825
        %v929 = vpack.c.bf16 %v912, %v883
        %v930 = vpack.c.bf16 %v856, %v827
        %v931 = vpack.c.bf16 %v914, %v885
        %932 = vst [vmem:[#allocation2] sm:$0xff] %v916
        %933 = vst [vmem:[#allocation2 + $0x8] sm:$0xff] %v917
        %934 = vst [vmem:[#allocation2 + $0x10] sm:$0xff] %v918
        %935 = vst [vmem:[#allocation2 + $0x18] sm:$0xff] %v919
        %936 = vst [vmem:[#allocation2 + $0x20] sm:$0xff] %v920
        %937 = vst [vmem:[#allocation2 + $0x28] sm:$0xff] %v921
        %938 = vst [vmem:[#allocation2 + $0x30] sm:$0xff] %v922
        %939 = vst [vmem:[#allocation2 + $0x38] sm:$0xff] %v923
        %940 = vst [vmem:[#allocation2 + $0x40] sm:$0xff] %v924
        %941 = vst [vmem:[#allocation2 + $0x48] sm:$0xff] %v925
        %942 = vst [vmem:[#allocation2 + $0x50] sm:$0xff] %v926
        %943 = vst [vmem:[#allocation2 + $0x58] sm:$0xff] %v927
        %944 = vst [vmem:[#allocation2 + $0x60] sm:$0xff] %v928
        %945 = vst [vmem:[#allocation2 + $0x68] sm:$0xff] %v929
        %946 = vst [vmem:[#allocation2 + $0x70] sm:$0xff] %v930
        %947 = vst [vmem:[#allocation2 + $0x78] sm:$0xff] %v931
        %v948 = vld [vmem:[%s478] sm:$0xf]
        %v949 = vld [vmem:[%s478 + $0x4] sm:$0xf]
        %v950 = vld [vmem:[%s478 + $0x8] sm:$0xf]
        %v951 = vld [vmem:[%s478 + $0xc] sm:$0xf]
        %v952 = vld [vmem:[%s478 + $0x10] sm:$0xf]
        %v953 = vld [vmem:[%s478 + $0x14] sm:$0xf]
        %v954 = vld [vmem:[%s478 + $0x18] sm:$0xf]
        %v955 = vld [vmem:[%s478 + $0x1c] sm:$0xf]
        %v956 = vld [vmem:[#allocation17] sm:$0xff]
        %v957 = vld [vmem:[#allocation17 + $0x8] sm:$0xff]
        %v958 = vld [vmem:[#allocation17 + $0x10] sm:$0xff]
        %v959 = vld [vmem:[#allocation17 + $0x18] sm:$0xff]
        %v960 = vld [vmem:[#allocation17 + $0x20] sm:$0xff]
        %v961 = vld [vmem:[#allocation17 + $0x28] sm:$0xff]
        %v962 = vld [vmem:[#allocation17 + $0x30] sm:$0xff]
        %v963 = vld [vmem:[#allocation17 + $0x38] sm:$0xff]
        %v964 = vld [vmem:[#allocation17 + $0x40] sm:$0xff]
        %v965 = vld [vmem:[#allocation17 + $0x48] sm:$0xff]
        %v966 = vld [vmem:[#allocation17 + $0x50] sm:$0xff]
        %v967 = vld [vmem:[#allocation17 + $0x58] sm:$0xff]
        %v968 = vld [vmem:[#allocation17 + $0x60] sm:$0xff]
        %v969 = vld [vmem:[#allocation17 + $0x68] sm:$0xff]
        %v970 = vld [vmem:[#allocation17 + $0x70] sm:$0xff]
        %v971 = vld [vmem:[#allocation17 + $0x78] sm:$0xff]
        %v972 = vld [vmem:[#allocation17 + $0x80] sm:$0xff]
        %v973 = vld [vmem:[#allocation17 + $0x88] sm:$0xff]
        %v974 = vld [vmem:[#allocation17 + $0x90] sm:$0xff]
        %v975 = vld [vmem:[#allocation17 + $0x98] sm:$0xff]
        %v976 = vld [vmem:[#allocation17 + $0xa0] sm:$0xff]
        %v977 = vld [vmem:[#allocation17 + $0xa8] sm:$0xff]
        %v978 = vld [vmem:[#allocation17 + $0xb0] sm:$0xff]
        %v979 = vld [vmem:[#allocation17 + $0xb8] sm:$0xff]
        %v980 = vld [vmem:[#allocation17 + $0xc0] sm:$0xff]
        %v981 = vld [vmem:[#allocation17 + $0xc8] sm:$0xff]
        %v982 = vld [vmem:[#allocation17 + $0xd0] sm:$0xff]
        %v983 = vld [vmem:[#allocation17 + $0xd8] sm:$0xff]
        %v984 = vld [vmem:[#allocation17 + $0xe0] sm:$0xff]
        %v985 = vld [vmem:[#allocation17 + $0xe8] sm:$0xff]
        %v986 = vld [vmem:[#allocation17 + $0xf0] sm:$0xff]
        %v987 = vld [vmem:[#allocation17 + $0xf8] sm:$0xff]
        %v988 = vld [vmem:[%s7] sm:$0xf]
        %v990 = vperm.slane %v988, 0
        %v991 = vperm.slane %v988, 1
        %v992 = vperm.slane %v988, 2
        %v993 = vperm.slane %v988, 3
        %v1006 = vunpack.c.l.b16 %v948
        %v1007 = vunpack.c.l.b16 %v949
        %v1008 = vunpack.c.l.b16 %v950
        %v1009 = vunpack.c.l.b16 %v951
        %v1010 = vunpack.c.l.b16 %v952
        %v1011 = vunpack.c.l.b16 %v953
        %v1012 = vunpack.c.l.b16 %v954
        %v1013 = vunpack.c.l.b16 %v955
        %v1014 = vpack.c.b16 %v1007, %v1006
        %v1015 = vpack.c.b16 %v1009, %v1008
        %v1016 = vpack.c.b16 %v1011, %v1010
        %v1017 = vpack.c.b16 %v1013, %v1012
        %v1054 = vunpack.c.l.b16 %v956
        %v1055 = vunpack.c.h.b16 %v956
        %v1056 = vunpack.c.l.b16 %v957
        %v1057 = vunpack.c.h.b16 %v957
        %v1058 = vunpack.c.l.b16 %v958
        %v1059 = vunpack.c.h.b16 %v958
        %v1060 = vunpack.c.l.b16 %v959
        %v1061 = vunpack.c.h.b16 %v959
        %v1062 = vunpack.c.l.b16 %v960
        %v1063 = vunpack.c.h.b16 %v960
        %v1064 = vunpack.c.l.b16 %v961
        %v1065 = vunpack.c.h.b16 %v961
        %v1066 = vunpack.c.l.b16 %v962
        %v1067 = vunpack.c.h.b16 %v962
        %v1068 = vunpack.c.l.b16 %v963
        %v1069 = vunpack.c.h.b16 %v963
        %v1070 = vunpack.c.l.b16 %v964
        %v1071 = vunpack.c.h.b16 %v964
        %v1072 = vunpack.c.l.b16 %v965
        %v1073 = vunpack.c.h.b16 %v965
        %v1074 = vunpack.c.l.b16 %v966
        %v1075 = vunpack.c.h.b16 %v966
        %v1076 = vunpack.c.l.b16 %v967
        %v1077 = vunpack.c.h.b16 %v967
        %v1078 = vunpack.c.l.b16 %v968
        %v1079 = vunpack.c.h.b16 %v968
        %v1080 = vunpack.c.l.b16 %v969
        %v1081 = vunpack.c.h.b16 %v969
        %v1082 = vunpack.c.l.b16 %v970
        %v1083 = vunpack.c.h.b16 %v970
        %v1084 = vunpack.c.l.b16 %v971
        %v1085 = vunpack.c.h.b16 %v971
        %v1086 = vunpack.c.l.b16 %v972
        %v1087 = vunpack.c.h.b16 %v972
        %v1088 = vunpack.c.l.b16 %v973
        %v1089 = vunpack.c.h.b16 %v973
        %v1090 = vunpack.c.l.b16 %v974
        %v1091 = vunpack.c.h.b16 %v974
        %v1092 = vunpack.c.l.b16 %v975
        %v1093 = vunpack.c.h.b16 %v975
        %v1094 = vunpack.c.l.b16 %v976
        %v1095 = vunpack.c.h.b16 %v976
        %v1096 = vunpack.c.l.b16 %v977
        %v1097 = vunpack.c.h.b16 %v977
        %v1098 = vunpack.c.l.b16 %v978
        %v1099 = vunpack.c.h.b16 %v978
        %v1100 = vunpack.c.l.b16 %v979
        %v1101 = vunpack.c.h.b16 %v979
        %v1102 = vunpack.c.l.b16 %v980
        %v1103 = vunpack.c.h.b16 %v980
        %v1104 = vunpack.c.l.b16 %v981
        %v1105 = vunpack.c.h.b16 %v981
        %v1106 = vunpack.c.l.b16 %v982
        %v1107 = vunpack.c.h.b16 %v982
        %v1108 = vunpack.c.l.b16 %v983
        %v1109 = vunpack.c.h.b16 %v983
        %v1110 = vunpack.c.l.b16 %v984
        %v1111 = vunpack.c.h.b16 %v984
        %v1112 = vunpack.c.l.b16 %v985
        %v1113 = vunpack.c.h.b16 %v985
        %v1114 = vunpack.c.l.b16 %v986
        %v1115 = vunpack.c.h.b16 %v986
        %v1116 = vunpack.c.l.b16 %v987
        %v1117 = vunpack.c.h.b16 %v987
        %v1118 = vpack.c.b16 %v1058, %v1054
        %v1119 = vpack.c.b16 %v1059, %v1055
        %v1120 = vpack.c.b16 %v1060, %v1056
        %v1121 = vpack.c.b16 %v1061, %v1057
        %v1122 = vpack.c.b16 %v1066, %v1062
        %v1123 = vpack.c.b16 %v1067, %v1063
        %v1124 = vpack.c.b16 %v1068, %v1064
        %v1125 = vpack.c.b16 %v1069, %v1065
        %v1126 = vpack.c.b16 %v1074, %v1070
        %v1127 = vpack.c.b16 %v1075, %v1071
        %v1128 = vpack.c.b16 %v1076, %v1072
        %v1129 = vpack.c.b16 %v1077, %v1073
        %v1130 = vpack.c.b16 %v1082, %v1078
        %v1131 = vpack.c.b16 %v1083, %v1079
        %v1132 = vpack.c.b16 %v1084, %v1080
        %v1133 = vpack.c.b16 %v1085, %v1081
        %v1134 = vpack.c.b16 %v1090, %v1086
        %v1135 = vpack.c.b16 %v1091, %v1087
        %v1136 = vpack.c.b16 %v1092, %v1088
        %v1137 = vpack.c.b16 %v1093, %v1089
        %v1138 = vpack.c.b16 %v1098, %v1094
        %v1139 = vpack.c.b16 %v1099, %v1095
        %v1140 = vpack.c.b16 %v1100, %v1096
        %v1141 = vpack.c.b16 %v1101, %v1097
        %v1142 = vpack.c.b16 %v1106, %v1102
        %v1143 = vpack.c.b16 %v1107, %v1103
        %v1144 = vpack.c.b16 %v1108, %v1104
        %v1145 = vpack.c.b16 %v1109, %v1105
        %v1146 = vpack.c.b16 %v1114, %v1110
        %v1147 = vpack.c.b16 %v1115, %v1111
        %v1148 = vpack.c.b16 %v1116, %v1112
        %v1149 = vpack.c.b16 %v1117, %v1113
        %1182 = vmatpush.bf16.msra.mxu0 %v1146
        %1183 = vmatpush.bf16.msra.mxu0 %v1142
        %1184 = vmatpush.bf16.msra.mxu0 %v1138
        %1185 = vmatpush.bf16.msra.mxu0 %v1134
        %1186 = vmatpush.bf16.msra.mxu0 %v1130
        %1187 = vmatpush.bf16.msra.mxu0 %v1126
        %1188 = vmatpush.bf16.msra.mxu0 %v1122
        %1189 = vmatpush.bf16.msra.mxu0 %v1118
        %1190 = vmatmul.bf16.gmra.mxu0 %v1014
        %v1191 = vpop.f32.mrf.mxu0
        %v1192 = vadd.f32 %v990, %v1191
        %v1193 = vpop.f32.mrf.mxu0
        %v1194 = vadd.f32 %v990, %v1193
        %1195 = vmatmul.bf16.gmra.mxu0 %v1015
        %v1196 = vpop.f32.mrf.mxu0
        %v1197 = vadd.f32 %v990, %v1196
        %v1198 = vpop.f32.mrf.mxu0
        %v1199 = vadd.f32 %v990, %v1198
        %1200 = vmatmul.bf16.gmra.mxu0 %v1016
        %v1201 = vpop.f32.mrf.mxu0
        %v1202 = vadd.f32 %v990, %v1201
        %v1203 = vpop.f32.mrf.mxu0
        %v1204 = vadd.f32 %v990, %v1203
        %1205 = vmatmul.bf16.gmra.mxu0 %v1017
        %v1206 = vpop.f32.mrf.mxu0
        %v1207 = vadd.f32 %v990, %v1206
        %v1208 = vpop.f32.mrf.mxu0
        %v1209 = vadd.f32 %v990, %v1208
        %1210 = vdwg.mxu0
        %1211 = vmatpush.bf16.msra.mxu0 %v1147
        %1212 = vmatpush.bf16.msra.mxu0 %v1143
        %1213 = vmatpush.bf16.msra.mxu0 %v1139
        %1214 = vmatpush.bf16.msra.mxu0 %v1135
        %1215 = vmatpush.bf16.msra.mxu0 %v1131
        %1216 = vmatpush.bf16.msra.mxu0 %v1127
        %1217 = vmatpush.bf16.msra.mxu0 %v1123
        %1218 = vmatpush.bf16.msra.mxu0 %v1119
        %1219 = vmatmul.bf16.gmra.mxu0 %v1014
        %v1220 = vpop.f32.mrf.mxu0
        %v1221 = vadd.f32 %v991, %v1220
        %v1222 = vpop.f32.mrf.mxu0
        %v1223 = vadd.f32 %v991, %v1222
        %1224 = vmatmul.bf16.gmra.mxu0 %v1015
        %v1225 = vpop.f32.mrf.mxu0
        %v1226 = vadd.f32 %v991, %v1225
        %v1227 = vpop.f32.mrf.mxu0
        %v1228 = vadd.f32 %v991, %v1227
        %1229 = vmatmul.bf16.gmra.mxu0 %v1016
        %v1230 = vpop.f32.mrf.mxu0
        %v1231 = vadd.f32 %v991, %v1230
        %v1232 = vpop.f32.mrf.mxu0
        %v1233 = vadd.f32 %v991, %v1232
        %1234 = vmatmul.bf16.gmra.mxu0 %v1017
        %v1235 = vpop.f32.mrf.mxu0
        %v1236 = vadd.f32 %v991, %v1235
        %v1237 = vpop.f32.mrf.mxu0
        %v1238 = vadd.f32 %v991, %v1237
        %1239 = vdwg.mxu0
        %1240 = vmatpush.bf16.msra.mxu0 %v1148
        %1241 = vmatpush.bf16.msra.mxu0 %v1144
        %1242 = vmatpush.bf16.msra.mxu0 %v1140
        %1243 = vmatpush.bf16.msra.mxu0 %v1136
        %1244 = vmatpush.bf16.msra.mxu0 %v1132
        %1245 = vmatpush.bf16.msra.mxu0 %v1128
        %1246 = vmatpush.bf16.msra.mxu0 %v1124
        %1247 = vmatpush.bf16.msra.mxu0 %v1120
        %1248 = vmatmul.bf16.gmra.mxu0 %v1014
        %v1249 = vpop.f32.mrf.mxu0
        %v1250 = vadd.f32 %v992, %v1249
        %v1251 = vpop.f32.mrf.mxu0
        %v1252 = vadd.f32 %v992, %v1251
        %1253 = vmatmul.bf16.gmra.mxu0 %v1015
        %v1254 = vpop.f32.mrf.mxu0
        %v1255 = vadd.f32 %v992, %v1254
        %v1256 = vpop.f32.mrf.mxu0
        %v1257 = vadd.f32 %v992, %v1256
        %1258 = vmatmul.bf16.gmra.mxu0 %v1016
        %v1259 = vpop.f32.mrf.mxu0
        %v1260 = vadd.f32 %v992, %v1259
        %v1261 = vpop.f32.mrf.mxu0
        %v1262 = vadd.f32 %v992, %v1261
        %1263 = vmatmul.bf16.gmra.mxu0 %v1017
        %v1264 = vpop.f32.mrf.mxu0
        %v1265 = vadd.f32 %v992, %v1264
        %v1266 = vpop.f32.mrf.mxu0
        %v1267 = vadd.f32 %v992, %v1266
        %1268 = vdwg.mxu0
        %1269 = vmatpush.bf16.msra.mxu0 %v1149
        %1270 = vmatpush.bf16.msra.mxu0 %v1145
        %1271 = vmatpush.bf16.msra.mxu0 %v1141
        %1272 = vmatpush.bf16.msra.mxu0 %v1137
        %1273 = vmatpush.bf16.msra.mxu0 %v1133
        %1274 = vmatpush.bf16.msra.mxu0 %v1129
        %1275 = vmatpush.bf16.msra.mxu0 %v1125
        %1276 = vmatpush.bf16.msra.mxu0 %v1121
        %1277 = vmatmul.bf16.gmra.mxu0 %v1014
        %v1278 = vpop.f32.mrf.mxu0
        %v1279 = vadd.f32 %v993, %v1278
        %v1280 = vpop.f32.mrf.mxu0
        %v1281 = vadd.f32 %v993, %v1280
        %1282 = vmatmul.bf16.gmra.mxu0 %v1015
        %v1283 = vpop.f32.mrf.mxu0
        %v1284 = vadd.f32 %v993, %v1283
        %v1285 = vpop.f32.mrf.mxu0
        %v1286 = vadd.f32 %v993, %v1285
        %1287 = vmatmul.bf16.gmra.mxu0 %v1016
        %v1288 = vpop.f32.mrf.mxu0
        %v1289 = vadd.f32 %v993, %v1288
        %v1290 = vpop.f32.mrf.mxu0
        %v1291 = vadd.f32 %v993, %v1290
        %1292 = vmatmul.bf16.gmra.mxu0 %v1017
        %v1293 = vpop.f32.mrf.mxu0
        %v1294 = vadd.f32 %v993, %v1293
        %v1295 = vpop.f32.mrf.mxu0
        %v1296 = vadd.f32 %v993, %v1295
        %1297 = vdwg.mxu0
        %v1298 = vpack.c.bf16 %v1221, %v1192
        %v1299 = vpack.c.bf16 %v1279, %v1250
        %v1300 = vpack.c.bf16 %v1223, %v1194
        %v1301 = vpack.c.bf16 %v1281, %v1252
        %v1302 = vpack.c.bf16 %v1226, %v1197
        %v1303 = vpack.c.bf16 %v1284, %v1255
        %v1304 = vpack.c.bf16 %v1228, %v1199
        %v1305 = vpack.c.bf16 %v1286, %v1257
        %v1306 = vpack.c.bf16 %v1231, %v1202
        %v1307 = vpack.c.bf16 %v1289, %v1260
        %v1308 = vpack.c.bf16 %v1233, %v1204
        %v1309 = vpack.c.bf16 %v1291, %v1262
        %v1310 = vpack.c.bf16 %v1236, %v1207
        %v1311 = vpack.c.bf16 %v1294, %v1265
        %v1312 = vpack.c.bf16 %v1238, %v1209
        %v1313 = vpack.c.bf16 %v1296, %v1267
        %1314 = vst [vmem:[#allocation3] sm:$0xff] %v1298
        %1315 = vst [vmem:[#allocation3 + $0x8] sm:$0xff] %v1299
        %1316 = vst [vmem:[#allocation3 + $0x10] sm:$0xff] %v1300
        %1317 = vst [vmem:[#allocation3 + $0x18] sm:$0xff] %v1301
        %1318 = vst [vmem:[#allocation3 + $0x20] sm:$0xff] %v1302
        %1319 = vst [vmem:[#allocation3 + $0x28] sm:$0xff] %v1303
        %1320 = vst [vmem:[#allocation3 + $0x30] sm:$0xff] %v1304
        %1321 = vst [vmem:[#allocation3 + $0x38] sm:$0xff] %v1305
        %1322 = vst [vmem:[#allocation3 + $0x40] sm:$0xff] %v1306
        %1323 = vst [vmem:[#allocation3 + $0x48] sm:$0xff] %v1307
        %1324 = vst [vmem:[#allocation3 + $0x50] sm:$0xff] %v1308
        %1325 = vst [vmem:[#allocation3 + $0x58] sm:$0xff] %v1309
        %1326 = vst [vmem:[#allocation3 + $0x60] sm:$0xff] %v1310
        %1327 = vst [vmem:[#allocation3 + $0x68] sm:$0xff] %v1311
        %1328 = vst [vmem:[#allocation3 + $0x70] sm:$0xff] %v1312
        %1329 = vst [vmem:[#allocation3 + $0x78] sm:$0xff] %v1313
        %s1330 = smul.u32 %s32, 4
        %v1331 = vld [vmem:[#allocation4] sm:$0xff]
        %v1332 = vld [vmem:[#allocation4 + $0x8] sm:$0xff]
        %v1333 = vld [vmem:[#allocation5] sm:$0xff]
        %v1334 = vld [vmem:[#allocation5 + $0x8] sm:$0xff]
        %v1335 = vld [vmem:[#allocation6] sm:$0xff]
        %v1336 = vld [vmem:[#allocation6 + $0x8] sm:$0xff]
        %v1337 = vld [vmem:[#allocation7] sm:$0xff]
        %v1338 = vld [vmem:[#allocation7 + $0x8] sm:$0xff]
        %v1339 = vld [vmem:[#allocation2] sm:$0xff]
        %v1340 = vld [vmem:[#allocation2 + $0x8] sm:$0xff]
        %v1341 = vld [vmem:[#allocation2 + $0x10] sm:$0xff]
        %v1342 = vld [vmem:[#allocation2 + $0x18] sm:$0xff]
        %v1343 = vunpack.c.l.bf16 %v1339
        %v1344 = vunpack.c.h.bf16 %v1339
        %v1345 = vunpack.c.l.bf16 %v1340
        %v1346 = vunpack.c.h.bf16 %v1340
        %v1347 = vunpack.c.l.bf16 %v1341
        %v1348 = vunpack.c.h.bf16 %v1341
        %v1349 = vunpack.c.l.bf16 %v1342
        %v1350 = vunpack.c.h.bf16 %v1342
        %v1351 = vpack.c.bf16 %v1332, %v1331
        %v1352 = vld [vmem:[#allocation14] sm:$0xff]
        %v1353 = vld [vmem:[#allocation14 + $0x8] sm:$0xff]
        %v1354 = vld [vmem:[#allocation14 + $0x10] sm:$0xff]
        %v1355 = vld [vmem:[#allocation14 + $0x18] sm:$0xff]
        %v1356 = vld [vmem:[#allocation14 + $0x20] sm:$0xff]
        %v1357 = vld [vmem:[#allocation14 + $0x28] sm:$0xff]
        %v1358 = vld [vmem:[#allocation14 + $0x30] sm:$0xff]
        %v1359 = vld [vmem:[#allocation14 + $0x38] sm:$0xff]
        %v1360 = vld [vmem:[#allocation14 + $0x40] sm:$0xff]
        %v1361 = vld [vmem:[#allocation14 + $0x48] sm:$0xff]
        %v1362 = vld [vmem:[#allocation14 + $0x50] sm:$0xff]
        %v1363 = vld [vmem:[#allocation14 + $0x58] sm:$0xff]
        %v1364 = vld [vmem:[#allocation14 + $0x60] sm:$0xff]
        %v1365 = vld [vmem:[#allocation14 + $0x68] sm:$0xff]
        %v1366 = vld [vmem:[#allocation14 + $0x70] sm:$0xff]
        %v1367 = vld [vmem:[#allocation14 + $0x78] sm:$0xff]
        %v1368 = vld [vmem:[#allocation14 + $0x80] sm:$0xff]
        %v1369 = vld [vmem:[#allocation14 + $0x88] sm:$0xff]
        %v1370 = vld [vmem:[#allocation14 + $0x90] sm:$0xff]
        %v1371 = vld [vmem:[#allocation14 + $0x98] sm:$0xff]
        %v1372 = vld [vmem:[#allocation14 + $0xa0] sm:$0xff]
        %v1373 = vld [vmem:[#allocation14 + $0xa8] sm:$0xff]
        %v1374 = vld [vmem:[#allocation14 + $0xb0] sm:$0xff]
        %v1375 = vld [vmem:[#allocation14 + $0xb8] sm:$0xff]
        %v1376 = vld [vmem:[#allocation14 + $0xc0] sm:$0xff]
        %v1377 = vld [vmem:[#allocation14 + $0xc8] sm:$0xff]
        %v1378 = vld [vmem:[#allocation14 + $0xd0] sm:$0xff]
        %v1379 = vld [vmem:[#allocation14 + $0xd8] sm:$0xff]
        %v1380 = vld [vmem:[#allocation14 + $0xe0] sm:$0xff]
        %v1381 = vld [vmem:[#allocation14 + $0xe8] sm:$0xff]
        %v1382 = vld [vmem:[#allocation14 + $0xf0] sm:$0xff]
        %v1383 = vld [vmem:[#allocation14 + $0xf8] sm:$0xff]
        %v1416 = vunpack.c.l.b16 %v1352
        %v1417 = vunpack.c.h.b16 %v1352
        %v1418 = vunpack.c.l.b16 %v1353
        %v1419 = vunpack.c.h.b16 %v1353
        %v1420 = vunpack.c.l.b16 %v1354
        %v1421 = vunpack.c.h.b16 %v1354
        %v1422 = vunpack.c.l.b16 %v1355
        %v1423 = vunpack.c.h.b16 %v1355
        %v1424 = vunpack.c.l.b16 %v1356
        %v1425 = vunpack.c.h.b16 %v1356
        %v1426 = vunpack.c.l.b16 %v1357
        %v1427 = vunpack.c.h.b16 %v1357
        %v1428 = vunpack.c.l.b16 %v1358
        %v1429 = vunpack.c.h.b16 %v1358
        %v1430 = vunpack.c.l.b16 %v1359
        %v1431 = vunpack.c.h.b16 %v1359
        %v1432 = vunpack.c.l.b16 %v1360
        %v1433 = vunpack.c.h.b16 %v1360
        %v1434 = vunpack.c.l.b16 %v1361
        %v1435 = vunpack.c.h.b16 %v1361
        %v1436 = vunpack.c.l.b16 %v1362
        %v1437 = vunpack.c.h.b16 %v1362
        %v1438 = vunpack.c.l.b16 %v1363
        %v1439 = vunpack.c.h.b16 %v1363
        %v1440 = vunpack.c.l.b16 %v1364
        %v1441 = vunpack.c.h.b16 %v1364
        %v1442 = vunpack.c.l.b16 %v1365
        %v1443 = vunpack.c.h.b16 %v1365
        %v1444 = vunpack.c.l.b16 %v1366
        %v1445 = vunpack.c.h.b16 %v1366
        %v1446 = vunpack.c.l.b16 %v1367
        %v1447 = vunpack.c.h.b16 %v1367
        %v1448 = vunpack.c.l.b16 %v1368
        %v1449 = vunpack.c.h.b16 %v1368
        %v1450 = vunpack.c.l.b16 %v1369
        %v1451 = vunpack.c.h.b16 %v1369
        %v1452 = vunpack.c.l.b16 %v1370
        %v1453 = vunpack.c.h.b16 %v1370
        %v1454 = vunpack.c.l.b16 %v1371
        %v1455 = vunpack.c.h.b16 %v1371
        %v1456 = vunpack.c.l.b16 %v1372
        %v1457 = vunpack.c.h.b16 %v1372
        %v1458 = vunpack.c.l.b16 %v1373
        %v1459 = vunpack.c.h.b16 %v1373
        %v1460 = vunpack.c.l.b16 %v1374
        %v1461 = vunpack.c.h.b16 %v1374
        %v1462 = vunpack.c.l.b16 %v1375
        %v1463 = vunpack.c.h.b16 %v1375
        %v1464 = vunpack.c.l.b16 %v1376
        %v1465 = vunpack.c.h.b16 %v1376
        %v1466 = vunpack.c.l.b16 %v1377
        %v1467 = vunpack.c.h.b16 %v1377
        %v1468 = vunpack.c.l.b16 %v1378
        %v1469 = vunpack.c.h.b16 %v1378
        %v1470 = vunpack.c.l.b16 %v1379
        %v1471 = vunpack.c.h.b16 %v1379
        %v1472 = vunpack.c.l.b16 %v1380
        %v1473 = vunpack.c.h.b16 %v1380
        %v1474 = vunpack.c.l.b16 %v1381
        %v1475 = vunpack.c.h.b16 %v1381
        %v1476 = vunpack.c.l.b16 %v1382
        %v1477 = vunpack.c.h.b16 %v1382
        %v1478 = vunpack.c.l.b16 %v1383
        %v1479 = vunpack.c.h.b16 %v1383
        %v1480 = vpack.c.b16 %v1420, %v1416
        %v1481 = vpack.c.b16 %v1421, %v1417
        %v1482 = vpack.c.b16 %v1422, %v1418
        %v1483 = vpack.c.b16 %v1423, %v1419
        %v1484 = vpack.c.b16 %v1428, %v1424
        %v1485 = vpack.c.b16 %v1429, %v1425
        %v1486 = vpack.c.b16 %v1430, %v1426
        %v1487 = vpack.c.b16 %v1431, %v1427
        %v1488 = vpack.c.b16 %v1436, %v1432
        %v1489 = vpack.c.b16 %v1437, %v1433
        %v1490 = vpack.c.b16 %v1438, %v1434
        %v1491 = vpack.c.b16 %v1439, %v1435
        %v1492 = vpack.c.b16 %v1444, %v1440
        %v1493 = vpack.c.b16 %v1445, %v1441
        %v1494 = vpack.c.b16 %v1446, %v1442
        %v1495 = vpack.c.b16 %v1447, %v1443
        %v1496 = vpack.c.b16 %v1452, %v1448
        %v1497 = vpack.c.b16 %v1453, %v1449
        %v1498 = vpack.c.b16 %v1454, %v1450
        %v1499 = vpack.c.b16 %v1455, %v1451
        %v1500 = vpack.c.b16 %v1460, %v1456
        %v1501 = vpack.c.b16 %v1461, %v1457
        %v1502 = vpack.c.b16 %v1462, %v1458
        %v1503 = vpack.c.b16 %v1463, %v1459
        %v1504 = vpack.c.b16 %v1468, %v1464
        %v1505 = vpack.c.b16 %v1469, %v1465
        %v1506 = vpack.c.b16 %v1470, %v1466
        %v1507 = vpack.c.b16 %v1471, %v1467
        %v1508 = vpack.c.b16 %v1476, %v1472
        %v1509 = vpack.c.b16 %v1477, %v1473
        %v1510 = vpack.c.b16 %v1478, %v1474
        %v1511 = vpack.c.b16 %v1479, %v1475
        %1544 = vmatpush.bf16.msra.mxu0 %v1508
        %1545 = vmatpush.bf16.msra.mxu0 %v1504
        %1546 = vmatpush.bf16.msra.mxu0 %v1500
        %1547 = vmatpush.bf16.msra.mxu0 %v1496
        %1548 = vmatpush.bf16.msra.mxu0 %v1492
        %1549 = vmatpush.bf16.msra.mxu0 %v1488
        %1550 = vmatpush.bf16.msra.mxu0 %v1484
        %1551 = vmatpush.bf16.msra.mxu0 %v1480
        %1552 = vmatmul.bf16.gmra.mxu0 %v1351
        %v1553 = vpop.f32.mrf.mxu0
        %v1554 = vadd.f32 0.0, %v1553
        %v1555 = vpop.f32.mrf.mxu0
        %v1556 = vadd.f32 0.0, %v1555
        %1557 = vdwg.mxu0
        %1558 = vmatpush.bf16.msra.mxu0 %v1509
        %1559 = vmatpush.bf16.msra.mxu0 %v1505
        %1560 = vmatpush.bf16.msra.mxu0 %v1501
        %1561 = vmatpush.bf16.msra.mxu0 %v1497
        %1562 = vmatpush.bf16.msra.mxu0 %v1493
        %1563 = vmatpush.bf16.msra.mxu0 %v1489
        %1564 = vmatpush.bf16.msra.mxu0 %v1485
        %1565 = vmatpush.bf16.msra.mxu0 %v1481
        %1566 = vmatmul.bf16.gmra.mxu0 %v1351
        %v1567 = vpop.f32.mrf.mxu0
        %v1568 = vadd.f32 0.0, %v1567
        %v1569 = vpop.f32.mrf.mxu0
        %v1570 = vadd.f32 0.0, %v1569
        %1571 = vdwg.mxu0
        %1572 = vmatpush.bf16.msra.mxu0 %v1510
        %1573 = vmatpush.bf16.msra.mxu0 %v1506
        %1574 = vmatpush.bf16.msra.mxu0 %v1502
        %1575 = vmatpush.bf16.msra.mxu0 %v1498
        %1576 = vmatpush.bf16.msra.mxu0 %v1494
        %1577 = vmatpush.bf16.msra.mxu0 %v1490
        %1578 = vmatpush.bf16.msra.mxu0 %v1486
        %1579 = vmatpush.bf16.msra.mxu0 %v1482
        %1580 = vmatmul.bf16.gmra.mxu0 %v1351
        %v1581 = vpop.f32.mrf.mxu0
        %v1582 = vadd.f32 0.0, %v1581
        %v1583 = vpop.f32.mrf.mxu0
        %v1584 = vadd.f32 0.0, %v1583
        %1585 = vdwg.mxu0
        %1586 = vmatpush.bf16.msra.mxu0 %v1511
        %1587 = vmatpush.bf16.msra.mxu0 %v1507
        %1588 = vmatpush.bf16.msra.mxu0 %v1503
        %1589 = vmatpush.bf16.msra.mxu0 %v1499
        %1590 = vmatpush.bf16.msra.mxu0 %v1495
        %1591 = vmatpush.bf16.msra.mxu0 %v1491
        %1592 = vmatpush.bf16.msra.mxu0 %v1487
        %1593 = vmatpush.bf16.msra.mxu0 %v1483
        %1594 = vmatmul.bf16.gmra.mxu0 %v1351
        %v1595 = vpop.f32.mrf.mxu0
        %v1596 = vadd.f32 0.0, %v1595
        %v1597 = vpop.f32.mrf.mxu0
        %v1598 = vadd.f32 0.0, %v1597
        %1599 = vdwg.mxu0
        %v1600 = vadd.f32 %v1343, %v1554
        %v1601 = vadd.f32 %v1344, %v1568
        %v1602 = vadd.f32 %v1345, %v1582
        %v1603 = vadd.f32 %v1346, %v1596
        %v1604 = vadd.f32 %v1347, %v1556
        %v1605 = vadd.f32 %v1348, %v1570
        %v1606 = vadd.f32 %v1349, %v1584
        %v1607 = vadd.f32 %v1350, %v1598
        %s1608 = scalar_lea.vmem [#allocation3], 96
        %v1609 = vld [vmem:[%s1608] sm:$0xff]
        %v1610 = vld [vmem:[%s1608 + $0x8] sm:$0xff]
        %v1611 = vld [vmem:[%s1608 + $0x10] sm:$0xff]
        %v1612 = vld [vmem:[%s1608 + $0x18] sm:$0xff]
        %v1613 = vunpack.c.l.bf16 %v1609
        %v1614 = vunpack.c.h.bf16 %v1609
        %v1615 = vunpack.c.l.bf16 %v1610
        %v1616 = vunpack.c.h.bf16 %v1610
        %v1617 = vunpack.c.l.bf16 %v1611
        %v1618 = vunpack.c.h.bf16 %v1611
        %v1619 = vunpack.c.l.bf16 %v1612
        %v1620 = vunpack.c.h.bf16 %v1612
        %v1621 = vpack.c.bf16 %v1336, %v1335
        %v1622 = vld [vmem:[#allocation19] sm:$0xff]
        %v1623 = vld [vmem:[#allocation19 + $0x8] sm:$0xff]
        %v1624 = vld [vmem:[#allocation19 + $0x10] sm:$0xff]
        %v1625 = vld [vmem:[#allocation19 + $0x18] sm:$0xff]
        %v1626 = vld [vmem:[#allocation19 + $0x20] sm:$0xff]
        %v1627 = vld [vmem:[#allocation19 + $0x28] sm:$0xff]
        %v1628 = vld [vmem:[#allocation19 + $0x30] sm:$0xff]
        %v1629 = vld [vmem:[#allocation19 + $0x38] sm:$0xff]
        %v1630 = vld [vmem:[#allocation19 + $0x40] sm:$0xff]
        %v1631 = vld [vmem:[#allocation19 + $0x48] sm:$0xff]
        %v1632 = vld [vmem:[#allocation19 + $0x50] sm:$0xff]
        %v1633 = vld [vmem:[#allocation19 + $0x58] sm:$0xff]
        %v1634 = vld [vmem:[#allocation19 + $0x60] sm:$0xff]
        %v1635 = vld [vmem:[#allocation19 + $0x68] sm:$0xff]
        %v1636 = vld [vmem:[#allocation19 + $0x70] sm:$0xff]
        %v1637 = vld [vmem:[#allocation19 + $0x78] sm:$0xff]
        %v1638 = vld [vmem:[#allocation19 + $0x80] sm:$0xff]
        %v1639 = vld [vmem:[#allocation19 + $0x88] sm:$0xff]
        %v1640 = vld [vmem:[#allocation19 + $0x90] sm:$0xff]
        %v1641 = vld [vmem:[#allocation19 + $0x98] sm:$0xff]
        %v1642 = vld [vmem:[#allocation19 + $0xa0] sm:$0xff]
        %v1643 = vld [vmem:[#allocation19 + $0xa8] sm:$0xff]
        %v1644 = vld [vmem:[#allocation19 + $0xb0] sm:$0xff]
        %v1645 = vld [vmem:[#allocation19 + $0xb8] sm:$0xff]
        %v1646 = vld [vmem:[#allocation19 + $0xc0] sm:$0xff]
        %v1647 = vld [vmem:[#allocation19 + $0xc8] sm:$0xff]
        %v1648 = vld [vmem:[#allocation19 + $0xd0] sm:$0xff]
        %v1649 = vld [vmem:[#allocation19 + $0xd8] sm:$0xff]
        %v1650 = vld [vmem:[#allocation19 + $0xe0] sm:$0xff]
        %v1651 = vld [vmem:[#allocation19 + $0xe8] sm:$0xff]
        %v1652 = vld [vmem:[#allocation19 + $0xf0] sm:$0xff]
        %v1653 = vld [vmem:[#allocation19 + $0xf8] sm:$0xff]
        %v1686 = vunpack.c.l.b16 %v1622
        %v1687 = vunpack.c.h.b16 %v1622
        %v1688 = vunpack.c.l.b16 %v1623
        %v1689 = vunpack.c.h.b16 %v1623
        %v1690 = vunpack.c.l.b16 %v1624
        %v1691 = vunpack.c.h.b16 %v1624
        %v1692 = vunpack.c.l.b16 %v1625
        %v1693 = vunpack.c.h.b16 %v1625
        %v1694 = vunpack.c.l.b16 %v1626
        %v1695 = vunpack.c.h.b16 %v1626
        %v1696 = vunpack.c.l.b16 %v1627
        %v1697 = vunpack.c.h.b16 %v1627
        %v1698 = vunpack.c.l.b16 %v1628
        %v1699 = vunpack.c.h.b16 %v1628
        %v1700 = vunpack.c.l.b16 %v1629
        %v1701 = vunpack.c.h.b16 %v1629
        %v1702 = vunpack.c.l.b16 %v1630
        %v1703 = vunpack.c.h.b16 %v1630
        %v1704 = vunpack.c.l.b16 %v1631
        %v1705 = vunpack.c.h.b16 %v1631
        %v1706 = vunpack.c.l.b16 %v1632
        %v1707 = vunpack.c.h.b16 %v1632
        %v1708 = vunpack.c.l.b16 %v1633
        %v1709 = vunpack.c.h.b16 %v1633
        %v1710 = vunpack.c.l.b16 %v1634
        %v1711 = vunpack.c.h.b16 %v1634
        %v1712 = vunpack.c.l.b16 %v1635
        %v1713 = vunpack.c.h.b16 %v1635
        %v1714 = vunpack.c.l.b16 %v1636
        %v1715 = vunpack.c.h.b16 %v1636
        %v1716 = vunpack.c.l.b16 %v1637
        %v1717 = vunpack.c.h.b16 %v1637
        %v1718 = vunpack.c.l.b16 %v1638
        %v1719 = vunpack.c.h.b16 %v1638
        %v1720 = vunpack.c.l.b16 %v1639
        %v1721 = vunpack.c.h.b16 %v1639
        %v1722 = vunpack.c.l.b16 %v1640
        %v1723 = vunpack.c.h.b16 %v1640
        %v1724 = vunpack.c.l.b16 %v1641
        %v1725 = vunpack.c.h.b16 %v1641
        %v1726 = vunpack.c.l.b16 %v1642
        %v1727 = vunpack.c.h.b16 %v1642
        %v1728 = vunpack.c.l.b16 %v1643
        %v1729 = vunpack.c.h.b16 %v1643
        %v1730 = vunpack.c.l.b16 %v1644
        %v1731 = vunpack.c.h.b16 %v1644
        %v1732 = vunpack.c.l.b16 %v1645
        %v1733 = vunpack.c.h.b16 %v1645
        %v1734 = vunpack.c.l.b16 %v1646
        %v1735 = vunpack.c.h.b16 %v1646
        %v1736 = vunpack.c.l.b16 %v1647
        %v1737 = vunpack.c.h.b16 %v1647
        %v1738 = vunpack.c.l.b16 %v1648
        %v1739 = vunpack.c.h.b16 %v1648
        %v1740 = vunpack.c.l.b16 %v1649
        %v1741 = vunpack.c.h.b16 %v1649
        %v1742 = vunpack.c.l.b16 %v1650
        %v1743 = vunpack.c.h.b16 %v1650
        %v1744 = vunpack.c.l.b16 %v1651
        %v1745 = vunpack.c.h.b16 %v1651
        %v1746 = vunpack.c.l.b16 %v1652
        %v1747 = vunpack.c.h.b16 %v1652
        %v1748 = vunpack.c.l.b16 %v1653
        %v1749 = vunpack.c.h.b16 %v1653
        %v1750 = vpack.c.b16 %v1690, %v1686
        %v1751 = vpack.c.b16 %v1691, %v1687
        %v1752 = vpack.c.b16 %v1692, %v1688
        %v1753 = vpack.c.b16 %v1693, %v1689
        %v1754 = vpack.c.b16 %v1698, %v1694
        %v1755 = vpack.c.b16 %v1699, %v1695
        %v1756 = vpack.c.b16 %v1700, %v1696
        %v1757 = vpack.c.b16 %v1701, %v1697
        %v1758 = vpack.c.b16 %v1706, %v1702
        %v1759 = vpack.c.b16 %v1707, %v1703
        %v1760 = vpack.c.b16 %v1708, %v1704
        %v1761 = vpack.c.b16 %v1709, %v1705
        %v1762 = vpack.c.b16 %v1714, %v1710
        %v1763 = vpack.c.b16 %v1715, %v1711
        %v1764 = vpack.c.b16 %v1716, %v1712
        %v1765 = vpack.c.b16 %v1717, %v1713
        %v1766 = vpack.c.b16 %v1722, %v1718
        %v1767 = vpack.c.b16 %v1723, %v1719
        %v1768 = vpack.c.b16 %v1724, %v1720
        %v1769 = vpack.c.b16 %v1725, %v1721
        %v1770 = vpack.c.b16 %v1730, %v1726
        %v1771 = vpack.c.b16 %v1731, %v1727
        %v1772 = vpack.c.b16 %v1732, %v1728
        %v1773 = vpack.c.b16 %v1733, %v1729
        %v1774 = vpack.c.b16 %v1738, %v1734
        %v1775 = vpack.c.b16 %v1739, %v1735
        %v1776 = vpack.c.b16 %v1740, %v1736
        %v1777 = vpack.c.b16 %v1741, %v1737
        %v1778 = vpack.c.b16 %v1746, %v1742
        %v1779 = vpack.c.b16 %v1747, %v1743
        %v1780 = vpack.c.b16 %v1748, %v1744
        %v1781 = vpack.c.b16 %v1749, %v1745
        %1814 = vmatpush.bf16.msra.mxu0 %v1778
        %1815 = vmatpush.bf16.msra.mxu0 %v1774
        %1816 = vmatpush.bf16.msra.mxu0 %v1770
        %1817 = vmatpush.bf16.msra.mxu0 %v1766
        %1818 = vmatpush.bf16.msra.mxu0 %v1762
        %1819 = vmatpush.bf16.msra.mxu0 %v1758
        %1820 = vmatpush.bf16.msra.mxu0 %v1754
        %1821 = vmatpush.bf16.msra.mxu0 %v1750
        %1822 = vmatmul.bf16.gmra.mxu0 %v1621
        %v1823 = vpop.f32.mrf.mxu0
        %v1824 = vadd.f32 0.0, %v1823
        %v1825 = vpop.f32.mrf.mxu0
        %v1826 = vadd.f32 0.0, %v1825
        %1827 = vdwg.mxu0
        %1828 = vmatpush.bf16.msra.mxu0 %v1779
        %1829 = vmatpush.bf16.msra.mxu0 %v1775
        %1830 = vmatpush.bf16.msra.mxu0 %v1771
        %1831 = vmatpush.bf16.msra.mxu0 %v1767
        %1832 = vmatpush.bf16.msra.mxu0 %v1763
        %1833 = vmatpush.bf16.msra.mxu0 %v1759
        %1834 = vmatpush.bf16.msra.mxu0 %v1755
        %1835 = vmatpush.bf16.msra.mxu0 %v1751
        %1836 = vmatmul.bf16.gmra.mxu0 %v1621
        %v1837 = vpop.f32.mrf.mxu0
        %v1838 = vadd.f32 0.0, %v1837
        %v1839 = vpop.f32.mrf.mxu0
        %v1840 = vadd.f32 0.0, %v1839
        %1841 = vdwg.mxu0
        %1842 = vmatpush.bf16.msra.mxu0 %v1780
        %1843 = vmatpush.bf16.msra.mxu0 %v1776
        %1844 = vmatpush.bf16.msra.mxu0 %v1772
        %1845 = vmatpush.bf16.msra.mxu0 %v1768
        %1846 = vmatpush.bf16.msra.mxu0 %v1764
        %1847 = vmatpush.bf16.msra.mxu0 %v1760
        %1848 = vmatpush.bf16.msra.mxu0 %v1756
        %1849 = vmatpush.bf16.msra.mxu0 %v1752
        %1850 = vmatmul.bf16.gmra.mxu0 %v1621
        %v1851 = vpop.f32.mrf.mxu0
        %v1852 = vadd.f32 0.0, %v1851
        %v1853 = vpop.f32.mrf.mxu0
        %v1854 = vadd.f32 0.0, %v1853
        %1855 = vdwg.mxu0
        %1856 = vmatpush.bf16.msra.mxu0 %v1781
        %1857 = vmatpush.bf16.msra.mxu0 %v1777
        %1858 = vmatpush.bf16.msra.mxu0 %v1773
        %1859 = vmatpush.bf16.msra.mxu0 %v1769
        %1860 = vmatpush.bf16.msra.mxu0 %v1765
        %1861 = vmatpush.bf16.msra.mxu0 %v1761
        %1862 = vmatpush.bf16.msra.mxu0 %v1757
        %1863 = vmatpush.bf16.msra.mxu0 %v1753
        %1864 = vmatmul.bf16.gmra.mxu0 %v1621
        %v1865 = vpop.f32.mrf.mxu0
        %v1866 = vadd.f32 0.0, %v1865
        %v1867 = vpop.f32.mrf.mxu0
        %v1868 = vadd.f32 0.0, %v1867
        %1869 = vdwg.mxu0
        %v1870 = vadd.f32 %v1613, %v1824
        %v1871 = vadd.f32 %v1614, %v1838
        %v1872 = vadd.f32 %v1615, %v1852
        %v1873 = vadd.f32 %v1616, %v1866
        %v1874 = vadd.f32 %v1617, %v1826
        %v1875 = vadd.f32 %v1618, %v1840
        %v1876 = vadd.f32 %v1619, %v1854
        %v1877 = vadd.f32 %v1620, %v1868
        %v1878 = vmul.f32 %v1600, 0.5
        %v1879 = vmul.f32 %v1604, 0.5
        %v1880 = vtanh.pop %v1878
        %v1881 = vtanh.pop %v1879
        %v1882 = vmul.f32 %v1880, 0.5
        %v1883 = vmul.f32 %v1881, 0.5
        %v1884 = vadd.f32 %v1882, 0.5
        %v1885 = vadd.f32 %v1883, 0.5
        %v1886 = vmul.f32 %v1601, 0.5
        %v1887 = vmul.f32 %v1605, 0.5
        %v1888 = vtanh.pop %v1886
        %v1889 = vtanh.pop %v1887
        %v1890 = vmul.f32 %v1888, 0.5
        %v1891 = vmul.f32 %v1889, 0.5
        %v1892 = vadd.f32 %v1890, 0.5
        %v1893 = vadd.f32 %v1891, 0.5
        %v1894 = vtanh.pop %v1602
        %v1895 = vtanh.pop %v1606
        %v1896 = vmul.f32 %v1603, 0.5
        %v1897 = vmul.f32 %v1607, 0.5
        %v1898 = vtanh.pop %v1896
        %v1899 = vtanh.pop %v1897
        %v1900 = vmul.f32 %v1898, 0.5
        %v1901 = vmul.f32 %v1899, 0.5
        %v1902 = vadd.f32 %v1900, 0.5
        %v1903 = vadd.f32 %v1901, 0.5
        %v1904 = vmul.f32 %v1892, %v1333
        %v1905 = vmul.f32 %v1893, %v1334
        %v1906 = vmul.f32 %v1884, %v1894
        %v1907 = vmul.f32 %v1885, %v1895
        %v1908 = vadd.f32 %v1904, %v1906
        %v1909 = vadd.f32 %v1905, %v1907
        %v1910 = vtanh.pop %v1908
        %v1911 = vtanh.pop %v1909
        %v1912 = vmul.f32 %v1902, %v1910
        %v1913 = vmul.f32 %v1903, %v1911
        %v1914 = vmul.f32 %v1870, 0.5
        %v1915 = vmul.f32 %v1874, 0.5
        %v1916 = vtanh.pop %v1914
        %v1917 = vtanh.pop %v1915
        %v1918 = vmul.f32 %v1916, 0.5
        %v1919 = vmul.f32 %v1917, 0.5
        %v1920 = vadd.f32 %v1918, 0.5
        %v1921 = vadd.f32 %v1919, 0.5
        %v1922 = vmul.f32 %v1871, 0.5
        %v1923 = vmul.f32 %v1875, 0.5
        %v1924 = vtanh.pop %v1922
        %v1925 = vtanh.pop %v1923
        %v1926 = vmul.f32 %v1924, 0.5
        %v1927 = vmul.f32 %v1925, 0.5
        %v1928 = vadd.f32 %v1926, 0.5
        %v1929 = vadd.f32 %v1927, 0.5
        %v1930 = vtanh.pop %v1872
        %v1931 = vtanh.pop %v1876
        %v1932 = vmul.f32 %v1873, 0.5
        %v1933 = vmul.f32 %v1877, 0.5
        %v1934 = vtanh.pop %v1932
        %v1935 = vtanh.pop %v1933
        %v1936 = vmul.f32 %v1934, 0.5
        %v1937 = vmul.f32 %v1935, 0.5
        %v1938 = vadd.f32 %v1936, 0.5
        %v1939 = vadd.f32 %v1937, 0.5
        %v1940 = vmul.f32 %v1928, %v1337
        %v1941 = vmul.f32 %v1929, %v1338
        %v1942 = vmul.f32 %v1920, %v1930
        %v1943 = vmul.f32 %v1921, %v1931
        %v1944 = vadd.f32 %v1940, %v1942
        %v1945 = vadd.f32 %v1941, %v1943
        %v1946 = vtanh.pop %v1944
        %v1947 = vtanh.pop %v1945
        %v1948 = vmul.f32 %v1938, %v1946
        %v1949 = vmul.f32 %v1939, %v1947
        %p1950 = scmp.lt.s32.totalorder %s1330, 9
        %s1951 = scalar_select %p1950, 1, 0
        %s1952 = scvt.s32.f32 %s1951
        %p1953 = scmp.ge.s32.totalorder %s1330, 3
        %s1954 = scalar_select %p1953, 1, 0
        %s1955 = scvt.s32.f32 %s1954
        %v1956 = vstv %s1952
        %v1957 = vmul.f32 %v1956, %v1912
        %v1958 = vmul.f32 %v1956, %v1913
        %s1959 = ssub.f32 1.0, %s1952
        %v1960 = vstv %s1959
        %v1961 = vmul.f32 %v1960, %v1331
        %v1962 = vmul.f32 %v1960, %v1332
        %v1963 = vadd.f32 %v1957, %v1961
        %v1964 = vadd.f32 %v1958, %v1962
        %v1965 = vmul.f32 %v1956, %v1908
        %v1966 = vmul.f32 %v1956, %v1909
        %v1967 = vmul.f32 %v1960, %v1333
        %v1968 = vmul.f32 %v1960, %v1334
        %v1969 = vadd.f32 %v1965, %v1967
        %v1970 = vadd.f32 %v1966, %v1968
        %v1971 = vstv %s1955
        %v1972 = vmul.f32 %v1971, %v1948
        %v1973 = vmul.f32 %v1971, %v1949
        %s1974 = ssub.f32 1.0, %s1955
        %v1975 = vstv %s1974
        %v1976 = vmul.f32 %v1975, %v1335
        %v1977 = vmul.f32 %v1975, %v1336
        %v1978 = vadd.f32 %v1972, %v1976
        %v1979 = vadd.f32 %v1973, %v1977
        %v1980 = vmul.f32 %v1971, %v1944
        %v1981 = vmul.f32 %v1971, %v1945
        %v1982 = vmul.f32 %v1975, %v1337
        %v1983 = vmul.f32 %v1975, %v1338
        %v1984 = vadd.f32 %v1980, %v1982
        %v1985 = vadd.f32 %v1981, %v1983
        %s1986 = scalar_lea.vmem [#allocation2], 32
        %v1987 = vld [vmem:[%s1986] sm:$0xff]
        %v1988 = vld [vmem:[%s1986 + $0x8] sm:$0xff]
        %v1989 = vld [vmem:[%s1986 + $0x10] sm:$0xff]
        %v1990 = vld [vmem:[%s1986 + $0x18] sm:$0xff]
        %v1991 = vunpack.c.l.bf16 %v1987
        %v1992 = vunpack.c.h.bf16 %v1987
        %v1993 = vunpack.c.l.bf16 %v1988
        %v1994 = vunpack.c.h.bf16 %v1988
        %v1995 = vunpack.c.l.bf16 %v1989
        %v1996 = vunpack.c.h.bf16 %v1989
        %v1997 = vunpack.c.l.bf16 %v1990
        %v1998 = vunpack.c.h.bf16 %v1990
        %v1999 = vpack.c.bf16 %v1964, %v1963
        %2000 = vmatpush.bf16.msra.mxu0 %v1508
        %2001 = vmatpush.bf16.msra.mxu0 %v1504
        %2002 = vmatpush.bf16.msra.mxu0 %v1500
        %2003 = vmatpush.bf16.msra.mxu0 %v1496
        %2004 = vmatpush.bf16.msra.mxu0 %v1492
        %2005 = vmatpush.bf16.msra.mxu0 %v1488
        %2006 = vmatpush.bf16.msra.mxu0 %v1484
        %2007 = vmatpush.bf16.msra.mxu0 %v1480
        %2008 = vmatmul.bf16.gmra.mxu0 %v1999
        %v2009 = vpop.f32.mrf.mxu0
        %v2010 = vadd.f32 0.0, %v2009
        %v2011 = vpop.f32.mrf.mxu0
        %v2012 = vadd.f32 0.0, %v2011
        %2013 = vdwg.mxu0
        %2014 = vmatpush.bf16.msra.mxu0 %v1509
        %2015 = vmatpush.bf16.msra.mxu0 %v1505
        %2016 = vmatpush.bf16.msra.mxu0 %v1501
        %2017 = vmatpush.bf16.msra.mxu0 %v1497
        %2018 = vmatpush.bf16.msra.mxu0 %v1493
        %2019 = vmatpush.bf16.msra.mxu0 %v1489
        %2020 = vmatpush.bf16.msra.mxu0 %v1485
        %2021 = vmatpush.bf16.msra.mxu0 %v1481
        %2022 = vmatmul.bf16.gmra.mxu0 %v1999
        %v2023 = vpop.f32.mrf.mxu0
        %v2024 = vadd.f32 0.0, %v2023
        %v2025 = vpop.f32.mrf.mxu0
        %v2026 = vadd.f32 0.0, %v2025
        %2027 = vdwg.mxu0
        %2028 = vmatpush.bf16.msra.mxu0 %v1510
        %2029 = vmatpush.bf16.msra.mxu0 %v1506
        %2030 = vmatpush.bf16.msra.mxu0 %v1502
        %2031 = vmatpush.bf16.msra.mxu0 %v1498
        %2032 = vmatpush.bf16.msra.mxu0 %v1494
        %2033 = vmatpush.bf16.msra.mxu0 %v1490
        %2034 = vmatpush.bf16.msra.mxu0 %v1486
        %2035 = vmatpush.bf16.msra.mxu0 %v1482
        %2036 = vmatmul.bf16.gmra.mxu0 %v1999
        %v2037 = vpop.f32.mrf.mxu0
        %v2038 = vadd.f32 0.0, %v2037
        %v2039 = vpop.f32.mrf.mxu0
        %v2040 = vadd.f32 0.0, %v2039
        %2041 = vdwg.mxu0
        %2042 = vmatpush.bf16.msra.mxu0 %v1511
        %2043 = vmatpush.bf16.msra.mxu0 %v1507
        %2044 = vmatpush.bf16.msra.mxu0 %v1503
        %2045 = vmatpush.bf16.msra.mxu0 %v1499
        %2046 = vmatpush.bf16.msra.mxu0 %v1495
        %2047 = vmatpush.bf16.msra.mxu0 %v1491
        %2048 = vmatpush.bf16.msra.mxu0 %v1487
        %2049 = vmatpush.bf16.msra.mxu0 %v1483
        %2050 = vmatmul.bf16.gmra.mxu0 %v1999
        %v2051 = vpop.f32.mrf.mxu0
        %v2052 = vadd.f32 0.0, %v2051
        %v2053 = vpop.f32.mrf.mxu0
        %v2054 = vadd.f32 0.0, %v2053
        %2055 = vdwg.mxu0
        %v2056 = vadd.f32 %v1991, %v2010
        %v2057 = vadd.f32 %v1992, %v2024
        %v2058 = vadd.f32 %v1993, %v2038
        %v2059 = vadd.f32 %v1994, %v2052
        %v2060 = vadd.f32 %v1995, %v2012
        %v2061 = vadd.f32 %v1996, %v2026
        %v2062 = vadd.f32 %v1997, %v2040
        %v2063 = vadd.f32 %v1998, %v2054
        %s2064 = scalar_lea.vmem [#allocation3], 64
        %v2065 = vld [vmem:[%s2064] sm:$0xff]
        %v2066 = vld [vmem:[%s2064 + $0x8] sm:$0xff]
        %v2067 = vld [vmem:[%s2064 + $0x10] sm:$0xff]
        %v2068 = vld [vmem:[%s2064 + $0x18] sm:$0xff]
        %v2069 = vunpack.c.l.bf16 %v2065
        %v2070 = vunpack.c.h.bf16 %v2065
        %v2071 = vunpack.c.l.bf16 %v2066
        %v2072 = vunpack.c.h.bf16 %v2066
        %v2073 = vunpack.c.l.bf16 %v2067
        %v2074 = vunpack.c.h.bf16 %v2067
        %v2075 = vunpack.c.l.bf16 %v2068
        %v2076 = vunpack.c.h.bf16 %v2068
        %v2077 = vpack.c.bf16 %v1979, %v1978
        %2078 = vmatpush.bf16.msra.mxu0 %v1778
        %2079 = vmatpush.bf16.msra.mxu0 %v1774
        %2080 = vmatpush.bf16.msra.mxu0 %v1770
        %2081 = vmatpush.bf16.msra.mxu0 %v1766
        %2082 = vmatpush.bf16.msra.mxu0 %v1762
        %2083 = vmatpush.bf16.msra.mxu0 %v1758
        %2084 = vmatpush.bf16.msra.mxu0 %v1754
        %2085 = vmatpush.bf16.msra.mxu0 %v1750
        %2086 = vmatmul.bf16.gmra.mxu0 %v2077
        %v2087 = vpop.f32.mrf.mxu0
        %v2088 = vadd.f32 0.0, %v2087
        %v2089 = vpop.f32.mrf.mxu0
        %v2090 = vadd.f32 0.0, %v2089
        %2091 = vdwg.mxu0
        %2092 = vmatpush.bf16.msra.mxu0 %v1779
        %2093 = vmatpush.bf16.msra.mxu0 %v1775
        %2094 = vmatpush.bf16.msra.mxu0 %v1771
        %2095 = vmatpush.bf16.msra.mxu0 %v1767
        %2096 = vmatpush.bf16.msra.mxu0 %v1763
        %2097 = vmatpush.bf16.msra.mxu0 %v1759
        %2098 = vmatpush.bf16.msra.mxu0 %v1755
        %2099 = vmatpush.bf16.msra.mxu0 %v1751
        %2100 = vmatmul.bf16.gmra.mxu0 %v2077
        %v2101 = vpop.f32.mrf.mxu0
        %v2102 = vadd.f32 0.0, %v2101
        %v2103 = vpop.f32.mrf.mxu0
        %v2104 = vadd.f32 0.0, %v2103
        %2105 = vdwg.mxu0
        %2106 = vmatpush.bf16.msra.mxu0 %v1780
        %2107 = vmatpush.bf16.msra.mxu0 %v1776
        %2108 = vmatpush.bf16.msra.mxu0 %v1772
        %2109 = vmatpush.bf16.msra.mxu0 %v1768
        %2110 = vmatpush.bf16.msra.mxu0 %v1764
        %2111 = vmatpush.bf16.msra.mxu0 %v1760
        %2112 = vmatpush.bf16.msra.mxu0 %v1756
        %2113 = vmatpush.bf16.msra.mxu0 %v1752
        %2114 = vmatmul.bf16.gmra.mxu0 %v2077
        %v2115 = vpop.f32.mrf.mxu0
        %v2116 = vadd.f32 0.0, %v2115
        %v2117 = vpop.f32.mrf.mxu0
        %v2118 = vadd.f32 0.0, %v2117
        %2119 = vdwg.mxu0
        %2120 = vmatpush.bf16.msra.mxu0 %v1781
        %2121 = vmatpush.bf16.msra.mxu0 %v1777
        %2122 = vmatpush.bf16.msra.mxu0 %v1773
        %2123 = vmatpush.bf16.msra.mxu0 %v1769
        %2124 = vmatpush.bf16.msra.mxu0 %v1765
        %2125 = vmatpush.bf16.msra.mxu0 %v1761
        %2126 = vmatpush.bf16.msra.mxu0 %v1757
        %2127 = vmatpush.bf16.msra.mxu0 %v1753
        %2128 = vmatmul.bf16.gmra.mxu0 %v2077
        %v2129 = vpop.f32.mrf.mxu0
        %v2130 = vadd.f32 0.0, %v2129
        %v2131 = vpop.f32.mrf.mxu0
        %v2132 = vadd.f32 0.0, %v2131
        %2133 = vdwg.mxu0
        %v2134 = vadd.f32 %v2069, %v2088
        %v2135 = vadd.f32 %v2070, %v2102
        %v2136 = vadd.f32 %v2071, %v2116
        %v2137 = vadd.f32 %v2072, %v2130
        %v2138 = vadd.f32 %v2073, %v2090
        %v2139 = vadd.f32 %v2074, %v2104
        %v2140 = vadd.f32 %v2075, %v2118
        %v2141 = vadd.f32 %v2076, %v2132
        %v2142 = vmul.f32 %v2056, 0.5
        %v2143 = vmul.f32 %v2060, 0.5
        %v2144 = vtanh.pop %v2142
        %v2145 = vtanh.pop %v2143
        %v2146 = vmul.f32 %v2144, 0.5
        %v2147 = vmul.f32 %v2145, 0.5
        %v2148 = vadd.f32 %v2146, 0.5
        %v2149 = vadd.f32 %v2147, 0.5
        %v2150 = vmul.f32 %v2057, 0.5
        %v2151 = vmul.f32 %v2061, 0.5
        %v2152 = vtanh.pop %v2150
        %v2153 = vtanh.pop %v2151
        %v2154 = vmul.f32 %v2152, 0.5
        %v2155 = vmul.f32 %v2153, 0.5
        %v2156 = vadd.f32 %v2154, 0.5
        %v2157 = vadd.f32 %v2155, 0.5
        %v2158 = vtanh.pop %v2058
        %v2159 = vtanh.pop %v2062
        %v2160 = vmul.f32 %v2059, 0.5
        %v2161 = vmul.f32 %v2063, 0.5
        %v2162 = vtanh.pop %v2160
        %v2163 = vtanh.pop %v2161
        %v2164 = vmul.f32 %v2162, 0.5
        %v2165 = vmul.f32 %v2163, 0.5
        %v2166 = vadd.f32 %v2164, 0.5
        %v2167 = vadd.f32 %v2165, 0.5
        %v2168 = vmul.f32 %v2156, %v1969
        %v2169 = vmul.f32 %v2157, %v1970
        %v2170 = vmul.f32 %v2148, %v2158
        %v2171 = vmul.f32 %v2149, %v2159
        %v2172 = vadd.f32 %v2168, %v2170
        %v2173 = vadd.f32 %v2169, %v2171
        %v2174 = vtanh.pop %v2172
        %v2175 = vtanh.pop %v2173
        %v2176 = vmul.f32 %v2166, %v2174
        %v2177 = vmul.f32 %v2167, %v2175
        %v2178 = vmul.f32 %v2134, 0.5
        %v2179 = vmul.f32 %v2138, 0.5
        %v2180 = vtanh.pop %v2178
        %v2181 = vtanh.pop %v2179
        %v2182 = vmul.f32 %v2180, 0.5
        %v2183 = vmul.f32 %v2181, 0.5
        %v2184 = vadd.f32 %v2182, 0.5
        %v2185 = vadd.f32 %v2183, 0.5
        %v2186 = vmul.f32 %v2135, 0.5
        %v2187 = vmul.f32 %v2139, 0.5
        %v2188 = vtanh.pop %v2186
        %v2189 = vtanh.pop %v2187
        %v2190 = vmul.f32 %v2188, 0.5
        %v2191 = vmul.f32 %v2189, 0.5
        %v2192 = vadd.f32 %v2190, 0.5
        %v2193 = vadd.f32 %v2191, 0.5
        %v2194 = vtanh.pop %v2136
        %v2195 = vtanh.pop %v2140
        %v2196 = vmul.f32 %v2137, 0.5
        %v2197 = vmul.f32 %v2141, 0.5
        %v2198 = vtanh.pop %v2196
        %v2199 = vtanh.pop %v2197
        %v2200 = vmul.f32 %v2198, 0.5
        %v2201 = vmul.f32 %v2199, 0.5
        %v2202 = vadd.f32 %v2200, 0.5
        %v2203 = vadd.f32 %v2201, 0.5
        %v2204 = vmul.f32 %v2192, %v1984
        %v2205 = vmul.f32 %v2193, %v1985
        %v2206 = vmul.f32 %v2184, %v2194
        %v2207 = vmul.f32 %v2185, %v2195
        %v2208 = vadd.f32 %v2204, %v2206
        %v2209 = vadd.f32 %v2205, %v2207
        %v2210 = vtanh.pop %v2208
        %v2211 = vtanh.pop %v2209
        %v2212 = vmul.f32 %v2202, %v2210
        %v2213 = vmul.f32 %v2203, %v2211
        %s2214 = sadd.s32 %s1330, 1
        %p2215 = scmp.lt.s32.totalorder %s2214, 9
        %s2216 = scalar_select %p2215, 1, 0
        %s2217 = scvt.s32.f32 %s2216
        %p2218 = scmp.ge.s32.totalorder %s2214, 3
        %s2219 = scalar_select %p2218, 1, 0
        %s2220 = scvt.s32.f32 %s2219
        %v2221 = vstv %s2217
        %v2222 = vmul.f32 %v2221, %v2176
        %v2223 = vmul.f32 %v2221, %v2177
        %s2224 = ssub.f32 1.0, %s2217
        %v2225 = vstv %s2224
        %v2226 = vmul.f32 %v2225, %v1963
        %v2227 = vmul.f32 %v2225, %v1964
        %v2228 = vadd.f32 %v2222, %v2226
        %v2229 = vadd.f32 %v2223, %v2227
        %v2230 = vmul.f32 %v2221, %v2172
        %v2231 = vmul.f32 %v2221, %v2173
        %v2232 = vmul.f32 %v2225, %v1969
        %v2233 = vmul.f32 %v2225, %v1970
        %v2234 = vadd.f32 %v2230, %v2232
        %v2235 = vadd.f32 %v2231, %v2233
        %v2236 = vstv %s2220
        %v2237 = vmul.f32 %v2236, %v2212
        %v2238 = vmul.f32 %v2236, %v2213
        %s2239 = ssub.f32 1.0, %s2220
        %v2240 = vstv %s2239
        %v2241 = vmul.f32 %v2240, %v1978
        %v2242 = vmul.f32 %v2240, %v1979
        %v2243 = vadd.f32 %v2237, %v2241
        %v2244 = vadd.f32 %v2238, %v2242
        %v2245 = vmul.f32 %v2236, %v2208
        %v2246 = vmul.f32 %v2236, %v2209
        %v2247 = vmul.f32 %v2240, %v1984
        %v2248 = vmul.f32 %v2240, %v1985
        %v2249 = vadd.f32 %v2245, %v2247
        %v2250 = vadd.f32 %v2246, %v2248
        %s2251 = scalar_lea.vmem [#allocation2], 64
        %v2252 = vld [vmem:[%s2251] sm:$0xff]
        %v2253 = vld [vmem:[%s2251 + $0x8] sm:$0xff]
        %v2254 = vld [vmem:[%s2251 + $0x10] sm:$0xff]
        %v2255 = vld [vmem:[%s2251 + $0x18] sm:$0xff]
        %v2256 = vunpack.c.l.bf16 %v2252
        %v2257 = vunpack.c.h.bf16 %v2252
        %v2258 = vunpack.c.l.bf16 %v2253
        %v2259 = vunpack.c.h.bf16 %v2253
        %v2260 = vunpack.c.l.bf16 %v2254
        %v2261 = vunpack.c.h.bf16 %v2254
        %v2262 = vunpack.c.l.bf16 %v2255
        %v2263 = vunpack.c.h.bf16 %v2255
        %v2264 = vpack.c.bf16 %v2229, %v2228
        %2265 = vmatpush.bf16.msra.mxu0 %v1508
        %2266 = vmatpush.bf16.msra.mxu0 %v1504
        %2267 = vmatpush.bf16.msra.mxu0 %v1500
        %2268 = vmatpush.bf16.msra.mxu0 %v1496
        %2269 = vmatpush.bf16.msra.mxu0 %v1492
        %2270 = vmatpush.bf16.msra.mxu0 %v1488
        %2271 = vmatpush.bf16.msra.mxu0 %v1484
        %2272 = vmatpush.bf16.msra.mxu0 %v1480
        %2273 = vmatmul.bf16.gmra.mxu0 %v2264
        %v2274 = vpop.f32.mrf.mxu0
        %v2275 = vadd.f32 0.0, %v2274
        %v2276 = vpop.f32.mrf.mxu0
        %v2277 = vadd.f32 0.0, %v2276
        %2278 = vdwg.mxu0
        %2279 = vmatpush.bf16.msra.mxu0 %v1509
        %2280 = vmatpush.bf16.msra.mxu0 %v1505
        %2281 = vmatpush.bf16.msra.mxu0 %v1501
        %2282 = vmatpush.bf16.msra.mxu0 %v1497
        %2283 = vmatpush.bf16.msra.mxu0 %v1493
        %2284 = vmatpush.bf16.msra.mxu0 %v1489
        %2285 = vmatpush.bf16.msra.mxu0 %v1485
        %2286 = vmatpush.bf16.msra.mxu0 %v1481
        %2287 = vmatmul.bf16.gmra.mxu0 %v2264
        %v2288 = vpop.f32.mrf.mxu0
        %v2289 = vadd.f32 0.0, %v2288
        %v2290 = vpop.f32.mrf.mxu0
        %v2291 = vadd.f32 0.0, %v2290
        %2292 = vdwg.mxu0
        %2293 = vmatpush.bf16.msra.mxu0 %v1510
        %2294 = vmatpush.bf16.msra.mxu0 %v1506
        %2295 = vmatpush.bf16.msra.mxu0 %v1502
        %2296 = vmatpush.bf16.msra.mxu0 %v1498
        %2297 = vmatpush.bf16.msra.mxu0 %v1494
        %2298 = vmatpush.bf16.msra.mxu0 %v1490
        %2299 = vmatpush.bf16.msra.mxu0 %v1486
        %2300 = vmatpush.bf16.msra.mxu0 %v1482
        %2301 = vmatmul.bf16.gmra.mxu0 %v2264
        %v2302 = vpop.f32.mrf.mxu0
        %v2303 = vadd.f32 0.0, %v2302
        %v2304 = vpop.f32.mrf.mxu0
        %v2305 = vadd.f32 0.0, %v2304
        %2306 = vdwg.mxu0
        %2307 = vmatpush.bf16.msra.mxu0 %v1511
        %2308 = vmatpush.bf16.msra.mxu0 %v1507
        %2309 = vmatpush.bf16.msra.mxu0 %v1503
        %2310 = vmatpush.bf16.msra.mxu0 %v1499
        %2311 = vmatpush.bf16.msra.mxu0 %v1495
        %2312 = vmatpush.bf16.msra.mxu0 %v1491
        %2313 = vmatpush.bf16.msra.mxu0 %v1487
        %2314 = vmatpush.bf16.msra.mxu0 %v1483
        %2315 = vmatmul.bf16.gmra.mxu0 %v2264
        %v2316 = vpop.f32.mrf.mxu0
        %v2317 = vadd.f32 0.0, %v2316
        %v2318 = vpop.f32.mrf.mxu0
        %v2319 = vadd.f32 0.0, %v2318
        %2320 = vdwg.mxu0
        %v2321 = vadd.f32 %v2256, %v2275
        %v2322 = vadd.f32 %v2257, %v2289
        %v2323 = vadd.f32 %v2258, %v2303
        %v2324 = vadd.f32 %v2259, %v2317
        %v2325 = vadd.f32 %v2260, %v2277
        %v2326 = vadd.f32 %v2261, %v2291
        %v2327 = vadd.f32 %v2262, %v2305
        %v2328 = vadd.f32 %v2263, %v2319
        %s2329 = scalar_lea.vmem [#allocation3], 32
        %v2330 = vld [vmem:[%s2329] sm:$0xff]
        %v2331 = vld [vmem:[%s2329 + $0x8] sm:$0xff]
        %v2332 = vld [vmem:[%s2329 + $0x10] sm:$0xff]
        %v2333 = vld [vmem:[%s2329 + $0x18] sm:$0xff]
        %v2334 = vunpack.c.l.bf16 %v2330
        %v2335 = vunpack.c.h.bf16 %v2330
        %v2336 = vunpack.c.l.bf16 %v2331
        %v2337 = vunpack.c.h.bf16 %v2331
        %v2338 = vunpack.c.l.bf16 %v2332
        %v2339 = vunpack.c.h.bf16 %v2332
        %v2340 = vunpack.c.l.bf16 %v2333
        %v2341 = vunpack.c.h.bf16 %v2333
        %v2342 = vpack.c.bf16 %v2244, %v2243
        %2343 = vmatpush.bf16.msra.mxu0 %v1778
        %2344 = vmatpush.bf16.msra.mxu0 %v1774
        %2345 = vmatpush.bf16.msra.mxu0 %v1770
        %2346 = vmatpush.bf16.msra.mxu0 %v1766
        %2347 = vmatpush.bf16.msra.mxu0 %v1762
        %2348 = vmatpush.bf16.msra.mxu0 %v1758
        %2349 = vmatpush.bf16.msra.mxu0 %v1754
        %2350 = vmatpush.bf16.msra.mxu0 %v1750
        %2351 = vmatmul.bf16.gmra.mxu0 %v2342
        %v2352 = vpop.f32.mrf.mxu0
        %v2353 = vadd.f32 0.0, %v2352
        %v2354 = vpop.f32.mrf.mxu0
        %v2355 = vadd.f32 0.0, %v2354
        %2356 = vdwg.mxu0
        %2357 = vmatpush.bf16.msra.mxu0 %v1779
        %2358 = vmatpush.bf16.msra.mxu0 %v1775
        %2359 = vmatpush.bf16.msra.mxu0 %v1771
        %2360 = vmatpush.bf16.msra.mxu0 %v1767
        %2361 = vmatpush.bf16.msra.mxu0 %v1763
        %2362 = vmatpush.bf16.msra.mxu0 %v1759
        %2363 = vmatpush.bf16.msra.mxu0 %v1755
        %2364 = vmatpush.bf16.msra.mxu0 %v1751
        %2365 = vmatmul.bf16.gmra.mxu0 %v2342
        %v2366 = vpop.f32.mrf.mxu0
        %v2367 = vadd.f32 0.0, %v2366
        %v2368 = vpop.f32.mrf.mxu0
        %v2369 = vadd.f32 0.0, %v2368
        %2370 = vdwg.mxu0
        %2371 = vmatpush.bf16.msra.mxu0 %v1780
        %2372 = vmatpush.bf16.msra.mxu0 %v1776
        %2373 = vmatpush.bf16.msra.mxu0 %v1772
        %2374 = vmatpush.bf16.msra.mxu0 %v1768
        %2375 = vmatpush.bf16.msra.mxu0 %v1764
        %2376 = vmatpush.bf16.msra.mxu0 %v1760
        %2377 = vmatpush.bf16.msra.mxu0 %v1756
        %2378 = vmatpush.bf16.msra.mxu0 %v1752
        %2379 = vmatmul.bf16.gmra.mxu0 %v2342
        %v2380 = vpop.f32.mrf.mxu0
        %v2381 = vadd.f32 0.0, %v2380
        %v2382 = vpop.f32.mrf.mxu0
        %v2383 = vadd.f32 0.0, %v2382
        %2384 = vdwg.mxu0
        %2385 = vmatpush.bf16.msra.mxu0 %v1781
        %2386 = vmatpush.bf16.msra.mxu0 %v1777
        %2387 = vmatpush.bf16.msra.mxu0 %v1773
        %2388 = vmatpush.bf16.msra.mxu0 %v1769
        %2389 = vmatpush.bf16.msra.mxu0 %v1765
        %2390 = vmatpush.bf16.msra.mxu0 %v1761
        %2391 = vmatpush.bf16.msra.mxu0 %v1757
        %2392 = vmatpush.bf16.msra.mxu0 %v1753
        %2393 = vmatmul.bf16.gmra.mxu0 %v2342
        %v2394 = vpop.f32.mrf.mxu0
        %v2395 = vadd.f32 0.0, %v2394
        %v2396 = vpop.f32.mrf.mxu0
        %v2397 = vadd.f32 0.0, %v2396
        %2398 = vdwg.mxu0
        %v2399 = vadd.f32 %v2334, %v2353
        %v2400 = vadd.f32 %v2335, %v2367
        %v2401 = vadd.f32 %v2336, %v2381
        %v2402 = vadd.f32 %v2337, %v2395
        %v2403 = vadd.f32 %v2338, %v2355
        %v2404 = vadd.f32 %v2339, %v2369
        %v2405 = vadd.f32 %v2340, %v2383
        %v2406 = vadd.f32 %v2341, %v2397
        %v2407 = vmul.f32 %v2321, 0.5
        %v2408 = vmul.f32 %v2325, 0.5
        %v2409 = vtanh.pop %v2407
        %v2410 = vtanh.pop %v2408
        %v2411 = vmul.f32 %v2409, 0.5
        %v2412 = vmul.f32 %v2410, 0.5
        %v2413 = vadd.f32 %v2411, 0.5
        %v2414 = vadd.f32 %v2412, 0.5
        %v2415 = vmul.f32 %v2322, 0.5
        %v2416 = vmul.f32 %v2326, 0.5
        %v2417 = vtanh.pop %v2415
        %v2418 = vtanh.pop %v2416
        %v2419 = vmul.f32 %v2417, 0.5
        %v2420 = vmul.f32 %v2418, 0.5
        %v2421 = vadd.f32 %v2419, 0.5
        %v2422 = vadd.f32 %v2420, 0.5
        %v2423 = vtanh.pop %v2323
        %v2424 = vtanh.pop %v2327
        %v2425 = vmul.f32 %v2324, 0.5
        %v2426 = vmul.f32 %v2328, 0.5
        %v2427 = vtanh.pop %v2425
        %v2428 = vtanh.pop %v2426
        %v2429 = vmul.f32 %v2427, 0.5
        %v2430 = vmul.f32 %v2428, 0.5
        %v2431 = vadd.f32 %v2429, 0.5
        %v2432 = vadd.f32 %v2430, 0.5
        %v2433 = vmul.f32 %v2421, %v2234
        %v2434 = vmul.f32 %v2422, %v2235
        %v2435 = vmul.f32 %v2413, %v2423
        %v2436 = vmul.f32 %v2414, %v2424
        %v2437 = vadd.f32 %v2433, %v2435
        %v2438 = vadd.f32 %v2434, %v2436
        %v2439 = vtanh.pop %v2437
        %v2440 = vtanh.pop %v2438
        %v2441 = vmul.f32 %v2431, %v2439
        %v2442 = vmul.f32 %v2432, %v2440
        %v2443 = vmul.f32 %v2399, 0.5
        %v2444 = vmul.f32 %v2403, 0.5
        %v2445 = vtanh.pop %v2443
        %v2446 = vtanh.pop %v2444
        %v2447 = vmul.f32 %v2445, 0.5
        %v2448 = vmul.f32 %v2446, 0.5
        %v2449 = vadd.f32 %v2447, 0.5
        %v2450 = vadd.f32 %v2448, 0.5
        %v2451 = vmul.f32 %v2400, 0.5
        %v2452 = vmul.f32 %v2404, 0.5
        %v2453 = vtanh.pop %v2451
        %v2454 = vtanh.pop %v2452
        %v2455 = vmul.f32 %v2453, 0.5
        %v2456 = vmul.f32 %v2454, 0.5
        %v2457 = vadd.f32 %v2455, 0.5
        %v2458 = vadd.f32 %v2456, 0.5
        %v2459 = vtanh.pop %v2401
        %v2460 = vtanh.pop %v2405
        %v2461 = vmul.f32 %v2402, 0.5
        %v2462 = vmul.f32 %v2406, 0.5
        %v2463 = vtanh.pop %v2461
        %v2464 = vtanh.pop %v2462
        %v2465 = vmul.f32 %v2463, 0.5
        %v2466 = vmul.f32 %v2464, 0.5
        %v2467 = vadd.f32 %v2465, 0.5
        %v2468 = vadd.f32 %v2466, 0.5
        %v2469 = vmul.f32 %v2457, %v2249
        %v2470 = vmul.f32 %v2458, %v2250
        %v2471 = vmul.f32 %v2449, %v2459
        %v2472 = vmul.f32 %v2450, %v2460
        %v2473 = vadd.f32 %v2469, %v2471
        %v2474 = vadd.f32 %v2470, %v2472
        %v2475 = vtanh.pop %v2473
        %v2476 = vtanh.pop %v2474
        %v2477 = vmul.f32 %v2467, %v2475
        %v2478 = vmul.f32 %v2468, %v2476
        %s2479 = sadd.s32 %s1330, 2
        %p2480 = scmp.lt.s32.totalorder %s2479, 9
        %s2481 = scalar_select %p2480, 1, 0
        %s2482 = scvt.s32.f32 %s2481
        %p2483 = scmp.ge.s32.totalorder %s2479, 3
        %s2484 = scalar_select %p2483, 1, 0
        %s2485 = scvt.s32.f32 %s2484
        %v2486 = vstv %s2482
        %v2487 = vmul.f32 %v2486, %v2441
        %v2488 = vmul.f32 %v2486, %v2442
        %s2489 = ssub.f32 1.0, %s2482
        %v2490 = vstv %s2489
        %v2491 = vmul.f32 %v2490, %v2228
        %v2492 = vmul.f32 %v2490, %v2229
        %v2493 = vadd.f32 %v2487, %v2491
        %v2494 = vadd.f32 %v2488, %v2492
        %v2495 = vmul.f32 %v2486, %v2437
        %v2496 = vmul.f32 %v2486, %v2438
        %v2497 = vmul.f32 %v2490, %v2234
        %v2498 = vmul.f32 %v2490, %v2235
        %v2499 = vadd.f32 %v2495, %v2497
        %v2500 = vadd.f32 %v2496, %v2498
        %v2501 = vstv %s2485
        %v2502 = vmul.f32 %v2501, %v2477
        %v2503 = vmul.f32 %v2501, %v2478
        %s2504 = ssub.f32 1.0, %s2485
        %v2505 = vstv %s2504
        %v2506 = vmul.f32 %v2505, %v2243
        %v2507 = vmul.f32 %v2505, %v2244
        %v2508 = vadd.f32 %v2502, %v2506
        %v2509 = vadd.f32 %v2503, %v2507
        %v2510 = vmul.f32 %v2501, %v2473
        %v2511 = vmul.f32 %v2501, %v2474
        %v2512 = vmul.f32 %v2505, %v2249
        %v2513 = vmul.f32 %v2505, %v2250
        %v2514 = vadd.f32 %v2510, %v2512
        %v2515 = vadd.f32 %v2511, %v2513
        %s2516 = scalar_lea.vmem [#allocation2], 96
        %v2517 = vld [vmem:[%s2516] sm:$0xff]
        %v2518 = vld [vmem:[%s2516 + $0x8] sm:$0xff]
        %v2519 = vld [vmem:[%s2516 + $0x10] sm:$0xff]
        %v2520 = vld [vmem:[%s2516 + $0x18] sm:$0xff]
        %v2521 = vunpack.c.l.bf16 %v2517
        %v2522 = vunpack.c.h.bf16 %v2517
        %v2523 = vunpack.c.l.bf16 %v2518
        %v2524 = vunpack.c.h.bf16 %v2518
        %v2525 = vunpack.c.l.bf16 %v2519
        %v2526 = vunpack.c.h.bf16 %v2519
        %v2527 = vunpack.c.l.bf16 %v2520
        %v2528 = vunpack.c.h.bf16 %v2520
        %v2529 = vpack.c.bf16 %v2494, %v2493
        %2530 = vmatpush.bf16.msra.mxu0 %v1508
        %2531 = vmatpush.bf16.msra.mxu0 %v1504
        %2532 = vmatpush.bf16.msra.mxu0 %v1500
        %2533 = vmatpush.bf16.msra.mxu0 %v1496
        %2534 = vmatpush.bf16.msra.mxu0 %v1492
        %2535 = vmatpush.bf16.msra.mxu0 %v1488
        %2536 = vmatpush.bf16.msra.mxu0 %v1484
        %2537 = vmatpush.bf16.msra.mxu0 %v1480
        %2538 = vmatmul.bf16.gmra.mxu0 %v2529
        %v2539 = vpop.f32.mrf.mxu0
        %v2540 = vadd.f32 0.0, %v2539
        %v2541 = vpop.f32.mrf.mxu0
        %v2542 = vadd.f32 0.0, %v2541
        %2543 = vdwg.mxu0
        %2544 = vmatpush.bf16.msra.mxu0 %v1509
        %2545 = vmatpush.bf16.msra.mxu0 %v1505
        %2546 = vmatpush.bf16.msra.mxu0 %v1501
        %2547 = vmatpush.bf16.msra.mxu0 %v1497
        %2548 = vmatpush.bf16.msra.mxu0 %v1493
        %2549 = vmatpush.bf16.msra.mxu0 %v1489
        %2550 = vmatpush.bf16.msra.mxu0 %v1485
        %2551 = vmatpush.bf16.msra.mxu0 %v1481
        %2552 = vmatmul.bf16.gmra.mxu0 %v2529
        %v2553 = vpop.f32.mrf.mxu0
        %v2554 = vadd.f32 0.0, %v2553
        %v2555 = vpop.f32.mrf.mxu0
        %v2556 = vadd.f32 0.0, %v2555
        %2557 = vdwg.mxu0
        %2558 = vmatpush.bf16.msra.mxu0 %v1510
        %2559 = vmatpush.bf16.msra.mxu0 %v1506
        %2560 = vmatpush.bf16.msra.mxu0 %v1502
        %2561 = vmatpush.bf16.msra.mxu0 %v1498
        %2562 = vmatpush.bf16.msra.mxu0 %v1494
        %2563 = vmatpush.bf16.msra.mxu0 %v1490
        %2564 = vmatpush.bf16.msra.mxu0 %v1486
        %2565 = vmatpush.bf16.msra.mxu0 %v1482
        %2566 = vmatmul.bf16.gmra.mxu0 %v2529
        %v2567 = vpop.f32.mrf.mxu0
        %v2568 = vadd.f32 0.0, %v2567
        %v2569 = vpop.f32.mrf.mxu0
        %v2570 = vadd.f32 0.0, %v2569
        %2571 = vdwg.mxu0
        %2572 = vmatpush.bf16.msra.mxu0 %v1511
        %2573 = vmatpush.bf16.msra.mxu0 %v1507
        %2574 = vmatpush.bf16.msra.mxu0 %v1503
        %2575 = vmatpush.bf16.msra.mxu0 %v1499
        %2576 = vmatpush.bf16.msra.mxu0 %v1495
        %2577 = vmatpush.bf16.msra.mxu0 %v1491
        %2578 = vmatpush.bf16.msra.mxu0 %v1487
        %2579 = vmatpush.bf16.msra.mxu0 %v1483
        %2580 = vmatmul.bf16.gmra.mxu0 %v2529
        %v2581 = vpop.f32.mrf.mxu0
        %v2582 = vadd.f32 0.0, %v2581
        %v2583 = vpop.f32.mrf.mxu0
        %v2584 = vadd.f32 0.0, %v2583
        %2585 = vdwg.mxu0
        %v2586 = vadd.f32 %v2521, %v2540
        %v2587 = vadd.f32 %v2522, %v2554
        %v2588 = vadd.f32 %v2523, %v2568
        %v2589 = vadd.f32 %v2524, %v2582
        %v2590 = vadd.f32 %v2525, %v2542
        %v2591 = vadd.f32 %v2526, %v2556
        %v2592 = vadd.f32 %v2527, %v2570
        %v2593 = vadd.f32 %v2528, %v2584
        %v2594 = vld [vmem:[#allocation3] sm:$0xff]
        %v2595 = vld [vmem:[#allocation3 + $0x8] sm:$0xff]
        %v2596 = vld [vmem:[#allocation3 + $0x10] sm:$0xff]
        %v2597 = vld [vmem:[#allocation3 + $0x18] sm:$0xff]
        %v2598 = vunpack.c.l.bf16 %v2594
        %v2599 = vunpack.c.h.bf16 %v2594
        %v2600 = vunpack.c.l.bf16 %v2595
        %v2601 = vunpack.c.h.bf16 %v2595
        %v2602 = vunpack.c.l.bf16 %v2596
        %v2603 = vunpack.c.h.bf16 %v2596
        %v2604 = vunpack.c.l.bf16 %v2597
        %v2605 = vunpack.c.h.bf16 %v2597
        %v2606 = vpack.c.bf16 %v2509, %v2508
        %2607 = vmatpush.bf16.msra.mxu0 %v1778
        %2608 = vmatpush.bf16.msra.mxu0 %v1774
        %2609 = vmatpush.bf16.msra.mxu0 %v1770
        %2610 = vmatpush.bf16.msra.mxu0 %v1766
        %2611 = vmatpush.bf16.msra.mxu0 %v1762
        %2612 = vmatpush.bf16.msra.mxu0 %v1758
        %2613 = vmatpush.bf16.msra.mxu0 %v1754
        %2614 = vmatpush.bf16.msra.mxu0 %v1750
        %2615 = vmatmul.bf16.gmra.mxu0 %v2606
        %v2616 = vpop.f32.mrf.mxu0
        %v2617 = vadd.f32 0.0, %v2616
        %v2618 = vpop.f32.mrf.mxu0
        %v2619 = vadd.f32 0.0, %v2618
        %2620 = vdwg.mxu0
        %2621 = vmatpush.bf16.msra.mxu0 %v1779
        %2622 = vmatpush.bf16.msra.mxu0 %v1775
        %2623 = vmatpush.bf16.msra.mxu0 %v1771
        %2624 = vmatpush.bf16.msra.mxu0 %v1767
        %2625 = vmatpush.bf16.msra.mxu0 %v1763
        %2626 = vmatpush.bf16.msra.mxu0 %v1759
        %2627 = vmatpush.bf16.msra.mxu0 %v1755
        %2628 = vmatpush.bf16.msra.mxu0 %v1751
        %2629 = vmatmul.bf16.gmra.mxu0 %v2606
        %v2630 = vpop.f32.mrf.mxu0
        %v2631 = vadd.f32 0.0, %v2630
        %v2632 = vpop.f32.mrf.mxu0
        %v2633 = vadd.f32 0.0, %v2632
        %2634 = vdwg.mxu0
        %2635 = vmatpush.bf16.msra.mxu0 %v1780
        %2636 = vmatpush.bf16.msra.mxu0 %v1776
        %2637 = vmatpush.bf16.msra.mxu0 %v1772
        %2638 = vmatpush.bf16.msra.mxu0 %v1768
        %2639 = vmatpush.bf16.msra.mxu0 %v1764
        %2640 = vmatpush.bf16.msra.mxu0 %v1760
        %2641 = vmatpush.bf16.msra.mxu0 %v1756
        %2642 = vmatpush.bf16.msra.mxu0 %v1752
        %2643 = vmatmul.bf16.gmra.mxu0 %v2606
        %v2644 = vpop.f32.mrf.mxu0
        %v2645 = vadd.f32 0.0, %v2644
        %v2646 = vpop.f32.mrf.mxu0
        %v2647 = vadd.f32 0.0, %v2646
        %2648 = vdwg.mxu0
        %2649 = vmatpush.bf16.msra.mxu0 %v1781
        %2650 = vmatpush.bf16.msra.mxu0 %v1777
        %2651 = vmatpush.bf16.msra.mxu0 %v1773
        %2652 = vmatpush.bf16.msra.mxu0 %v1769
        %2653 = vmatpush.bf16.msra.mxu0 %v1765
        %2654 = vmatpush.bf16.msra.mxu0 %v1761
        %2655 = vmatpush.bf16.msra.mxu0 %v1757
        %2656 = vmatpush.bf16.msra.mxu0 %v1753
        %2657 = vmatmul.bf16.gmra.mxu0 %v2606
        %v2658 = vpop.f32.mrf.mxu0
        %v2659 = vadd.f32 0.0, %v2658
        %v2660 = vpop.f32.mrf.mxu0
        %v2661 = vadd.f32 0.0, %v2660
        %2662 = vdwg.mxu0
        %v2663 = vadd.f32 %v2598, %v2617
        %v2664 = vadd.f32 %v2599, %v2631
        %v2665 = vadd.f32 %v2600, %v2645
        %v2666 = vadd.f32 %v2601, %v2659
        %v2667 = vadd.f32 %v2602, %v2619
        %v2668 = vadd.f32 %v2603, %v2633
        %v2669 = vadd.f32 %v2604, %v2647
        %v2670 = vadd.f32 %v2605, %v2661
        %v2671 = vmul.f32 %v2586, 0.5
        %v2672 = vmul.f32 %v2590, 0.5
        %v2673 = vtanh.pop %v2671
        %v2674 = vtanh.pop %v2672
        %v2675 = vmul.f32 %v2673, 0.5
        %v2676 = vmul.f32 %v2674, 0.5
        %v2677 = vadd.f32 %v2675, 0.5
        %v2678 = vadd.f32 %v2676, 0.5
        %v2679 = vmul.f32 %v2587, 0.5
        %v2680 = vmul.f32 %v2591, 0.5
        %v2681 = vtanh.pop %v2679
        %v2682 = vtanh.pop %v2680
        %v2683 = vmul.f32 %v2681, 0.5
        %v2684 = vmul.f32 %v2682, 0.5
        %v2685 = vadd.f32 %v2683, 0.5
        %v2686 = vadd.f32 %v2684, 0.5
        %v2687 = vtanh.pop %v2588
        %v2688 = vtanh.pop %v2592
        %v2689 = vmul.f32 %v2589, 0.5
        %v2690 = vmul.f32 %v2593, 0.5
        %v2691 = vtanh.pop %v2689
        %v2692 = vtanh.pop %v2690
        %v2693 = vmul.f32 %v2691, 0.5
        %v2694 = vmul.f32 %v2692, 0.5
        %v2695 = vadd.f32 %v2693, 0.5
        %v2696 = vadd.f32 %v2694, 0.5
        %v2697 = vmul.f32 %v2685, %v2499
        %v2698 = vmul.f32 %v2686, %v2500
        %v2699 = vmul.f32 %v2677, %v2687
        %v2700 = vmul.f32 %v2678, %v2688
        %v2701 = vadd.f32 %v2697, %v2699
        %v2702 = vadd.f32 %v2698, %v2700
        %v2703 = vtanh.pop %v2701
        %v2704 = vtanh.pop %v2702
        %v2705 = vmul.f32 %v2695, %v2703
        %v2706 = vmul.f32 %v2696, %v2704
        %v2707 = vmul.f32 %v2663, 0.5
        %v2708 = vmul.f32 %v2667, 0.5
        %v2709 = vtanh.pop %v2707
        %v2710 = vtanh.pop %v2708
        %v2711 = vmul.f32 %v2709, 0.5
        %v2712 = vmul.f32 %v2710, 0.5
        %v2713 = vadd.f32 %v2711, 0.5
        %v2714 = vadd.f32 %v2712, 0.5
        %v2715 = vmul.f32 %v2664, 0.5
        %v2716 = vmul.f32 %v2668, 0.5
        %v2717 = vtanh.pop %v2715
        %v2718 = vtanh.pop %v2716
        %v2719 = vmul.f32 %v2717, 0.5
        %v2720 = vmul.f32 %v2718, 0.5
        %v2721 = vadd.f32 %v2719, 0.5
        %v2722 = vadd.f32 %v2720, 0.5
        %v2723 = vtanh.pop %v2665
        %v2724 = vtanh.pop %v2669
        %v2725 = vmul.f32 %v2666, 0.5
        %v2726 = vmul.f32 %v2670, 0.5
        %v2727 = vtanh.pop %v2725
        %v2728 = vtanh.pop %v2726
        %v2729 = vmul.f32 %v2727, 0.5
        %v2730 = vmul.f32 %v2728, 0.5
        %v2731 = vadd.f32 %v2729, 0.5
        %v2732 = vadd.f32 %v2730, 0.5
        %v2733 = vmul.f32 %v2721, %v2514
        %v2734 = vmul.f32 %v2722, %v2515
        %v2735 = vmul.f32 %v2713, %v2723
        %v2736 = vmul.f32 %v2714, %v2724
        %v2737 = vadd.f32 %v2733, %v2735
        %v2738 = vadd.f32 %v2734, %v2736
        %v2739 = vtanh.pop %v2737
        %v2740 = vtanh.pop %v2738
        %v2741 = vmul.f32 %v2731, %v2739
        %v2742 = vmul.f32 %v2732, %v2740
        %s2743 = sadd.s32 %s1330, 3
        %p2744 = scmp.lt.s32.totalorder %s2743, 9
        %s2745 = scalar_select %p2744, 1, 0
        %s2746 = scvt.s32.f32 %s2745
        %p2747 = scmp.ge.s32.totalorder %s2743, 3
        %s2748 = scalar_select %p2747, 1, 0
        %s2749 = scvt.s32.f32 %s2748
        %v2750 = vstv %s2746
        %v2751 = vmul.f32 %v2750, %v2705
        %v2752 = vmul.f32 %v2750, %v2706
        %s2753 = ssub.f32 1.0, %s2746
        %v2754 = vstv %s2753
        %v2755 = vmul.f32 %v2754, %v2493
        %v2756 = vmul.f32 %v2754, %v2494
        %v2757 = vadd.f32 %v2751, %v2755
        %v2758 = vadd.f32 %v2752, %v2756
        %v2759 = vmul.f32 %v2750, %v2701
        %v2760 = vmul.f32 %v2750, %v2702
        %v2761 = vmul.f32 %v2754, %v2499
        %v2762 = vmul.f32 %v2754, %v2500
        %v2763 = vadd.f32 %v2759, %v2761
        %v2764 = vadd.f32 %v2760, %v2762
        %v2765 = vstv %s2749
        %v2766 = vmul.f32 %v2765, %v2741
        %v2767 = vmul.f32 %v2765, %v2742
        %s2768 = ssub.f32 1.0, %s2749
        %v2769 = vstv %s2768
        %v2770 = vmul.f32 %v2769, %v2508
        %v2771 = vmul.f32 %v2769, %v2509
        %v2772 = vadd.f32 %v2766, %v2770
        %v2773 = vadd.f32 %v2767, %v2771
        %v2774 = vmul.f32 %v2765, %v2737
        %v2775 = vmul.f32 %v2765, %v2738
        %v2776 = vmul.f32 %v2769, %v2514
        %v2777 = vmul.f32 %v2769, %v2515
        %v2778 = vadd.f32 %v2774, %v2776
        %v2779 = vadd.f32 %v2775, %v2777
        %2780 = vst [vmem:[#allocation4] sm:$0xff] %v2757
        %2781 = vst [vmem:[#allocation4 + $0x8] sm:$0xff] %v2758
        %2782 = vst [vmem:[#allocation5] sm:$0xff] %v2763
        %2783 = vst [vmem:[#allocation5 + $0x8] sm:$0xff] %v2764
        %2784 = vst [vmem:[#allocation6] sm:$0xff] %v2772
        %2785 = vst [vmem:[#allocation6 + $0x8] sm:$0xff] %v2773
        %2786 = vst [vmem:[#allocation7] sm:$0xff] %v2778
        %2787 = vst [vmem:[#allocation7 + $0x8] sm:$0xff] %v2779
        %p2788 = scmp.eq.s32.totalorder %s32, 2
        // Predicated region
        $region105: #{tpu_custom_call.1} parent=63 // pred_check
          %p2789 = pneg %p2788
        $region106: #{tpu_custom_call.1} parent=63 // pred_check_branch
          %2791 = sbr.rel (%p2789) target = $region108
        $region107: #{tpu_custom_call.1} parent=63 // pred_region
          %v2792 = vld [vmem:[#allocation20] sm:$0xff]
          %v2793 = vld [vmem:[#allocation20 + $0x8] sm:$0xff]
          %v2794 = vld [vmem:[#allocation20 + $0x10] sm:$0xff]
          %v2795 = vld [vmem:[#allocation20 + $0x18] sm:$0xff]
          %v2796 = vld [vmem:[#allocation20 + $0x20] sm:$0xff]
          %v2797 = vld [vmem:[#allocation20 + $0x28] sm:$0xff]
          %v2798 = vld [vmem:[#allocation20 + $0x30] sm:$0xff]
          %v2799 = vld [vmem:[#allocation20 + $0x38] sm:$0xff]
          %v2800 = vld [vmem:[#allocation20 + $0x40] sm:$0xff]
          %v2801 = vld [vmem:[#allocation20 + $0x48] sm:$0xff]
          %v2802 = vld [vmem:[#allocation20 + $0x50] sm:$0xff]
          %v2803 = vld [vmem:[#allocation20 + $0x58] sm:$0xff]
          %v2804 = vld [vmem:[#allocation20 + $0x60] sm:$0xff]
          %v2805 = vld [vmem:[#allocation20 + $0x68] sm:$0xff]
          %v2806 = vld [vmem:[#allocation20 + $0x70] sm:$0xff]
          %v2807 = vld [vmem:[#allocation20 + $0x78] sm:$0xff]
          %v2808 = vld [vmem:[#allocation22] sm:$0xff]
          %v2809 = vld [vmem:[#allocation22 + $0x8] sm:$0xff]
          %v2810 = vld [vmem:[#allocation22 + $0x10] sm:$0xff]
          %v2811 = vld [vmem:[#allocation22 + $0x18] sm:$0xff]
          %v2812 = vld [vmem:[#allocation22 + $0x20] sm:$0xff]
          %v2813 = vld [vmem:[#allocation22 + $0x28] sm:$0xff]
          %v2814 = vld [vmem:[#allocation22 + $0x30] sm:$0xff]
          %v2815 = vld [vmem:[#allocation22 + $0x38] sm:$0xff]
          %v2816 = vld [vmem:[#allocation22 + $0x40] sm:$0xff]
          %v2817 = vld [vmem:[#allocation22 + $0x48] sm:$0xff]
          %v2818 = vld [vmem:[#allocation22 + $0x50] sm:$0xff]
          %v2819 = vld [vmem:[#allocation22 + $0x58] sm:$0xff]
          %v2820 = vld [vmem:[#allocation22 + $0x60] sm:$0xff]
          %v2821 = vld [vmem:[#allocation22 + $0x68] sm:$0xff]
          %v2822 = vld [vmem:[#allocation22 + $0x70] sm:$0xff]
          %v2823 = vld [vmem:[#allocation22 + $0x78] sm:$0xff]
          %2824 = vmatpush.msra.mxu0 %v2823
          %2825 = vmatpush.msra.mxu0 %v2822
          %2826 = vmatpush.msra.mxu0 %v2821
          %2827 = vmatpush.msra.mxu0 %v2820
          %2828 = vmatpush.msra.mxu0 %v2819
          %2829 = vmatpush.msra.mxu0 %v2818
          %2830 = vmatpush.msra.mxu0 %v2817
          %2831 = vmatpush.msra.mxu0 %v2816
          %2832 = vmatpush.msra.mxu0 %v2815
          %2833 = vmatpush.msra.mxu0 %v2814
          %2834 = vmatpush.msra.mxu0 %v2813
          %2835 = vmatpush.msra.mxu0 %v2812
          %2836 = vmatpush.msra.mxu0 %v2811
          %2837 = vmatpush.msra.mxu0 %v2810
          %2838 = vmatpush.msra.mxu0 %v2809
          %2839 = vmatpush.msra.mxu0 %v2808
          %2840 = vmatmul.f32.gmra.mxu0 %v2772
          %v2841 = vpop.f32.mrf.mxu0
          %v2842 = vadd.f32 0.0, %v2841
          %2843 = vmatmul.f32.gmra.mxu0 %v2773
          %v2844 = vpop.f32.mrf.mxu0
          %v2845 = vadd.f32 0.0, %v2844
          %2846 = vdwg.mxu0
          %2847 = vmatpush.msra.mxu0 %v2807
          %2848 = vmatpush.msra.mxu0 %v2806
          %2849 = vmatpush.msra.mxu0 %v2805
          %2850 = vmatpush.msra.mxu0 %v2804
          %2851 = vmatpush.msra.mxu0 %v2803
          %2852 = vmatpush.msra.mxu0 %v2802
          %2853 = vmatpush.msra.mxu0 %v2801
          %2854 = vmatpush.msra.mxu0 %v2800
          %2855 = vmatpush.msra.mxu0 %v2799
          %2856 = vmatpush.msra.mxu0 %v2798
          %2857 = vmatpush.msra.mxu0 %v2797
          %2858 = vmatpush.msra.mxu0 %v2796
          %2859 = vmatpush.msra.mxu0 %v2795
          %2860 = vmatpush.msra.mxu0 %v2794
          %2861 = vmatpush.msra.mxu0 %v2793
          %2862 = vmatpush.msra.mxu0 %v2792
          %2863 = vmatmul.f32.gmra.mxu0 %v2757
          %v2864 = vpop.f32.mrf.mxu0
          %v2865 = vadd.f32 %v2842, %v2864
          %2866 = vmatmul.f32.gmra.mxu0 %v2758
          %v2867 = vpop.f32.mrf.mxu0
          %v2868 = vadd.f32 %v2845, %v2867
          %2869 = vdwg.mxu0
          %v2870 = vld [vmem:[%s10] sm:$0x1]
          %v2872 = vperm.slane %v2870, 0
          %v2874 = vadd.f32 %v2865, %v2872
          %v2875 = vadd.f32 %v2868, %v2872
          %2876 = vst [vmem:[#allocation23] sm:$0xff] %v2874
          %2877 = vst [vmem:[#allocation23 + $0x8] sm:$0xff] %v2875
        $region108: #{tpu_custom_call.1} parent=63 // pred_fallthru
          _
        // Predicated region
        $region109: #{tpu_custom_call.1} parent=63 // pred_check
          %p2878 = pneg %p288
        $region110: #{tpu_custom_call.1} parent=63 // pred_check_branch
          %2880 = sbr.rel (%p2878) target = $region112
        $region111: #{tpu_custom_call.1} parent=63 // pred_region
          %2882 = vsyncadd [#allocation10], 0
          %s2883 = sshll.u32 [#allocation23], 4
          %s2884 = int_to_ptr.vmem [resolvable:$true] %s2883
          %s2885 = sshll.u32 %s11, 4
          %s2886 = int_to_ptr.hbm [resolvable:$true] %s2885
          %2891 = dma.vmem_to_hbm [thread:$0]  %s2884, 256, %s2886, [#allocation10], 128, 128, 8
        $region112: #{tpu_custom_call.1} parent=63 // pred_fallthru
          _
        // Predicated region
        $region113: #{tpu_custom_call.1} parent=63 // pred_check
          %p2892 = pneg %p288
        $region114: #{tpu_custom_call.1} parent=63 // pred_check_branch
          %2894 = sbr.rel (%p2892) target = $region116
        $region115: #{tpu_custom_call.1} parent=63 // pred_region
          %2896 = dma.done [#allocation10], 256
        $region116: #{tpu_custom_call.1} parent=63 // pred_fallthru
          _
      $region64: #{tpu_custom_call.1} parent=5 // pred_fallthru
        _
      %p2897 = scmp.le.s32.totalorder 2, %s27
      // Predicated region
      $region117: #{tpu_custom_call.1} parent=5 // pred_check
        %p2898 = pneg %p2897
      $region118: #{tpu_custom_call.1} parent=5 // pred_check_branch
        %2900 = sbr.rel (%p2898) target = $region120
      $region119: #{tpu_custom_call.1} parent=5 // pred_region
        %s2901 = ssub.s32 %s27, 2
      $region120: #{tpu_custom_call.1} parent=5 // pred_fallthru
        _
    $region6: #{tpu_custom_call.1} parent=1 // loop_footer
      %s31 = sadd.s32 1, %s27
    $region7: #{tpu_custom_call.1} parent=1 // loop_footer_branch
      %26 = sbr.rel target = $region3
    $region8: #{tpu_custom_call.1} parent=1 // loop_exit
      _
    %2902 = vsyncpa [#allocation9], 1
    %s2903 = scalar_lea.sflag [#allocation9], 1
    %2904 = vsyncpa %s2903, 1
    %2905 = vsyncpa [#allocation12], 1
    %s2906 = scalar_lea.sflag [#allocation12], 1
    %2907 = vsyncpa %s2906, 1
    %2908 = vsyncpa [#allocation15], 1
    %2909 = vsyncpa [#allocation18], 1
    %2910 = vsyncpa [#allocation21], 1
    %2911 = vsyncpa [#allocation10], 1
    %s2912 = scalar_lea.sflag [#allocation10], 1
    %2913 = vsyncpa %s2912, 1

// kernel: tpu_custom_call.1
$region0: #{tpu_custom_call.1}
  #allocation0 [shape = 'u32[]', space=smem, size = 0x4, offset = 0x4, fixed_abs, tag = 'smem constant byte address 0x4 - core index']
  #allocation1 [shape = 'u32[72,128]{1,0:T(1,128)}', space=vmem, size = 0x9000, scoped, tag = 'internal scratch']
  #allocation2 [shape = 'bf16[4,16,512]{2,1,0:T(8,128)(2,1)}', space=vmem, size = 0x10000, scoped, tag = 'scratch operand']
  #allocation3 [shape = 'bf16[4,16,512]{2,1,0:T(8,128)(2,1)}', space=vmem, size = 0x10000, scoped, tag = 'scratch operand']
  #allocation4 [shape = 'f32[16,128]{1,0:T(8,128)}', space=vmem, size = 0x2000, scoped, tag = 'scratch operand']
  #allocation5 [shape = 'f32[16,128]{1,0:T(8,128)}', space=vmem, size = 0x2000, scoped, tag = 'scratch operand']
  #allocation6 [shape = 'f32[16,128]{1,0:T(8,128)}', space=vmem, size = 0x2000, scoped, tag = 'scratch operand']
  #allocation7 [shape = 'f32[16,128]{1,0:T(8,128)}', space=vmem, size = 0x2000, scoped, tag = 'scratch operand']
  %s0 = inlined_call_operand.hbm [shape: bf16[3,64,128], index: 0, kind: input, shape index: {}]
  %s1 = inlined_call_operand.hbm [shape: bf16[3,64,128], index: 1, kind: input, shape index: {}]
  %s2 = inlined_call_operand.hbm [shape: bf16[128,512], index: 2, kind: input, shape index: {}]
  %s3 = inlined_call_operand.hbm [shape: bf16[128,512], index: 3, kind: input, shape index: {}]
  %s4 = inlined_call_operand.hbm [shape: f32[1,512], index: 4, kind: input, shape index: {}]
  %s5 = inlined_call_operand.hbm [shape: bf16[128,512], index: 5, kind: input, shape index: {}]
  %s6 = inlined_call_operand.hbm [shape: bf16[128,512], index: 6, kind: input, shape index: {}]
  %s7 = inlined_call_operand.vmem [shape: f32[1,512], index: 7, kind: input, shape index: {}]
  %s8 = inlined_call_operand.hbm [shape: f32[128,128], index: 8, kind: input, shape index: {}]
  %s9 = inlined_call_operand.hbm [shape: f32[128,128], index: 9, kind: input, shape index: {}]
  %s10 = inlined_call_operand.vmem [shape: f32[1,128], index: 10, kind: input, shape index: {}]
  %s11 = inlined_call_operand.hbm [shape: f32[16,128], index: 11, kind: output, shape index: {}]
  %s12 = sld [smem:[#allocation0]]
  $region121: #{tpu_custom_call.1} parent=0
    _
  %s14 = ssub.s32 1, %s12
  %s15 = scalar_select 0, %s14, %s12
  $region1: #{tpu_custom_call.1} parent=0
    #allocation8 [shape = 'u8[32768]{0}', space=vmem, size = 0x8000, scoped, tag = 'input window, operand 0']
    #allocation9 [shape = 's32[2]{0}', space=sflag, size = 0x8, scoped, tag = 'scoped memory for tpu_custom_call.1']
    #allocation10 [shape = 's32[2]{0}', space=sflag, size = 0x8, scoped, tag = 'scoped memory for tpu_custom_call.1']
    #allocation11 [shape = 'u8[32768]{0}', space=vmem, size = 0x8000, scoped, tag = 'input window, operand 1']
    #allocation12 [shape = 's32[2]{0}', space=sflag, size = 0x8, scoped, tag = 'scoped memory for tpu_custom_call.1']
    #allocation13 [shape = 'u8[131072]{0}', space=vmem, size = 0x20000, scoped, tag = 'input window, operand 2, single buffered']
    #allocation14 [shape = 'u8[131072]{0}', space=vmem, size = 0x20000, scoped, tag = 'input window, operand 3, single buffered']
    #allocation15 [shape = 's32[1]{0}', space=sflag, size = 0x4, scoped, tag = 'scoped memory for tpu_custom_call.1']
    #allocation16 [shape = 'u8[2048]{0}', space=vmem, size = 0x800, scoped, tag = 'input window, operand 4, single buffered']
    #allocation17 [shape = 'u8[131072]{0}', space=vmem, size = 0x20000, scoped, tag = 'input window, operand 5, single buffered']
    #allocation18 [shape = 's32[1]{0}', space=sflag, size = 0x4, scoped, tag = 'scoped memory for tpu_custom_call.1']
    #allocation19 [shape = 'u8[131072]{0}', space=vmem, size = 0x20000, scoped, tag = 'input window, operand 6, single buffered']
    #allocation20 [shape = 'u8[65536]{0}', space=vmem, size = 0x10000, scoped, tag = 'input window, operand 8, single buffered']
    #allocation21 [shape = 's32[1]{0}', space=sflag, size = 0x4, scoped, tag = 'scoped memory for tpu_custom_call.1']
    #allocation22 [shape = 'u8[65536]{0}', space=vmem, size = 0x10000, scoped, tag = 'input window, operand 9, single buffered']
    #allocation23 [shape = 'u8[8192]{0}', space=vmem, size = 0x2000, scoped, tag = 'output window, operand 0, single buffered']
    %16 = vsyncpa [#allocation9], 0
    %s17 = scalar_lea.sflag [#allocation9], 1
    %18 = vsyncpa %s17, 0
    %19 = vsyncpa [#allocation12], 0
    %s20 = scalar_lea.sflag [#allocation12], 1
    %21 = vsyncpa %s20, 0
    %22 = vsyncpa [#allocation15], 0
    %23 = vsyncpa [#allocation18], 0
    %24 = vsyncpa [#allocation21], 0
    %25 = vsyncpa [#allocation10], 0
    loop: start=0, step=1, limit=5
    $region2: #{tpu_custom_call.1} parent=1 // loop_pre_header
      _
    $region3: #{tpu_custom_call.1} parent=1 // loop_header
      %s27 = sphi 0, %s31
      %p28 = scmp.ge.s32.totalorder %s27, 5
      %s37 = sphi 0, %s39
      %s40 = sphi 0, %s37
      %s41 = sphi 0, %s40
      %s57 = sphi 0, %s41
      %s65 = sphi 0, %s67
      %s68 = sphi 0, %s65
      %s69 = sphi 0, %s68
      %s85 = sphi 0, %s69
      %s89 = sphi 0, %s89
      %s91 = sphi 0, %s89
      %s92 = sphi 0, %s91
      %s106 = sphi 0, %s92
      %s110 = sphi 0, %s110
      %s112 = sphi 0, %s110
      %s113 = sphi 0, %s112
      %s127 = sphi 0, %s113
      %s131 = sphi 0, %s131
      %s133 = sphi 0, %s131
      %s134 = sphi 0, %s133
      %s148 = sphi 0, %s134
      %s152 = sphi 0, %s152
      %s154 = sphi 0, %s152
      %s155 = sphi 0, %s154
      %s169 = sphi 0, %s155
      %s173 = sphi 0, %s173
      %s175 = sphi 0, %s173
      %s176 = sphi 0, %s175
      %s190 = sphi 0, %s176
      %s194 = sphi 0, %s194
      %s196 = sphi 0, %s194
      %s197 = sphi 0, %s196
      %s211 = sphi 0, %s197
      %s215 = sphi 0, %s215
      %s217 = sphi 0, %s215
      %s218 = sphi 0, %s217
      %s232 = sphi 0, %s218
      %s236 = sphi 0, %s236
      %s238 = sphi 0, %s236
      %s239 = sphi 0, %s238
      %s253 = sphi 0, %s239
      %s257 = sphi 0, %s257
      %s259 = sphi 0, %s257
      %s260 = sphi 0, %s259
      %s274 = sphi 0, %s260
      %s278 = sphi 0, %s278
      %s280 = sphi 0, %s278
      %s281 = sphi 0, %s280
      %s295 = sphi 0, %s281
    $region4: #{tpu_custom_call.1} parent=1 // loop_header_branch
      %30 = sbr.rel (%p28) target = $region8
    $region5: #{tpu_custom_call.1} parent=1 // loop_body
      %s32 = ssub.s32 %s27, 1
      %s33 = ssub.s32 %s27, 2
      %s34 = sadd.s32 %s27, 1
      %s35 = ssub.s32 %s27, %s34
      %p36 = scmp.eq.s32.totalorder %s35, 0
      %s38 = sadd.s32 %s37, 1
      %s39 = scalar_select %p36, %s37, %s38
      %p42 = pneg %p36
      %p43 = scmp.eq.s32.totalorder %s27, 2
      %p44 = por %p42, %p43
      %p45 = scmp.ne.s32.totalorder %s37, %s40
      %p46 = scmp.eq.s32.totalorder %s27, 0
      %p47 = por %p45, %p46
      %p48 = scmp.ne.s32.totalorder %s37, %s40
      %p49 = scmp.eq.s32.totalorder %s32, 2
      %p50 = por %p48, %p49
      %p51 = scmp.ne.s32.totalorder %s40, %s41
      %p52 = scmp.eq.s32.totalorder %s32, 0
      %p53 = por %p51, %p52
      %p54 = scmp.ne.s32.totalorder %s40, %s41
      %p55 = scmp.eq.s32.totalorder %s33, 2
      %p56 = por %p54, %p55
      %p58 = scmp.ne.s32.totalorder %s41, %s57
      %p59 = scmp.eq.s32.totalorder %s33, 0
      %p60 = por %p58, %p59
      %s61 = ssub.s32 2, %s27
      %s62 = ssub.s32 2, %s34
      %s63 = ssub.s32 %s61, %s62
      %p64 = scmp.eq.s32.totalorder %s63, 0
      %s66 = sadd.s32 %s65, 1
      %s67 = scalar_select %p64, %s65, %s66
      %p70 = pneg %p64
      %p71 = scmp.eq.s32.totalorder %s27, 2
      %p72 = por %p70, %p71
      %p73 = scmp.ne.s32.totalorder %s65, %s68
      %p74 = scmp.eq.s32.totalorder %s27, 0
      %p75 = por %p73, %p74
      %p76 = scmp.ne.s32.totalorder %s65, %s68
      %p77 = scmp.eq.s32.totalorder %s32, 2
      %p78 = por %p76, %p77
      %p79 = scmp.ne.s32.totalorder %s68, %s69
      %p80 = scmp.eq.s32.totalorder %s32, 0
      %p81 = por %p79, %p80
      %p82 = scmp.ne.s32.totalorder %s68, %s69
      %p83 = scmp.eq.s32.totalorder %s33, 2
      %p84 = por %p82, %p83
      %p86 = scmp.ne.s32.totalorder %s69, %s85
      %p87 = scmp.eq.s32.totalorder %s33, 0
      %p88 = por %p86, %p87
      %s90 = sadd.s32 %s89, 1
      %p93 = scmp.eq.s32.totalorder %s27, 2
      %p94 = scmp.ne.s32.totalorder %s89, %s91
      %p95 = scmp.eq.s32.totalorder %s27, 0
      %p96 = por %p94, %p95
      %p97 = scmp.ne.s32.totalorder %s89, %s91
      %p98 = scmp.eq.s32.totalorder %s32, 2
      %p99 = por %p97, %p98
      %p100 = scmp.ne.s32.totalorder %s91, %s92
      %p101 = scmp.eq.s32.totalorder %s32, 0
      %p102 = por %p100, %p101
      %p103 = scmp.ne.s32.totalorder %s91, %s92
      %p104 = scmp.eq.s32.totalorder %s33, 2
      %p105 = por %p103, %p104
      %p107 = scmp.ne.s32.totalorder %s92, %s106
      %p108 = scmp.eq.s32.totalorder %s33, 0
      %p109 = por %p107, %p108
      %s111 = sadd.s32 %s110, 1
      %p114 = scmp.eq.s32.totalorder %s27, 2
      %p115 = scmp.ne.s32.totalorder %s110, %s112
      %p116 = scmp.eq.s32.totalorder %s27, 0
      %p117 = por %p115, %p116
      %p118 = scmp.ne.s32.totalorder %s110, %s112
      %p119 = scmp.eq.s32.totalorder %s32, 2
      %p120 = por %p118, %p119
      %p121 = scmp.ne.s32.totalorder %s112, %s113
      %p122 = scmp.eq.s32.totalorder %s32, 0
      %p123 = por %p121, %p122
      %p124 = scmp.ne.s32.totalorder %s112, %s113
      %p125 = scmp.eq.s32.totalorder %s33, 2
      %p126 = por %p124, %p125
      %p128 = scmp.ne.s32.totalorder %s113, %s127
      %p129 = scmp.eq.s32.totalorder %s33, 0
      %p130 = por %p128, %p129
      %s132 = sadd.s32 %s131, 1
      %p135 = scmp.eq.s32.totalorder %s27, 2
      %p136 = scmp.ne.s32.totalorder %s131, %s133
      %p137 = scmp.eq.s32.totalorder %s27, 0
      %p138 = por %p136, %p137
      %p139 = scmp.ne.s32.totalorder %s131, %s133
      %p140 = scmp.eq.s32.totalorder %s32, 2
      %p141 = por %p139, %p140
      %p142 = scmp.ne.s32.totalorder %s133, %s134
      %p143 = scmp.eq.s32.totalorder %s32, 0
      %p144 = por %p142, %p143
      %p145 = scmp.ne.s32.totalorder %s133, %s134
      %p146 = scmp.eq.s32.totalorder %s33, 2
      %p147 = por %p145, %p146
      %p149 = scmp.ne.s32.totalorder %s134, %s148
      %p150 = scmp.eq.s32.totalorder %s33, 0
      %p151 = por %p149, %p150
      %s153 = sadd.s32 %s152, 1
      %p156 = scmp.eq.s32.totalorder %s27, 2
      %p157 = scmp.ne.s32.totalorder %s152, %s154
      %p158 = scmp.eq.s32.totalorder %s27, 0
      %p159 = por %p157, %p158
      %p160 = scmp.ne.s32.totalorder %s152, %s154
      %p161 = scmp.eq.s32.totalorder %s32, 2
      %p162 = por %p160, %p161
      %p163 = scmp.ne.s32.totalorder %s154, %s155
      %p164 = scmp.eq.s32.totalorder %s32, 0
      %p165 = por %p163, %p164
      %p166 = scmp.ne.s32.totalorder %s154, %s155
      %p167 = scmp.eq.s32.totalorder %s33, 2
      %p168 = por %p166, %p167
      %p170 = scmp.ne.s32.totalorder %s155, %s169
      %p171 = scmp.eq.s32.totalorder %s33, 0
      %p172 = por %p170, %p171
      %s174 = sadd.s32 %s173, 1
      %p177 = scmp.eq.s32.totalorder %s27, 2
      %p178 = scmp.ne.s32.totalorder %s173, %s175
      %p179 = scmp.eq.s32.totalorder %s27, 0
      %p180 = por %p178, %p179
      %p181 = scmp.ne.s32.totalorder %s173, %s175
      %p182 = scmp.eq.s32.totalorder %s32, 2
      %p183 = por %p181, %p182
      %p184 = scmp.ne.s32.totalorder %s175, %s176
      %p185 = scmp.eq.s32.totalorder %s32, 0
      %p186 = por %p184, %p185
      %p187 = scmp.ne.s32.totalorder %s175, %s176
      %p188 = scmp.eq.s32.totalorder %s33, 2
      %p189 = por %p187, %p188
      %p191 = scmp.ne.s32.totalorder %s176, %s190
      %p192 = scmp.eq.s32.totalorder %s33, 0
      %p193 = por %p191, %p192
      %s195 = sadd.s32 %s194, 1
      %p198 = scmp.eq.s32.totalorder %s27, 2
      %p199 = scmp.ne.s32.totalorder %s194, %s196
      %p200 = scmp.eq.s32.totalorder %s27, 0
      %p201 = por %p199, %p200
      %p202 = scmp.ne.s32.totalorder %s194, %s196
      %p203 = scmp.eq.s32.totalorder %s32, 2
      %p204 = por %p202, %p203
      %p205 = scmp.ne.s32.totalorder %s196, %s197
      %p206 = scmp.eq.s32.totalorder %s32, 0
      %p207 = por %p205, %p206
      %p208 = scmp.ne.s32.totalorder %s196, %s197
      %p209 = scmp.eq.s32.totalorder %s33, 2
      %p210 = por %p208, %p209
      %p212 = scmp.ne.s32.totalorder %s197, %s211
      %p213 = scmp.eq.s32.totalorder %s33, 0
      %p214 = por %p212, %p213
      %s216 = sadd.s32 %s215, 1
      %p219 = scmp.eq.s32.totalorder %s27, 2
      %p220 = scmp.ne.s32.totalorder %s215, %s217
      %p221 = scmp.eq.s32.totalorder %s27, 0
      %p222 = por %p220, %p221
      %p223 = scmp.ne.s32.totalorder %s215, %s217
      %p224 = scmp.eq.s32.totalorder %s32, 2
      %p225 = por %p223, %p224
      %p226 = scmp.ne.s32.totalorder %s217, %s218
      %p227 = scmp.eq.s32.totalorder %s32, 0
      %p228 = por %p226, %p227
      %p229 = scmp.ne.s32.totalorder %s217, %s218
      %p230 = scmp.eq.s32.totalorder %s33, 2
      %p231 = por %p229, %p230
      %p233 = scmp.ne.s32.totalorder %s218, %s232
      %p234 = scmp.eq.s32.totalorder %s33, 0
      %p235 = por %p233, %p234
      %s237 = sadd.s32 %s236, 1
      %p240 = scmp.eq.s32.totalorder %s27, 2
      %p241 = scmp.ne.s32.totalorder %s236, %s238
      %p242 = scmp.eq.s32.totalorder %s27, 0
      %p243 = por %p241, %p242
      %p244 = scmp.ne.s32.totalorder %s236, %s238
      %p245 = scmp.eq.s32.totalorder %s32, 2
      %p246 = por %p244, %p245
      %p247 = scmp.ne.s32.totalorder %s238, %s239
      %p248 = scmp.eq.s32.totalorder %s32, 0
      %p249 = por %p247, %p248
      %p250 = scmp.ne.s32.totalorder %s238, %s239
      %p251 = scmp.eq.s32.totalorder %s33, 2
      %p252 = por %p250, %p251
      %p254 = scmp.ne.s32.totalorder %s239, %s253
      %p255 = scmp.eq.s32.totalorder %s33, 0
      %p256 = por %p254, %p255
      %s258 = sadd.s32 %s257, 1
      %p261 = scmp.eq.s32.totalorder %s27, 2
      %p262 = scmp.ne.s32.totalorder %s257, %s259
      %p263 = scmp.eq.s32.totalorder %s27, 0
      %p264 = por %p262, %p263
      %p265 = scmp.ne.s32.totalorder %s257, %s259
      %p266 = scmp.eq.s32.totalorder %s32, 2
      %p267 = por %p265, %p266
      %p268 = scmp.ne.s32.totalorder %s259, %s260
      %p269 = scmp.eq.s32.totalorder %s32, 0
      %p270 = por %p268, %p269
      %p271 = scmp.ne.s32.totalorder %s259, %s260
      %p272 = scmp.eq.s32.totalorder %s33, 2
      %p273 = por %p271, %p272
      %p275 = scmp.ne.s32.totalorder %s260, %s274
      %p276 = scmp.eq.s32.totalorder %s33, 0
      %p277 = por %p275, %p276
      %s279 = sadd.s32 %s278, 1
      %p282 = scmp.eq.s32.totalorder %s27, 2
      %p283 = scmp.ne.s32.totalorder %s278, %s280
      %p284 = scmp.eq.s32.totalorder %s27, 0
      %p285 = por %p283, %p284
      %p286 = scmp.ne.s32.totalorder %s278, %s280
      %p287 = scmp.eq.s32.totalorder %s32, 2
      %p288 = por %p286, %p287
      %p289 = scmp.ne.s32.totalorder %s280, %s281
      %p290 = scmp.eq.s32.totalorder %s32, 0
      %p291 = por %p289, %p290
      %p292 = scmp.ne.s32.totalorder %s280, %s281
      %p293 = scmp.eq.s32.totalorder %s33, 2
      %p294 = por %p292, %p293
      %p296 = scmp.ne.s32.totalorder %s281, %s295
      %p297 = scmp.eq.s32.totalorder %s33, 0
      %p298 = por %p296, %p297
      %p299 = scmp.le.s32.totalorder 1, %s27
      %p300 = scmp.lt.s32.totalorder %s27, 4
      %p301 = pnand %p299, %p300
      %p302 = pneg %p301
      // Predicated region
      $region9: #{tpu_custom_call.1} parent=5 // pred_check
        _
      $region10: #{tpu_custom_call.1} parent=5 // pred_check_branch
        %304 = sbr.rel (%p301) target = $region12
      $region11: #{tpu_custom_call.1} parent=5 // pred_region
        %s305 = ssub.s32 %s27, 1
        // Predicated region
        $region13: #{tpu_custom_call.1} parent=11 // pred_check
          %p306 = pneg %p102
        $region14: #{tpu_custom_call.1} parent=11 // pred_check_branch
          %308 = sbr.rel (%p306) target = $region16
        $region15: #{tpu_custom_call.1} parent=11 // pred_region
          %310 = vsyncadd [#allocation12], 0
          %s311 = sshll.u32 %s2, 4
          %s312 = int_to_ptr.hbm [resolvable:$true] %s311
          %s313 = sshll.u32 [#allocation13], 4
          %s314 = int_to_ptr.vmem [resolvable:$true] %s313
          %319 = dma.hbm_to_vmem [thread:$0]  %s312, 4096, %s314, [#allocation12], 256, 256, 16
        $region16: #{tpu_custom_call.1} parent=11 // pred_fallthru
          _
        // Predicated region
        $region17: #{tpu_custom_call.1} parent=11 // pred_check
          %p320 = pneg %p123
        $region18: #{tpu_custom_call.1} parent=11 // pred_check_branch
          %322 = sbr.rel (%p320) target = $region20
        $region19: #{tpu_custom_call.1} parent=11 // pred_region
          %324 = vsyncadd [#allocation15], 0
          %s325 = sshll.u32 %s3, 4
          %s326 = int_to_ptr.hbm [resolvable:$true] %s325
          %s327 = sshll.u32 [#allocation14], 4
          %s328 = int_to_ptr.vmem [resolvable:$true] %s327
          %333 = dma.hbm_to_vmem [thread:$0]  %s326, 4096, %s328, [#allocation15], 256, 256, 16
        $region20: #{tpu_custom_call.1} parent=11 // pred_fallthru
          _
        // Predicated region
        $region21: #{tpu_custom_call.1} parent=11 // pred_check
          %p334 = pneg %p144
        $region22: #{tpu_custom_call.1} parent=11 // pred_check_branch
          %336 = sbr.rel (%p334) target = $region24
        $region23: #{tpu_custom_call.1} parent=11 // pred_region
          %338 = vsyncadd [#allocation15], 0
          %s340 = sshll.u32 %s4, 4
          %s341 = int_to_ptr.hbm [resolvable:$true] %s340
          %s342 = sshll.u32 [#allocation16], 4
          %s343 = int_to_ptr.vmem [resolvable:$true] %s342
          %345 = dma.hbm_to_vmem [thread:$0]  %s341, 64, %s343, [#allocation15]
        $region24: #{tpu_custom_call.1} parent=11 // pred_fallthru
          _
        // Predicated region
        $region25: #{tpu_custom_call.1} parent=11 // pred_check
          %p346 = pneg %p165
        $region26: #{tpu_custom_call.1} parent=11 // pred_check_branch
          %348 = sbr.rel (%p346) target = $region28
        $region27: #{tpu_custom_call.1} parent=11 // pred_region
          %350 = vsyncadd [#allocation18], 0
          %s351 = sshll.u32 %s5, 4
          %s352 = int_to_ptr.hbm [resolvable:$true] %s351
          %s353 = sshll.u32 [#allocation17], 4
          %s354 = int_to_ptr.vmem [resolvable:$true] %s353
          %359 = dma.hbm_to_vmem [thread:$0]  %s352, 4096, %s354, [#allocation18], 256, 256, 16
        $region28: #{tpu_custom_call.1} parent=11 // pred_fallthru
          _
        // Predicated region
        $region29: #{tpu_custom_call.1} parent=11 // pred_check
          %p360 = pneg %p186
        $region30: #{tpu_custom_call.1} parent=11 // pred_check_branch
          %362 = sbr.rel (%p360) target = $region32
        $region31: #{tpu_custom_call.1} parent=11 // pred_region
          %364 = vsyncadd [#allocation18], 0
          %s365 = sshll.u32 %s6, 4
          %s366 = int_to_ptr.hbm [resolvable:$true] %s365
          %s367 = sshll.u32 [#allocation19], 4
          %s368 = int_to_ptr.vmem [resolvable:$true] %s367
          %373 = dma.hbm_to_vmem [thread:$0]  %s366, 4096, %s368, [#allocation18], 256, 256, 16
        $region32: #{tpu_custom_call.1} parent=11 // pred_fallthru
          _
        // Predicated region
        $region33: #{tpu_custom_call.1} parent=11 // pred_check
          %p374 = pneg %p207
        $region34: #{tpu_custom_call.1} parent=11 // pred_check_branch
          %376 = sbr.rel (%p374) target = $region36
        $region35: #{tpu_custom_call.1} parent=11 // pred_region
          _
        $region36: #{tpu_custom_call.1} parent=11 // pred_fallthru
          _
        // Predicated region
        $region37: #{tpu_custom_call.1} parent=11 // pred_check
          %p377 = pneg %p228
        $region38: #{tpu_custom_call.1} parent=11 // pred_check_branch
          %379 = sbr.rel (%p377) target = $region40
        $region39: #{tpu_custom_call.1} parent=11 // pred_region
          %381 = vsyncadd [#allocation21], 0
          %s382 = sshll.u32 %s8, 4
          %s383 = int_to_ptr.hbm [resolvable:$true] %s382
          %s384 = sshll.u32 [#allocation20], 4
          %s385 = int_to_ptr.vmem [resolvable:$true] %s384
          %390 = dma.hbm_to_vmem [thread:$0]  %s383, 2048, %s385, [#allocation21], 128, 128, 8
        $region40: #{tpu_custom_call.1} parent=11 // pred_fallthru
          _
        // Predicated region
        $region41: #{tpu_custom_call.1} parent=11 // pred_check
          %p391 = pneg %p249
        $region42: #{tpu_custom_call.1} parent=11 // pred_check_branch
          %393 = sbr.rel (%p391) target = $region44
        $region43: #{tpu_custom_call.1} parent=11 // pred_region
          %395 = vsyncadd [#allocation21], 0
          %s396 = sshll.u32 %s9, 4
          %s397 = int_to_ptr.hbm [resolvable:$true] %s396
          %s398 = sshll.u32 [#allocation22], 4
          %s399 = int_to_ptr.vmem [resolvable:$true] %s398
          %404 = dma.hbm_to_vmem [thread:$0]  %s397, 2048, %s399, [#allocation21], 128, 128, 8
        $region44: #{tpu_custom_call.1} parent=11 // pred_fallthru
          _
        // Predicated region
        $region45: #{tpu_custom_call.1} parent=11 // pred_check
          %p405 = pneg %p270
        $region46: #{tpu_custom_call.1} parent=11 // pred_check_branch
          %407 = sbr.rel (%p405) target = $region48
        $region47: #{tpu_custom_call.1} parent=11 // pred_region
          _
        $region48: #{tpu_custom_call.1} parent=11 // pred_fallthru
          _
      $region12: #{tpu_custom_call.1} parent=5 // pred_fallthru
        _
      %p408 = scmp.lt.s32.totalorder %s27, 3
      // Predicated region
      $region49: #{tpu_custom_call.1} parent=5 // pred_check
        %p409 = pneg %p408
      $region50: #{tpu_custom_call.1} parent=5 // pred_check_branch
        %411 = sbr.rel (%p409) target = $region52
      $region51: #{tpu_custom_call.1} parent=5 // pred_region
        // Predicated region
        $region53: #{tpu_custom_call.1} parent=51 // pred_check
          %p412 = pneg %p47
        $region54: #{tpu_custom_call.1} parent=51 // pred_check_branch
          %414 = sbr.rel (%p412) target = $region56
        $region55: #{tpu_custom_call.1} parent=51 // pred_region
          %s415 = sand.u32 %s37, 1
          %s416 = scalar_lea.sflag [#allocation9], %s415
          %s417 = sand.u32 %s37, 1
          %s418 = smul.addr %s417, 32
          %s419 = scalar_lea.vmem [#allocation8], %s418
          %421 = vsyncadd %s416, 0
          %s422 = smul.addr %s27, 8
          %s423 = smul.addr %s422, 4
          %s424 = scalar_lea.hbm %s0, %s423
          %s425 = sshll.u32 %s424, 4
          %s426 = int_to_ptr.hbm [resolvable:$true] %s425
          %s427 = sshll.u32 %s419, 4
          %s428 = int_to_ptr.vmem [resolvable:$true] %s427
          %433 = dma.hbm_to_vmem [thread:$0]  %s426, 512, %s428, %s416, 64, 64, 4
        $region56: #{tpu_custom_call.1} parent=51 // pred_fallthru
          _
        // Predicated region
        $region57: #{tpu_custom_call.1} parent=51 // pred_check
          %p434 = pneg %p75
        $region58: #{tpu_custom_call.1} parent=51 // pred_check_branch
          %436 = sbr.rel (%p434) target = $region60
        $region59: #{tpu_custom_call.1} parent=51 // pred_region
          %s437 = sand.u32 %s27, 1
          %s438 = scalar_lea.sflag [#allocation12], %s437
          %s439 = sand.u32 %s65, 1
          %s440 = smul.addr %s439, 32
          %s441 = scalar_lea.vmem [#allocation11], %s440
          %s442 = ssub.s32 2, %s27
          %444 = vsyncadd %s438, 0
          %s445 = smul.addr %s442, 8
          %s446 = smul.addr %s445, 4
          %s447 = scalar_lea.hbm %s1, %s446
          %s448 = sshll.u32 %s447, 4
          %s449 = int_to_ptr.hbm [resolvable:$true] %s448
          %s450 = sshll.u32 %s441, 4
          %s451 = int_to_ptr.vmem [resolvable:$true] %s450
          %456 = dma.hbm_to_vmem [thread:$0]  %s449, 512, %s451, %s438, 64, 64, 4
        $region60: #{tpu_custom_call.1} parent=51 // pred_fallthru
          _
      $region52: #{tpu_custom_call.1} parent=5 // pred_fallthru
        _
      %p457 = scmp.le.s32.totalorder 1, %s27
      %p458 = scmp.lt.s32.totalorder %s27, 4
      %p459 = pnand %p457, %p458
      %p460 = pneg %p459
      // Predicated region
      $region61: #{tpu_custom_call.1} parent=5 // pred_check
        _
      $region62: #{tpu_custom_call.1} parent=5 // pred_check_branch
        %462 = sbr.rel (%p459) target = $region64
      $region63: #{tpu_custom_call.1} parent=5 // pred_region
        %s463 = ssub.s32 %s27, 1
        %s464 = sand.u32 %s40, 1
        %s465 = scalar_lea.sflag [#allocation9], %s464
        %s466 = sand.u32 %s40, 1
        %s467 = smul.addr %s466, 32
        %s468 = scalar_lea.vmem [#allocation8], %s467
        // Predicated region
        $region65: #{tpu_custom_call.1} parent=63 // pred_check
          %p469 = pneg %p53
        $region66: #{tpu_custom_call.1} parent=63 // pred_check_branch
          %471 = sbr.rel (%p469) target = $region68
        $region67: #{tpu_custom_call.1} parent=63 // pred_region
          %473 = dma.done %s465, 512
        $region68: #{tpu_custom_call.1} parent=63 // pred_fallthru
          _
        %s474 = sand.u32 %s32, 1
        %s475 = scalar_lea.sflag [#allocation12], %s474
        %s476 = sand.u32 %s68, 1
        %s477 = smul.addr %s476, 32
        %s478 = scalar_lea.vmem [#allocation11], %s477
        // Predicated region
        $region69: #{tpu_custom_call.1} parent=63 // pred_check
          %p479 = pneg %p81
        $region70: #{tpu_custom_call.1} parent=63 // pred_check_branch
          %481 = sbr.rel (%p479) target = $region72
        $region71: #{tpu_custom_call.1} parent=63 // pred_region
          %483 = dma.done %s475, 512
        $region72: #{tpu_custom_call.1} parent=63 // pred_fallthru
          _
        // Predicated region
        $region73: #{tpu_custom_call.1} parent=63 // pred_check
          %p484 = pneg %p102
        $region74: #{tpu_custom_call.1} parent=63 // pred_check_branch
          %486 = sbr.rel (%p484) target = $region76
        $region75: #{tpu_custom_call.1} parent=63 // pred_region
          %488 = dma.done [#allocation12], 4096
        $region76: #{tpu_custom_call.1} parent=63 // pred_fallthru
          _
        // Predicated region
        $region77: #{tpu_custom_call.1} parent=63 // pred_check
          %p489 = pneg %p123
        $region78: #{tpu_custom_call.1} parent=63 // pred_check_branch
          %491 = sbr.rel (%p489) target = $region80
        $region79: #{tpu_custom_call.1} parent=63 // pred_region
          %493 = dma.done [#allocation15], 4096
        $region80: #{tpu_custom_call.1} parent=63 // pred_fallthru
          _
        // Predicated region
        $region81: #{tpu_custom_call.1} parent=63 // pred_check
          %p494 = pneg %p144
        $region82: #{tpu_custom_call.1} parent=63 // pred_check_branch
          %496 = sbr.rel (%p494) target = $region84
        $region83: #{tpu_custom_call.1} parent=63 // pred_region
          %498 = dma.done [#allocation15], 64
        $region84: #{tpu_custom_call.1} parent=63 // pred_fallthru
          _
        // Predicated region
        $region85: #{tpu_custom_call.1} parent=63 // pred_check
          %p499 = pneg %p165
        $region86: #{tpu_custom_call.1} parent=63 // pred_check_branch
          %501 = sbr.rel (%p499) target = $region88
        $region87: #{tpu_custom_call.1} parent=63 // pred_region
          %503 = dma.done [#allocation18], 4096
        $region88: #{tpu_custom_call.1} parent=63 // pred_fallthru
          _
        // Predicated region
        $region89: #{tpu_custom_call.1} parent=63 // pred_check
          %p504 = pneg %p186
        $region90: #{tpu_custom_call.1} parent=63 // pred_check_branch
          %506 = sbr.rel (%p504) target = $region92
        $region91: #{tpu_custom_call.1} parent=63 // pred_region
          %508 = dma.done [#allocation18], 4096
        $region92: #{tpu_custom_call.1} parent=63 // pred_fallthru
          _
        // Predicated region
        $region93: #{tpu_custom_call.1} parent=63 // pred_check
          %p509 = pneg %p228
        $region94: #{tpu_custom_call.1} parent=63 // pred_check_branch
          %511 = sbr.rel (%p509) target = $region96
        $region95: #{tpu_custom_call.1} parent=63 // pred_region
          %513 = dma.done [#allocation21], 2048
        $region96: #{tpu_custom_call.1} parent=63 // pred_fallthru
          _
        // Predicated region
        $region97: #{tpu_custom_call.1} parent=63 // pred_check
          %p514 = pneg %p249
        $region98: #{tpu_custom_call.1} parent=63 // pred_check_branch
          %516 = sbr.rel (%p514) target = $region100
        $region99: #{tpu_custom_call.1} parent=63 // pred_region
          %518 = dma.done [#allocation21], 2048
        $region100: #{tpu_custom_call.1} parent=63 // pred_fallthru
          _
        %s519 = sand.u32 %s40, 1
        %s520 = scalar_lea.sflag [#allocation9], %s519
        %s521 = sand.u32 %s40, 1
        %s522 = smul.addr %s521, 32
        %s523 = scalar_lea.vmem [#allocation8], %s522
        %p524 = pneg %p53
        %p525 = pneg %p50
        %s526 = sand.u32 %s32, 1
        %s527 = scalar_lea.sflag [#allocation12], %s526
        %s528 = sand.u32 %s68, 1
        %s529 = smul.addr %s528, 32
        %s530 = scalar_lea.vmem [#allocation11], %s529
        %p531 = pneg %p81
        %p532 = pneg %p78
        %p533 = pneg %p102
        %p534 = pneg %p99
        %p535 = pneg %p123
        %p536 = pneg %p120
        %p537 = pneg %p144
        %p538 = pneg %p141
        %p539 = pneg %p165
        %p540 = pneg %p162
        %p541 = pneg %p186
        %p542 = pneg %p183
        %p543 = pneg %p207
        %p544 = pneg %p204
        %p545 = pneg %p228
        %p546 = pneg %p225
        %p547 = pneg %p249
        %p548 = pneg %p246
        %p549 = pneg %p270
        %p550 = pneg %p267
        %p551 = pneg %p291
        %p552 = pneg %p288
        %s553 = ssub.s32 2, %s32
        %p554 = scmp.eq.s32.totalorder %s32, 0
        // Predicated region
        $region101: #{tpu_custom_call.1} parent=63 // pred_check
          %p555 = pneg %p554
        $region102: #{tpu_custom_call.1} parent=63 // pred_check_branch
          %557 = sbr.rel (%p555) target = $region104
        $region103: #{tpu_custom_call.1} parent=63 // pred_region
          %558 = vst [vmem:[#allocation4] sm:$0xff] 0.0
          %559 = vst [vmem:[#allocation4 + $0x8] sm:$0xff] 0.0
          %560 = vst [vmem:[#allocation5] sm:$0xff] 0.0
          %561 = vst [vmem:[#allocation5 + $0x8] sm:$0xff] 0.0
          %562 = vst [vmem:[#allocation6] sm:$0xff] 0.0
          %563 = vst [vmem:[#allocation6 + $0x8] sm:$0xff] 0.0
          %564 = vst [vmem:[#allocation7] sm:$0xff] 0.0
          %565 = vst [vmem:[#allocation7 + $0x8] sm:$0xff] 0.0
        $region104: #{tpu_custom_call.1} parent=63 // pred_fallthru
          _
        %v566 = vld [vmem:[%s468] sm:$0xf]
        %v567 = vld [vmem:[%s468 + $0x4] sm:$0xf]
        %v568 = vld [vmem:[%s468 + $0x8] sm:$0xf]
        %v569 = vld [vmem:[%s468 + $0xc] sm:$0xf]
        %v570 = vld [vmem:[%s468 + $0x10] sm:$0xf]
        %v571 = vld [vmem:[%s468 + $0x14] sm:$0xf]
        %v572 = vld [vmem:[%s468 + $0x18] sm:$0xf]
        %v573 = vld [vmem:[%s468 + $0x1c] sm:$0xf]
        %v574 = vld [vmem:[#allocation13] sm:$0xff]
        %v575 = vld [vmem:[#allocation13 + $0x8] sm:$0xff]
        %v576 = vld [vmem:[#allocation13 + $0x10] sm:$0xff]
        %v577 = vld [vmem:[#allocation13 + $0x18] sm:$0xff]
        %v578 = vld [vmem:[#allocation13 + $0x20] sm:$0xff]
        %v579 = vld [vmem:[#allocation13 + $0x28] sm:$0xff]
        %v580 = vld [vmem:[#allocation13 + $0x30] sm:$0xff]
        %v581 = vld [vmem:[#allocation13 + $0x38] sm:$0xff]
        %v582 = vld [vmem:[#allocation13 + $0x40] sm:$0xff]
        %v583 = vld [vmem:[#allocation13 + $0x48] sm:$0xff]
        %v584 = vld [vmem:[#allocation13 + $0x50] sm:$0xff]
        %v585 = vld [vmem:[#allocation13 + $0x58] sm:$0xff]
        %v586 = vld [vmem:[#allocation13 + $0x60] sm:$0xff]
        %v587 = vld [vmem:[#allocation13 + $0x68] sm:$0xff]
        %v588 = vld [vmem:[#allocation13 + $0x70] sm:$0xff]
        %v589 = vld [vmem:[#allocation13 + $0x78] sm:$0xff]
        %v590 = vld [vmem:[#allocation13 + $0x80] sm:$0xff]
        %v591 = vld [vmem:[#allocation13 + $0x88] sm:$0xff]
        %v592 = vld [vmem:[#allocation13 + $0x90] sm:$0xff]
        %v593 = vld [vmem:[#allocation13 + $0x98] sm:$0xff]
        %v594 = vld [vmem:[#allocation13 + $0xa0] sm:$0xff]
        %v595 = vld [vmem:[#allocation13 + $0xa8] sm:$0xff]
        %v596 = vld [vmem:[#allocation13 + $0xb0] sm:$0xff]
        %v597 = vld [vmem:[#allocation13 + $0xb8] sm:$0xff]
        %v598 = vld [vmem:[#allocation13 + $0xc0] sm:$0xff]
        %v599 = vld [vmem:[#allocation13 + $0xc8] sm:$0xff]
        %v600 = vld [vmem:[#allocation13 + $0xd0] sm:$0xff]
        %v601 = vld [vmem:[#allocation13 + $0xd8] sm:$0xff]
        %v602 = vld [vmem:[#allocation13 + $0xe0] sm:$0xff]
        %v603 = vld [vmem:[#allocation13 + $0xe8] sm:$0xff]
        %v604 = vld [vmem:[#allocation13 + $0xf0] sm:$0xff]
        %v605 = vld [vmem:[#allocation13 + $0xf8] sm:$0xff]
        %v606 = vld [vmem:[#allocation16] sm:$0xf]
        %v608 = vperm.slane %v606, 0
        %v609 = vperm.slane %v606, 1
        %v610 = vperm.slane %v606, 2
        %v611 = vperm.slane %v606, 3
        %v624 = vunpack.c.l.b16 %v566
        %v625 = vunpack.c.l.b16 %v567
        %v626 = vunpack.c.l.b16 %v568
        %v627 = vunpack.c.l.b16 %v569
        %v628 = vunpack.c.l.b16 %v570
        %v629 = vunpack.c.l.b16 %v571
        %v630 = vunpack.c.l.b16 %v572
        %v631 = vunpack.c.l.b16 %v573
        %v632 = vpack.c.b16 %v625, %v624
        %v633 = vpack.c.b16 %v627, %v626
        %v634 = vpack.c.b16 %v629, %v628
        %v635 = vpack.c.b16 %v631, %v630
        %v672 = vunpack.c.l.b16 %v574
        %v673 = vunpack.c.h.b16 %v574
        %v674 = vunpack.c.l.b16 %v575
        %v675 = vunpack.c.h.b16 %v575
        %v676 = vunpack.c.l.b16 %v576
        %v677 = vunpack.c.h.b16 %v576
        %v678 = vunpack.c.l.b16 %v577
        %v679 = vunpack.c.h.b16 %v577
        %v680 = vunpack.c.l.b16 %v578
        %v681 = vunpack.c.h.b16 %v578
        %v682 = vunpack.c.l.b16 %v579
        %v683 = vunpack.c.h.b16 %v579
        %v684 = vunpack.c.l.b16 %v580
        %v685 = vunpack.c.h.b16 %v580
        %v686 = vunpack.c.l.b16 %v581
        %v687 = vunpack.c.h.b16 %v581
        %v688 = vunpack.c.l.b16 %v582
        %v689 = vunpack.c.h.b16 %v582
        %v690 = vunpack.c.l.b16 %v583
        %v691 = vunpack.c.h.b16 %v583
        %v692 = vunpack.c.l.b16 %v584
        %v693 = vunpack.c.h.b16 %v584
        %v694 = vunpack.c.l.b16 %v585
        %v695 = vunpack.c.h.b16 %v585
        %v696 = vunpack.c.l.b16 %v586
        %v697 = vunpack.c.h.b16 %v586
        %v698 = vunpack.c.l.b16 %v587
        %v699 = vunpack.c.h.b16 %v587
        %v700 = vunpack.c.l.b16 %v588
        %v701 = vunpack.c.h.b16 %v588
        %v702 = vunpack.c.l.b16 %v589
        %v703 = vunpack.c.h.b16 %v589
        %v704 = vunpack.c.l.b16 %v590
        %v705 = vunpack.c.h.b16 %v590
        %v706 = vunpack.c.l.b16 %v591
        %v707 = vunpack.c.h.b16 %v591
        %v708 = vunpack.c.l.b16 %v592
        %v709 = vunpack.c.h.b16 %v592
        %v710 = vunpack.c.l.b16 %v593
        %v711 = vunpack.c.h.b16 %v593
        %v712 = vunpack.c.l.b16 %v594
        %v713 = vunpack.c.h.b16 %v594
        %v714 = vunpack.c.l.b16 %v595
        %v715 = vunpack.c.h.b16 %v595
        %v716 = vunpack.c.l.b16 %v596
        %v717 = vunpack.c.h.b16 %v596
        %v718 = vunpack.c.l.b16 %v597
        %v719 = vunpack.c.h.b16 %v597
        %v720 = vunpack.c.l.b16 %v598
        %v721 = vunpack.c.h.b16 %v598
        %v722 = vunpack.c.l.b16 %v599
        %v723 = vunpack.c.h.b16 %v599
        %v724 = vunpack.c.l.b16 %v600
        %v725 = vunpack.c.h.b16 %v600
        %v726 = vunpack.c.l.b16 %v601
        %v727 = vunpack.c.h.b16 %v601
        %v728 = vunpack.c.l.b16 %v602
        %v729 = vunpack.c.h.b16 %v602
        %v730 = vunpack.c.l.b16 %v603
        %v731 = vunpack.c.h.b16 %v603
        %v732 = vunpack.c.l.b16 %v604
        %v733 = vunpack.c.h.b16 %v604
        %v734 = vunpack.c.l.b16 %v605
        %v735 = vunpack.c.h.b16 %v605
        %v736 = vpack.c.b16 %v676, %v672
        %v737 = vpack.c.b16 %v677, %v673
        %v738 = vpack.c.b16 %v678, %v674
        %v739 = vpack.c.b16 %v679, %v675
        %v740 = vpack.c.b16 %v684, %v680
        %v741 = vpack.c.b16 %v685, %v681
        %v742 = vpack.c.b16 %v686, %v682
        %v743 = vpack.c.b16 %v687, %v683
        %v744 = vpack.c.b16 %v692, %v688
        %v745 = vpack.c.b16 %v693, %v689
        %v746 = vpack.c.b16 %v694, %v690
        %v747 = vpack.c.b16 %v695, %v691
        %v748 = vpack.c.b16 %v700, %v696
        %v749 = vpack.c.b16 %v701, %v697
        %v750 = vpack.c.b16 %v702, %v698
        %v751 = vpack.c.b16 %v703, %v699
        %v752 = vpack.c.b16 %v708, %v704
        %v753 = vpack.c.b16 %v709, %v705
        %v754 = vpack.c.b16 %v710, %v706
        %v755 = vpack.c.b16 %v711, %v707
        %v756 = vpack.c.b16 %v716, %v712
        %v757 = vpack.c.b16 %v717, %v713
        %v758 = vpack.c.b16 %v718, %v714
        %v759 = vpack.c.b16 %v719, %v715
        %v760 = vpack.c.b16 %v724, %v720
        %v761 = vpack.c.b16 %v725, %v721
        %v762 = vpack.c.b16 %v726, %v722
        %v763 = vpack.c.b16 %v727, %v723
        %v764 = vpack.c.b16 %v732, %v728
        %v765 = vpack.c.b16 %v733, %v729
        %v766 = vpack.c.b16 %v734, %v730
        %v767 = vpack.c.b16 %v735, %v731
        %800 = vmatpush.bf16.msra.mxu0 %v764
        %801 = vmatpush.bf16.msra.mxu0 %v760
        %802 = vmatpush.bf16.msra.mxu0 %v756
        %803 = vmatpush.bf16.msra.mxu0 %v752
        %804 = vmatpush.bf16.msra.mxu0 %v748
        %805 = vmatpush.bf16.msra.mxu0 %v744
        %806 = vmatpush.bf16.msra.mxu0 %v740
        %807 = vmatpush.bf16.msra.mxu0 %v736
        %808 = vmatmul.bf16.gmra.mxu0 %v632
        %v809 = vpop.f32.mrf.mxu0
        %v810 = vadd.f32 %v608, %v809
        %v811 = vpop.f32.mrf.mxu0
        %v812 = vadd.f32 %v608, %v811
        %813 = vmatmul.bf16.gmra.mxu0 %v633
        %v814 = vpop.f32.mrf.mxu0
        %v815 = vadd.f32 %v608, %v814
        %v816 = vpop.f32.mrf.mxu0
        %v817 = vadd.f32 %v608, %v816
        %818 = vmatmul.bf16.gmra.mxu0 %v634
        %v819 = vpop.f32.mrf.mxu0
        %v820 = vadd.f32 %v608, %v819
        %v821 = vpop.f32.mrf.mxu0
        %v822 = vadd.f32 %v608, %v821
        %823 = vmatmul.bf16.gmra.mxu0 %v635
        %v824 = vpop.f32.mrf.mxu0
        %v825 = vadd.f32 %v608, %v824
        %v826 = vpop.f32.mrf.mxu0
        %v827 = vadd.f32 %v608, %v826
        %828 = vdwg.mxu0
        %829 = vmatpush.bf16.msra.mxu0 %v765
        %830 = vmatpush.bf16.msra.mxu0 %v761
        %831 = vmatpush.bf16.msra.mxu0 %v757
        %832 = vmatpush.bf16.msra.mxu0 %v753
        %833 = vmatpush.bf16.msra.mxu0 %v749
        %834 = vmatpush.bf16.msra.mxu0 %v745
        %835 = vmatpush.bf16.msra.mxu0 %v741
        %836 = vmatpush.bf16.msra.mxu0 %v737
        %837 = vmatmul.bf16.gmra.mxu0 %v632
        %v838 = vpop.f32.mrf.mxu0
        %v839 = vadd.f32 %v609, %v838
        %v840 = vpop.f32.mrf.mxu0
        %v841 = vadd.f32 %v609, %v840
        %842 = vmatmul.bf16.gmra.mxu0 %v633
        %v843 = vpop.f32.mrf.mxu0
        %v844 = vadd.f32 %v609, %v843
        %v845 = vpop.f32.mrf.mxu0
        %v846 = vadd.f32 %v609, %v845
        %847 = vmatmul.bf16.gmra.mxu0 %v634
        %v848 = vpop.f32.mrf.mxu0
        %v849 = vadd.f32 %v609, %v848
        %v850 = vpop.f32.mrf.mxu0
        %v851 = vadd.f32 %v609, %v850
        %852 = vmatmul.bf16.gmra.mxu0 %v635
        %v853 = vpop.f32.mrf.mxu0
        %v854 = vadd.f32 %v609, %v853
        %v855 = vpop.f32.mrf.mxu0
        %v856 = vadd.f32 %v609, %v855
        %857 = vdwg.mxu0
        %858 = vmatpush.bf16.msra.mxu0 %v766
        %859 = vmatpush.bf16.msra.mxu0 %v762
        %860 = vmatpush.bf16.msra.mxu0 %v758
        %861 = vmatpush.bf16.msra.mxu0 %v754
        %862 = vmatpush.bf16.msra.mxu0 %v750
        %863 = vmatpush.bf16.msra.mxu0 %v746
        %864 = vmatpush.bf16.msra.mxu0 %v742
        %865 = vmatpush.bf16.msra.mxu0 %v738
        %866 = vmatmul.bf16.gmra.mxu0 %v632
        %v867 = vpop.f32.mrf.mxu0
        %v868 = vadd.f32 %v610, %v867
        %v869 = vpop.f32.mrf.mxu0
        %v870 = vadd.f32 %v610, %v869
        %871 = vmatmul.bf16.gmra.mxu0 %v633
        %v872 = vpop.f32.mrf.mxu0
        %v873 = vadd.f32 %v610, %v872
        %v874 = vpop.f32.mrf.mxu0
        %v875 = vadd.f32 %v610, %v874
        %876 = vmatmul.bf16.gmra.mxu0 %v634
        %v877 = vpop.f32.mrf.mxu0
        %v878 = vadd.f32 %v610, %v877
        %v879 = vpop.f32.mrf.mxu0
        %v880 = vadd.f32 %v610, %v879
        %881 = vmatmul.bf16.gmra.mxu0 %v635
        %v882 = vpop.f32.mrf.mxu0
        %v883 = vadd.f32 %v610, %v882
        %v884 = vpop.f32.mrf.mxu0
        %v885 = vadd.f32 %v610, %v884
        %886 = vdwg.mxu0
        %887 = vmatpush.bf16.msra.mxu0 %v767
        %888 = vmatpush.bf16.msra.mxu0 %v763
        %889 = vmatpush.bf16.msra.mxu0 %v759
        %890 = vmatpush.bf16.msra.mxu0 %v755
        %891 = vmatpush.bf16.msra.mxu0 %v751
        %892 = vmatpush.bf16.msra.mxu0 %v747
        %893 = vmatpush.bf16.msra.mxu0 %v743
        %894 = vmatpush.bf16.msra.mxu0 %v739
        %895 = vmatmul.bf16.gmra.mxu0 %v632
        %v896 = vpop.f32.mrf.mxu0
        %v897 = vadd.f32 %v611, %v896
        %v898 = vpop.f32.mrf.mxu0
        %v899 = vadd.f32 %v611, %v898
        %900 = vmatmul.bf16.gmra.mxu0 %v633
        %v901 = vpop.f32.mrf.mxu0
        %v902 = vadd.f32 %v611, %v901
        %v903 = vpop.f32.mrf.mxu0
        %v904 = vadd.f32 %v611, %v903
        %905 = vmatmul.bf16.gmra.mxu0 %v634
        %v906 = vpop.f32.mrf.mxu0
        %v907 = vadd.f32 %v611, %v906
        %v908 = vpop.f32.mrf.mxu0
        %v909 = vadd.f32 %v611, %v908
        %910 = vmatmul.bf16.gmra.mxu0 %v635
        %v911 = vpop.f32.mrf.mxu0
        %v912 = vadd.f32 %v611, %v911
        %v913 = vpop.f32.mrf.mxu0
        %v914 = vadd.f32 %v611, %v913
        %915 = vdwg.mxu0
        %v916 = vpack.c.bf16 %v839, %v810
        %v917 = vpack.c.bf16 %v897, %v868
        %v918 = vpack.c.bf16 %v841, %v812
        %v919 = vpack.c.bf16 %v899, %v870
        %v920 = vpack.c.bf16 %v844, %v815
        %v921 = vpack.c.bf16 %v902, %v873
        %v922 = vpack.c.bf16 %v846, %v817
        %v923 = vpack.c.bf16 %v904, %v875
        %v924 = vpack.c.bf16 %v849, %v820
        %v925 = vpack.c.bf16 %v907, %v878
        %v926 = vpack.c.bf16 %v851, %v822
        %v927 = vpack.c.bf16 %v909, %v880
        %v928 = vpack.c.bf16 %v854, %v825
        %v929 = vpack.c.bf16 %v912, %v883
        %v930 = vpack.c.bf16 %v856, %v827
        %v931 = vpack.c.bf16 %v914, %v885
        %932 = vst [vmem:[#allocation2] sm:$0xff] %v916
        %933 = vst [vmem:[#allocation2 + $0x8] sm:$0xff] %v917
        %934 = vst [vmem:[#allocation2 + $0x10] sm:$0xff] %v918
        %935 = vst [vmem:[#allocation2 + $0x18] sm:$0xff] %v919
        %936 = vst [vmem:[#allocation2 + $0x20] sm:$0xff] %v920
        %937 = vst [vmem:[#allocation2 + $0x28] sm:$0xff] %v921
        %938 = vst [vmem:[#allocation2 + $0x30] sm:$0xff] %v922
        %939 = vst [vmem:[#allocation2 + $0x38] sm:$0xff] %v923
        %940 = vst [vmem:[#allocation2 + $0x40] sm:$0xff] %v924
        %941 = vst [vmem:[#allocation2 + $0x48] sm:$0xff] %v925
        %942 = vst [vmem:[#allocation2 + $0x50] sm:$0xff] %v926
        %943 = vst [vmem:[#allocation2 + $0x58] sm:$0xff] %v927
        %944 = vst [vmem:[#allocation2 + $0x60] sm:$0xff] %v928
        %945 = vst [vmem:[#allocation2 + $0x68] sm:$0xff] %v929
        %946 = vst [vmem:[#allocation2 + $0x70] sm:$0xff] %v930
        %947 = vst [vmem:[#allocation2 + $0x78] sm:$0xff] %v931
        %v948 = vld [vmem:[%s478] sm:$0xf]
        %v949 = vld [vmem:[%s478 + $0x4] sm:$0xf]
        %v950 = vld [vmem:[%s478 + $0x8] sm:$0xf]
        %v951 = vld [vmem:[%s478 + $0xc] sm:$0xf]
        %v952 = vld [vmem:[%s478 + $0x10] sm:$0xf]
        %v953 = vld [vmem:[%s478 + $0x14] sm:$0xf]
        %v954 = vld [vmem:[%s478 + $0x18] sm:$0xf]
        %v955 = vld [vmem:[%s478 + $0x1c] sm:$0xf]
        %v956 = vld [vmem:[#allocation17] sm:$0xff]
        %v957 = vld [vmem:[#allocation17 + $0x8] sm:$0xff]
        %v958 = vld [vmem:[#allocation17 + $0x10] sm:$0xff]
        %v959 = vld [vmem:[#allocation17 + $0x18] sm:$0xff]
        %v960 = vld [vmem:[#allocation17 + $0x20] sm:$0xff]
        %v961 = vld [vmem:[#allocation17 + $0x28] sm:$0xff]
        %v962 = vld [vmem:[#allocation17 + $0x30] sm:$0xff]
        %v963 = vld [vmem:[#allocation17 + $0x38] sm:$0xff]
        %v964 = vld [vmem:[#allocation17 + $0x40] sm:$0xff]
        %v965 = vld [vmem:[#allocation17 + $0x48] sm:$0xff]
        %v966 = vld [vmem:[#allocation17 + $0x50] sm:$0xff]
        %v967 = vld [vmem:[#allocation17 + $0x58] sm:$0xff]
        %v968 = vld [vmem:[#allocation17 + $0x60] sm:$0xff]
        %v969 = vld [vmem:[#allocation17 + $0x68] sm:$0xff]
        %v970 = vld [vmem:[#allocation17 + $0x70] sm:$0xff]
        %v971 = vld [vmem:[#allocation17 + $0x78] sm:$0xff]
        %v972 = vld [vmem:[#allocation17 + $0x80] sm:$0xff]
        %v973 = vld [vmem:[#allocation17 + $0x88] sm:$0xff]
        %v974 = vld [vmem:[#allocation17 + $0x90] sm:$0xff]
        %v975 = vld [vmem:[#allocation17 + $0x98] sm:$0xff]
        %v976 = vld [vmem:[#allocation17 + $0xa0] sm:$0xff]
        %v977 = vld [vmem:[#allocation17 + $0xa8] sm:$0xff]
        %v978 = vld [vmem:[#allocation17 + $0xb0] sm:$0xff]
        %v979 = vld [vmem:[#allocation17 + $0xb8] sm:$0xff]
        %v980 = vld [vmem:[#allocation17 + $0xc0] sm:$0xff]
        %v981 = vld [vmem:[#allocation17 + $0xc8] sm:$0xff]
        %v982 = vld [vmem:[#allocation17 + $0xd0] sm:$0xff]
        %v983 = vld [vmem:[#allocation17 + $0xd8] sm:$0xff]
        %v984 = vld [vmem:[#allocation17 + $0xe0] sm:$0xff]
        %v985 = vld [vmem:[#allocation17 + $0xe8] sm:$0xff]
        %v986 = vld [vmem:[#allocation17 + $0xf0] sm:$0xff]
        %v987 = vld [vmem:[#allocation17 + $0xf8] sm:$0xff]
        %v988 = vld [vmem:[%s7] sm:$0xf]
        %v990 = vperm.slane %v988, 0
        %v991 = vperm.slane %v988, 1
        %v992 = vperm.slane %v988, 2
        %v993 = vperm.slane %v988, 3
        %v1006 = vunpack.c.l.b16 %v948
        %v1007 = vunpack.c.l.b16 %v949
        %v1008 = vunpack.c.l.b16 %v950
        %v1009 = vunpack.c.l.b16 %v951
        %v1010 = vunpack.c.l.b16 %v952
        %v1011 = vunpack.c.l.b16 %v953
        %v1012 = vunpack.c.l.b16 %v954
        %v1013 = vunpack.c.l.b16 %v955
        %v1014 = vpack.c.b16 %v1007, %v1006
        %v1015 = vpack.c.b16 %v1009, %v1008
        %v1016 = vpack.c.b16 %v1011, %v1010
        %v1017 = vpack.c.b16 %v1013, %v1012
        %v1054 = vunpack.c.l.b16 %v956
        %v1055 = vunpack.c.h.b16 %v956
        %v1056 = vunpack.c.l.b16 %v957
        %v1057 = vunpack.c.h.b16 %v957
        %v1058 = vunpack.c.l.b16 %v958
        %v1059 = vunpack.c.h.b16 %v958
        %v1060 = vunpack.c.l.b16 %v959
        %v1061 = vunpack.c.h.b16 %v959
        %v1062 = vunpack.c.l.b16 %v960
        %v1063 = vunpack.c.h.b16 %v960
        %v1064 = vunpack.c.l.b16 %v961
        %v1065 = vunpack.c.h.b16 %v961
        %v1066 = vunpack.c.l.b16 %v962
        %v1067 = vunpack.c.h.b16 %v962
        %v1068 = vunpack.c.l.b16 %v963
        %v1069 = vunpack.c.h.b16 %v963
        %v1070 = vunpack.c.l.b16 %v964
        %v1071 = vunpack.c.h.b16 %v964
        %v1072 = vunpack.c.l.b16 %v965
        %v1073 = vunpack.c.h.b16 %v965
        %v1074 = vunpack.c.l.b16 %v966
        %v1075 = vunpack.c.h.b16 %v966
        %v1076 = vunpack.c.l.b16 %v967
        %v1077 = vunpack.c.h.b16 %v967
        %v1078 = vunpack.c.l.b16 %v968
        %v1079 = vunpack.c.h.b16 %v968
        %v1080 = vunpack.c.l.b16 %v969
        %v1081 = vunpack.c.h.b16 %v969
        %v1082 = vunpack.c.l.b16 %v970
        %v1083 = vunpack.c.h.b16 %v970
        %v1084 = vunpack.c.l.b16 %v971
        %v1085 = vunpack.c.h.b16 %v971
        %v1086 = vunpack.c.l.b16 %v972
        %v1087 = vunpack.c.h.b16 %v972
        %v1088 = vunpack.c.l.b16 %v973
        %v1089 = vunpack.c.h.b16 %v973
        %v1090 = vunpack.c.l.b16 %v974
        %v1091 = vunpack.c.h.b16 %v974
        %v1092 = vunpack.c.l.b16 %v975
        %v1093 = vunpack.c.h.b16 %v975
        %v1094 = vunpack.c.l.b16 %v976
        %v1095 = vunpack.c.h.b16 %v976
        %v1096 = vunpack.c.l.b16 %v977
        %v1097 = vunpack.c.h.b16 %v977
        %v1098 = vunpack.c.l.b16 %v978
        %v1099 = vunpack.c.h.b16 %v978
        %v1100 = vunpack.c.l.b16 %v979
        %v1101 = vunpack.c.h.b16 %v979
        %v1102 = vunpack.c.l.b16 %v980
        %v1103 = vunpack.c.h.b16 %v980
        %v1104 = vunpack.c.l.b16 %v981
        %v1105 = vunpack.c.h.b16 %v981
        %v1106 = vunpack.c.l.b16 %v982
        %v1107 = vunpack.c.h.b16 %v982
        %v1108 = vunpack.c.l.b16 %v983
        %v1109 = vunpack.c.h.b16 %v983
        %v1110 = vunpack.c.l.b16 %v984
        %v1111 = vunpack.c.h.b16 %v984
        %v1112 = vunpack.c.l.b16 %v985
        %v1113 = vunpack.c.h.b16 %v985
        %v1114 = vunpack.c.l.b16 %v986
        %v1115 = vunpack.c.h.b16 %v986
        %v1116 = vunpack.c.l.b16 %v987
        %v1117 = vunpack.c.h.b16 %v987
        %v1118 = vpack.c.b16 %v1058, %v1054
        %v1119 = vpack.c.b16 %v1059, %v1055
        %v1120 = vpack.c.b16 %v1060, %v1056
        %v1121 = vpack.c.b16 %v1061, %v1057
        %v1122 = vpack.c.b16 %v1066, %v1062
        %v1123 = vpack.c.b16 %v1067, %v1063
        %v1124 = vpack.c.b16 %v1068, %v1064
        %v1125 = vpack.c.b16 %v1069, %v1065
        %v1126 = vpack.c.b16 %v1074, %v1070
        %v1127 = vpack.c.b16 %v1075, %v1071
        %v1128 = vpack.c.b16 %v1076, %v1072
        %v1129 = vpack.c.b16 %v1077, %v1073
        %v1130 = vpack.c.b16 %v1082, %v1078
        %v1131 = vpack.c.b16 %v1083, %v1079
        %v1132 = vpack.c.b16 %v1084, %v1080
        %v1133 = vpack.c.b16 %v1085, %v1081
        %v1134 = vpack.c.b16 %v1090, %v1086
        %v1135 = vpack.c.b16 %v1091, %v1087
        %v1136 = vpack.c.b16 %v1092, %v1088
        %v1137 = vpack.c.b16 %v1093, %v1089
        %v1138 = vpack.c.b16 %v1098, %v1094
        %v1139 = vpack.c.b16 %v1099, %v1095
        %v1140 = vpack.c.b16 %v1100, %v1096
        %v1141 = vpack.c.b16 %v1101, %v1097
        %v1142 = vpack.c.b16 %v1106, %v1102
        %v1143 = vpack.c.b16 %v1107, %v1103
        %v1144 = vpack.c.b16 %v1108, %v1104
        %v1145 = vpack.c.b16 %v1109, %v1105
        %v1146 = vpack.c.b16 %v1114, %v1110
        %v1147 = vpack.c.b16 %v1115, %v1111
        %v1148 = vpack.c.b16 %v1116, %v1112
        %v1149 = vpack.c.b16 %v1117, %v1113
        %1182 = vmatpush.bf16.msra.mxu0 %v1146
        %1183 = vmatpush.bf16.msra.mxu0 %v1142
        %1184 = vmatpush.bf16.msra.mxu0 %v1138
        %1185 = vmatpush.bf16.msra.mxu0 %v1134
        %1186 = vmatpush.bf16.msra.mxu0 %v1130
        %1187 = vmatpush.bf16.msra.mxu0 %v1126
        %1188 = vmatpush.bf16.msra.mxu0 %v1122
        %1189 = vmatpush.bf16.msra.mxu0 %v1118
        %1190 = vmatmul.bf16.gmra.mxu0 %v1014
        %v1191 = vpop.f32.mrf.mxu0
        %v1192 = vadd.f32 %v990, %v1191
        %v1193 = vpop.f32.mrf.mxu0
        %v1194 = vadd.f32 %v990, %v1193
        %1195 = vmatmul.bf16.gmra.mxu0 %v1015
        %v1196 = vpop.f32.mrf.mxu0
        %v1197 = vadd.f32 %v990, %v1196
        %v1198 = vpop.f32.mrf.mxu0
        %v1199 = vadd.f32 %v990, %v1198
        %1200 = vmatmul.bf16.gmra.mxu0 %v1016
        %v1201 = vpop.f32.mrf.mxu0
        %v1202 = vadd.f32 %v990, %v1201
        %v1203 = vpop.f32.mrf.mxu0
        %v1204 = vadd.f32 %v990, %v1203
        %1205 = vmatmul.bf16.gmra.mxu0 %v1017
        %v1206 = vpop.f32.mrf.mxu0
        %v1207 = vadd.f32 %v990, %v1206
        %v1208 = vpop.f32.mrf.mxu0
        %v1209 = vadd.f32 %v990, %v1208
        %1210 = vdwg.mxu0
        %1211 = vmatpush.bf16.msra.mxu0 %v1147
        %1212 = vmatpush.bf16.msra.mxu0 %v1143
        %1213 = vmatpush.bf16.msra.mxu0 %v1139
        %1214 = vmatpush.bf16.msra.mxu0 %v1135
        %1215 = vmatpush.bf16.msra.mxu0 %v1131
        %1216 = vmatpush.bf16.msra.mxu0 %v1127
        %1217 = vmatpush.bf16.msra.mxu0 %v1123
        %1218 = vmatpush.bf16.msra.mxu0 %v1119
        %1219 = vmatmul.bf16.gmra.mxu0 %v1014
        %v1220 = vpop.f32.mrf.mxu0
        %v1221 = vadd.f32 %v991, %v1220
        %v1222 = vpop.f32.mrf.mxu0
        %v1223 = vadd.f32 %v991, %v1222
        %1224 = vmatmul.bf16.gmra.mxu0 %v1015
        %v1225 = vpop.f32.mrf.mxu0
        %v1226 = vadd.f32 %v991, %v1225
        %v1227 = vpop.f32.mrf.mxu0
        %v1228 = vadd.f32 %v991, %v1227
        %1229 = vmatmul.bf16.gmra.mxu0 %v1016
        %v1230 = vpop.f32.mrf.mxu0
        %v1231 = vadd.f32 %v991, %v1230
        %v1232 = vpop.f32.mrf.mxu0
        %v1233 = vadd.f32 %v991, %v1232
        %1234 = vmatmul.bf16.gmra.mxu0 %v1017
        %v1235 = vpop.f32.mrf.mxu0
        %v1236 = vadd.f32 %v991, %v1235
        %v1237 = vpop.f32.mrf.mxu0
        %v1238 = vadd.f32 %v991, %v1237
        %1239 = vdwg.mxu0
        %1240 = vmatpush.bf16.msra.mxu0 %v1148
        %1241 = vmatpush.bf16.msra.mxu0 %v1144
        %1242 = vmatpush.bf16.msra.mxu0 %v1140
        %1243 = vmatpush.bf16.msra.mxu0 %v1136
        %1244 = vmatpush.bf16.msra.mxu0 %v1132
        %1245 = vmatpush.bf16.msra.mxu0 %v1128
        %1246 = vmatpush.bf16.msra.mxu0 %v1124
        %1247 = vmatpush.bf16.msra.mxu0 %v1120
        %1248 = vmatmul.bf16.gmra.mxu0 %v1014
        %v1249 = vpop.f32.mrf.mxu0
        %v1250 = vadd.f32 %v992, %v1249
        %v1251 = vpop.f32.mrf.mxu0
        %v1252 = vadd.f32 %v992, %v1251
        %1253 = vmatmul.bf16.gmra.mxu0 %v1015
        %v1254 = vpop.f32.mrf.mxu0
        %v1255 = vadd.f32 %v992, %v1254
        %v1256 = vpop.f32.mrf.mxu0
        %v1257 = vadd.f32 %v992, %v1256
        %1258 = vmatmul.bf16.gmra.mxu0 %v1016
        %v1259 = vpop.f32.mrf.mxu0
        %v1260 = vadd.f32 %v992, %v1259
        %v1261 = vpop.f32.mrf.mxu0
        %v1262 = vadd.f32 %v992, %v1261
        %1263 = vmatmul.bf16.gmra.mxu0 %v1017
        %v1264 = vpop.f32.mrf.mxu0
        %v1265 = vadd.f32 %v992, %v1264
        %v1266 = vpop.f32.mrf.mxu0
        %v1267 = vadd.f32 %v992, %v1266
        %1268 = vdwg.mxu0
        %1269 = vmatpush.bf16.msra.mxu0 %v1149
        %1270 = vmatpush.bf16.msra.mxu0 %v1145
        %1271 = vmatpush.bf16.msra.mxu0 %v1141
        %1272 = vmatpush.bf16.msra.mxu0 %v1137
        %1273 = vmatpush.bf16.msra.mxu0 %v1133
        %1274 = vmatpush.bf16.msra.mxu0 %v1129
        %1275 = vmatpush.bf16.msra.mxu0 %v1125
        %1276 = vmatpush.bf16.msra.mxu0 %v1121
        %1277 = vmatmul.bf16.gmra.mxu0 %v1014
        %v1278 = vpop.f32.mrf.mxu0
        %v1279 = vadd.f32 %v993, %v1278
        %v1280 = vpop.f32.mrf.mxu0
        %v1281 = vadd.f32 %v993, %v1280
        %1282 = vmatmul.bf16.gmra.mxu0 %v1015
        %v1283 = vpop.f32.mrf.mxu0
        %v1284 = vadd.f32 %v993, %v1283
        %v1285 = vpop.f32.mrf.mxu0
        %v1286 = vadd.f32 %v993, %v1285
        %1287 = vmatmul.bf16.gmra.mxu0 %v1016
        %v1288 = vpop.f32.mrf.mxu0
        %v1289 = vadd.f32 %v993, %v1288
        %v1290 = vpop.f32.mrf.mxu0
        %v1291 = vadd.f32 %v993, %v1290
        %1292 = vmatmul.bf16.gmra.mxu0 %v1017
        %v1293 = vpop.f32.mrf.mxu0
        %v1294 = vadd.f32 %v993, %v1293
        %v1295 = vpop.f32.mrf.mxu0
        %v1296 = vadd.f32 %v993, %v1295
        %1297 = vdwg.mxu0
        %v1298 = vpack.c.bf16 %v1221, %v1192
        %v1299 = vpack.c.bf16 %v1279, %v1250
        %v1300 = vpack.c.bf16 %v1223, %v1194
        %v1301 = vpack.c.bf16 %v1281, %v1252
        %v1302 = vpack.c.bf16 %v1226, %v1197
        %v1303 = vpack.c.bf16 %v1284, %v1255
        %v1304 = vpack.c.bf16 %v1228, %v1199
        %v1305 = vpack.c.bf16 %v1286, %v1257
        %v1306 = vpack.c.bf16 %v1231, %v1202
        %v1307 = vpack.c.bf16 %v1289, %v1260
        %v1308 = vpack.c.bf16 %v1233, %v1204
        %v1309 = vpack.c.bf16 %v1291, %v1262
        %v1310 = vpack.c.bf16 %v1236, %v1207
        %v1311 = vpack.c.bf16 %v1294, %v1265
        %v1312 = vpack.c.bf16 %v1238, %v1209
        %v1313 = vpack.c.bf16 %v1296, %v1267
        %1314 = vst [vmem:[#allocation3] sm:$0xff] %v1298
        %1315 = vst [vmem:[#allocation3 + $0x8] sm:$0xff] %v1299
        %1316 = vst [vmem:[#allocation3 + $0x10] sm:$0xff] %v1300
        %1317 = vst [vmem:[#allocation3 + $0x18] sm:$0xff] %v1301
        %1318 = vst [vmem:[#allocation3 + $0x20] sm:$0xff] %v1302
        %1319 = vst [vmem:[#allocation3 + $0x28] sm:$0xff] %v1303
        %1320 = vst [vmem:[#allocation3 + $0x30] sm:$0xff] %v1304
        %1321 = vst [vmem:[#allocation3 + $0x38] sm:$0xff] %v1305
        %1322 = vst [vmem:[#allocation3 + $0x40] sm:$0xff] %v1306
        %1323 = vst [vmem:[#allocation3 + $0x48] sm:$0xff] %v1307
        %1324 = vst [vmem:[#allocation3 + $0x50] sm:$0xff] %v1308
        %1325 = vst [vmem:[#allocation3 + $0x58] sm:$0xff] %v1309
        %1326 = vst [vmem:[#allocation3 + $0x60] sm:$0xff] %v1310
        %1327 = vst [vmem:[#allocation3 + $0x68] sm:$0xff] %v1311
        %1328 = vst [vmem:[#allocation3 + $0x70] sm:$0xff] %v1312
        %1329 = vst [vmem:[#allocation3 + $0x78] sm:$0xff] %v1313
        %s1330 = smul.u32 %s32, 4
        %v1331 = vld [vmem:[#allocation4] sm:$0xff]
        %v1332 = vld [vmem:[#allocation4 + $0x8] sm:$0xff]
        %v1333 = vld [vmem:[#allocation5] sm:$0xff]
        %v1334 = vld [vmem:[#allocation5 + $0x8] sm:$0xff]
        %v1335 = vld [vmem:[#allocation6] sm:$0xff]
        %v1336 = vld [vmem:[#allocation6 + $0x8] sm:$0xff]
        %v1337 = vld [vmem:[#allocation7] sm:$0xff]
        %v1338 = vld [vmem:[#allocation7 + $0x8] sm:$0xff]
        %v1339 = vld [vmem:[#allocation2] sm:$0xff]
        %v1340 = vld [vmem:[#allocation2 + $0x8] sm:$0xff]
        %v1341 = vld [vmem:[#allocation2 + $0x10] sm:$0xff]
        %v1342 = vld [vmem:[#allocation2 + $0x18] sm:$0xff]
        %v1343 = vunpack.c.l.bf16 %v1339
        %v1344 = vunpack.c.h.bf16 %v1339
        %v1345 = vunpack.c.l.bf16 %v1340
        %v1346 = vunpack.c.h.bf16 %v1340
        %v1347 = vunpack.c.l.bf16 %v1341
        %v1348 = vunpack.c.h.bf16 %v1341
        %v1349 = vunpack.c.l.bf16 %v1342
        %v1350 = vunpack.c.h.bf16 %v1342
        %v1351 = vpack.c.bf16 %v1332, %v1331
        %v1352 = vld [vmem:[#allocation14] sm:$0xff]
        %v1353 = vld [vmem:[#allocation14 + $0x8] sm:$0xff]
        %v1354 = vld [vmem:[#allocation14 + $0x10] sm:$0xff]
        %v1355 = vld [vmem:[#allocation14 + $0x18] sm:$0xff]
        %v1356 = vld [vmem:[#allocation14 + $0x20] sm:$0xff]
        %v1357 = vld [vmem:[#allocation14 + $0x28] sm:$0xff]
        %v1358 = vld [vmem:[#allocation14 + $0x30] sm:$0xff]
        %v1359 = vld [vmem:[#allocation14 + $0x38] sm:$0xff]
        %v1360 = vld [vmem:[#allocation14 + $0x40] sm:$0xff]
        %v1361 = vld [vmem:[#allocation14 + $0x48] sm:$0xff]
        %v1362 = vld [vmem:[#allocation14 + $0x50] sm:$0xff]
        %v1363 = vld [vmem:[#allocation14 + $0x58] sm:$0xff]
        %v1364 = vld [vmem:[#allocation14 + $0x60] sm:$0xff]
        %v1365 = vld [vmem:[#allocation14 + $0x68] sm:$0xff]
        %v1366 = vld [vmem:[#allocation14 + $0x70] sm:$0xff]
        %v1367 = vld [vmem:[#allocation14 + $0x78] sm:$0xff]
        %v1368 = vld [vmem:[#allocation14 + $0x80] sm:$0xff]
        %v1369 = vld [vmem:[#allocation14 + $0x88] sm:$0xff]
        %v1370 = vld [vmem:[#allocation14 + $0x90] sm:$0xff]
        %v1371 = vld [vmem:[#allocation14 + $0x98] sm:$0xff]
        %v1372 = vld [vmem:[#allocation14 + $0xa0] sm:$0xff]
        %v1373 = vld [vmem:[#allocation14 + $0xa8] sm:$0xff]
        %v1374 = vld [vmem:[#allocation14 + $0xb0] sm:$0xff]
        %v1375 = vld [vmem:[#allocation14 + $0xb8] sm:$0xff]
        %v1376 = vld [vmem:[#allocation14 + $0xc0] sm:$0xff]
        %v1377 = vld [vmem:[#allocation14 + $0xc8] sm:$0xff]
        %v1378 = vld [vmem:[#allocation14 + $0xd0] sm:$0xff]
        %v1379 = vld [vmem:[#allocation14 + $0xd8] sm:$0xff]
        %v1380 = vld [vmem:[#allocation14 + $0xe0] sm:$0xff]
        %v1381 = vld [vmem:[#allocation14 + $0xe8] sm:$0xff]
        %v1382 = vld [vmem:[#allocation14 + $0xf0] sm:$0xff]
        %v1383 = vld [vmem:[#allocation14 + $0xf8] sm:$0xff]
        %v1416 = vunpack.c.l.b16 %v1352
        %v1417 = vunpack.c.h.b16 %v1352
        %v1418 = vunpack.c.l.b16 %v1353
        %v1419 = vunpack.c.h.b16 %v1353
        %v1420 = vunpack.c.l.b16 %v1354
        %v1421 = vunpack.c.h.b16 %v1354
        %v1422 = vunpack.c.l.b16 %v1355
        %v1423 = vunpack.c.h.b16 %v1355
        %v1424 = vunpack.c.l.b16 %v1356
        %v1425 = vunpack.c.h.b16 %v1356
        %v1426 = vunpack.c.l.b16 %v1357
        %v1427 = vunpack.c.h.b16 %v1357
        %v1428 = vunpack.c.l.b16 %v1358
        %v1429 = vunpack.c.h.b16 %v1358
        %v1430 = vunpack.c.l.b16 %v1359
        %v1431 = vunpack.c.h.b16 %v1359
        %v1432 = vunpack.c.l.b16 %v1360
        %v1433 = vunpack.c.h.b16 %v1360
        %v1434 = vunpack.c.l.b16 %v1361
        %v1435 = vunpack.c.h.b16 %v1361
        %v1436 = vunpack.c.l.b16 %v1362
        %v1437 = vunpack.c.h.b16 %v1362
        %v1438 = vunpack.c.l.b16 %v1363
        %v1439 = vunpack.c.h.b16 %v1363
        %v1440 = vunpack.c.l.b16 %v1364
        %v1441 = vunpack.c.h.b16 %v1364
        %v1442 = vunpack.c.l.b16 %v1365
        %v1443 = vunpack.c.h.b16 %v1365
        %v1444 = vunpack.c.l.b16 %v1366
        %v1445 = vunpack.c.h.b16 %v1366
        %v1446 = vunpack.c.l.b16 %v1367
        %v1447 = vunpack.c.h.b16 %v1367
        %v1448 = vunpack.c.l.b16 %v1368
        %v1449 = vunpack.c.h.b16 %v1368
        %v1450 = vunpack.c.l.b16 %v1369
        %v1451 = vunpack.c.h.b16 %v1369
        %v1452 = vunpack.c.l.b16 %v1370
        %v1453 = vunpack.c.h.b16 %v1370
        %v1454 = vunpack.c.l.b16 %v1371
        %v1455 = vunpack.c.h.b16 %v1371
        %v1456 = vunpack.c.l.b16 %v1372
        %v1457 = vunpack.c.h.b16 %v1372
        %v1458 = vunpack.c.l.b16 %v1373
        %v1459 = vunpack.c.h.b16 %v1373
        %v1460 = vunpack.c.l.b16 %v1374
        %v1461 = vunpack.c.h.b16 %v1374
        %v1462 = vunpack.c.l.b16 %v1375
        %v1463 = vunpack.c.h.b16 %v1375
        %v1464 = vunpack.c.l.b16 %v1376
        %v1465 = vunpack.c.h.b16 %v1376
        %v1466 = vunpack.c.l.b16 %v1377
        %v1467 = vunpack.c.h.b16 %v1377
        %v1468 = vunpack.c.l.b16 %v1378
        %v1469 = vunpack.c.h.b16 %v1378
        %v1470 = vunpack.c.l.b16 %v1379
        %v1471 = vunpack.c.h.b16 %v1379
        %v1472 = vunpack.c.l.b16 %v1380
        %v1473 = vunpack.c.h.b16 %v1380
        %v1474 = vunpack.c.l.b16 %v1381
        %v1475 = vunpack.c.h.b16 %v1381
        %v1476 = vunpack.c.l.b16 %v1382
        %v1477 = vunpack.c.h.b16 %v1382
        %v1478 = vunpack.c.l.b16 %v1383
        %v1479 = vunpack.c.h.b16 %v1383
        %v1480 = vpack.c.b16 %v1420, %v1416
        %v1481 = vpack.c.b16 %v1421, %v1417
        %v1482 = vpack.c.b16 %v1422, %v1418
        %v1483 = vpack.c.b16 %v1423, %v1419
        %v1484 = vpack.c.b16 %v1428, %v1424
        %v1485 = vpack.c.b16 %v1429, %v1425
        %v1486 = vpack.c.b16 %v1430, %v1426
        %v1487 = vpack.c.b16 %v1431, %v1427
        %v1488 = vpack.c.b16 %v1436, %v1432
        %v1489 = vpack.c.b16 %v1437, %v1433
        %v1490 = vpack.c.b16 %v1438, %v1434
        %v1491 = vpack.c.b16 %v1439, %v1435
        %v1492 = vpack.c.b16 %v1444, %v1440
        %v1493 = vpack.c.b16 %v1445, %v1441
        %v1494 = vpack.c.b16 %v1446, %v1442
        %v1495 = vpack.c.b16 %v1447, %v1443
        %v1496 = vpack.c.b16 %v1452, %v1448
        %v1497 = vpack.c.b16 %v1453, %v1449
        %v1498 = vpack.c.b16 %v1454, %v1450
        %v1499 = vpack.c.b16 %v1455, %v1451
        %v1500 = vpack.c.b16 %v1460, %v1456
        %v1501 = vpack.c.b16 %v1461, %v1457
        %v1502 = vpack.c.b16 %v1462, %v1458
        %v1503 = vpack.c.b16 %v1463, %v1459
        %v1504 = vpack.c.b16 %v1468, %v1464
        %v1505 = vpack.c.b16 %v1469, %v1465
        %v1506 = vpack.c.b16 %v1470, %v1466
        %v1507 = vpack.c.b16 %v1471, %v1467
        %v1508 = vpack.c.b16 %v1476, %v1472
        %v1509 = vpack.c.b16 %v1477, %v1473
        %v1510 = vpack.c.b16 %v1478, %v1474
        %v1511 = vpack.c.b16 %v1479, %v1475
        %1544 = vmatpush.bf16.msra.mxu0 %v1508
        %1545 = vmatpush.bf16.msra.mxu0 %v1504
        %1546 = vmatpush.bf16.msra.mxu0 %v1500
        %1547 = vmatpush.bf16.msra.mxu0 %v1496
        %1548 = vmatpush.bf16.msra.mxu0 %v1492
        %1549 = vmatpush.bf16.msra.mxu0 %v1488
        %1550 = vmatpush.bf16.msra.mxu0 %v1484
        %1551 = vmatpush.bf16.msra.mxu0 %v1480
        %1552 = vmatmul.bf16.gmra.mxu0 %v1351
        %v1553 = vpop.f32.mrf.mxu0
        %v1554 = vadd.f32 0.0, %v1553
        %v1555 = vpop.f32.mrf.mxu0
        %v1556 = vadd.f32 0.0, %v1555
        %1557 = vdwg.mxu0
        %1558 = vmatpush.bf16.msra.mxu0 %v1509
        %1559 = vmatpush.bf16.msra.mxu0 %v1505
        %1560 = vmatpush.bf16.msra.mxu0 %v1501
        %1561 = vmatpush.bf16.msra.mxu0 %v1497
        %1562 = vmatpush.bf16.msra.mxu0 %v1493
        %1563 = vmatpush.bf16.msra.mxu0 %v1489
        %1564 = vmatpush.bf16.msra.mxu0 %v1485
        %1565 = vmatpush.bf16.msra.mxu0 %v1481
        %1566 = vmatmul.bf16.gmra.mxu0 %v1351
        %v1567 = vpop.f32.mrf.mxu0
        %v1568 = vadd.f32 0.0, %v1567
        %v1569 = vpop.f32.mrf.mxu0
        %v1570 = vadd.f32 0.0, %v1569
        %1571 = vdwg.mxu0
        %1572 = vmatpush.bf16.msra.mxu0 %v1510
        %1573 = vmatpush.bf16.msra.mxu0 %v1506
        %1574 = vmatpush.bf16.msra.mxu0 %v1502
        %1575 = vmatpush.bf16.msra.mxu0 %v1498
        %1576 = vmatpush.bf16.msra.mxu0 %v1494
        %1577 = vmatpush.bf16.msra.mxu0 %v1490
        %1578 = vmatpush.bf16.msra.mxu0 %v1486
        %1579 = vmatpush.bf16.msra.mxu0 %v1482
        %1580 = vmatmul.bf16.gmra.mxu0 %v1351
        %v1581 = vpop.f32.mrf.mxu0
        %v1582 = vadd.f32 0.0, %v1581
        %v1583 = vpop.f32.mrf.mxu0
        %v1584 = vadd.f32 0.0, %v1583
        %1585 = vdwg.mxu0
        %1586 = vmatpush.bf16.msra.mxu0 %v1511
        %1587 = vmatpush.bf16.msra.mxu0 %v1507
        %1588 = vmatpush.bf16.msra.mxu0 %v1503
        %1589 = vmatpush.bf16.msra.mxu0 %v1499
        %1590 = vmatpush.bf16.msra.mxu0 %v1495
        %1591 = vmatpush.bf16.msra.mxu0 %v1491
        %1592 = vmatpush.bf16.msra.mxu0 %v1487
        %1593 = vmatpush.bf16.msra.mxu0 %v1483
        %1594 = vmatmul.bf16.gmra.mxu0 %v1351
        %v1595 = vpop.f32.mrf.mxu0
        %v1596 = vadd.f32 0.0, %v1595
        %v1597 = vpop.f32.mrf.mxu0
        %v1598 = vadd.f32 0.0, %v1597
        %1599 = vdwg.mxu0
        %v1600 = vadd.f32 %v1343, %v1554
        %v1601 = vadd.f32 %v1344, %v1568
        %v1602 = vadd.f32 %v1345, %v1582
        %v1603 = vadd.f32 %v1346, %v1596
        %v1604 = vadd.f32 %v1347, %v1556
        %v1605 = vadd.f32 %v1348, %v1570
        %v1606 = vadd.f32 %v1349, %v1584
        %v1607 = vadd.f32 %v1350, %v1598
        %s1608 = scalar_lea.vmem [#allocation3], 96
        %v1609 = vld [vmem:[%s1608] sm:$0xff]
        %v1610 = vld [vmem:[%s1608 + $0x8] sm:$0xff]
        %v1611 = vld [vmem:[%s1608 + $0x10] sm:$0xff]
        %v1612 = vld [vmem:[%s1608 + $0x18] sm:$0xff]
        %v1613 = vunpack.c.l.bf16 %v1609
        %v1614 = vunpack.c.h.bf16 %v1609
        %v1615 = vunpack.c.l.bf16 %v1610
        %v1616 = vunpack.c.h.bf16 %v1610
        %v1617 = vunpack.c.l.bf16 %v1611
        %v1618 = vunpack.c.h.bf16 %v1611
        %v1619 = vunpack.c.l.bf16 %v1612
        %v1620 = vunpack.c.h.bf16 %v1612
        %v1621 = vpack.c.bf16 %v1336, %v1335
        %v1622 = vld [vmem:[#allocation19] sm:$0xff]
        %v1623 = vld [vmem:[#allocation19 + $0x8] sm:$0xff]
        %v1624 = vld [vmem:[#allocation19 + $0x10] sm:$0xff]
        %v1625 = vld [vmem:[#allocation19 + $0x18] sm:$0xff]
        %v1626 = vld [vmem:[#allocation19 + $0x20] sm:$0xff]
        %v1627 = vld [vmem:[#allocation19 + $0x28] sm:$0xff]
        %v1628 = vld [vmem:[#allocation19 + $0x30] sm:$0xff]
        %v1629 = vld [vmem:[#allocation19 + $0x38] sm:$0xff]
        %v1630 = vld [vmem:[#allocation19 + $0x40] sm:$0xff]
        %v1631 = vld [vmem:[#allocation19 + $0x48] sm:$0xff]
        %v1632 = vld [vmem:[#allocation19 + $0x50] sm:$0xff]
        %v1633 = vld [vmem:[#allocation19 + $0x58] sm:$0xff]
        %v1634 = vld [vmem:[#allocation19 + $0x60] sm:$0xff]
        %v1635 = vld [vmem:[#allocation19 + $0x68] sm:$0xff]
        %v1636 = vld [vmem:[#allocation19 + $0x70] sm:$0xff]
        %v1637 = vld [vmem:[#allocation19 + $0x78] sm:$0xff]
        %v1638 = vld [vmem:[#allocation19 + $0x80] sm:$0xff]
        %v1639 = vld [vmem:[#allocation19 + $0x88] sm:$0xff]
        %v1640 = vld [vmem:[#allocation19 + $0x90] sm:$0xff]
        %v1641 = vld [vmem:[#allocation19 + $0x98] sm:$0xff]
        %v1642 = vld [vmem:[#allocation19 + $0xa0] sm:$0xff]
        %v1643 = vld [vmem:[#allocation19 + $0xa8] sm:$0xff]
        %v1644 = vld [vmem:[#allocation19 + $0xb0] sm:$0xff]
        %v1645 = vld [vmem:[#allocation19 + $0xb8] sm:$0xff]
        %v1646 = vld [vmem:[#allocation19 + $0xc0] sm:$0xff]
        %v1647 = vld [vmem:[#allocation19 + $0xc8] sm:$0xff]
        %v1648 = vld [vmem:[#allocation19 + $0xd0] sm:$0xff]
        %v1649 = vld [vmem:[#allocation19 + $0xd8] sm:$0xff]
        %v1650 = vld [vmem:[#allocation19 + $0xe0] sm:$0xff]
        %v1651 = vld [vmem:[#allocation19 + $0xe8] sm:$0xff]
        %v1652 = vld [vmem:[#allocation19 + $0xf0] sm:$0xff]
        %v1653 = vld [vmem:[#allocation19 + $0xf8] sm:$0xff]
        %v1686 = vunpack.c.l.b16 %v1622
        %v1687 = vunpack.c.h.b16 %v1622
        %v1688 = vunpack.c.l.b16 %v1623
        %v1689 = vunpack.c.h.b16 %v1623
        %v1690 = vunpack.c.l.b16 %v1624
        %v1691 = vunpack.c.h.b16 %v1624
        %v1692 = vunpack.c.l.b16 %v1625
        %v1693 = vunpack.c.h.b16 %v1625
        %v1694 = vunpack.c.l.b16 %v1626
        %v1695 = vunpack.c.h.b16 %v1626
        %v1696 = vunpack.c.l.b16 %v1627
        %v1697 = vunpack.c.h.b16 %v1627
        %v1698 = vunpack.c.l.b16 %v1628
        %v1699 = vunpack.c.h.b16 %v1628
        %v1700 = vunpack.c.l.b16 %v1629
        %v1701 = vunpack.c.h.b16 %v1629
        %v1702 = vunpack.c.l.b16 %v1630
        %v1703 = vunpack.c.h.b16 %v1630
        %v1704 = vunpack.c.l.b16 %v1631
        %v1705 = vunpack.c.h.b16 %v1631
        %v1706 = vunpack.c.l.b16 %v1632
        %v1707 = vunpack.c.h.b16 %v1632
        %v1708 = vunpack.c.l.b16 %v1633
        %v1709 = vunpack.c.h.b16 %v1633
        %v1710 = vunpack.c.l.b16 %v1634
        %v1711 = vunpack.c.h.b16 %v1634
        %v1712 = vunpack.c.l.b16 %v1635
        %v1713 = vunpack.c.h.b16 %v1635
        %v1714 = vunpack.c.l.b16 %v1636
        %v1715 = vunpack.c.h.b16 %v1636
        %v1716 = vunpack.c.l.b16 %v1637
        %v1717 = vunpack.c.h.b16 %v1637
        %v1718 = vunpack.c.l.b16 %v1638
        %v1719 = vunpack.c.h.b16 %v1638
        %v1720 = vunpack.c.l.b16 %v1639
        %v1721 = vunpack.c.h.b16 %v1639
        %v1722 = vunpack.c.l.b16 %v1640
        %v1723 = vunpack.c.h.b16 %v1640
        %v1724 = vunpack.c.l.b16 %v1641
        %v1725 = vunpack.c.h.b16 %v1641
        %v1726 = vunpack.c.l.b16 %v1642
        %v1727 = vunpack.c.h.b16 %v1642
        %v1728 = vunpack.c.l.b16 %v1643
        %v1729 = vunpack.c.h.b16 %v1643
        %v1730 = vunpack.c.l.b16 %v1644
        %v1731 = vunpack.c.h.b16 %v1644
        %v1732 = vunpack.c.l.b16 %v1645
        %v1733 = vunpack.c.h.b16 %v1645
        %v1734 = vunpack.c.l.b16 %v1646
        %v1735 = vunpack.c.h.b16 %v1646
        %v1736 = vunpack.c.l.b16 %v1647
        %v1737 = vunpack.c.h.b16 %v1647
        %v1738 = vunpack.c.l.b16 %v1648
        %v1739 = vunpack.c.h.b16 %v1648
        %v1740 = vunpack.c.l.b16 %v1649
        %v1741 = vunpack.c.h.b16 %v1649
        %v1742 = vunpack.c.l.b16 %v1650
        %v1743 = vunpack.c.h.b16 %v1650
        %v1744 = vunpack.c.l.b16 %v1651
        %v1745 = vunpack.c.h.b16 %v1651
        %v1746 = vunpack.c.l.b16 %v1652
        %v1747 = vunpack.c.h.b16 %v1652
        %v1748 = vunpack.c.l.b16 %v1653
        %v1749 = vunpack.c.h.b16 %v1653
        %v1750 = vpack.c.b16 %v1690, %v1686
        %v1751 = vpack.c.b16 %v1691, %v1687
        %v1752 = vpack.c.b16 %v1692, %v1688
        %v1753 = vpack.c.b16 %v1693, %v1689
        %v1754 = vpack.c.b16 %v1698, %v1694
        %v1755 = vpack.c.b16 %v1699, %v1695
        %v1756 = vpack.c.b16 %v1700, %v1696
        %v1757 = vpack.c.b16 %v1701, %v1697
        %v1758 = vpack.c.b16 %v1706, %v1702
        %v1759 = vpack.c.b16 %v1707, %v1703
        %v1760 = vpack.c.b16 %v1708, %v1704
        %v1761 = vpack.c.b16 %v1709, %v1705
        %v1762 = vpack.c.b16 %v1714, %v1710
        %v1763 = vpack.c.b16 %v1715, %v1711
        %v1764 = vpack.c.b16 %v1716, %v1712
        %v1765 = vpack.c.b16 %v1717, %v1713
        %v1766 = vpack.c.b16 %v1722, %v1718
        %v1767 = vpack.c.b16 %v1723, %v1719
        %v1768 = vpack.c.b16 %v1724, %v1720
        %v1769 = vpack.c.b16 %v1725, %v1721
        %v1770 = vpack.c.b16 %v1730, %v1726
        %v1771 = vpack.c.b16 %v1731, %v1727
        %v1772 = vpack.c.b16 %v1732, %v1728
        %v1773 = vpack.c.b16 %v1733, %v1729
        %v1774 = vpack.c.b16 %v1738, %v1734
        %v1775 = vpack.c.b16 %v1739, %v1735
        %v1776 = vpack.c.b16 %v1740, %v1736
        %v1777 = vpack.c.b16 %v1741, %v1737
        %v1778 = vpack.c.b16 %v1746, %v1742
        %v1779 = vpack.c.b16 %v1747, %v1743
        %v1780 = vpack.c.b16 %v1748, %v1744
        %v1781 = vpack.c.b16 %v1749, %v1745
        %1814 = vmatpush.bf16.msra.mxu0 %v1778
        %1815 = vmatpush.bf16.msra.mxu0 %v1774
        %1816 = vmatpush.bf16.msra.mxu0 %v1770
        %1817 = vmatpush.bf16.msra.mxu0 %v1766
        %1818 = vmatpush.bf16.msra.mxu0 %v1762
        %1819 = vmatpush.bf16.msra.mxu0 %v1758
        %1820 = vmatpush.bf16.msra.mxu0 %v1754
        %1821 = vmatpush.bf16.msra.mxu0 %v1750
        %1822 = vmatmul.bf16.gmra.mxu0 %v1621
        %v1823 = vpop.f32.mrf.mxu0
        %v1824 = vadd.f32 0.0, %v1823
        %v1825 = vpop.f32.mrf.mxu0
        %v1826 = vadd.f32 0.0, %v1825
        %1827 = vdwg.mxu0
        %1828 = vmatpush.bf16.msra.mxu0 %v1779
        %1829 = vmatpush.bf16.msra.mxu0 %v1775
        %1830 = vmatpush.bf16.msra.mxu0 %v1771
        %1831 = vmatpush.bf16.msra.mxu0 %v1767
        %1832 = vmatpush.bf16.msra.mxu0 %v1763
        %1833 = vmatpush.bf16.msra.mxu0 %v1759
        %1834 = vmatpush.bf16.msra.mxu0 %v1755
        %1835 = vmatpush.bf16.msra.mxu0 %v1751
        %1836 = vmatmul.bf16.gmra.mxu0 %v1621
        %v1837 = vpop.f32.mrf.mxu0
        %v1838 = vadd.f32 0.0, %v1837
        %v1839 = vpop.f32.mrf.mxu0
        %v1840 = vadd.f32 0.0, %v1839
        %1841 = vdwg.mxu0
        %1842 = vmatpush.bf16.msra.mxu0 %v1780
        %1843 = vmatpush.bf16.msra.mxu0 %v1776
        %1844 = vmatpush.bf16.msra.mxu0 %v1772
        %1845 = vmatpush.bf16.msra.mxu0 %v1768
        %1846 = vmatpush.bf16.msra.mxu0 %v1764
        %1847 = vmatpush.bf16.msra.mxu0 %v1760
        %1848 = vmatpush.bf16.msra.mxu0 %v1756
        %1849 = vmatpush.bf16.msra.mxu0 %v1752
        %1850 = vmatmul.bf16.gmra.mxu0 %v1621
        %v1851 = vpop.f32.mrf.mxu0
        %v1852 = vadd.f32 0.0, %v1851
        %v1853 = vpop.f32.mrf.mxu0
        %v1854 = vadd.f32 0.0, %v1853
        %1855 = vdwg.mxu0
        %1856 = vmatpush.bf16.msra.mxu0 %v1781
        %1857 = vmatpush.bf16.msra.mxu0 %v1777
        %1858 = vmatpush.bf16.msra.mxu0 %v1773
        %1859 = vmatpush.bf16.msra.mxu0 %v1769
        %1860 = vmatpush.bf16.msra.mxu0 %v1765
        %1861 = vmatpush.bf16.msra.mxu0 %v1761
        %1862 = vmatpush.bf16.msra.mxu0 %v1757
        %1863 = vmatpush.bf16.msra.mxu0 %v1753
        %1864 = vmatmul.bf16.gmra.mxu0 %v1621
        %v1865 = vpop.f32.mrf.mxu0
        %v1866 = vadd.f32 0.0, %v1865
        %v1867 = vpop.f32.mrf.mxu0
        %v1868 = vadd.f32 0.0, %v1867
        %1869 = vdwg.mxu0
        %v1870 = vadd.f32 %v1613, %v1824
        %v1871 = vadd.f32 %v1614, %v1838
        %v1872 = vadd.f32 %v1615, %v1852
        %v1873 = vadd.f32 %v1616, %v1866
        %v1874 = vadd.f32 %v1617, %v1826
        %v1875 = vadd.f32 %v1618, %v1840
        %v1876 = vadd.f32 %v1619, %v1854
        %v1877 = vadd.f32 %v1620, %v1868
        %v1878 = vmul.f32 %v1600, 0.5
        %v1879 = vmul.f32 %v1604, 0.5
        %v1880 = vtanh.pop %v1878
        %v1881 = vtanh.pop %v1879
        %v1882 = vmul.f32 %v1880, 0.5
        %v1883 = vmul.f32 %v1881, 0.5
        %v1884 = vadd.f32 %v1882, 0.5
        %v1885 = vadd.f32 %v1883, 0.5
        %v1886 = vmul.f32 %v1601, 0.5
        %v1887 = vmul.f32 %v1605, 0.5
        %v1888 = vtanh.pop %v1886
        %v1889 = vtanh.pop %v1887
        %v1890 = vmul.f32 %v1888, 0.5
        %v1891 = vmul.f32 %v1889, 0.5
        %v1892 = vadd.f32 %v1890, 0.5
        %v1893 = vadd.f32 %v1891, 0.5
        %v1894 = vtanh.pop %v1602
        %v1895 = vtanh.pop %v1606
        %v1896 = vmul.f32 %v1603, 0.5
        %v1897 = vmul.f32 %v1607, 0.5
        %v1898 = vtanh.pop %v1896
        %v1899 = vtanh.pop %v1897
        %v1900 = vmul.f32 %v1898, 0.5
        %v1901 = vmul.f32 %v1899, 0.5
        %v1902 = vadd.f32 %v1900, 0.5
        %v1903 = vadd.f32 %v1901, 0.5
        %v1904 = vmul.f32 %v1892, %v1333
        %v1905 = vmul.f32 %v1893, %v1334
        %v1906 = vmul.f32 %v1884, %v1894
        %v1907 = vmul.f32 %v1885, %v1895
        %v1908 = vadd.f32 %v1904, %v1906
        %v1909 = vadd.f32 %v1905, %v1907
        %v1910 = vtanh.pop %v1908
        %v1911 = vtanh.pop %v1909
        %v1912 = vmul.f32 %v1902, %v1910
        %v1913 = vmul.f32 %v1903, %v1911
        %v1914 = vmul.f32 %v1870, 0.5
        %v1915 = vmul.f32 %v1874, 0.5
        %v1916 = vtanh.pop %v1914
        %v1917 = vtanh.pop %v1915
        %v1918 = vmul.f32 %v1916, 0.5
        %v1919 = vmul.f32 %v1917, 0.5
        %v1920 = vadd.f32 %v1918, 0.5
        %v1921 = vadd.f32 %v1919, 0.5
        %v1922 = vmul.f32 %v1871, 0.5
        %v1923 = vmul.f32 %v1875, 0.5
        %v1924 = vtanh.pop %v1922
        %v1925 = vtanh.pop %v1923
        %v1926 = vmul.f32 %v1924, 0.5
        %v1927 = vmul.f32 %v1925, 0.5
        %v1928 = vadd.f32 %v1926, 0.5
        %v1929 = vadd.f32 %v1927, 0.5
        %v1930 = vtanh.pop %v1872
        %v1931 = vtanh.pop %v1876
        %v1932 = vmul.f32 %v1873, 0.5
        %v1933 = vmul.f32 %v1877, 0.5
        %v1934 = vtanh.pop %v1932
        %v1935 = vtanh.pop %v1933
        %v1936 = vmul.f32 %v1934, 0.5
        %v1937 = vmul.f32 %v1935, 0.5
        %v1938 = vadd.f32 %v1936, 0.5
        %v1939 = vadd.f32 %v1937, 0.5
        %v1940 = vmul.f32 %v1928, %v1337
        %v1941 = vmul.f32 %v1929, %v1338
        %v1942 = vmul.f32 %v1920, %v1930
        %v1943 = vmul.f32 %v1921, %v1931
        %v1944 = vadd.f32 %v1940, %v1942
        %v1945 = vadd.f32 %v1941, %v1943
        %v1946 = vtanh.pop %v1944
        %v1947 = vtanh.pop %v1945
        %v1948 = vmul.f32 %v1938, %v1946
        %v1949 = vmul.f32 %v1939, %v1947
        %p1950 = scmp.lt.s32.totalorder %s1330, 9
        %s1951 = scalar_select %p1950, 1, 0
        %s1952 = scvt.s32.f32 %s1951
        %p1953 = scmp.ge.s32.totalorder %s1330, 3
        %s1954 = scalar_select %p1953, 1, 0
        %s1955 = scvt.s32.f32 %s1954
        %v1956 = vstv %s1952
        %v1957 = vmul.f32 %v1956, %v1912
        %v1958 = vmul.f32 %v1956, %v1913
        %s1959 = ssub.f32 1.0, %s1952
        %v1960 = vstv %s1959
        %v1961 = vmul.f32 %v1960, %v1331
        %v1962 = vmul.f32 %v1960, %v1332
        %v1963 = vadd.f32 %v1957, %v1961
        %v1964 = vadd.f32 %v1958, %v1962
        %v1965 = vmul.f32 %v1956, %v1908
        %v1966 = vmul.f32 %v1956, %v1909
        %v1967 = vmul.f32 %v1960, %v1333
        %v1968 = vmul.f32 %v1960, %v1334
        %v1969 = vadd.f32 %v1965, %v1967
        %v1970 = vadd.f32 %v1966, %v1968
        %v1971 = vstv %s1955
        %v1972 = vmul.f32 %v1971, %v1948
        %v1973 = vmul.f32 %v1971, %v1949
        %s1974 = ssub.f32 1.0, %s1955
        %v1975 = vstv %s1974
        %v1976 = vmul.f32 %v1975, %v1335
        %v1977 = vmul.f32 %v1975, %v1336
        %v1978 = vadd.f32 %v1972, %v1976
        %v1979 = vadd.f32 %v1973, %v1977
        %v1980 = vmul.f32 %v1971, %v1944
        %v1981 = vmul.f32 %v1971, %v1945
        %v1982 = vmul.f32 %v1975, %v1337
        %v1983 = vmul.f32 %v1975, %v1338
        %v1984 = vadd.f32 %v1980, %v1982
        %v1985 = vadd.f32 %v1981, %v1983
        %s1986 = scalar_lea.vmem [#allocation2], 32
        %v1987 = vld [vmem:[%s1986] sm:$0xff]
        %v1988 = vld [vmem:[%s1986 + $0x8] sm:$0xff]
        %v1989 = vld [vmem:[%s1986 + $0x10] sm:$0xff]
        %v1990 = vld [vmem:[%s1986 + $0x18] sm:$0xff]
        %v1991 = vunpack.c.l.bf16 %v1987
        %v1992 = vunpack.c.h.bf16 %v1987
        %v1993 = vunpack.c.l.bf16 %v1988
        %v1994 = vunpack.c.h.bf16 %v1988
        %v1995 = vunpack.c.l.bf16 %v1989
        %v1996 = vunpack.c.h.bf16 %v1989
        %v1997 = vunpack.c.l.bf16 %v1990
        %v1998 = vunpack.c.h.bf16 %v1990
        %v1999 = vpack.c.bf16 %v1964, %v1963
        %2000 = vmatpush.bf16.msra.mxu0 %v1508
        %2001 = vmatpush.bf16.msra.mxu0 %v1504
        %2002 = vmatpush.bf16.msra.mxu0 %v1500
        %2003 = vmatpush.bf16.msra.mxu0 %v1496
        %2004 = vmatpush.bf16.msra.mxu0 %v1492
        %2005 = vmatpush.bf16.msra.mxu0 %v1488
        %2006 = vmatpush.bf16.msra.mxu0 %v1484
        %2007 = vmatpush.bf16.msra.mxu0 %v1480
        %2008 = vmatmul.bf16.gmra.mxu0 %v1999
        %v2009 = vpop.f32.mrf.mxu0
        %v2010 = vadd.f32 0.0, %v2009
        %v2011 = vpop.f32.mrf.mxu0
        %v2012 = vadd.f32 0.0, %v2011
        %2013 = vdwg.mxu0
        %2014 = vmatpush.bf16.msra.mxu0 %v1509
        %2015 = vmatpush.bf16.msra.mxu0 %v1505
        %2016 = vmatpush.bf16.msra.mxu0 %v1501
        %2017 = vmatpush.bf16.msra.mxu0 %v1497
        %2018 = vmatpush.bf16.msra.mxu0 %v1493
        %2019 = vmatpush.bf16.msra.mxu0 %v1489
        %2020 = vmatpush.bf16.msra.mxu0 %v1485
        %2021 = vmatpush.bf16.msra.mxu0 %v1481
        %2022 = vmatmul.bf16.gmra.mxu0 %v1999
        %v2023 = vpop.f32.mrf.mxu0
        %v2024 = vadd.f32 0.0, %v2023
        %v2025 = vpop.f32.mrf.mxu0
        %v2026 = vadd.f32 0.0, %v2025
        %2027 = vdwg.mxu0
        %2028 = vmatpush.bf16.msra.mxu0 %v1510
        %2029 = vmatpush.bf16.msra.mxu0 %v1506
        %2030 = vmatpush.bf16.msra.mxu0 %v1502
        %2031 = vmatpush.bf16.msra.mxu0 %v1498
        %2032 = vmatpush.bf16.msra.mxu0 %v1494
        %2033 = vmatpush.bf16.msra.mxu0 %v1490
        %2034 = vmatpush.bf16.msra.mxu0 %v1486
        %2035 = vmatpush.bf16.msra.mxu0 %v1482
        %2036 = vmatmul.bf16.gmra.mxu0 %v1999
        %v2037 = vpop.f32.mrf.mxu0
        %v2038 = vadd.f32 0.0, %v2037
        %v2039 = vpop.f32.mrf.mxu0
        %v2040 = vadd.f32 0.0, %v2039
        %2041 = vdwg.mxu0
        %2042 = vmatpush.bf16.msra.mxu0 %v1511
        %2043 = vmatpush.bf16.msra.mxu0 %v1507
        %2044 = vmatpush.bf16.msra.mxu0 %v1503
        %2045 = vmatpush.bf16.msra.mxu0 %v1499
        %2046 = vmatpush.bf16.msra.mxu0 %v1495
        %2047 = vmatpush.bf16.msra.mxu0 %v1491
        %2048 = vmatpush.bf16.msra.mxu0 %v1487
        %2049 = vmatpush.bf16.msra.mxu0 %v1483
        %2050 = vmatmul.bf16.gmra.mxu0 %v1999
        %v2051 = vpop.f32.mrf.mxu0
        %v2052 = vadd.f32 0.0, %v2051
        %v2053 = vpop.f32.mrf.mxu0
        %v2054 = vadd.f32 0.0, %v2053
        %2055 = vdwg.mxu0
        %v2056 = vadd.f32 %v1991, %v2010
        %v2057 = vadd.f32 %v1992, %v2024
        %v2058 = vadd.f32 %v1993, %v2038
        %v2059 = vadd.f32 %v1994, %v2052
        %v2060 = vadd.f32 %v1995, %v2012
        %v2061 = vadd.f32 %v1996, %v2026
        %v2062 = vadd.f32 %v1997, %v2040
        %v2063 = vadd.f32 %v1998, %v2054
        %s2064 = scalar_lea.vmem [#allocation3], 64
        %v2065 = vld [vmem:[%s2064] sm:$0xff]
        %v2066 = vld [vmem:[%s2064 + $0x8] sm:$0xff]
        %v2067 = vld [vmem:[%s2064 + $0x10] sm:$0xff]
        %v2068 = vld [vmem:[%s2064 + $0x18] sm:$0xff]
        %v2069 = vunpack.c.l.bf16 %v2065
        %v2070 = vunpack.c.h.bf16 %v2065
        %v2071 = vunpack.c.l.bf16 %v2066
        %v2072 = vunpack.c.h.bf16 %v2066
        %v2073 = vunpack.c.l.bf16 %v2067
        %v2074 = vunpack.c.h.bf16 %v2067
        %v2075 = vunpack.c.l.bf16 %v2068
        %v2076 = vunpack.c.h.bf16 %v2068
        %v2077 = vpack.c.bf16 %v1979, %v1978
        %2078 = vmatpush.bf16.msra.mxu0 %v1778
        %2079 = vmatpush.bf16.msra.mxu0 %v1774
        %2080 = vmatpush.bf16.msra.mxu0 %v1770
        %2081 = vmatpush.bf16.msra.mxu0 %v1766
        %2082 = vmatpush.bf16.msra.mxu0 %v1762
        %2083 = vmatpush.bf16.msra.mxu0 %v1758
        %2084 = vmatpush.bf16.msra.mxu0 %v1754
        %2085 = vmatpush.bf16.msra.mxu0 %v1750
        %2086 = vmatmul.bf16.gmra.mxu0 %v2077
        %v2087 = vpop.f32.mrf.mxu0
        %v2088 = vadd.f32 0.0, %v2087
        %v2089 = vpop.f32.mrf.mxu0
        %v2090 = vadd.f32 0.0, %v2089
        %2091 = vdwg.mxu0
        %2092 = vmatpush.bf16.msra.mxu0 %v1779
        %2093 = vmatpush.bf16.msra.mxu0 %v1775
        %2094 = vmatpush.bf16.msra.mxu0 %v1771
        %2095 = vmatpush.bf16.msra.mxu0 %v1767
        %2096 = vmatpush.bf16.msra.mxu0 %v1763
        %2097 = vmatpush.bf16.msra.mxu0 %v1759
        %2098 = vmatpush.bf16.msra.mxu0 %v1755
        %2099 = vmatpush.bf16.msra.mxu0 %v1751
        %2100 = vmatmul.bf16.gmra.mxu0 %v2077
        %v2101 = vpop.f32.mrf.mxu0
        %v2102 = vadd.f32 0.0, %v2101
        %v2103 = vpop.f32.mrf.mxu0
        %v2104 = vadd.f32 0.0, %v2103
        %2105 = vdwg.mxu0
        %2106 = vmatpush.bf16.msra.mxu0 %v1780
        %2107 = vmatpush.bf16.msra.mxu0 %v1776
        %2108 = vmatpush.bf16.msra.mxu0 %v1772
        %2109 = vmatpush.bf16.msra.mxu0 %v1768
        %2110 = vmatpush.bf16.msra.mxu0 %v1764
        %2111 = vmatpush.bf16.msra.mxu0 %v1760
        %2112 = vmatpush.bf16.msra.mxu0 %v1756
        %2113 = vmatpush.bf16.msra.mxu0 %v1752
        %2114 = vmatmul.bf16.gmra.mxu0 %v2077
        %v2115 = vpop.f32.mrf.mxu0
        %v2116 = vadd.f32 0.0, %v2115
        %v2117 = vpop.f32.mrf.mxu0
        %v2118 = vadd.f32 0.0, %v2117
        %2119 = vdwg.mxu0
        %2120 = vmatpush.bf16.msra.mxu0 %v1781
        %2121 = vmatpush.bf16.msra.mxu0 %v1777
        %2122 = vmatpush.bf16.msra.mxu0 %v1773
        %2123 = vmatpush.bf16.msra.mxu0 %v1769
        %2124 = vmatpush.bf16.msra.mxu0 %v1765
        %2125 = vmatpush.bf16.msra.mxu0 %v1761
        %2126 = vmatpush.bf16.msra.mxu0 %v1757
        %2127 = vmatpush.bf16.msra.mxu0 %v1753
        %2128 = vmatmul.bf16.gmra.mxu0 %v2077
        %v2129 = vpop.f32.mrf.mxu0
        %v2130 = vadd.f32 0.0, %v2129
        %v2131 = vpop.f32.mrf.mxu0
        %v2132 = vadd.f32 0.0, %v2131
        %2133 = vdwg.mxu0
        %v2134 = vadd.f32 %v2069, %v2088
        %v2135 = vadd.f32 %v2070, %v2102
        %v2136 = vadd.f32 %v2071, %v2116
        %v2137 = vadd.f32 %v2072, %v2130
        %v2138 = vadd.f32 %v2073, %v2090
        %v2139 = vadd.f32 %v2074, %v2104
        %v2140 = vadd.f32 %v2075, %v2118
        %v2141 = vadd.f32 %v2076, %v2132
        %v2142 = vmul.f32 %v2056, 0.5
        %v2143 = vmul.f32 %v2060, 0.5
        %v2144 = vtanh.pop %v2142
        %v2145 = vtanh.pop %v2143
        %v2146 = vmul.f32 %v2144, 0.5
        %v2147 = vmul.f32 %v2145, 0.5
        %v2148 = vadd.f32 %v2146, 0.5
        %v2149 = vadd.f32 %v2147, 0.5
        %v2150 = vmul.f32 %v2057, 0.5
        %v2151 = vmul.f32 %v2061, 0.5
        %v2152 = vtanh.pop %v2150
        %v2153 = vtanh.pop %v2151
        %v2154 = vmul.f32 %v2152, 0.5
        %v2155 = vmul.f32 %v2153, 0.5
        %v2156 = vadd.f32 %v2154, 0.5
        %v2157 = vadd.f32 %v2155, 0.5
        %v2158 = vtanh.pop %v2058
        %v2159 = vtanh.pop %v2062
        %v2160 = vmul.f32 %v2059, 0.5
        %v2161 = vmul.f32 %v2063, 0.5
        %v2162 = vtanh.pop %v2160
        %v2163 = vtanh.pop %v2161
        %v2164 = vmul.f32 %v2162, 0.5
        %v2165 = vmul.f32 %v2163, 0.5
        %v2166 = vadd.f32 %v2164, 0.5
        %v2167 = vadd.f32 %v2165, 0.5
        %v2168 = vmul.f32 %v2156, %v1969
        %v2169 = vmul.f32 %v2157, %v1970
        %v2170 = vmul.f32 %v2148, %v2158
        %v2171 = vmul.f32 %v2149, %v2159
        %v2172 = vadd.f32 %v2168, %v2170
        %v2173 = vadd.f32 %v2169, %v2171
        %v2174 = vtanh.pop %v2172
        %v2175 = vtanh.pop %v2173
        %v2176 = vmul.f32 %v2166, %v2174
        %v2177 = vmul.f32 %v2167, %v2175
        %v2178 = vmul.f32 %v2134, 0.5
        %v2179 = vmul.f32 %v2138, 0.5
        %v2180 = vtanh.pop %v2178
        %v2181 = vtanh.pop %v2179
        %v2182 = vmul.f32 %v2180, 0.5
        %v2183 = vmul.f32 %v2181, 0.5
        %v2184 = vadd.f32 %v2182, 0.5
        %v2185 = vadd.f32 %v2183, 0.5
        %v2186 = vmul.f32 %v2135, 0.5
        %v2187 = vmul.f32 %v2139, 0.5
        %v2188 = vtanh.pop %v2186
        %v2189 = vtanh.pop %v2187
        %v2190 = vmul.f32 %v2188, 0.5
        %v2191 = vmul.f32 %v2189, 0.5
        %v2192 = vadd.f32 %v2190, 0.5
        %v2193 = vadd.f32 %v2191, 0.5
        %v2194 = vtanh.pop %v2136
        %v2195 = vtanh.pop %v2140
        %v2196 = vmul.f32 %v2137, 0.5
        %v2197 = vmul.f32 %v2141, 0.5
        %v2198 = vtanh.pop %v2196
        %v2199 = vtanh.pop %v2197
        %v2200 = vmul.f32 %v2198, 0.5
        %v2201 = vmul.f32 %v2199, 0.5
        %v2202 = vadd.f32 %v2200, 0.5
        %v2203 = vadd.f32 %v2201, 0.5
        %v2204 = vmul.f32 %v2192, %v1984
        %v2205 = vmul.f32 %v2193, %v1985
        %v2206 = vmul.f32 %v2184, %v2194
        %v2207 = vmul.f32 %v2185, %v2195
        %v2208 = vadd.f32 %v2204, %v2206
        %v2209 = vadd.f32 %v2205, %v2207
        %v2210 = vtanh.pop %v2208
        %v2211 = vtanh.pop %v2209
        %v2212 = vmul.f32 %v2202, %v2210
        %v2213 = vmul.f32 %v2203, %v2211
        %s2214 = sadd.s32 %s1330, 1
        %p2215 = scmp.lt.s32.totalorder %s2214, 9
        %s2216 = scalar_select %p2215, 1, 0
        %s2217 = scvt.s32.f32 %s2216
        %p2218 = scmp.ge.s32.totalorder %s2214, 3
        %s2219 = scalar_select %p2218, 1, 0
        %s2220 = scvt.s32.f32 %s2219
        %v2221 = vstv %s2217
        %v2222 = vmul.f32 %v2221, %v2176
        %v2223 = vmul.f32 %v2221, %v2177
        %s2224 = ssub.f32 1.0, %s2217
        %v2225 = vstv %s2224
        %v2226 = vmul.f32 %v2225, %v1963
        %v2227 = vmul.f32 %v2225, %v1964
        %v2228 = vadd.f32 %v2222, %v2226
        %v2229 = vadd.f32 %v2223, %v2227
        %v2230 = vmul.f32 %v2221, %v2172
        %v2231 = vmul.f32 %v2221, %v2173
        %v2232 = vmul.f32 %v2225, %v1969
        %v2233 = vmul.f32 %v2225, %v1970
        %v2234 = vadd.f32 %v2230, %v2232
        %v2235 = vadd.f32 %v2231, %v2233
        %v2236 = vstv %s2220
        %v2237 = vmul.f32 %v2236, %v2212
        %v2238 = vmul.f32 %v2236, %v2213
        %s2239 = ssub.f32 1.0, %s2220
        %v2240 = vstv %s2239
        %v2241 = vmul.f32 %v2240, %v1978
        %v2242 = vmul.f32 %v2240, %v1979
        %v2243 = vadd.f32 %v2237, %v2241
        %v2244 = vadd.f32 %v2238, %v2242
        %v2245 = vmul.f32 %v2236, %v2208
        %v2246 = vmul.f32 %v2236, %v2209
        %v2247 = vmul.f32 %v2240, %v1984
        %v2248 = vmul.f32 %v2240, %v1985
        %v2249 = vadd.f32 %v2245, %v2247
        %v2250 = vadd.f32 %v2246, %v2248
        %s2251 = scalar_lea.vmem [#allocation2], 64
        %v2252 = vld [vmem:[%s2251] sm:$0xff]
        %v2253 = vld [vmem:[%s2251 + $0x8] sm:$0xff]
        %v2254 = vld [vmem:[%s2251 + $0x10] sm:$0xff]
        %v2255 = vld [vmem:[%s2251 + $0x18] sm:$0xff]
        %v2256 = vunpack.c.l.bf16 %v2252
        %v2257 = vunpack.c.h.bf16 %v2252
        %v2258 = vunpack.c.l.bf16 %v2253
        %v2259 = vunpack.c.h.bf16 %v2253
        %v2260 = vunpack.c.l.bf16 %v2254
        %v2261 = vunpack.c.h.bf16 %v2254
        %v2262 = vunpack.c.l.bf16 %v2255
        %v2263 = vunpack.c.h.bf16 %v2255
        %v2264 = vpack.c.bf16 %v2229, %v2228
        %2265 = vmatpush.bf16.msra.mxu0 %v1508
        %2266 = vmatpush.bf16.msra.mxu0 %v1504
        %2267 = vmatpush.bf16.msra.mxu0 %v1500
        %2268 = vmatpush.bf16.msra.mxu0 %v1496
        %2269 = vmatpush.bf16.msra.mxu0 %v1492
        %2270 = vmatpush.bf16.msra.mxu0 %v1488
        %2271 = vmatpush.bf16.msra.mxu0 %v1484
        %2272 = vmatpush.bf16.msra.mxu0 %v1480
        %2273 = vmatmul.bf16.gmra.mxu0 %v2264
        %v2274 = vpop.f32.mrf.mxu0
        %v2275 = vadd.f32 0.0, %v2274
        %v2276 = vpop.f32.mrf.mxu0
        %v2277 = vadd.f32 0.0, %v2276
        %2278 = vdwg.mxu0
        %2279 = vmatpush.bf16.msra.mxu0 %v1509
        %2280 = vmatpush.bf16.msra.mxu0 %v1505
        %2281 = vmatpush.bf16.msra.mxu0 %v1501
        %2282 = vmatpush.bf16.msra.mxu0 %v1497
        %2283 = vmatpush.bf16.msra.mxu0 %v1493
        %2284 = vmatpush.bf16.msra.mxu0 %v1489
        %2285 = vmatpush.bf16.msra.mxu0 %v1485
        %2286 = vmatpush.bf16.msra.mxu0 %v1481
        %2287 = vmatmul.bf16.gmra.mxu0 %v2264
        %v2288 = vpop.f32.mrf.mxu0
        %v2289 = vadd.f32 0.0, %v2288
        %v2290 = vpop.f32.mrf.mxu0
        %v2291 = vadd.f32 0.0, %v2290
        %2292 = vdwg.mxu0
        %2293 = vmatpush.bf16.msra.mxu0 %v1510
        %2294 = vmatpush.bf16.msra.mxu0 %v1506
        %2295 = vmatpush.bf16.msra.mxu0 %v1502
        %2296 = vmatpush.bf16.msra.mxu0 %v1498
        %2297 = vmatpush.bf16.msra.mxu0 %v1494
        %2298 = vmatpush.bf16.msra.mxu0 %v1490
        %2299 = vmatpush.bf16.msra.mxu0 %v1486
        %2300 = vmatpush.bf16.msra.mxu0 %v1482
        %2301 = vmatmul.bf16.gmra.mxu0 %v2264
        %v2302 = vpop.f32.mrf.mxu0
        %v2303 = vadd.f32 0.0, %v2302
        %v2304 = vpop.f32.mrf.mxu0
        %v2305 = vadd.f32 0.0, %v2304
        %2306 = vdwg.mxu0
        %2307 = vmatpush.bf16.msra.mxu0 %v1511
        %2308 = vmatpush.bf16.msra.mxu0 %v1507
        %2309 = vmatpush.bf16.msra.mxu0 %v1503
        %2310 = vmatpush.bf16.msra.mxu0 %v1499
        %2311 = vmatpush.bf16.msra.mxu0 %v1495
        %2312 = vmatpush.bf16.msra.mxu0 %v1491
        %2313 = vmatpush.bf16.msra.mxu0 %v1487
        %2314 = vmatpush.bf16.msra.mxu0 %v1483
        %2315 = vmatmul.bf16.gmra.mxu0 %v2264
        %v2316 = vpop.f32.mrf.mxu0
        %v2317 = vadd.f32 0.0, %v2316
        %v2318 = vpop.f32.mrf.mxu0
        %v2319 = vadd.f32 0.0, %v2318
        %2320 = vdwg.mxu0
        %v2321 = vadd.f32 %v2256, %v2275
        %v2322 = vadd.f32 %v2257, %v2289
        %v2323 = vadd.f32 %v2258, %v2303
        %v2324 = vadd.f32 %v2259, %v2317
        %v2325 = vadd.f32 %v2260, %v2277
        %v2326 = vadd.f32 %v2261, %v2291
        %v2327 = vadd.f32 %v2262, %v2305
        %v2328 = vadd.f32 %v2263, %v2319
        %s2329 = scalar_lea.vmem [#allocation3], 32
        %v2330 = vld [vmem:[%s2329] sm:$0xff]
        %v2331 = vld [vmem:[%s2329 + $0x8] sm:$0xff]
        %v2332 = vld [vmem:[%s2329 + $0x10] sm:$0xff]
        %v2333 = vld [vmem:[%s2329 + $0x18] sm:$0xff]
        %v2334 = vunpack.c.l.bf16 %v2330
        %v2335 = vunpack.c.h.bf16 %v2330
        %v2336 = vunpack.c.l.bf16 %v2331
        %v2337 = vunpack.c.h.bf16 %v2331
        %v2338 = vunpack.c.l.bf16 %v2332
        %v2339 = vunpack.c.h.bf16 %v2332
        %v2340 = vunpack.c.l.bf16 %v2333
        %v2341 = vunpack.c.h.bf16 %v2333
        %v2342 = vpack.c.bf16 %v2244, %v2243
        %2343 = vmatpush.bf16.msra.mxu0 %v1778
        %2344 = vmatpush.bf16.msra.mxu0 %v1774
        %2345 = vmatpush.bf16.msra.mxu0 %v1770
        %2346 = vmatpush.bf16.msra.mxu0 %v1766
        %2347 = vmatpush.bf16.msra.mxu0 %v1762
        %2348 = vmatpush.bf16.msra.mxu0 %v1758
        %2349 = vmatpush.bf16.msra.mxu0 %v1754
        %2350 = vmatpush.bf16.msra.mxu0 %v1750
        %2351 = vmatmul.bf16.gmra.mxu0 %v2342
        %v2352 = vpop.f32.mrf.mxu0
        %v2353 = vadd.f32 0.0, %v2352
        %v2354 = vpop.f32.mrf.mxu0
        %v2355 = vadd.f32 0.0, %v2354
        %2356 = vdwg.mxu0
        %2357 = vmatpush.bf16.msra.mxu0 %v1779
        %2358 = vmatpush.bf16.msra.mxu0 %v1775
        %2359 = vmatpush.bf16.msra.mxu0 %v1771
        %2360 = vmatpush.bf16.msra.mxu0 %v1767
        %2361 = vmatpush.bf16.msra.mxu0 %v1763
        %2362 = vmatpush.bf16.msra.mxu0 %v1759
        %2363 = vmatpush.bf16.msra.mxu0 %v1755
        %2364 = vmatpush.bf16.msra.mxu0 %v1751
        %2365 = vmatmul.bf16.gmra.mxu0 %v2342
        %v2366 = vpop.f32.mrf.mxu0
        %v2367 = vadd.f32 0.0, %v2366
        %v2368 = vpop.f32.mrf.mxu0
        %v2369 = vadd.f32 0.0, %v2368
        %2370 = vdwg.mxu0
        %2371 = vmatpush.bf16.msra.mxu0 %v1780
        %2372 = vmatpush.bf16.msra.mxu0 %v1776
        %2373 = vmatpush.bf16.msra.mxu0 %v1772
        %2374 = vmatpush.bf16.msra.mxu0 %v1768
        %2375 = vmatpush.bf16.msra.mxu0 %v1764
        %2376 = vmatpush.bf16.msra.mxu0 %v1760
        %2377 = vmatpush.bf16.msra.mxu0 %v1756
        %2378 = vmatpush.bf16.msra.mxu0 %v1752
        %2379 = vmatmul.bf16.gmra.mxu0 %v2342
        %v2380 = vpop.f32.mrf.mxu0
        %v2381 = vadd.f32 0.0, %v2380
        %v2382 = vpop.f32.mrf.mxu0
        %v2383 = vadd.f32 0.0, %v2382
        %2384 = vdwg.mxu0
        %2385 = vmatpush.bf16.msra.mxu0 %v1781
        %2386 = vmatpush.bf16.msra.mxu0 %v1777
        %2387 = vmatpush.bf16.msra.mxu0 %v1773
        %2388 = vmatpush.bf16.msra.mxu0 %v1769
        %2389 = vmatpush.bf16.msra.mxu0 %v1765
        %2390 = vmatpush.bf16.msra.mxu0 %v1761
        %2391 = vmatpush.bf16.msra.mxu0 %v1757
        %2392 = vmatpush.bf16.msra.mxu0 %v1753
        %2393 = vmatmul.bf16.gmra.mxu0 %v2342
        %v2394 = vpop.f32.mrf.mxu0
        %v2395 = vadd.f32 0.0, %v2394
        %v2396 = vpop.f32.mrf.mxu0
        %v2397 = vadd.f32 0.0, %v2396
        %2398 = vdwg.mxu0
        %v2399 = vadd.f32 %v2334, %v2353
        %v2400 = vadd.f32 %v2335, %v2367
        %v2401 = vadd.f32 %v2336, %v2381
        %v2402 = vadd.f32 %v2337, %v2395
        %v2403 = vadd.f32 %v2338, %v2355
        %v2404 = vadd.f32 %v2339, %v2369
        %v2405 = vadd.f32 %v2340, %v2383
        %v2406 = vadd.f32 %v2341, %v2397
        %v2407 = vmul.f32 %v2321, 0.5
        %v2408 = vmul.f32 %v2325, 0.5
        %v2409 = vtanh.pop %v2407
        %v2410 = vtanh.pop %v2408
        %v2411 = vmul.f32 %v2409, 0.5
        %v2412 = vmul.f32 %v2410, 0.5
        %v2413 = vadd.f32 %v2411, 0.5
        %v2414 = vadd.f32 %v2412, 0.5
        %v2415 = vmul.f32 %v2322, 0.5
        %v2416 = vmul.f32 %v2326, 0.5
        %v2417 = vtanh.pop %v2415
        %v2418 = vtanh.pop %v2416
        %v2419 = vmul.f32 %v2417, 0.5
        %v2420 = vmul.f32 %v2418, 0.5
        %v2421 = vadd.f32 %v2419, 0.5
        %v2422 = vadd.f32 %v2420, 0.5
        %v2423 = vtanh.pop %v2323
        %v2424 = vtanh.pop %v2327
        %v2425 = vmul.f32 %v2324, 0.5
        %v2426 = vmul.f32 %v2328, 0.5
        %v2427 = vtanh.pop %v2425
        %v2428 = vtanh.pop %v2426
        %v2429 = vmul.f32 %v2427, 0.5
        %v2430 = vmul.f32 %v2428, 0.5
        %v2431 = vadd.f32 %v2429, 0.5
        %v2432 = vadd.f32 %v2430, 0.5
        %v2433 = vmul.f32 %v2421, %v2234
        %v2434 = vmul.f32 %v2422, %v2235
        %v2435 = vmul.f32 %v2413, %v2423
        %v2436 = vmul.f32 %v2414, %v2424
        %v2437 = vadd.f32 %v2433, %v2435
        %v2438 = vadd.f32 %v2434, %v2436
        %v2439 = vtanh.pop %v2437
        %v2440 = vtanh.pop %v2438
        %v2441 = vmul.f32 %v2431, %v2439
        %v2442 = vmul.f32 %v2432, %v2440
        %v2443 = vmul.f32 %v2399, 0.5
        %v2444 = vmul.f32 %v2403, 0.5
        %v2445 = vtanh.pop %v2443
        %v2446 = vtanh.pop %v2444
        %v2447 = vmul.f32 %v2445, 0.5
        %v2448 = vmul.f32 %v2446, 0.5
        %v2449 = vadd.f32 %v2447, 0.5
        %v2450 = vadd.f32 %v2448, 0.5
        %v2451 = vmul.f32 %v2400, 0.5
        %v2452 = vmul.f32 %v2404, 0.5
        %v2453 = vtanh.pop %v2451
        %v2454 = vtanh.pop %v2452
        %v2455 = vmul.f32 %v2453, 0.5
        %v2456 = vmul.f32 %v2454, 0.5
        %v2457 = vadd.f32 %v2455, 0.5
        %v2458 = vadd.f32 %v2456, 0.5
        %v2459 = vtanh.pop %v2401
        %v2460 = vtanh.pop %v2405
        %v2461 = vmul.f32 %v2402, 0.5
        %v2462 = vmul.f32 %v2406, 0.5
        %v2463 = vtanh.pop %v2461
        %v2464 = vtanh.pop %v2462
        %v2465 = vmul.f32 %v2463, 0.5
        %v2466 = vmul.f32 %v2464, 0.5
        %v2467 = vadd.f32 %v2465, 0.5
        %v2468 = vadd.f32 %v2466, 0.5
        %v2469 = vmul.f32 %v2457, %v2249
        %v2470 = vmul.f32 %v2458, %v2250
        %v2471 = vmul.f32 %v2449, %v2459
        %v2472 = vmul.f32 %v2450, %v2460
        %v2473 = vadd.f32 %v2469, %v2471
        %v2474 = vadd.f32 %v2470, %v2472
        %v2475 = vtanh.pop %v2473
        %v2476 = vtanh.pop %v2474
        %v2477 = vmul.f32 %v2467, %v2475
        %v2478 = vmul.f32 %v2468, %v2476
        %s2479 = sadd.s32 %s1330, 2
        %p2480 = scmp.lt.s32.totalorder %s2479, 9
        %s2481 = scalar_select %p2480, 1, 0
        %s2482 = scvt.s32.f32 %s2481
        %p2483 = scmp.ge.s32.totalorder %s2479, 3
        %s2484 = scalar_select %p2483, 1, 0
        %s2485 = scvt.s32.f32 %s2484
        %v2486 = vstv %s2482
        %v2487 = vmul.f32 %v2486, %v2441
        %v2488 = vmul.f32 %v2486, %v2442
        %s2489 = ssub.f32 1.0, %s2482
        %v2490 = vstv %s2489
        %v2491 = vmul.f32 %v2490, %v2228
        %v2492 = vmul.f32 %v2490, %v2229
        %v2493 = vadd.f32 %v2487, %v2491
        %v2494 = vadd.f32 %v2488, %v2492
        %v2495 = vmul.f32 %v2486, %v2437
        %v2496 = vmul.f32 %v2486, %v2438
        %v2497 = vmul.f32 %v2490, %v2234
        %v2498 = vmul.f32 %v2490, %v2235
        %v2499 = vadd.f32 %v2495, %v2497
        %v2500 = vadd.f32 %v2496, %v2498
        %v2501 = vstv %s2485
        %v2502 = vmul.f32 %v2501, %v2477
        %v2503 = vmul.f32 %v2501, %v2478
        %s2504 = ssub.f32 1.0, %s2485
        %v2505 = vstv %s2504
        %v2506 = vmul.f32 %v2505, %v2243
        %v2507 = vmul.f32 %v2505, %v2244
        %v2508 = vadd.f32 %v2502, %v2506
        %v2509 = vadd.f32 %v2503, %v2507
        %v2510 = vmul.f32 %v2501, %v2473
        %v2511 = vmul.f32 %v2501, %v2474
        %v2512 = vmul.f32 %v2505, %v2249
        %v2513 = vmul.f32 %v2505, %v2250
        %v2514 = vadd.f32 %v2510, %v2512
        %v2515 = vadd.f32 %v2511, %v2513
        %s2516 = scalar_lea.vmem [#allocation2], 96
        %v2517 = vld [vmem:[%s2516] sm:$0xff]
        %v2518 = vld [vmem:[%s2516 + $0x8] sm:$0xff]
        %v2519 = vld [vmem:[%s2516 + $0x10] sm:$0xff]
        %v2520 = vld [vmem:[%s2516 + $0x18] sm:$0xff]
        %v2521 = vunpack.c.l.bf16 %v2517
        %v2522 = vunpack.c.h.bf16 %v2517
        %v2523 = vunpack.c.l.bf16 %v2518
        %v2524 = vunpack.c.h.bf16 %v2518
        %v2525 = vunpack.c.l.bf16 %v2519
        %v2526 = vunpack.c.h.bf16 %v2519
        %v2527 = vunpack.c.l.bf16 %v2520
        %v2528 = vunpack.c.h.bf16 %v2520
        %v2529 = vpack.c.bf16 %v2494, %v2493
        %2530 = vmatpush.bf16.msra.mxu0 %v1508
        %2531 = vmatpush.bf16.msra.mxu0 %v1504
        %2532 = vmatpush.bf16.msra.mxu0 %v1500
        %2533 = vmatpush.bf16.msra.mxu0 %v1496
        %2534 = vmatpush.bf16.msra.mxu0 %v1492
        %2535 = vmatpush.bf16.msra.mxu0 %v1488
        %2536 = vmatpush.bf16.msra.mxu0 %v1484
        %2537 = vmatpush.bf16.msra.mxu0 %v1480
        %2538 = vmatmul.bf16.gmra.mxu0 %v2529
        %v2539 = vpop.f32.mrf.mxu0
        %v2540 = vadd.f32 0.0, %v2539
        %v2541 = vpop.f32.mrf.mxu0
        %v2542 = vadd.f32 0.0, %v2541
        %2543 = vdwg.mxu0
        %2544 = vmatpush.bf16.msra.mxu0 %v1509
        %2545 = vmatpush.bf16.msra.mxu0 %v1505
        %2546 = vmatpush.bf16.msra.mxu0 %v1501
        %2547 = vmatpush.bf16.msra.mxu0 %v1497
        %2548 = vmatpush.bf16.msra.mxu0 %v1493
        %2549 = vmatpush.bf16.msra.mxu0 %v1489
        %2550 = vmatpush.bf16.msra.mxu0 %v1485
        %2551 = vmatpush.bf16.msra.mxu0 %v1481
        %2552 = vmatmul.bf16.gmra.mxu0 %v2529
        %v2553 = vpop.f32.mrf.mxu0
        %v2554 = vadd.f32 0.0, %v2553
        %v2555 = vpop.f32.mrf.mxu0
        %v2556 = vadd.f32 0.0, %v2555
        %2557 = vdwg.mxu0
        %2558 = vmatpush.bf16.msra.mxu0 %v1510
        %2559 = vmatpush.bf16.msra.mxu0 %v1506
        %2560 = vmatpush.bf16.msra.mxu0 %v1502
        %2561 = vmatpush.bf16.msra.mxu0 %v1498
        %2562 = vmatpush.bf16.msra.mxu0 %v1494
        %2563 = vmatpush.bf16.msra.mxu0 %v1490
        %2564 = vmatpush.bf16.msra.mxu0 %v1486
        %2565 = vmatpush.bf16.msra.mxu0 %v1482
        %2566 = vmatmul.bf16.gmra.mxu0 %v2529
        %v2567 = vpop.f32.mrf.mxu0
        %v2568 = vadd.f32 0.0, %v2567
        %v2569 = vpop.f32.mrf.mxu0
        %v2570 = vadd.f32 0.0, %v2569
        %2571 = vdwg.mxu0
        %2572 = vmatpush.bf16.msra.mxu0 %v1511
        %2573 = vmatpush.bf16.msra.mxu0 %v1507
        %2574 = vmatpush.bf16.msra.mxu0 %v1503
        %2575 = vmatpush.bf16.msra.mxu0 %v1499
        %2576 = vmatpush.bf16.msra.mxu0 %v1495
        %2577 = vmatpush.bf16.msra.mxu0 %v1491
        %2578 = vmatpush.bf16.msra.mxu0 %v1487
        %2579 = vmatpush.bf16.msra.mxu0 %v1483
        %2580 = vmatmul.bf16.gmra.mxu0 %v2529
        %v2581 = vpop.f32.mrf.mxu0
        %v2582 = vadd.f32 0.0, %v2581
        %v2583 = vpop.f32.mrf.mxu0
        %v2584 = vadd.f32 0.0, %v2583
        %2585 = vdwg.mxu0
        %v2586 = vadd.f32 %v2521, %v2540
        %v2587 = vadd.f32 %v2522, %v2554
        %v2588 = vadd.f32 %v2523, %v2568
        %v2589 = vadd.f32 %v2524, %v2582
        %v2590 = vadd.f32 %v2525, %v2542
        %v2591 = vadd.f32 %v2526, %v2556
        %v2592 = vadd.f32 %v2527, %v2570
        %v2593 = vadd.f32 %v2528, %v2584
        %v2594 = vld [vmem:[#allocation3] sm:$0xff]
        %v2595 = vld [vmem:[#allocation3 + $0x8] sm:$0xff]
        %v2596 = vld [vmem:[#allocation3 + $0x10] sm:$0xff]
        %v2597 = vld [vmem:[#allocation3 + $0x18] sm:$0xff]
        %v2598 = vunpack.c.l.bf16 %v2594
        %v2599 = vunpack.c.h.bf16 %v2594
        %v2600 = vunpack.c.l.bf16 %v2595
        %v2601 = vunpack.c.h.bf16 %v2595
        %v2602 = vunpack.c.l.bf16 %v2596
        %v2603 = vunpack.c.h.bf16 %v2596
        %v2604 = vunpack.c.l.bf16 %v2597
        %v2605 = vunpack.c.h.bf16 %v2597
        %v2606 = vpack.c.bf16 %v2509, %v2508
        %2607 = vmatpush.bf16.msra.mxu0 %v1778
        %2608 = vmatpush.bf16.msra.mxu0 %v1774
        %2609 = vmatpush.bf16.msra.mxu0 %v1770
        %2610 = vmatpush.bf16.msra.mxu0 %v1766
        %2611 = vmatpush.bf16.msra.mxu0 %v1762
        %2612 = vmatpush.bf16.msra.mxu0 %v1758
        %2613 = vmatpush.bf16.msra.mxu0 %v1754
        %2614 = vmatpush.bf16.msra.mxu0 %v1750
        %2615 = vmatmul.bf16.gmra.mxu0 %v2606
        %v2616 = vpop.f32.mrf.mxu0
        %v2617 = vadd.f32 0.0, %v2616
        %v2618 = vpop.f32.mrf.mxu0
        %v2619 = vadd.f32 0.0, %v2618
        %2620 = vdwg.mxu0
        %2621 = vmatpush.bf16.msra.mxu0 %v1779
        %2622 = vmatpush.bf16.msra.mxu0 %v1775
        %2623 = vmatpush.bf16.msra.mxu0 %v1771
        %2624 = vmatpush.bf16.msra.mxu0 %v1767
        %2625 = vmatpush.bf16.msra.mxu0 %v1763
        %2626 = vmatpush.bf16.msra.mxu0 %v1759
        %2627 = vmatpush.bf16.msra.mxu0 %v1755
        %2628 = vmatpush.bf16.msra.mxu0 %v1751
        %2629 = vmatmul.bf16.gmra.mxu0 %v2606
        %v2630 = vpop.f32.mrf.mxu0
        %v2631 = vadd.f32 0.0, %v2630
        %v2632 = vpop.f32.mrf.mxu0
        %v2633 = vadd.f32 0.0, %v2632
        %2634 = vdwg.mxu0
        %2635 = vmatpush.bf16.msra.mxu0 %v1780
        %2636 = vmatpush.bf16.msra.mxu0 %v1776
        %2637 = vmatpush.bf16.msra.mxu0 %v1772
        %2638 = vmatpush.bf16.msra.mxu0 %v1768
        %2639 = vmatpush.bf16.msra.mxu0 %v1764
        %2640 = vmatpush.bf16.msra.mxu0 %v1760
        %2641 = vmatpush.bf16.msra.mxu0 %v1756
        %2642 = vmatpush.bf16.msra.mxu0 %v1752
        %2643 = vmatmul.bf16.gmra.mxu0 %v2606
        %v2644 = vpop.f32.mrf.mxu0
        %v2645 = vadd.f32 0.0, %v2644
        %v2646 = vpop.f32.mrf.mxu0
        %v2647 = vadd.f32 0.0, %v2646
        %2648 = vdwg.mxu0
        %2649 = vmatpush.bf16.msra.mxu0 %v1781
        %2650 = vmatpush.bf16.msra.mxu0 %v1777
        %2651 = vmatpush.bf16.msra.mxu0 %v1773
        %2652 = vmatpush.bf16.msra.mxu0 %v1769
        %2653 = vmatpush.bf16.msra.mxu0 %v1765
        %2654 = vmatpush.bf16.msra.mxu0 %v1761
        %2655 = vmatpush.bf16.msra.mxu0 %v1757
        %2656 = vmatpush.bf16.msra.mxu0 %v1753
        %2657 = vmatmul.bf16.gmra.mxu0 %v2606
        %v2658 = vpop.f32.mrf.mxu0
        %v2659 = vadd.f32 0.0, %v2658
        %v2660 = vpop.f32.mrf.mxu0
        %v2661 = vadd.f32 0.0, %v2660
        %2662 = vdwg.mxu0
        %v2663 = vadd.f32 %v2598, %v2617
        %v2664 = vadd.f32 %v2599, %v2631
        %v2665 = vadd.f32 %v2600, %v2645
        %v2666 = vadd.f32 %v2601, %v2659
        %v2667 = vadd.f32 %v2602, %v2619
        %v2668 = vadd.f32 %v2603, %v2633
        %v2669 = vadd.f32 %v2604, %v2647
        %v2670 = vadd.f32 %v2605, %v2661
        %v2671 = vmul.f32 %v2586, 0.5
        %v2672 = vmul.f32 %v2590, 0.5
        %v2673 = vtanh.pop %v2671
        %v2674 = vtanh.pop %v2672
        %v2675 = vmul.f32 %v2673, 0.5
        %v2676 = vmul.f32 %v2674, 0.5
        %v2677 = vadd.f32 %v2675, 0.5
        %v2678 = vadd.f32 %v2676, 0.5
        %v2679 = vmul.f32 %v2587, 0.5
        %v2680 = vmul.f32 %v2591, 0.5
        %v2681 = vtanh.pop %v2679
        %v2682 = vtanh.pop %v2680
        %v2683 = vmul.f32 %v2681, 0.5
        %v2684 = vmul.f32 %v2682, 0.5
        %v2685 = vadd.f32 %v2683, 0.5
        %v2686 = vadd.f32 %v2684, 0.5
        %v2687 = vtanh.pop %v2588
        %v2688 = vtanh.pop %v2592
        %v2689 = vmul.f32 %v2589, 0.5
        %v2690 = vmul.f32 %v2593, 0.5
        %v2691 = vtanh.pop %v2689
        %v2692 = vtanh.pop %v2690
        %v2693 = vmul.f32 %v2691, 0.5
        %v2694 = vmul.f32 %v2692, 0.5
        %v2695 = vadd.f32 %v2693, 0.5
        %v2696 = vadd.f32 %v2694, 0.5
        %v2697 = vmul.f32 %v2685, %v2499
        %v2698 = vmul.f32 %v2686, %v2500
        %v2699 = vmul.f32 %v2677, %v2687
        %v2700 = vmul.f32 %v2678, %v2688
        %v2701 = vadd.f32 %v2697, %v2699
        %v2702 = vadd.f32 %v2698, %v2700
        %v2703 = vtanh.pop %v2701
        %v2704 = vtanh.pop %v2702
        %v2705 = vmul.f32 %v2695, %v2703
        %v2706 = vmul.f32 %v2696, %v2704
        %v2707 = vmul.f32 %v2663, 0.5
        %v2708 = vmul.f32 %v2667, 0.5
        %v2709 = vtanh.pop %v2707
        %v2710 = vtanh.pop %v2708
        %v2711 = vmul.f32 %v2709, 0.5
        %v2712 = vmul.f32 %v2710, 0.5
        %v2713 = vadd.f32 %v2711, 0.5
        %v2714 = vadd.f32 %v2712, 0.5
        %v2715 = vmul.f32 %v2664, 0.5
        %v2716 = vmul.f32 %v2668, 0.5
        %v2717 = vtanh.pop %v2715
        %v2718 = vtanh.pop %v2716
        %v2719 = vmul.f32 %v2717, 0.5
        %v2720 = vmul.f32 %v2718, 0.5
        %v2721 = vadd.f32 %v2719, 0.5
        %v2722 = vadd.f32 %v2720, 0.5
        %v2723 = vtanh.pop %v2665
        %v2724 = vtanh.pop %v2669
        %v2725 = vmul.f32 %v2666, 0.5
        %v2726 = vmul.f32 %v2670, 0.5
        %v2727 = vtanh.pop %v2725
        %v2728 = vtanh.pop %v2726
        %v2729 = vmul.f32 %v2727, 0.5
        %v2730 = vmul.f32 %v2728, 0.5
        %v2731 = vadd.f32 %v2729, 0.5
        %v2732 = vadd.f32 %v2730, 0.5
        %v2733 = vmul.f32 %v2721, %v2514
        %v2734 = vmul.f32 %v2722, %v2515
        %v2735 = vmul.f32 %v2713, %v2723
        %v2736 = vmul.f32 %v2714, %v2724
        %v2737 = vadd.f32 %v2733, %v2735
        %v2738 = vadd.f32 %v2734, %v2736
        %v2739 = vtanh.pop %v2737
        %v2740 = vtanh.pop %v2738
        %v2741 = vmul.f32 %v2731, %v2739
        %v2742 = vmul.f32 %v2732, %v2740
        %s2743 = sadd.s32 %s1330, 3
        %p2744 = scmp.lt.s32.totalorder %s2743, 9
        %s2745 = scalar_select %p2744, 1, 0
        %s2746 = scvt.s32.f32 %s2745
        %p2747 = scmp.ge.s32.totalorder %s2743, 3
        %s2748 = scalar_select %p2747, 1, 0
        %s2749 = scvt.s32.f32 %s2748
        %v2750 = vstv %s2746
        %v2751 = vmul.f32 %v2750, %v2705
        %v2752 = vmul.f32 %v2750, %v2706
        %s2753 = ssub.f32 1.0, %s2746
        %v2754 = vstv %s2753
        %v2755 = vmul.f32 %v2754, %v2493
        %v2756 = vmul.f32 %v2754, %v2494
        %v2757 = vadd.f32 %v2751, %v2755
        %v2758 = vadd.f32 %v2752, %v2756
        %v2759 = vmul.f32 %v2750, %v2701
        %v2760 = vmul.f32 %v2750, %v2702
        %v2761 = vmul.f32 %v2754, %v2499
        %v2762 = vmul.f32 %v2754, %v2500
        %v2763 = vadd.f32 %v2759, %v2761
        %v2764 = vadd.f32 %v2760, %v2762
        %v2765 = vstv %s2749
        %v2766 = vmul.f32 %v2765, %v2741
        %v2767 = vmul.f32 %v2765, %v2742
        %s2768 = ssub.f32 1.0, %s2749
        %v2769 = vstv %s2768
        %v2770 = vmul.f32 %v2769, %v2508
        %v2771 = vmul.f32 %v2769, %v2509
        %v2772 = vadd.f32 %v2766, %v2770
        %v2773 = vadd.f32 %v2767, %v2771
        %v2774 = vmul.f32 %v2765, %v2737
        %v2775 = vmul.f32 %v2765, %v2738
        %v2776 = vmul.f32 %v2769, %v2514
        %v2777 = vmul.f32 %v2769, %v2515
        %v2778 = vadd.f32 %v2774, %v2776
        %v2779 = vadd.f32 %v2775, %v2777
        %2780 = vst [vmem:[#allocation4] sm:$0xff] %v2757
        %2781 = vst [vmem:[#allocation4 + $0x8] sm:$0xff] %v2758
        %2782 = vst [vmem:[#allocation5] sm:$0xff] %v2763
        %2783 = vst [vmem:[#allocation5 + $0x8] sm:$0xff] %v2764
        %2784 = vst [vmem:[#allocation6] sm:$0xff] %v2772
        %2785 = vst [vmem:[#allocation6 + $0x8] sm:$0xff] %v2773
        %2786 = vst [vmem:[#allocation7] sm:$0xff] %v2778
        %2787 = vst [vmem:[#allocation7 + $0x8] sm:$0xff] %v2779
        %p2788 = scmp.eq.s32.totalorder %s32, 2
        // Predicated region
        $region105: #{tpu_custom_call.1} parent=63 // pred_check
          %p2789 = pneg %p2788
        $region106: #{tpu_custom_call.1} parent=63 // pred_check_branch
          %2791 = sbr.rel (%p2789) target = $region108
        $region107: #{tpu_custom_call.1} parent=63 // pred_region
          %v2792 = vld [vmem:[#allocation20] sm:$0xff]
          %v2793 = vld [vmem:[#allocation20 + $0x8] sm:$0xff]
          %v2794 = vld [vmem:[#allocation20 + $0x10] sm:$0xff]
          %v2795 = vld [vmem:[#allocation20 + $0x18] sm:$0xff]
          %v2796 = vld [vmem:[#allocation20 + $0x20] sm:$0xff]
          %v2797 = vld [vmem:[#allocation20 + $0x28] sm:$0xff]
          %v2798 = vld [vmem:[#allocation20 + $0x30] sm:$0xff]
          %v2799 = vld [vmem:[#allocation20 + $0x38] sm:$0xff]
          %v2800 = vld [vmem:[#allocation20 + $0x40] sm:$0xff]
          %v2801 = vld [vmem:[#allocation20 + $0x48] sm:$0xff]
          %v2802 = vld [vmem:[#allocation20 + $0x50] sm:$0xff]
          %v2803 = vld [vmem:[#allocation20 + $0x58] sm:$0xff]
          %v2804 = vld [vmem:[#allocation20 + $0x60] sm:$0xff]
          %v2805 = vld [vmem:[#allocation20 + $0x68] sm:$0xff]
          %v2806 = vld [vmem:[#allocation20 + $0x70] sm:$0xff]
          %v2807 = vld [vmem:[#allocation20 + $0x78] sm:$0xff]
          %v2808 = vld [vmem:[#allocation22] sm:$0xff]
          %v2809 = vld [vmem:[#allocation22 + $0x8] sm:$0xff]
          %v2810 = vld [vmem:[#allocation22 + $0x10] sm:$0xff]
          %v2811 = vld [vmem:[#allocation22 + $0x18] sm:$0xff]
          %v2812 = vld [vmem:[#allocation22 + $0x20] sm:$0xff]
          %v2813 = vld [vmem:[#allocation22 + $0x28] sm:$0xff]
          %v2814 = vld [vmem:[#allocation22 + $0x30] sm:$0xff]
          %v2815 = vld [vmem:[#allocation22 + $0x38] sm:$0xff]
          %v2816 = vld [vmem:[#allocation22 + $0x40] sm:$0xff]
          %v2817 = vld [vmem:[#allocation22 + $0x48] sm:$0xff]
          %v2818 = vld [vmem:[#allocation22 + $0x50] sm:$0xff]
          %v2819 = vld [vmem:[#allocation22 + $0x58] sm:$0xff]
          %v2820 = vld [vmem:[#allocation22 + $0x60] sm:$0xff]
          %v2821 = vld [vmem:[#allocation22 + $0x68] sm:$0xff]
          %v2822 = vld [vmem:[#allocation22 + $0x70] sm:$0xff]
          %v2823 = vld [vmem:[#allocation22 + $0x78] sm:$0xff]
          %2824 = vmatpush.msra.mxu0 %v2823
          %2825 = vmatpush.msra.mxu0 %v2822
          %2826 = vmatpush.msra.mxu0 %v2821
          %2827 = vmatpush.msra.mxu0 %v2820
          %2828 = vmatpush.msra.mxu0 %v2819
          %2829 = vmatpush.msra.mxu0 %v2818
          %2830 = vmatpush.msra.mxu0 %v2817
          %2831 = vmatpush.msra.mxu0 %v2816
          %2832 = vmatpush.msra.mxu0 %v2815
          %2833 = vmatpush.msra.mxu0 %v2814
          %2834 = vmatpush.msra.mxu0 %v2813
          %2835 = vmatpush.msra.mxu0 %v2812
          %2836 = vmatpush.msra.mxu0 %v2811
          %2837 = vmatpush.msra.mxu0 %v2810
          %2838 = vmatpush.msra.mxu0 %v2809
          %2839 = vmatpush.msra.mxu0 %v2808
          %2840 = vmatmul.f32.gmra.mxu0 %v2772
          %v2841 = vpop.f32.mrf.mxu0
          %v2842 = vadd.f32 0.0, %v2841
          %2843 = vmatmul.f32.gmra.mxu0 %v2773
          %v2844 = vpop.f32.mrf.mxu0
          %v2845 = vadd.f32 0.0, %v2844
          %2846 = vdwg.mxu0
          %2847 = vmatpush.msra.mxu0 %v2807
          %2848 = vmatpush.msra.mxu0 %v2806
          %2849 = vmatpush.msra.mxu0 %v2805
          %2850 = vmatpush.msra.mxu0 %v2804
          %2851 = vmatpush.msra.mxu0 %v2803
          %2852 = vmatpush.msra.mxu0 %v2802
          %2853 = vmatpush.msra.mxu0 %v2801
          %2854 = vmatpush.msra.mxu0 %v2800
          %2855 = vmatpush.msra.mxu0 %v2799
          %2856 = vmatpush.msra.mxu0 %v2798
          %2857 = vmatpush.msra.mxu0 %v2797
          %2858 = vmatpush.msra.mxu0 %v2796
          %2859 = vmatpush.msra.mxu0 %v2795
          %2860 = vmatpush.msra.mxu0 %v2794
          %2861 = vmatpush.msra.mxu0 %v2793
          %2862 = vmatpush.msra.mxu0 %v2792
          %2863 = vmatmul.f32.gmra.mxu0 %v2757
          %v2864 = vpop.f32.mrf.mxu0
          %v2865 = vadd.f32 %v2842, %v2864
          %2866 = vmatmul.f32.gmra.mxu0 %v2758
          %v2867 = vpop.f32.mrf.mxu0
          %v2868 = vadd.f32 %v2845, %v2867
          %2869 = vdwg.mxu0
          %v2870 = vld [vmem:[%s10] sm:$0x1]
          %v2872 = vperm.slane %v2870, 0
          %v2874 = vadd.f32 %v2865, %v2872
          %v2875 = vadd.f32 %v2868, %v2872
          %2876 = vst [vmem:[#allocation23] sm:$0xff] %v2874
          %2877 = vst [vmem:[#allocation23 + $0x8] sm:$0xff] %v2875
        $region108: #{tpu_custom_call.1} parent=63 // pred_fallthru
          _
        // Predicated region
        $region109: #{tpu_custom_call.1} parent=63 // pred_check
          %p2878 = pneg %p288
        $region110: #{tpu_custom_call.1} parent=63 // pred_check_branch
          %2880 = sbr.rel (%p2878) target = $region112
        $region111: #{tpu_custom_call.1} parent=63 // pred_region
          %2882 = vsyncadd [#allocation10], 0
          %s2883 = sshll.u32 [#allocation23], 4
          %s2884 = int_to_ptr.vmem [resolvable:$true] %s2883
          %s2885 = sshll.u32 %s11, 4
          %s2886 = int_to_ptr.hbm [resolvable:$true] %s2885
          %2891 = dma.vmem_to_hbm [thread:$0]  %s2884, 256, %s2886, [#allocation10], 128, 128, 8
        $region112: #{tpu_custom_call.1} parent=63 // pred_fallthru
          _
        // Predicated region
        $region113: #{tpu_custom_call.1} parent=63 // pred_check
          %p2892 = pneg %p288
        $region114: #{tpu_custom_call.1} parent=63 // pred_check_branch
          %2894 = sbr.rel (%p2892) target = $region116
        $region115: #{tpu_custom_call.1} parent=63 // pred_region
          %2896 = dma.done [#allocation10], 256
        $region116: #{tpu_custom_call.1} parent=63 // pred_fallthru
          _
      $region64: #{tpu_custom_call.1} parent=5 // pred_fallthru
        _
      %p2897 = scmp.le.s32.totalorder 2, %s27
      // Predicated region
      $region117: #{tpu_custom_call.1} parent=5 // pred_check
        %p2898 = pneg %p2897
      $region118: #{tpu_custom_call.1} parent=5 // pred_check_branch
        %2900 = sbr.rel (%p2898) target = $region120
      $region119: #{tpu_custom_call.1} parent=5 // pred_region
        %s2901 = ssub.s32 %s27, 2
      $region120: #{tpu_custom_call.1} parent=5 // pred_fallthru
        _
    $region6: #{tpu_custom_call.1} parent=1 // loop_footer
      %s31 = sadd.s32 1, %s27
    $region7: #{tpu_custom_call.1} parent=1 // loop_footer_branch
      %26 = sbr.rel target = $region3
    $region8: #{tpu_custom_call.1} parent=1 // loop_exit
      _
    %2902 = vsyncpa [#allocation9], 1
    %s2903 = scalar_lea.sflag [#allocation9], 1
    %2904 = vsyncpa %s2903, 1
    %2905 = vsyncpa [#allocation12], 1
    %s2906 = scalar_lea.sflag [#allocation12], 1
    %2907 = vsyncpa %s2906, 1
    %2908 = vsyncpa [#allocation15], 1
    %2909 = vsyncpa [#allocation18], 1
    %2910 = vsyncpa [#allocation21], 1
    %2911 = vsyncpa [#allocation10], 1
    %s2912 = scalar_lea.sflag [#allocation10], 1
    %2913 = vsyncpa %s2912, 1

</llo_original>
